<compile_context>
chip_gen: v7x
topology: tpu7x:2x2x1
jax: 0.10.0
libtpu: 0.0.40
codegen_flags: <defaults>
</compile_context>

<pallas_src>
import jax
import jax.numpy as jnp
from jax.experimental import pallas as pl
from jax.experimental.pallas import tpu as pltpu

# Flip to jnp.bfloat16 on v6e/v7x for higher MXU throughput (f32 accumulation
# is preserved; bias/ReLU/stats/softmax stay f32 everywhere).
MATMUL_DTYPE = jnp.float32

_HIDDEN = 512
# (context_size, dilation, per-tap input dim) for frame1..frame5
_FRAME_DEFS = (
    (5, 1, 23),
    (3, 2, _HIDDEN),
    (3, 3, _HIDDEN),
    (1, 1, _HIDDEN),
    (1, 1, _HIDDEN),
)
_LAYER_NAMES = ("frame1", "frame2", "frame3", "frame4", "frame5", "fc1", "fc2")


def _full_spec(shape):
    # whole-array block (gridless call) -> legal regardless of (8,128) divisibility
    return pl.BlockSpec(shape, lambda: (0,) * len(shape))


# ---------------------------------------------------------------------------
# Fused kernel: all 5 TDNN layers + stats pooling + FC + FC + softmax
# ---------------------------------------------------------------------------
def _make_fused_kernel(batch, frame_defs, compute_dtype):
    n_frames = len(frame_defs)

    def kernel(*refs):
        x_ref = refs[0]
        o_ref = refs[-1]
        wb = refs[1:-1]
        w_refs = wb[0::2]   # (K, N) weights, already transposed
        b_refs = wb[1::2]   # (1, N) biases, f32

        def tdnn_layer(h, w_ref, b_ref, ctx, dil, in_dim):
            # h: (T, in_dim) f32 -> returns (new_T, N) f32 (post-ReLU)
            t = h.shape[0]
            new_t = t - (ctx - 1) * dil
            n_out = w_ref.shape[1]
            if in_dim % 8 == 0:
                # Per-tap shifted-slice matmuls accumulated in f32; weight row
                # slices are sublane-aligned (in_dim multiple of 8).
                acc = jnp.zeros((new_t, n_out), jnp.float32)
                for k in range(ctx):
                    xs = h[k * dil:k * dil + new_t, :].astype(compute_dtype)
                    wk = w_refs_slice = w_ref[k * in_dim:(k + 1) * in_dim, :]
                    acc = acc + jnp.dot(xs, wk,
                                        preferred_element_type=jnp.float32)
            else:
                # frame1 (in_dim=23): build the tiny unfolded block in VMEM and
                # do a single K=115 matmul.
                unfolded = jnp.concatenate(
                    [h[k * dil:k * dil + new_t, :] for k in range(ctx)],
                    axis=1).astype(compute_dtype)
                acc = jnp.dot(unfolded, w_ref[...],
                              preferred_element_type=jnp.float32)
            return jnp.maximum(acc + b_ref[...], 0.0)

        # ---- frame layers + stats pooling, per batch element (2-D matmuls) --
        pooled_rows = []
        for b in range(batch):
            h = x_ref[b].astype(jnp.float32)          # (T, in_dim)
            for li, (ctx, dil, in_dim) in enumerate(frame_defs):
                h = tdnn_layer(h, w_refs[li], b_refs[li], ctx, dil, in_dim)
            t5 = h.shape[0]
            mean = jnp.mean(h, axis=0, keepdims=True)               # (1, 512)
            diff = h - mean
            var = jnp.sum(diff * diff, axis=0, keepdims=True) / float(t5 - 1)
            pooled_rows.append(mean + jnp.sqrt(var))                # mean + unbiased std
        pooled = (pooled_rows[0] if batch == 1
                  else jnp.concatenate(pooled_rows, axis=0))        # (B, 512)

        # ---- FullyConnected head (dropout = identity at inference) ----------
        wf1, bf1 = w_refs[n_frames], b_refs[n_frames]
        wf2, bf2 = w_refs[n_frames + 1], b_refs[n_frames + 1]
        z = jnp.dot(pooled.astype(compute_dtype), wf1[...],
                    preferred_element_type=jnp.float32) + bf1[...]
        z = jnp.dot(z.astype(compute_dtype), wf2[...],
                    preferred_element_type=jnp.float32) + bf2[...]

        # ---- softmax over features (torch dim=1 of a (B, 512) tensor) -------
        m = jnp.max(z, axis=-1, keepdims=True)
        e = jnp.exp(z - m)
        probs = e / jnp.sum(e, axis=-1, keepdims=True)
        o_ref[...] = probs.astype(o_ref.dtype)

    return kernel


def fused_xvector(x, params, compute_dtype=MATMUL_DTYPE):
    B, T, D = x.shape

    flat = [x]
    for name in _LAYER_NAMES:
        w_t, bias = params[name]
        flat.append(w_t.astype(compute_dtype))
        flat.append(bias.reshape(1, -1).astype(jnp.float32))

    # Cost estimate (advisory).
    flops = 0
    t_cur = T
    for (ctx, dil, in_dim) in _FRAME_DEFS:
        new_t = t_cur - (ctx - 1) * dil
        flops += 2 * B * new_t * (ctx * in_dim) * _HIDDEN
        t_cur = new_t
    flops += 2 * B * _HIDDEN * _HIDDEN * 2                    # fc1 + fc2
    bytes_accessed = (sum(int(a.size) * a.dtype.itemsize for a in flat)
                      + B * _HIDDEN * 4)

    kernel = _make_fused_kernel(B, _FRAME_DEFS, compute_dtype)
    return pl.pallas_call(
        kernel,
        out_shape=jax.ShapeDtypeStruct((B, _HIDDEN), jnp.float32),
        in_specs=[_full_spec(a.shape) for a in flat],
        out_specs=_full_spec((B, _HIDDEN)),
        compiler_params=pltpu.CompilerParams(
            vmem_limit_bytes=32 * 1024 * 1024),   # fits ~11 MB weights + acts on v5e too
        cost_estimate=pl.CostEstimate(
            flops=flops,
            transcendentals=2 * B * _HIDDEN,      # exp + sqrt
            bytes_accessed=bytes_accessed),
    )(*flat)


def my_model(x, params):
    return fused_xvector(x, params)


# ---------------------------------------------------------------------------
# Parameters (deterministic init mimicking nn.Linear default U(-1/sqrt(k), ..))
# Weights are stored pre-transposed in (K, N) layout (transposed ONCE here).
# ---------------------------------------------------------------------------
def init_linear_t(key, in_f, out_f):
    kw, kb = jax.random.split(key)
    bound = 1.0 / (in_f ** 0.5)
    w = jax.random.uniform(kw, (out_f, in_f), jnp.float32, -bound, bound)
    b = jax.random.uniform(kb, (out_f,), jnp.float32, -bound, bound)
    return jnp.transpose(w), b


def init_params(key):
    keys = jax.random.split(key, 7)
    return {
        "frame1": init_linear_t(keys[0], 23 * 5, _HIDDEN),
        "frame2": init_linear_t(keys[1], _HIDDEN * 3, _HIDDEN),
        "frame3": init_linear_t(keys[2], _HIDDEN * 3, _HIDDEN),
        "frame4": init_linear_t(keys[3], _HIDDEN * 1, _HIDDEN),
        "frame5": init_linear_t(keys[4], _HIDDEN * 1, _HIDDEN),
        "fc1": init_linear_t(keys[5], _HIDDEN, _HIDDEN),
        "fc2": init_linear_t(keys[6], _HIDDEN, _HIDDEN),
    }


# ---------------------------------------------------------------------------
# Pure-JAX reference (same math, unfused) for a correctness sanity check.
# ---------------------------------------------------------------------------
def reference_forward(x, params):
    def unfold(h, ctx, dil):
        _, t, _ = h.shape
        new_t = t - (ctx - 1) * dil
        return jnp.concatenate(
            [h[:, k * dil:k * dil + new_t, :] for k in range(ctx)], axis=-1)

    h = x
    for name, (ctx, dil, _) in zip(_LAYER_NAMES[:5], _FRAME_DEFS):
        w_t, b = params[name]
        hu = unfold(h, ctx, dil)
        h = jax.nn.relu(jnp.einsum("btk,kn->btn", hu, w_t) + b)
    mean = h.mean(axis=1)
    var = jnp.sum((h - mean[:, None, :]) ** 2, axis=1) / (h.shape[1] - 1)
    pooled = mean + jnp.sqrt(var)
    w1, b1 = params["fc1"]
    w2, b2 = params["fc2"]
    z = pooled @ w1 + b1
    z = z @ w2 + b2
    return jax.nn.softmax(z, axis=1)


if __name__ == "__main__":
    key = jax.random.PRNGKey(0)
    k_param, k_x = jax.random.split(key)
    params = init_params(k_param)

    # (batch=2, seq_len=32, input_dim=23); time shrinks 32 -> 28 -> 24 -> 18
    x = jax.random.normal(k_x, (2, 32, 23), dtype=jnp.float32)

    out = jax.jit(my_model)(x, params)
    out = jax.block_until_ready(out)

    assert out.shape == (2, 512), out.shape
    assert bool(jnp.all(jnp.isfinite(out)))
    # softmax rows sum to 1
    assert bool(jnp.allclose(jnp.sum(out, axis=1), 1.0, atol=1e-4))

    # numerical check vs. unfused pure-JAX reference (tolerant of matmul
    # precision/ordering differences between XLA and Mosaic)
    ref = jax.block_until_ready(reference_forward(x, params))
    assert bool(jnp.allclose(out, ref, rtol=5e-2, atol=1e-6)), \
        float(jnp.max(jnp.abs(out - ref)))

    print("KERNEL_OK")
</pallas_src>

<mosaic_0001>
module attributes {stable_mosaic.version = 11 : i64} {
  func.func @kernel(%arg0: memref<2x32x23xf32, #tpu.memory_space<vmem>>, %arg1: memref<115x512xf32, #tpu.memory_space<vmem>>, %arg2: memref<1x512xf32, #tpu.memory_space<vmem>>, %arg3: memref<1536x512xf32, #tpu.memory_space<vmem>>, %arg4: memref<1x512xf32, #tpu.memory_space<vmem>>, %arg5: memref<1536x512xf32, #tpu.memory_space<vmem>>, %arg6: memref<1x512xf32, #tpu.memory_space<vmem>>, %arg7: memref<512x512xf32, #tpu.memory_space<vmem>>, %arg8: memref<1x512xf32, #tpu.memory_space<vmem>>, %arg9: memref<512x512xf32, #tpu.memory_space<vmem>>, %arg10: memref<1x512xf32, #tpu.memory_space<vmem>>, %arg11: memref<512x512xf32, #tpu.memory_space<vmem>>, %arg12: memref<1x512xf32, #tpu.memory_space<vmem>>, %arg13: memref<512x512xf32, #tpu.memory_space<vmem>>, %arg14: memref<1x512xf32, #tpu.memory_space<vmem>>, %arg15: memref<2x512xf32, #tpu.memory_space<vmem>>) attributes {dimension_semantics = [], scalar_prefetch = 0 : i64, scratch_operands = 0 : i64, tpu.core_type = #tpu.core_type<tc>} {
    %c0 = arith.constant 0 : index
    %c0_0 = arith.constant 0 : index
    %c0_1 = arith.constant 0 : index
    %0 = vector.load %arg0[%c0, %c0_0, %c0_1] : memref<2x32x23xf32, #tpu.memory_space<vmem>>, vector<1x32x23xf32>
    %1 = vector.shape_cast %0 : vector<1x32x23xf32> to vector<32x23xf32>
    %2 = vector.extract_strided_slice %1 {offsets = [0, 0], sizes = [28, 23], strides = [1, 1]} : vector<32x23xf32> to vector<28x23xf32>
    %3 = vector.extract_strided_slice %1 {offsets = [1, 0], sizes = [28, 23], strides = [1, 1]} : vector<32x23xf32> to vector<28x23xf32>
    %4 = vector.extract_strided_slice %1 {offsets = [2, 0], sizes = [28, 23], strides = [1, 1]} : vector<32x23xf32> to vector<28x23xf32>
    %5 = vector.extract_strided_slice %1 {offsets = [3, 0], sizes = [28, 23], strides = [1, 1]} : vector<32x23xf32> to vector<28x23xf32>
    %6 = vector.extract_strided_slice %1 {offsets = [4, 0], sizes = [28, 23], strides = [1, 1]} : vector<32x23xf32> to vector<28x23xf32>
    %7 = tpu.concatenate %2, %3, %4, %5, %6 in 1 : vector<28x23xf32>, vector<28x23xf32>, vector<28x23xf32>, vector<28x23xf32>, vector<28x23xf32> -> vector<28x115xf32>
    %c0_2 = arith.constant 0 : index
    %c0_3 = arith.constant 0 : index
    %8 = vector.load %arg1[%c0_2, %c0_3] : memref<115x512xf32, #tpu.memory_space<vmem>>, vector<115x512xf32>
    %cst = arith.constant dense<0.000000e+00> : vector<28x512xf32>
    %9 = tpu.matmul %7, %8, %cst {dimension_numbers = #tpu.dot_dimension_numbers<[1], [0], [0], [1], [0, 0, 1, 1], [], []>} : vector<28x115xf32>, vector<115x512xf32>, vector<28x512xf32> -> vector<28x512xf32>
    %c0_4 = arith.constant 0 : index
    %c0_5 = arith.constant 0 : index
    %10 = vector.load %arg2[%c0_4, %c0_5] : memref<1x512xf32, #tpu.memory_space<vmem>>, vector<1x512xf32>
    %11 = vector.broadcast %10 : vector<1x512xf32> to vector<28x512xf32>
    %12 = arith.addf %9, %11 : vector<28x512xf32>
    %cst_6 = arith.constant 0.000000e+00 : f32
    %13 = vector.broadcast %cst_6 : f32 to vector<28x512xf32>
    %14 = arith.maximumf %12, %13 : vector<28x512xf32>
    %cst_7 = arith.constant 0.000000e+00 : f32
    %15 = vector.broadcast %cst_7 : f32 to vector<24x512xf32>
    %16 = vector.extract_strided_slice %14 {offsets = [0, 0], sizes = [24, 512], strides = [1, 1]} : vector<28x512xf32> to vector<24x512xf32>
    %c0_8 = arith.constant 0 : index
    %c0_9 = arith.constant 0 : index
    %17 = vector.load %arg3[%c0_8, %c0_9] : memref<1536x512xf32, #tpu.memory_space<vmem>>, vector<512x512xf32>
    %cst_10 = arith.constant dense<0.000000e+00> : vector<24x512xf32>
    %18 = tpu.matmul %16, %17, %cst_10 {dimension_numbers = #tpu.dot_dimension_numbers<[1], [0], [0], [1], [0, 0, 1, 1], [], []>} : vector<24x512xf32>, vector<512x512xf32>, vector<24x512xf32> -> vector<24x512xf32>
    %19 = arith.addf %15, %18 : vector<24x512xf32>
    %20 = vector.extract_strided_slice %14 {offsets = [2, 0], sizes = [24, 512], strides = [1, 1]} : vector<28x512xf32> to vector<24x512xf32>
    %c512 = arith.constant 512 : index
    %c0_11 = arith.constant 0 : index
    %21 = vector.load %arg3[%c512, %c0_11] : memref<1536x512xf32, #tpu.memory_space<vmem>>, vector<512x512xf32>
    %cst_12 = arith.constant dense<0.000000e+00> : vector<24x512xf32>
    %22 = tpu.matmul %20, %21, %cst_12 {dimension_numbers = #tpu.dot_dimension_numbers<[1], [0], [0], [1], [0, 0, 1, 1], [], []>} : vector<24x512xf32>, vector<512x512xf32>, vector<24x512xf32> -> vector<24x512xf32>
    %23 = arith.addf %19, %22 : vector<24x512xf32>
    %24 = vector.extract_strided_slice %14 {offsets = [4, 0], sizes = [24, 512], strides = [1, 1]} : vector<28x512xf32> to vector<24x512xf32>
    %c1024 = arith.constant 1024 : index
    %c0_13 = arith.constant 0 : index
    %25 = vector.load %arg3[%c1024, %c0_13] : memref<1536x512xf32, #tpu.memory_space<vmem>>, vector<512x512xf32>
    %cst_14 = arith.constant dense<0.000000e+00> : vector<24x512xf32>
    %26 = tpu.matmul %24, %25, %cst_14 {dimension_numbers = #tpu.dot_dimension_numbers<[1], [0], [0], [1], [0, 0, 1, 1], [], []>} : vector<24x512xf32>, vector<512x512xf32>, vector<24x512xf32> -> vector<24x512xf32>
    %27 = arith.addf %23, %26 : vector<24x512xf32>
    %c0_15 = arith.constant 0 : index
    %c0_16 = arith.constant 0 : index
    %28 = vector.load %arg4[%c0_15, %c0_16] : memref<1x512xf32, #tpu.memory_space<vmem>>, vector<1x512xf32>
    %29 = vector.broadcast %28 : vector<1x512xf32> to vector<24x512xf32>
    %30 = arith.addf %27, %29 : vector<24x512xf32>
    %cst_17 = arith.constant 0.000000e+00 : f32
    %31 = vector.broadcast %cst_17 : f32 to vector<24x512xf32>
    %32 = arith.maximumf %30, %31 : vector<24x512xf32>
    %cst_18 = arith.constant 0.000000e+00 : f32
    %33 = vector.broadcast %cst_18 : f32 to vector<18x512xf32>
    %34 = vector.extract_strided_slice %32 {offsets = [0, 0], sizes = [18, 512], strides = [1, 1]} : vector<24x512xf32> to vector<18x512xf32>
    %c0_19 = arith.constant 0 : index
    %c0_20 = arith.constant 0 : index
    %35 = vector.load %arg5[%c0_19, %c0_20] : memref<1536x512xf32, #tpu.memory_space<vmem>>, vector<512x512xf32>
    %cst_21 = arith.constant dense<0.000000e+00> : vector<18x512xf32>
    %36 = tpu.matmul %34, %35, %cst_21 {dimension_numbers = #tpu.dot_dimension_numbers<[1], [0], [0], [1], [0, 0, 1, 1], [], []>} : vector<18x512xf32>, vector<512x512xf32>, vector<18x512xf32> -> vector<18x512xf32>
    %37 = arith.addf %33, %36 : vector<18x512xf32>
    %38 = vector.extract_strided_slice %32 {offsets = [3, 0], sizes = [18, 512], strides = [1, 1]} : vector<24x512xf32> to vector<18x512xf32>
    %c512_22 = arith.constant 512 : index
    %c0_23 = arith.constant 0 : index
    %39 = vector.load %arg5[%c512_22, %c0_23] : memref<1536x512xf32, #tpu.memory_space<vmem>>, vector<512x512xf32>
    %cst_24 = arith.constant dense<0.000000e+00> : vector<18x512xf32>
    %40 = tpu.matmul %38, %39, %cst_24 {dimension_numbers = #tpu.dot_dimension_numbers<[1], [0], [0], [1], [0, 0, 1, 1], [], []>} : vector<18x512xf32>, vector<512x512xf32>, vector<18x512xf32> -> vector<18x512xf32>
    %41 = arith.addf %37, %40 : vector<18x512xf32>
    %42 = vector.extract_strided_slice %32 {offsets = [6, 0], sizes = [18, 512], strides = [1, 1]} : vector<24x512xf32> to vector<18x512xf32>
    %c1024_25 = arith.constant 1024 : index
    %c0_26 = arith.constant 0 : index
    %43 = vector.load %arg5[%c1024_25, %c0_26] : memref<1536x512xf32, #tpu.memory_space<vmem>>, vector<512x512xf32>
    %cst_27 = arith.constant dense<0.000000e+00> : vector<18x512xf32>
    %44 = tpu.matmul %42, %43, %cst_27 {dimension_numbers = #tpu.dot_dimension_numbers<[1], [0], [0], [1], [0, 0, 1, 1], [], []>} : vector<18x512xf32>, vector<512x512xf32>, vector<18x512xf32> -> vector<18x512xf32>
    %45 = arith.addf %41, %44 : vector<18x512xf32>
    %c0_28 = arith.constant 0 : index
    %c0_29 = arith.constant 0 : index
    %46 = vector.load %arg6[%c0_28, %c0_29] : memref<1x512xf32, #tpu.memory_space<vmem>>, vector<1x512xf32>
    %47 = vector.broadcast %46 : vector<1x512xf32> to vector<18x512xf32>
    %48 = arith.addf %45, %47 : vector<18x512xf32>
    %cst_30 = arith.constant 0.000000e+00 : f32
    %49 = vector.broadcast %cst_30 : f32 to vector<18x512xf32>
    %50 = arith.maximumf %48, %49 : vector<18x512xf32>
    %cst_31 = arith.constant 0.000000e+00 : f32
    %51 = vector.broadcast %cst_31 : f32 to vector<18x512xf32>
    %c0_32 = arith.constant 0 : index
    %c0_33 = arith.constant 0 : index
    %52 = vector.load %arg7[%c0_32, %c0_33] : memref<512x512xf32, #tpu.memory_space<vmem>>, vector<512x512xf32>
    %cst_34 = arith.constant dense<0.000000e+00> : vector<18x512xf32>
    %53 = tpu.matmul %50, %52, %cst_34 {dimension_numbers = #tpu.dot_dimension_numbers<[1], [0], [0], [1], [0, 0, 1, 1], [], []>} : vector<18x512xf32>, vector<512x512xf32>, vector<18x512xf32> -> vector<18x512xf32>
    %54 = arith.addf %51, %53 : vector<18x512xf32>
    %c0_35 = arith.constant 0 : index
    %c0_36 = arith.constant 0 : index
    %55 = vector.load %arg8[%c0_35, %c0_36] : memref<1x512xf32, #tpu.memory_space<vmem>>, vector<1x512xf32>
    %56 = vector.broadcast %55 : vector<1x512xf32> to vector<18x512xf32>
    %57 = arith.addf %54, %56 : vector<18x512xf32>
    %cst_37 = arith.constant 0.000000e+00 : f32
    %58 = vector.broadcast %cst_37 : f32 to vector<18x512xf32>
    %59 = arith.maximumf %57, %58 : vector<18x512xf32>
    %cst_38 = arith.constant 0.000000e+00 : f32
    %60 = vector.broadcast %cst_38 : f32 to vector<18x512xf32>
    %c0_39 = arith.constant 0 : index
    %c0_40 = arith.constant 0 : index
    %61 = vector.load %arg9[%c0_39, %c0_40] : memref<512x512xf32, #tpu.memory_space<vmem>>, vector<512x512xf32>
    %cst_41 = arith.constant dense<0.000000e+00> : vector<18x512xf32>
    %62 = tpu.matmul %59, %61, %cst_41 {dimension_numbers = #tpu.dot_dimension_numbers<[1], [0], [0], [1], [0, 0, 1, 1], [], []>} : vector<18x512xf32>, vector<512x512xf32>, vector<18x512xf32> -> vector<18x512xf32>
    %63 = arith.addf %60, %62 : vector<18x512xf32>
    %c0_42 = arith.constant 0 : index
    %c0_43 = arith.constant 0 : index
    %64 = vector.load %arg10[%c0_42, %c0_43] : memref<1x512xf32, #tpu.memory_space<vmem>>, vector<1x512xf32>
    %65 = vector.broadcast %64 : vector<1x512xf32> to vector<18x512xf32>
    %66 = arith.addf %63, %65 : vector<18x512xf32>
    %cst_44 = arith.constant 0.000000e+00 : f32
    %67 = vector.broadcast %cst_44 : f32 to vector<18x512xf32>
    %68 = arith.maximumf %66, %67 : vector<18x512xf32>
    %cst_45 = arith.constant dense<0.000000e+00> : vector<512xf32>
    %69 = vector.multi_reduction <add>, %68, %cst_45 [0] : vector<18x512xf32> to vector<512xf32>
    %70 = vector.shape_cast %69 : vector<512xf32> to vector<1x512xf32>
    %cst_46 = arith.constant 1.800000e+01 : f32
    %71 = vector.broadcast %cst_46 : f32 to vector<1x512xf32>
    %72 = arith.divf %70, %71 : vector<1x512xf32>
    %73 = vector.broadcast %72 : vector<1x512xf32> to vector<18x512xf32>
    %74 = arith.subf %68, %73 : vector<18x512xf32>
    %75 = arith.mulf %74, %74 : vector<18x512xf32>
    %cst_47 = arith.constant dense<0.000000e+00> : vector<512xf32>
    %76 = vector.multi_reduction <add>, %75, %cst_47 [0] : vector<18x512xf32> to vector<512xf32>
    %77 = vector.shape_cast %76 : vector<512xf32> to vector<1x512xf32>
    %cst_48 = arith.constant 1.700000e+01 : f32
    %78 = vector.broadcast %cst_48 : f32 to vector<1x512xf32>
    %79 = arith.divf %77, %78 : vector<1x512xf32>
    %80 = math.sqrt %79 : vector<1x512xf32>
    %81 = arith.addf %72, %80 : vector<1x512xf32>
    %c1 = arith.constant 1 : index
    %c0_49 = arith.constant 0 : index
    %c0_50 = arith.constant 0 : index
    %82 = vector.load %arg0[%c1, %c0_49, %c0_50] : memref<2x32x23xf32, #tpu.memory_space<vmem>>, vector<1x32x23xf32>
    %83 = vector.shape_cast %82 : vector<1x32x23xf32> to vector<32x23xf32>
    %84 = vector.extract_strided_slice %83 {offsets = [0, 0], sizes = [28, 23], strides = [1, 1]} : vector<32x23xf32> to vector<28x23xf32>
    %85 = vector.extract_strided_slice %83 {offsets = [1, 0], sizes = [28, 23], strides = [1, 1]} : vector<32x23xf32> to vector<28x23xf32>
    %86 = vector.extract_strided_slice %83 {offsets = [2, 0], sizes = [28, 23], strides = [1, 1]} : vector<32x23xf32> to vector<28x23xf32>
    %87 = vector.extract_strided_slice %83 {offsets = [3, 0], sizes = [28, 23], strides = [1, 1]} : vector<32x23xf32> to vector<28x23xf32>
    %88 = vector.extract_strided_slice %83 {offsets = [4, 0], sizes = [28, 23], strides = [1, 1]} : vector<32x23xf32> to vector<28x23xf32>
    %89 = tpu.concatenate %84, %85, %86, %87, %88 in 1 : vector<28x23xf32>, vector<28x23xf32>, vector<28x23xf32>, vector<28x23xf32>, vector<28x23xf32> -> vector<28x115xf32>
    %c0_51 = arith.constant 0 : index
    %c0_52 = arith.constant 0 : index
    %90 = vector.load %arg1[%c0_51, %c0_52] : memref<115x512xf32, #tpu.memory_space<vmem>>, vector<115x512xf32>
    %cst_53 = arith.constant dense<0.000000e+00> : vector<28x512xf32>
    %91 = tpu.matmul %89, %90, %cst_53 {dimension_numbers = #tpu.dot_dimension_numbers<[1], [0], [0], [1], [0, 0, 1, 1], [], []>} : vector<28x115xf32>, vector<115x512xf32>, vector<28x512xf32> -> vector<28x512xf32>
    %c0_54 = arith.constant 0 : index
    %c0_55 = arith.constant 0 : index
    %92 = vector.load %arg2[%c0_54, %c0_55] : memref<1x512xf32, #tpu.memory_space<vmem>>, vector<1x512xf32>
    %93 = vector.broadcast %92 : vector<1x512xf32> to vector<28x512xf32>
    %94 = arith.addf %91, %93 : vector<28x512xf32>
    %cst_56 = arith.constant 0.000000e+00 : f32
    %95 = vector.broadcast %cst_56 : f32 to vector<28x512xf32>
    %96 = arith.maximumf %94, %95 : vector<28x512xf32>
    %cst_57 = arith.constant 0.000000e+00 : f32
    %97 = vector.broadcast %cst_57 : f32 to vector<24x512xf32>
    %98 = vector.extract_strided_slice %96 {offsets = [0, 0], sizes = [24, 512], strides = [1, 1]} : vector<28x512xf32> to vector<24x512xf32>
    %c0_58 = arith.constant 0 : index
    %c0_59 = arith.constant 0 : index
    %99 = vector.load %arg3[%c0_58, %c0_59] : memref<1536x512xf32, #tpu.memory_space<vmem>>, vector<512x512xf32>
    %cst_60 = arith.constant dense<0.000000e+00> : vector<24x512xf32>
    %100 = tpu.matmul %98, %99, %cst_60 {dimension_numbers = #tpu.dot_dimension_numbers<[1], [0], [0], [1], [0, 0, 1, 1], [], []>} : vector<24x512xf32>, vector<512x512xf32>, vector<24x512xf32> -> vector<24x512xf32>
    %101 = arith.addf %97, %100 : vector<24x512xf32>
    %102 = vector.extract_strided_slice %96 {offsets = [2, 0], sizes = [24, 512], strides = [1, 1]} : vector<28x512xf32> to vector<24x512xf32>
    %c512_61 = arith.constant 512 : index
    %c0_62 = arith.constant 0 : index
    %103 = vector.load %arg3[%c512_61, %c0_62] : memref<1536x512xf32, #tpu.memory_space<vmem>>, vector<512x512xf32>
    %cst_63 = arith.constant dense<0.000000e+00> : vector<24x512xf32>
    %104 = tpu.matmul %102, %103, %cst_63 {dimension_numbers = #tpu.dot_dimension_numbers<[1], [0], [0], [1], [0, 0, 1, 1], [], []>} : vector<24x512xf32>, vector<512x512xf32>, vector<24x512xf32> -> vector<24x512xf32>
    %105 = arith.addf %101, %104 : vector<24x512xf32>
    %106 = vector.extract_strided_slice %96 {offsets = [4, 0], sizes = [24, 512], strides = [1, 1]} : vector<28x512xf32> to vector<24x512xf32>
    %c1024_64 = arith.constant 1024 : index
    %c0_65 = arith.constant 0 : index
    %107 = vector.load %arg3[%c1024_64, %c0_65] : memref<1536x512xf32, #tpu.memory_space<vmem>>, vector<512x512xf32>
    %cst_66 = arith.constant dense<0.000000e+00> : vector<24x512xf32>
    %108 = tpu.matmul %106, %107, %cst_66 {dimension_numbers = #tpu.dot_dimension_numbers<[1], [0], [0], [1], [0, 0, 1, 1], [], []>} : vector<24x512xf32>, vector<512x512xf32>, vector<24x512xf32> -> vector<24x512xf32>
    %109 = arith.addf %105, %108 : vector<24x512xf32>
    %c0_67 = arith.constant 0 : index
    %c0_68 = arith.constant 0 : index
    %110 = vector.load %arg4[%c0_67, %c0_68] : memref<1x512xf32, #tpu.memory_space<vmem>>, vector<1x512xf32>
    %111 = vector.broadcast %110 : vector<1x512xf32> to vector<24x512xf32>
    %112 = arith.addf %109, %111 : vector<24x512xf32>
    %cst_69 = arith.constant 0.000000e+00 : f32
    %113 = vector.broadcast %cst_69 : f32 to vector<24x512xf32>
    %114 = arith.maximumf %112, %113 : vector<24x512xf32>
    %cst_70 = arith.constant 0.000000e+00 : f32
    %115 = vector.broadcast %cst_70 : f32 to vector<18x512xf32>
    %116 = vector.extract_strided_slice %114 {offsets = [0, 0], sizes = [18, 512], strides = [1, 1]} : vector<24x512xf32> to vector<18x512xf32>
    %c0_71 = arith.constant 0 : index
    %c0_72 = arith.constant 0 : index
    %117 = vector.load %arg5[%c0_71, %c0_72] : memref<1536x512xf32, #tpu.memory_space<vmem>>, vector<512x512xf32>
    %cst_73 = arith.constant dense<0.000000e+00> : vector<18x512xf32>
    %118 = tpu.matmul %116, %117, %cst_73 {dimension_numbers = #tpu.dot_dimension_numbers<[1], [0], [0], [1], [0, 0, 1, 1], [], []>} : vector<18x512xf32>, vector<512x512xf32>, vector<18x512xf32> -> vector<18x512xf32>
    %119 = arith.addf %115, %118 : vector<18x512xf32>
    %120 = vector.extract_strided_slice %114 {offsets = [3, 0], sizes = [18, 512], strides = [1, 1]} : vector<24x512xf32> to vector<18x512xf32>
    %c512_74 = arith.constant 512 : index
    %c0_75 = arith.constant 0 : index
    %121 = vector.load %arg5[%c512_74, %c0_75] : memref<1536x512xf32, #tpu.memory_space<vmem>>, vector<512x512xf32>
    %cst_76 = arith.constant dense<0.000000e+00> : vector<18x512xf32>
    %122 = tpu.matmul %120, %121, %cst_76 {dimension_numbers = #tpu.dot_dimension_numbers<[1], [0], [0], [1], [0, 0, 1, 1], [], []>} : vector<18x512xf32>, vector<512x512xf32>, vector<18x512xf32> -> vector<18x512xf32>
    %123 = arith.addf %119, %122 : vector<18x512xf32>
    %124 = vector.extract_strided_slice %114 {offsets = [6, 0], sizes = [18, 512], strides = [1, 1]} : vector<24x512xf32> to vector<18x512xf32>
    %c1024_77 = arith.constant 1024 : index
    %c0_78 = arith.constant 0 : index
    %125 = vector.load %arg5[%c1024_77, %c0_78] : memref<1536x512xf32, #tpu.memory_space<vmem>>, vector<512x512xf32>
    %cst_79 = arith.constant dense<0.000000e+00> : vector<18x512xf32>
    %126 = tpu.matmul %124, %125, %cst_79 {dimension_numbers = #tpu.dot_dimension_numbers<[1], [0], [0], [1], [0, 0, 1, 1], [], []>} : vector<18x512xf32>, vector<512x512xf32>, vector<18x512xf32> -> vector<18x512xf32>
    %127 = arith.addf %123, %126 : vector<18x512xf32>
    %c0_80 = arith.constant 0 : index
    %c0_81 = arith.constant 0 : index
    %128 = vector.load %arg6[%c0_80, %c0_81] : memref<1x512xf32, #tpu.memory_space<vmem>>, vector<1x512xf32>
    %129 = vector.broadcast %128 : vector<1x512xf32> to vector<18x512xf32>
    %130 = arith.addf %127, %129 : vector<18x512xf32>
    %cst_82 = arith.constant 0.000000e+00 : f32
    %131 = vector.broadcast %cst_82 : f32 to vector<18x512xf32>
    %132 = arith.maximumf %130, %131 : vector<18x512xf32>
    %cst_83 = arith.constant 0.000000e+00 : f32
    %133 = vector.broadcast %cst_83 : f32 to vector<18x512xf32>
    %c0_84 = arith.constant 0 : index
    %c0_85 = arith.constant 0 : index
    %134 = vector.load %arg7[%c0_84, %c0_85] : memref<512x512xf32, #tpu.memory_space<vmem>>, vector<512x512xf32>
    %cst_86 = arith.constant dense<0.000000e+00> : vector<18x512xf32>
    %135 = tpu.matmul %132, %134, %cst_86 {dimension_numbers = #tpu.dot_dimension_numbers<[1], [0], [0], [1], [0, 0, 1, 1], [], []>} : vector<18x512xf32>, vector<512x512xf32>, vector<18x512xf32> -> vector<18x512xf32>
    %136 = arith.addf %133, %135 : vector<18x512xf32>
    %c0_87 = arith.constant 0 : index
    %c0_88 = arith.constant 0 : index
    %137 = vector.load %arg8[%c0_87, %c0_88] : memref<1x512xf32, #tpu.memory_space<vmem>>, vector<1x512xf32>
    %138 = vector.broadcast %137 : vector<1x512xf32> to vector<18x512xf32>
    %139 = arith.addf %136, %138 : vector<18x512xf32>
    %cst_89 = arith.constant 0.000000e+00 : f32
    %140 = vector.broadcast %cst_89 : f32 to vector<18x512xf32>
    %141 = arith.maximumf %139, %140 : vector<18x512xf32>
    %cst_90 = arith.constant 0.000000e+00 : f32
    %142 = vector.broadcast %cst_90 : f32 to vector<18x512xf32>
    %c0_91 = arith.constant 0 : index
    %c0_92 = arith.constant 0 : index
    %143 = vector.load %arg9[%c0_91, %c0_92] : memref<512x512xf32, #tpu.memory_space<vmem>>, vector<512x512xf32>
    %cst_93 = arith.constant dense<0.000000e+00> : vector<18x512xf32>
    %144 = tpu.matmul %141, %143, %cst_93 {dimension_numbers = #tpu.dot_dimension_numbers<[1], [0], [0], [1], [0, 0, 1, 1], [], []>} : vector<18x512xf32>, vector<512x512xf32>, vector<18x512xf32> -> vector<18x512xf32>
    %145 = arith.addf %142, %144 : vector<18x512xf32>
    %c0_94 = arith.constant 0 : index
    %c0_95 = arith.constant 0 : index
    %146 = vector.load %arg10[%c0_94, %c0_95] : memref<1x512xf32, #tpu.memory_space<vmem>>, vector<1x512xf32>
    %147 = vector.broadcast %146 : vector<1x512xf32> to vector<18x512xf32>
    %148 = arith.addf %145, %147 : vector<18x512xf32>
    %cst_96 = arith.constant 0.000000e+00 : f32
    %149 = vector.broadcast %cst_96 : f32 to vector<18x512xf32>
    %150 = arith.maximumf %148, %149 : vector<18x512xf32>
    %cst_97 = arith.constant dense<0.000000e+00> : vector<512xf32>
    %151 = vector.multi_reduction <add>, %150, %cst_97 [0] : vector<18x512xf32> to vector<512xf32>
    %152 = vector.shape_cast %151 : vector<512xf32> to vector<1x512xf32>
    %cst_98 = arith.constant 1.800000e+01 : f32
    %153 = vector.broadcast %cst_98 : f32 to vector<1x512xf32>
    %154 = arith.divf %152, %153 : vector<1x512xf32>
    %155 = vector.broadcast %154 : vector<1x512xf32> to vector<18x512xf32>
    %156 = arith.subf %150, %155 : vector<18x512xf32>
    %157 = arith.mulf %156, %156 : vector<18x512xf32>
    %cst_99 = arith.constant dense<0.000000e+00> : vector<512xf32>
    %158 = vector.multi_reduction <add>, %157, %cst_99 [0] : vector<18x512xf32> to vector<512xf32>
    %159 = vector.shape_cast %158 : vector<512xf32> to vector<1x512xf32>
    %cst_100 = arith.constant 1.700000e+01 : f32
    %160 = vector.broadcast %cst_100 : f32 to vector<1x512xf32>
    %161 = arith.divf %159, %160 : vector<1x512xf32>
    %162 = math.sqrt %161 : vector<1x512xf32>
    %163 = arith.addf %154, %162 : vector<1x512xf32>
    %164 = tpu.concatenate %81, %163 in 0 : vector<1x512xf32>, vector<1x512xf32> -> vector<2x512xf32>
    %c0_101 = arith.constant 0 : index
    %c0_102 = arith.constant 0 : index
    %165 = vector.load %arg11[%c0_101, %c0_102] : memref<512x512xf32, #tpu.memory_space<vmem>>, vector<512x512xf32>
    %cst_103 = arith.constant dense<0.000000e+00> : vector<2x512xf32>
    %166 = tpu.matmul %164, %165, %cst_103 {dimension_numbers = #tpu.dot_dimension_numbers<[1], [0], [0], [1], [0, 0, 1, 1], [], []>} : vector<2x512xf32>, vector<512x512xf32>, vector<2x512xf32> -> vector<2x512xf32>
    %c0_104 = arith.constant 0 : index
    %c0_105 = arith.constant 0 : index
    %167 = vector.load %arg12[%c0_104, %c0_105] : memref<1x512xf32, #tpu.memory_space<vmem>>, vector<1x512xf32>
    %168 = vector.broadcast %167 : vector<1x512xf32> to vector<2x512xf32>
    %169 = arith.addf %166, %168 : vector<2x512xf32>
    %c0_106 = arith.constant 0 : index
    %c0_107 = arith.constant 0 : index
    %170 = vector.load %arg13[%c0_106, %c0_107] : memref<512x512xf32, #tpu.memory_space<vmem>>, vector<512x512xf32>
    %cst_108 = arith.constant dense<0.000000e+00> : vector<2x512xf32>
    %171 = tpu.matmul %169, %170, %cst_108 {dimension_numbers = #tpu.dot_dimension_numbers<[1], [0], [0], [1], [0, 0, 1, 1], [], []>} : vector<2x512xf32>, vector<512x512xf32>, vector<2x512xf32> -> vector<2x512xf32>
    %c0_109 = arith.constant 0 : index
    %c0_110 = arith.constant 0 : index
    %172 = vector.load %arg14[%c0_109, %c0_110] : memref<1x512xf32, #tpu.memory_space<vmem>>, vector<1x512xf32>
    %173 = vector.broadcast %172 : vector<1x512xf32> to vector<2x512xf32>
    %174 = arith.addf %171, %173 : vector<2x512xf32>
    %cst_111 = arith.constant dense<0xFF800000> : vector<2xf32>
    %175 = vector.multi_reduction <maximumf>, %174, %cst_111 [1] : vector<2x512xf32> to vector<2xf32>
    %176 = vector.shape_cast %175 : vector<2xf32> to vector<2x1xf32>
    %177 = vector.broadcast %176 : vector<2x1xf32> to vector<2x512xf32>
    %178 = arith.subf %174, %177 : vector<2x512xf32>
    %179 = math.exp %178 : vector<2x512xf32>
    %cst_112 = arith.constant dense<0.000000e+00> : vector<2xf32>
    %180 = vector.multi_reduction <add>, %179, %cst_112 [1] : vector<2x512xf32> to vector<2xf32>
    %181 = vector.shape_cast %180 : vector<2xf32> to vector<2x1xf32>
    %182 = vector.broadcast %181 : vector<2x1xf32> to vector<2x512xf32>
    %183 = arith.divf %179, %182 : vector<2x512xf32>
    %c0_113 = arith.constant 0 : index
    %c0_114 = arith.constant 0 : index
    %184 = vector.load %arg15[%c0_113, %c0_114] : memref<2x512xf32, #tpu.memory_space<vmem>>, vector<2x512xf32>
    tpu.vector_store %arg15[%c0_113, %c0_114], %183 {strides = array<i32>} : memref<2x512xf32, #tpu.memory_space<vmem>>, vector<2x512xf32>,
    return
  }
}

</mosaic_0001>

<llo_original>
// kernel: my_model.1
$region0: #{my_model.1}
  #allocation0 [shape = 'u32[]', space=smem, size = 0x4, offset = 0x4, fixed_abs, tag = 'smem constant byte address 0x4 - core index']
  #allocation1 [shape = 'u32[144,128]{1,0:T(1,128)}', space=vmem, size = 0x12000, scoped, tag = 'internal scratch']
  %s0 = inlined_call_operand.vmem [shape: f32[2,32,23], index: 0, kind: input, shape index: {}]
  %s1 = inlined_call_operand.hbm [shape: f32[115,512], index: 1, kind: input, shape index: {}]
  %s2 = inlined_call_operand.hbm [shape: f32[1,512], index: 2, kind: input, shape index: {}]
  %s3 = inlined_call_operand.hbm [shape: f32[1536,512], index: 3, kind: input, shape index: {}]
  %s4 = inlined_call_operand.hbm [shape: f32[1,512], index: 4, kind: input, shape index: {}]
  %s5 = inlined_call_operand.hbm [shape: f32[1536,512], index: 5, kind: input, shape index: {}]
  %s6 = inlined_call_operand.hbm [shape: f32[1,512], index: 6, kind: input, shape index: {}]
  %s7 = inlined_call_operand.hbm [shape: f32[512,512], index: 7, kind: input, shape index: {}]
  %s8 = inlined_call_operand.hbm [shape: f32[1,512], index: 8, kind: input, shape index: {}]
  %s9 = inlined_call_operand.hbm [shape: f32[512,512], index: 9, kind: input, shape index: {}]
  %s10 = inlined_call_operand.hbm [shape: f32[1,512], index: 10, kind: input, shape index: {}]
  %s11 = inlined_call_operand.hbm [shape: f32[512,512], index: 11, kind: input, shape index: {}]
  %s12 = inlined_call_operand.hbm [shape: f32[1,512], index: 12, kind: input, shape index: {}]
  %s13 = inlined_call_operand.hbm [shape: f32[512,512], index: 13, kind: input, shape index: {}]
  %s14 = inlined_call_operand.hbm [shape: f32[1,512], index: 14, kind: input, shape index: {}]
  %s15 = inlined_call_operand.hbm [shape: f32[2,512], index: 15, kind: output, shape index: {}]
  %s16 = sld [smem:[#allocation0]]
  $region126: #{my_model.1} parent=0
    _
  %s18 = ssub.s32 1, %s16
  %s19 = scalar_select 0, %s18, %s16
  $region1: #{my_model.1} parent=0
    #allocation2 [shape = 'u8[245760]{0}', space=vmem, size = 0x3c000, scoped, tag = 'input window, operand 1, single buffered']
    #allocation3 [shape = 's32[1]{0}', space=sflag, size = 0x4, scoped, tag = 'scoped memory for my_model.1']
    #allocation4 [shape = 's32[1]{0}', space=sflag, size = 0x4, scoped, tag = 'scoped memory for my_model.1']
    #allocation5 [shape = 'u8[2048]{0}', space=vmem, size = 0x800, scoped, tag = 'input window, operand 2, single buffered']
    #allocation6 [shape = 's32[1]{0}', space=sflag, size = 0x4, scoped, tag = 'scoped memory for my_model.1']
    #allocation7 [shape = 'u8[3145728]{0}', space=vmem, size = 0x300000, scoped, tag = 'input window, operand 3, single buffered']
    #allocation8 [shape = 'u8[2048]{0}', space=vmem, size = 0x800, scoped, tag = 'input window, operand 4, single buffered']
    #allocation9 [shape = 's32[1]{0}', space=sflag, size = 0x4, scoped, tag = 'scoped memory for my_model.1']
    #allocation10 [shape = 'u8[3145728]{0}', space=vmem, size = 0x300000, scoped, tag = 'input window, operand 5, single buffered']
    #allocation11 [shape = 'u8[2048]{0}', space=vmem, size = 0x800, scoped, tag = 'input window, operand 6, single buffered']
    #allocation12 [shape = 's32[1]{0}', space=sflag, size = 0x4, scoped, tag = 'scoped memory for my_model.1']
    #allocation13 [shape = 'u8[1048576]{0}', space=vmem, size = 0x100000, scoped, tag = 'input window, operand 7, single buffered']
    #allocation14 [shape = 'u8[2048]{0}', space=vmem, size = 0x800, scoped, tag = 'input window, operand 8, single buffered']
    #allocation15 [shape = 's32[1]{0}', space=sflag, size = 0x4, scoped, tag = 'scoped memory for my_model.1']
    #allocation16 [shape = 'u8[1048576]{0}', space=vmem, size = 0x100000, scoped, tag = 'input window, operand 9, single buffered']
    #allocation17 [shape = 'u8[2048]{0}', space=vmem, size = 0x800, scoped, tag = 'input window, operand 10, single buffered']
    #allocation18 [shape = 's32[1]{0}', space=sflag, size = 0x4, scoped, tag = 'scoped memory for my_model.1']
    #allocation19 [shape = 'u8[1048576]{0}', space=vmem, size = 0x100000, scoped, tag = 'input window, operand 11, single buffered']
    #allocation20 [shape = 'u8[2048]{0}', space=vmem, size = 0x800, scoped, tag = 'input window, operand 12, single buffered']
    #allocation21 [shape = 's32[1]{0}', space=sflag, size = 0x4, scoped, tag = 'scoped memory for my_model.1']
    #allocation22 [shape = 'u8[1048576]{0}', space=vmem, size = 0x100000, scoped, tag = 'input window, operand 13, single buffered']
    #allocation23 [shape = 'u8[2048]{0}', space=vmem, size = 0x800, scoped, tag = 'input window, operand 14, single buffered']
    #allocation24 [shape = 's32[1]{0}', space=sflag, size = 0x4, scoped, tag = 'scoped memory for my_model.1']
    #allocation25 [shape = 'u8[4096]{0}', space=vmem, size = 0x1000, scoped, tag = 'output window, operand 0, single buffered']
    %20 = vsyncpa [#allocation3], 0
    %21 = vsyncpa [#allocation6], 0
    %22 = vsyncpa [#allocation9], 0
    %23 = vsyncpa [#allocation12], 0
    %24 = vsyncpa [#allocation15], 0
    %25 = vsyncpa [#allocation18], 0
    %26 = vsyncpa [#allocation21], 0
    %27 = vsyncpa [#allocation24], 0
    %28 = vsyncpa [#allocation4], 0
    // Predicated region
    $region2: #{my_model.1} parent=1 // pred_check
      _
    $region3: #{my_model.1} parent=1 // pred_check_branch
      %30 = sbr.rel (0) target = $region5
    $region4: #{my_model.1} parent=1 // pred_region
      _
    $region5: #{my_model.1} parent=1 // pred_fallthru
      _
    // Predicated region
    $region6: #{my_model.1} parent=1 // pred_check
      _
    $region7: #{my_model.1} parent=1 // pred_check_branch
      %32 = sbr.rel (0) target = $region9
    $region8: #{my_model.1} parent=1 // pred_region
      %s34 = ssub.s32 7680, 7680
      %35 = vsyncadd [#allocation3], %s34
      %s36 = sshll.u32 [#allocation2], 4
      %s37 = int_to_ptr.vmem [resolvable:$true] %s36
      %42 = dma.hbm_to_vmem [thread:$0]  %s1, 7680, %s37, [#allocation3], 512, 512, 32
    $region9: #{my_model.1} parent=1 // pred_fallthru
      _
    // Predicated region
    $region10: #{my_model.1} parent=1 // pred_check
      _
    $region11: #{my_model.1} parent=1 // pred_check_branch
      %44 = sbr.rel (0) target = $region13
    $region12: #{my_model.1} parent=1 // pred_region
      %s46 = ssub.s32 64, 64
      %47 = vsyncadd [#allocation6], %s46
      %s49 = sshll.u32 [#allocation5], 4
      %s50 = int_to_ptr.vmem [resolvable:$true] %s49
      %52 = dma.hbm_to_vmem [thread:$0]  %s2, 64, %s50, [#allocation6]
    $region13: #{my_model.1} parent=1 // pred_fallthru
      _
    // Predicated region
    $region14: #{my_model.1} parent=1 // pred_check
      _
    $region15: #{my_model.1} parent=1 // pred_check_branch
      %54 = sbr.rel (0) target = $region17
    $region16: #{my_model.1} parent=1 // pred_region
      %s56 = ssub.s32 98304, 98304
      %57 = vsyncadd [#allocation6], %s56
      %s58 = sshll.u32 [#allocation7], 4
      %s59 = int_to_ptr.vmem [resolvable:$true] %s58
      %64 = dma.hbm_to_vmem [thread:$0]  %s3, 98304, %s59, [#allocation6], 512, 512, 32
    $region17: #{my_model.1} parent=1 // pred_fallthru
      _
    // Predicated region
    $region18: #{my_model.1} parent=1 // pred_check
      _
    $region19: #{my_model.1} parent=1 // pred_check_branch
      %66 = sbr.rel (0) target = $region21
    $region20: #{my_model.1} parent=1 // pred_region
      %s68 = ssub.s32 64, 64
      %69 = vsyncadd [#allocation9], %s68
      %s71 = sshll.u32 [#allocation8], 4
      %s72 = int_to_ptr.vmem [resolvable:$true] %s71
      %74 = dma.hbm_to_vmem [thread:$0]  %s4, 64, %s72, [#allocation9]
    $region21: #{my_model.1} parent=1 // pred_fallthru
      _
    // Predicated region
    $region22: #{my_model.1} parent=1 // pred_check
      _
    $region23: #{my_model.1} parent=1 // pred_check_branch
      %76 = sbr.rel (0) target = $region25
    $region24: #{my_model.1} parent=1 // pred_region
      %s78 = ssub.s32 98304, 98304
      %79 = vsyncadd [#allocation9], %s78
      %s80 = sshll.u32 [#allocation10], 4
      %s81 = int_to_ptr.vmem [resolvable:$true] %s80
      %86 = dma.hbm_to_vmem [thread:$0]  %s5, 98304, %s81, [#allocation9], 512, 512, 32
    $region25: #{my_model.1} parent=1 // pred_fallthru
      _
    // Predicated region
    $region26: #{my_model.1} parent=1 // pred_check
      _
    $region27: #{my_model.1} parent=1 // pred_check_branch
      %88 = sbr.rel (0) target = $region29
    $region28: #{my_model.1} parent=1 // pred_region
      %s90 = ssub.s32 64, 64
      %91 = vsyncadd [#allocation12], %s90
      %s93 = sshll.u32 [#allocation11], 4
      %s94 = int_to_ptr.vmem [resolvable:$true] %s93
      %96 = dma.hbm_to_vmem [thread:$0]  %s6, 64, %s94, [#allocation12]
    $region29: #{my_model.1} parent=1 // pred_fallthru
      _
    // Predicated region
    $region30: #{my_model.1} parent=1 // pred_check
      _
    $region31: #{my_model.1} parent=1 // pred_check_branch
      %98 = sbr.rel (0) target = $region33
    $region32: #{my_model.1} parent=1 // pred_region
      %s100 = ssub.s32 32768, 32768
      %101 = vsyncadd [#allocation12], %s100
      %s102 = sshll.u32 [#allocation13], 4
      %s103 = int_to_ptr.vmem [resolvable:$true] %s102
      %108 = dma.hbm_to_vmem [thread:$0]  %s7, 32768, %s103, [#allocation12], 512, 512, 32
    $region33: #{my_model.1} parent=1 // pred_fallthru
      _
    // Predicated region
    $region34: #{my_model.1} parent=1 // pred_check
      _
    $region35: #{my_model.1} parent=1 // pred_check_branch
      %110 = sbr.rel (0) target = $region37
    $region36: #{my_model.1} parent=1 // pred_region
      %s112 = ssub.s32 64, 64
      %113 = vsyncadd [#allocation15], %s112
      %s115 = sshll.u32 [#allocation14], 4
      %s116 = int_to_ptr.vmem [resolvable:$true] %s115
      %118 = dma.hbm_to_vmem [thread:$0]  %s8, 64, %s116, [#allocation15]
    $region37: #{my_model.1} parent=1 // pred_fallthru
      _
    // Predicated region
    $region38: #{my_model.1} parent=1 // pred_check
      _
    $region39: #{my_model.1} parent=1 // pred_check_branch
      %120 = sbr.rel (0) target = $region41
    $region40: #{my_model.1} parent=1 // pred_region
      %s122 = ssub.s32 32768, 32768
      %123 = vsyncadd [#allocation15], %s122
      %s124 = sshll.u32 [#allocation16], 4
      %s125 = int_to_ptr.vmem [resolvable:$true] %s124
      %130 = dma.hbm_to_vmem [thread:$0]  %s9, 32768, %s125, [#allocation15], 512, 512, 32
    $region41: #{my_model.1} parent=1 // pred_fallthru
      _
    // Predicated region
    $region42: #{my_model.1} parent=1 // pred_check
      _
    $region43: #{my_model.1} parent=1 // pred_check_branch
      %132 = sbr.rel (0) target = $region45
    $region44: #{my_model.1} parent=1 // pred_region
      %s134 = ssub.s32 64, 64
      %135 = vsyncadd [#allocation18], %s134
      %s137 = sshll.u32 [#allocation17], 4
      %s138 = int_to_ptr.vmem [resolvable:$true] %s137
      %140 = dma.hbm_to_vmem [thread:$0]  %s10, 64, %s138, [#allocation18]
    $region45: #{my_model.1} parent=1 // pred_fallthru
      _
    // Predicated region
    $region46: #{my_model.1} parent=1 // pred_check
      _
    $region47: #{my_model.1} parent=1 // pred_check_branch
      %142 = sbr.rel (0) target = $region49
    $region48: #{my_model.1} parent=1 // pred_region
      %s144 = ssub.s32 32768, 32768
      %145 = vsyncadd [#allocation18], %s144
      %s146 = sshll.u32 [#allocation19], 4
      %s147 = int_to_ptr.vmem [resolvable:$true] %s146
      %152 = dma.hbm_to_vmem [thread:$0]  %s11, 32768, %s147, [#allocation18], 512, 512, 32
    $region49: #{my_model.1} parent=1 // pred_fallthru
      _
    // Predicated region
    $region50: #{my_model.1} parent=1 // pred_check
      _
    $region51: #{my_model.1} parent=1 // pred_check_branch
      %154 = sbr.rel (0) target = $region53
    $region52: #{my_model.1} parent=1 // pred_region
      %s156 = ssub.s32 64, 64
      %157 = vsyncadd [#allocation21], %s156
      %s159 = sshll.u32 [#allocation20], 4
      %s160 = int_to_ptr.vmem [resolvable:$true] %s159
      %162 = dma.hbm_to_vmem [thread:$0]  %s12, 64, %s160, [#allocation21]
    $region53: #{my_model.1} parent=1 // pred_fallthru
      _
    // Predicated region
    $region54: #{my_model.1} parent=1 // pred_check
      _
    $region55: #{my_model.1} parent=1 // pred_check_branch
      %164 = sbr.rel (0) target = $region57
    $region56: #{my_model.1} parent=1 // pred_region
      %s166 = ssub.s32 32768, 32768
      %167 = vsyncadd [#allocation21], %s166
      %s168 = sshll.u32 [#allocation22], 4
      %s169 = int_to_ptr.vmem [resolvable:$true] %s168
      %174 = dma.hbm_to_vmem [thread:$0]  %s13, 32768, %s169, [#allocation21], 512, 512, 32
    $region57: #{my_model.1} parent=1 // pred_fallthru
      _
    // Predicated region
    $region58: #{my_model.1} parent=1 // pred_check
      _
    $region59: #{my_model.1} parent=1 // pred_check_branch
      %176 = sbr.rel (0) target = $region61
    $region60: #{my_model.1} parent=1 // pred_region
      %s178 = ssub.s32 64, 64
      %179 = vsyncadd [#allocation24], %s178
      %s181 = sshll.u32 [#allocation23], 4
      %s182 = int_to_ptr.vmem [resolvable:$true] %s181
      %184 = dma.hbm_to_vmem [thread:$0]  %s14, 64, %s182, [#allocation24]
    $region61: #{my_model.1} parent=1 // pred_fallthru
      _
    // Predicated region
    $region62: #{my_model.1} parent=1 // pred_check
      _
    $region63: #{my_model.1} parent=1 // pred_check_branch
      %186 = sbr.rel (0) target = $region65
    $region64: #{my_model.1} parent=1 // pred_region
      %187 = dma.done [#allocation3], 7680
    $region65: #{my_model.1} parent=1 // pred_fallthru
      _
    // Predicated region
    $region66: #{my_model.1} parent=1 // pred_check
      _
    $region67: #{my_model.1} parent=1 // pred_check_branch
      %189 = sbr.rel (0) target = $region69
    $region68: #{my_model.1} parent=1 // pred_region
      %190 = dma.done [#allocation6], 64
    $region69: #{my_model.1} parent=1 // pred_fallthru
      _
    // Predicated region
    $region70: #{my_model.1} parent=1 // pred_check
      _
    $region71: #{my_model.1} parent=1 // pred_check_branch
      %192 = sbr.rel (0) target = $region73
    $region72: #{my_model.1} parent=1 // pred_region
      %193 = dma.done [#allocation6], 98304
    $region73: #{my_model.1} parent=1 // pred_fallthru
      _
    // Predicated region
    $region74: #{my_model.1} parent=1 // pred_check
      _
    $region75: #{my_model.1} parent=1 // pred_check_branch
      %195 = sbr.rel (0) target = $region77
    $region76: #{my_model.1} parent=1 // pred_region
      %196 = dma.done [#allocation9], 64
    $region77: #{my_model.1} parent=1 // pred_fallthru
      _
    // Predicated region
    $region78: #{my_model.1} parent=1 // pred_check
      _
    $region79: #{my_model.1} parent=1 // pred_check_branch
      %198 = sbr.rel (0) target = $region81
    $region80: #{my_model.1} parent=1 // pred_region
      %199 = dma.done [#allocation9], 98304
    $region81: #{my_model.1} parent=1 // pred_fallthru
      _
    // Predicated region
    $region82: #{my_model.1} parent=1 // pred_check
      _
    $region83: #{my_model.1} parent=1 // pred_check_branch
      %201 = sbr.rel (0) target = $region85
    $region84: #{my_model.1} parent=1 // pred_region
      %202 = dma.done [#allocation12], 64
    $region85: #{my_model.1} parent=1 // pred_fallthru
      _
    // Predicated region
    $region86: #{my_model.1} parent=1 // pred_check
      _
    $region87: #{my_model.1} parent=1 // pred_check_branch
      %204 = sbr.rel (0) target = $region89
    $region88: #{my_model.1} parent=1 // pred_region
      %205 = dma.done [#allocation12], 32768
    $region89: #{my_model.1} parent=1 // pred_fallthru
      _
    // Predicated region
    $region90: #{my_model.1} parent=1 // pred_check
      _
    $region91: #{my_model.1} parent=1 // pred_check_branch
      %207 = sbr.rel (0) target = $region93
    $region92: #{my_model.1} parent=1 // pred_region
      %208 = dma.done [#allocation15], 64
    $region93: #{my_model.1} parent=1 // pred_fallthru
      _
    // Predicated region
    $region94: #{my_model.1} parent=1 // pred_check
      _
    $region95: #{my_model.1} parent=1 // pred_check_branch
      %210 = sbr.rel (0) target = $region97
    $region96: #{my_model.1} parent=1 // pred_region
      %211 = dma.done [#allocation15], 32768
    $region97: #{my_model.1} parent=1 // pred_fallthru
      _
    // Predicated region
    $region98: #{my_model.1} parent=1 // pred_check
      _
    $region99: #{my_model.1} parent=1 // pred_check_branch
      %213 = sbr.rel (0) target = $region101
    $region100: #{my_model.1} parent=1 // pred_region
      %214 = dma.done [#allocation18], 64
    $region101: #{my_model.1} parent=1 // pred_fallthru
      _
    // Predicated region
    $region102: #{my_model.1} parent=1 // pred_check
      _
    $region103: #{my_model.1} parent=1 // pred_check_branch
      %216 = sbr.rel (0) target = $region105
    $region104: #{my_model.1} parent=1 // pred_region
      %217 = dma.done [#allocation18], 32768
    $region105: #{my_model.1} parent=1 // pred_fallthru
      _
    // Predicated region
    $region106: #{my_model.1} parent=1 // pred_check
      _
    $region107: #{my_model.1} parent=1 // pred_check_branch
      %219 = sbr.rel (0) target = $region109
    $region108: #{my_model.1} parent=1 // pred_region
      %220 = dma.done [#allocation21], 64
    $region109: #{my_model.1} parent=1 // pred_fallthru
      _
    // Predicated region
    $region110: #{my_model.1} parent=1 // pred_check
      _
    $region111: #{my_model.1} parent=1 // pred_check_branch
      %222 = sbr.rel (0) target = $region113
    $region112: #{my_model.1} parent=1 // pred_region
      %223 = dma.done [#allocation21], 32768
    $region113: #{my_model.1} parent=1 // pred_fallthru
      _
    // Predicated region
    $region114: #{my_model.1} parent=1 // pred_check
      _
    $region115: #{my_model.1} parent=1 // pred_check_branch
      %225 = sbr.rel (0) target = $region117
    $region116: #{my_model.1} parent=1 // pred_region
      %226 = dma.done [#allocation24], 64
    $region117: #{my_model.1} parent=1 // pred_fallthru
      _
    %v227 = vld [vmem:[%s0] sm:$0xff]
    %v228 = vld [vmem:[%s0 + $0x8] sm:$0xff]
    %v229 = vld [vmem:[%s0 + $0x10] sm:$0xff]
    %v230 = vld [vmem:[%s0 + $0x18] sm:$0xff]
    %vm235 = vcmask 1046528
    %v236 = vrot.slane %v227, 1
    %v237 = vrot.slane %v228, 1
    %v238 = vsel %vm235, %v236, %v237
    %v239 = vrot.slane %v229, 1
    %v240 = vsel %vm235, %v237, %v239
    %v241 = vrot.slane %v230, 1
    %v242 = vsel %vm235, %v239, %v241
    %243 = vrot.lane.b32.xlu0 %v238, 23
    %v244 = vpop.permute.xlu0 %243
    %245 = vrot.lane.b32.xlu0 %v240, 23
    %v246 = vpop.permute.xlu0 %245
    %247 = vrot.lane.b32.xlu0 %v242, 23
    %v248 = vpop.permute.xlu0 %247
    %249 = vrot.lane.b32.xlu0 %v241, 23
    %v250 = vpop.permute.xlu0 %249
    %vm255 = vcmask 1045504
    %v256 = vrot.slane %v227, 2
    %v257 = vrot.slane %v228, 2
    %v258 = vsel %vm255, %v256, %v257
    %v259 = vrot.slane %v229, 2
    %v260 = vsel %vm255, %v257, %v259
    %v261 = vrot.slane %v230, 2
    %v262 = vsel %vm255, %v259, %v261
    %263 = vrot.lane.b32.xlu0 %v258, 46
    %v264 = vpop.permute.xlu0 %263
    %265 = vrot.lane.b32.xlu0 %v260, 46
    %v266 = vpop.permute.xlu0 %265
    %267 = vrot.lane.b32.xlu0 %v262, 46
    %v268 = vpop.permute.xlu0 %267
    %269 = vrot.lane.b32.xlu0 %v261, 46
    %v270 = vpop.permute.xlu0 %269
    %vm275 = vcmask 1044480
    %v276 = vrot.slane %v227, 3
    %v277 = vrot.slane %v228, 3
    %v278 = vsel %vm275, %v276, %v277
    %v279 = vrot.slane %v229, 3
    %v280 = vsel %vm275, %v277, %v279
    %v281 = vrot.slane %v230, 3
    %v282 = vsel %vm275, %v279, %v281
    %283 = vrot.lane.b32.xlu0 %v278, 69
    %v284 = vpop.permute.xlu0 %283
    %285 = vrot.lane.b32.xlu0 %v280, 69
    %v286 = vpop.permute.xlu0 %285
    %287 = vrot.lane.b32.xlu0 %v282, 69
    %v288 = vpop.permute.xlu0 %287
    %289 = vrot.lane.b32.xlu0 %v281, 69
    %v290 = vpop.permute.xlu0 %289
    %vm295 = vcmask 1043456
    %v296 = vrot.slane %v227, 4
    %v297 = vrot.slane %v228, 4
    %v298 = vsel %vm295, %v296, %v297
    %v299 = vrot.slane %v229, 4
    %v300 = vsel %vm295, %v297, %v299
    %v301 = vrot.slane %v230, 4
    %v302 = vsel %vm295, %v299, %v301
    %303 = vrot.lane.b32.xlu0 %v298, 92
    %v304 = vpop.permute.xlu0 %303
    %305 = vrot.lane.b32.xlu0 %v300, 92
    %v306 = vpop.permute.xlu0 %305
    %307 = vrot.lane.b32.xlu0 %v302, 92
    %v308 = vpop.permute.xlu0 %307
    %309 = vrot.lane.b32.xlu0 %v301, 92
    %v310 = vpop.permute.xlu0 %309
    %vm315 = vcmask 187392
    %v316 = vsel %vm315, %v227, %v244
    %v317 = vsel %vm315, %v228, %v246
    %v318 = vsel %vm315, %v229, %v248
    %v319 = vsel %vm315, %v230, %v250
    %vm320 = vcmask 375808
    %v321 = vsel %vm320, %v316, %v264
    %v322 = vsel %vm320, %v317, %v266
    %v323 = vsel %vm320, %v318, %v268
    %v324 = vsel %vm320, %v319, %v270
    %vm325 = vcmask 564224
    %v326 = vsel %vm325, %v321, %v284
    %v327 = vsel %vm325, %v322, %v286
    %v328 = vsel %vm325, %v323, %v288
    %v329 = vsel %vm325, %v324, %v290
    %vm330 = vcmask 752640
    %v331 = vsel %vm330, %v326, %v304
    %v332 = vsel %vm330, %v327, %v306
    %v333 = vsel %vm330, %v328, %v308
    %v334 = vsel %vm330, %v329, %v310
    %v335 = vld [vmem:[#allocation2] sm:$0xff]
    %v336 = vld [vmem:[#allocation2 + $0x8] sm:$0xff]
    %v337 = vld [vmem:[#allocation2 + $0x10] sm:$0xff]
    %v338 = vld [vmem:[#allocation2 + $0x18] sm:$0xff]
    %v339 = vld [vmem:[#allocation2 + $0x20] sm:$0xff]
    %v340 = vld [vmem:[#allocation2 + $0x28] sm:$0xff]
    %v341 = vld [vmem:[#allocation2 + $0x30] sm:$0xff]
    %v342 = vld [vmem:[#allocation2 + $0x38] sm:$0xff]
    %v343 = vld [vmem:[#allocation2 + $0x40] sm:$0xff]
    %v344 = vld [vmem:[#allocation2 + $0x48] sm:$0xff]
    %v345 = vld [vmem:[#allocation2 + $0x50] sm:$0xff]
    %v346 = vld [vmem:[#allocation2 + $0x58] sm:$0xff]
    %v347 = vld [vmem:[#allocation2 + $0x60] sm:$0xff]
    %v348 = vld [vmem:[#allocation2 + $0x68] sm:$0xff]
    %v349 = vld [vmem:[#allocation2 + $0x70] sm:$0xff]
    %v350 = vld [vmem:[#allocation2 + $0x78] sm:$0xff]
    %v351 = vld [vmem:[#allocation2 + $0x80] sm:$0xff]
    %v352 = vld [vmem:[#allocation2 + $0x88] sm:$0xff]
    %v353 = vld [vmem:[#allocation2 + $0x90] sm:$0xff]
    %v354 = vld [vmem:[#allocation2 + $0x98] sm:$0xff]
    %v355 = vld [vmem:[#allocation2 + $0xa0] sm:$0xff]
    %v356 = vld [vmem:[#allocation2 + $0xa8] sm:$0xff]
    %v357 = vld [vmem:[#allocation2 + $0xb0] sm:$0xff]
    %v358 = vld [vmem:[#allocation2 + $0xb8] sm:$0xff]
    %v359 = vld [vmem:[#allocation2 + $0xc0] sm:$0xff]
    %v360 = vld [vmem:[#allocation2 + $0xc8] sm:$0xff]
    %v361 = vld [vmem:[#allocation2 + $0xd0] sm:$0xff]
    %v362 = vld [vmem:[#allocation2 + $0xd8] sm:$0xff]
    %v363 = vld [vmem:[#allocation2 + $0xe0] sm:$0xff]
    %v364 = vld [vmem:[#allocation2 + $0xe8] sm:$0xff]
    %v365 = vld [vmem:[#allocation2 + $0xf0] sm:$0xff]
    %v366 = vld [vmem:[#allocation2 + $0xf8] sm:$0xff]
    %v367 = vld [vmem:[#allocation2 + $0x100] sm:$0xff]
    %v368 = vld [vmem:[#allocation2 + $0x108] sm:$0xff]
    %v369 = vld [vmem:[#allocation2 + $0x110] sm:$0xff]
    %v370 = vld [vmem:[#allocation2 + $0x118] sm:$0xff]
    %v371 = vld [vmem:[#allocation2 + $0x120] sm:$0xff]
    %v372 = vld [vmem:[#allocation2 + $0x128] sm:$0xff]
    %v373 = vld [vmem:[#allocation2 + $0x130] sm:$0xff]
    %v374 = vld [vmem:[#allocation2 + $0x138] sm:$0xff]
    %v375 = vld [vmem:[#allocation2 + $0x140] sm:$0xff]
    %v376 = vld [vmem:[#allocation2 + $0x148] sm:$0xff]
    %v377 = vld [vmem:[#allocation2 + $0x150] sm:$0xff]
    %v378 = vld [vmem:[#allocation2 + $0x158] sm:$0xff]
    %v379 = vld [vmem:[#allocation2 + $0x160] sm:$0xff]
    %v380 = vld [vmem:[#allocation2 + $0x168] sm:$0xff]
    %v381 = vld [vmem:[#allocation2 + $0x170] sm:$0xff]
    %v382 = vld [vmem:[#allocation2 + $0x178] sm:$0xff]
    %v383 = vld [vmem:[#allocation2 + $0x180] sm:$0xff]
    %v384 = vld [vmem:[#allocation2 + $0x188] sm:$0xff]
    %v385 = vld [vmem:[#allocation2 + $0x190] sm:$0xff]
    %v386 = vld [vmem:[#allocation2 + $0x198] sm:$0xff]
    %v387 = vld [vmem:[#allocation2 + $0x1a0] sm:$0xff]
    %v388 = vld [vmem:[#allocation2 + $0x1a8] sm:$0xff]
    %v389 = vld [vmem:[#allocation2 + $0x1b0] sm:$0xff]
    %v390 = vld [vmem:[#allocation2 + $0x1b8] sm:$0xff]
    %v391 = vld [vmem:[#allocation2 + $0x1c0] sm:$0x7]
    %v392 = vld [vmem:[#allocation2 + $0x1c8] sm:$0x7]
    %v393 = vld [vmem:[#allocation2 + $0x1d0] sm:$0x7]
    %v394 = vld [vmem:[#allocation2 + $0x1d8] sm:$0x7]
    %v395 = vld [vmem:[#allocation5] sm:$0xf]
    %v397 = vlaneseq
    %v398 = vshrl.u32 %v397, 7
    %v399 = vsub.s32 0, %v398
    %v400 = vrot.slane %v395, %v399
    %v401 = vlaneseq
    %v402 = vshrl.u32 %v401, 7
    %v403 = vsub.s32 1, %v402
    %v404 = vrot.slane %v395, %v403
    %v405 = vlaneseq
    %v406 = vshrl.u32 %v405, 7
    %v407 = vsub.s32 2, %v406
    %v408 = vrot.slane %v395, %v407
    %v409 = vlaneseq
    %v410 = vshrl.u32 %v409, 7
    %v411 = vsub.s32 3, %v410
    %v412 = vrot.slane %v395, %v411
    %vm417 = vcmask 941056
    %v419 = vsel %vm417, %v331, 0
    %v422 = vsel %vm417, %v332, 0
    %v425 = vsel %vm417, %v333, 0
    %v428 = vsel %vm417, %v334, 0
    %vm430 = vcmask 1042432
    %v432 = vsel %vm430, %v391, 0
    %v435 = vsel %vm430, %v392, 0
    %v438 = vsel %vm430, %v393, 0
    %v441 = vsel %vm430, %v394, 0
    %443 = vmatprep.subr.mxu0 %v336
    %444 = vmatpush1.msra.mxu0 %v335
    %445 = vmatprep.subr.mxu0 %v340
    %446 = vmatpush1.msra.mxu0 %v339
    %447 = vmatprep.subr.mxu0 %v344
    %448 = vmatpush1.msra.mxu0 %v343
    %449 = vmatprep.subr.mxu0 %v348
    %450 = vmatpush1.msra.mxu0 %v347
    %451 = vmatprep.subr.mxu0 %v352
    %452 = vmatpush1.msra.mxu0 %v351
    %453 = vmatprep.subr.mxu0 %v356
    %454 = vmatpush1.msra.mxu0 %v355
    %455 = vmatprep.subr.mxu0 %v360
    %456 = vmatpush1.msra.mxu0 %v359
    %457 = vmatprep.subr.mxu0 %v364
    %458 = vmatpush1.msra.mxu0 %v363
    %459 = vmatprep.subr.mxu0 %v368
    %460 = vmatpush1.msra.mxu0 %v367
    %461 = vmatprep.subr.mxu0 %v372
    %462 = vmatpush1.msra.mxu0 %v371
    %463 = vmatprep.subr.mxu0 %v376
    %464 = vmatpush1.msra.mxu0 %v375
    %465 = vmatprep.subr.mxu0 %v380
    %466 = vmatpush1.msra.mxu0 %v379
    %467 = vmatprep.subr.mxu0 %v384
    %468 = vmatpush1.msra.mxu0 %v383
    %469 = vmatprep.subr.mxu0 %v388
    %470 = vmatpush1.msra.mxu0 %v387
    %471 = vmatprep.subr.mxu0 %v435
    %472 = vmatpush1.msra.mxu0 %v432
    %473 = vmatprep.subr.mxu0 0.0
    %474 = vmatpush1.msra.mxu0 0.0
    %475 = vmatprep.subr.mxu0 0.0
    %476 = vmatpush1.msra.mxu0 0.0
    %477 = vmatprep.subr.mxu0 0.0
    %478 = vmatpush1.msra.mxu0 0.0
    %479 = vmatprep.subr.mxu0 0.0
    %480 = vmatpush1.msra.mxu0 0.0
    %481 = vmatprep.subr.mxu0 0.0
    %482 = vmatpush1.msra.mxu0 0.0
    %483 = vmatprep.subr.mxu0 0.0
    %484 = vmatpush1.msra.mxu0 0.0
    %485 = vmatprep.subr.mxu0 0.0
    %486 = vmatpush1.msra.mxu0 0.0
    %487 = vmatprep.subr.mxu0 0.0
    %488 = vmatpush1.msra.mxu0 0.0
    %489 = vmatprep.subr.mxu0 0.0
    %490 = vmatpush1.msra.mxu0 0.0
    %491 = vmatprep.subr.mxu0 0.0
    %492 = vmatpush1.msra.mxu0 0.0
    %493 = vmatprep.subr.mxu0 0.0
    %494 = vmatpush1.msra.mxu0 0.0
    %495 = vmatprep.subr.mxu0 0.0
    %496 = vmatpush1.msra.mxu0 0.0
    %497 = vmatprep.subr.mxu0 0.0
    %498 = vmatpush1.msra.mxu0 0.0
    %499 = vmatprep.subr.mxu0 0.0
    %500 = vmatpush1.msra.mxu0 0.0
    %501 = vmatprep.subr.mxu0 0.0
    %502 = vmatpush1.msra.mxu0 0.0
    %503 = vmatprep.subr.mxu0 0.0
    %504 = vmatpush1.msra.mxu0 0.0
    %505 = vmatprep.subr.mxu0 0.0
    %506 = vmatpush1.msra.mxu0 0.0
    %507 = vmatprep.mubr.f32.mxu0 0.0
    %508 = vmatmul.mubr.f32.gmra.mrb[0].mxu0 %v419
    %v509 = vpop.f32.mrb[0].mxu0
    %v510 = vadd.f32 %v400, %v509
    %v511 = vpop.f32.mrb[0].mxu0
    %v512 = vadd.f32 %v404, %v511
    %513 = vmatprep.mubr.f32.mxu0 0.0
    %514 = vmatmul.mubr.f32.gmra.mrb[0].mxu0 %v422
    %v515 = vpop.f32.mrb[0].mxu0
    %v516 = vadd.f32 %v400, %v515
    %v517 = vpop.f32.mrb[0].mxu0
    %v518 = vadd.f32 %v404, %v517
    %519 = vmatprep.mubr.f32.mxu0 0.0
    %520 = vmatmul.mubr.f32.gmra.mrb[0].mxu0 %v425
    %v521 = vpop.f32.mrb[0].mxu0
    %v522 = vadd.f32 %v400, %v521
    %v523 = vpop.f32.mrb[0].mxu0
    %v524 = vadd.f32 %v404, %v523
    %525 = vmatprep.mubr.f32.mxu0 0.0
    %526 = vmatmul.mubr.f32.gmra.mrb[0].mxu0 %v428
    %v527 = vpop.f32.mrb[0].mxu0
    %v528 = vadd.f32 %v400, %v527
    %v529 = vpop.f32.mrb[0].mxu0
    %v530 = vadd.f32 %v404, %v529
    %531 = vdwg.mxu0
    %532 = vmatprep.subr.mxu0 %v338
    %533 = vmatpush1.msra.mxu0 %v337
    %534 = vmatprep.subr.mxu0 %v342
    %535 = vmatpush1.msra.mxu0 %v341
    %536 = vmatprep.subr.mxu0 %v346
    %537 = vmatpush1.msra.mxu0 %v345
    %538 = vmatprep.subr.mxu0 %v350
    %539 = vmatpush1.msra.mxu0 %v349
    %540 = vmatprep.subr.mxu0 %v354
    %541 = vmatpush1.msra.mxu0 %v353
    %542 = vmatprep.subr.mxu0 %v358
    %543 = vmatpush1.msra.mxu0 %v357
    %544 = vmatprep.subr.mxu0 %v362
    %545 = vmatpush1.msra.mxu0 %v361
    %546 = vmatprep.subr.mxu0 %v366
    %547 = vmatpush1.msra.mxu0 %v365
    %548 = vmatprep.subr.mxu0 %v370
    %549 = vmatpush1.msra.mxu0 %v369
    %550 = vmatprep.subr.mxu0 %v374
    %551 = vmatpush1.msra.mxu0 %v373
    %552 = vmatprep.subr.mxu0 %v378
    %553 = vmatpush1.msra.mxu0 %v377
    %554 = vmatprep.subr.mxu0 %v382
    %555 = vmatpush1.msra.mxu0 %v381
    %556 = vmatprep.subr.mxu0 %v386
    %557 = vmatpush1.msra.mxu0 %v385
    %558 = vmatprep.subr.mxu0 %v390
    %559 = vmatpush1.msra.mxu0 %v389
    %560 = vmatprep.subr.mxu0 %v441
    %561 = vmatpush1.msra.mxu0 %v438
    %562 = vmatprep.subr.mxu0 0.0
    %563 = vmatpush1.msra.mxu0 0.0
    %564 = vmatprep.subr.mxu0 0.0
    %565 = vmatpush1.msra.mxu0 0.0
    %566 = vmatprep.subr.mxu0 0.0
    %567 = vmatpush1.msra.mxu0 0.0
    %568 = vmatprep.subr.mxu0 0.0
    %569 = vmatpush1.msra.mxu0 0.0
    %570 = vmatprep.subr.mxu0 0.0
    %571 = vmatpush1.msra.mxu0 0.0
    %572 = vmatprep.subr.mxu0 0.0
    %573 = vmatpush1.msra.mxu0 0.0
    %574 = vmatprep.subr.mxu0 0.0
    %575 = vmatpush1.msra.mxu0 0.0
    %576 = vmatprep.subr.mxu0 0.0
    %577 = vmatpush1.msra.mxu0 0.0
    %578 = vmatprep.subr.mxu0 0.0
    %579 = vmatpush1.msra.mxu0 0.0
    %580 = vmatprep.subr.mxu0 0.0
    %581 = vmatpush1.msra.mxu0 0.0
    %582 = vmatprep.subr.mxu0 0.0
    %583 = vmatpush1.msra.mxu0 0.0
    %584 = vmatprep.subr.mxu0 0.0
    %585 = vmatpush1.msra.mxu0 0.0
    %586 = vmatprep.subr.mxu0 0.0
    %587 = vmatpush1.msra.mxu0 0.0
    %588 = vmatprep.subr.mxu0 0.0
    %589 = vmatpush1.msra.mxu0 0.0
    %590 = vmatprep.subr.mxu0 0.0
    %591 = vmatpush1.msra.mxu0 0.0
    %592 = vmatprep.subr.mxu0 0.0
    %593 = vmatpush1.msra.mxu0 0.0
    %594 = vmatprep.subr.mxu0 0.0
    %595 = vmatpush1.msra.mxu0 0.0
    %596 = vmatprep.mubr.f32.mxu0 0.0
    %597 = vmatmul.mubr.f32.gmra.mrb[0].mxu0 %v419
    %v598 = vpop.f32.mrb[0].mxu0
    %v599 = vadd.f32 %v408, %v598
    %v600 = vpop.f32.mrb[0].mxu0
    %v601 = vadd.f32 %v412, %v600
    %602 = vmatprep.mubr.f32.mxu0 0.0
    %603 = vmatmul.mubr.f32.gmra.mrb[0].mxu0 %v422
    %v604 = vpop.f32.mrb[0].mxu0
    %v605 = vadd.f32 %v408, %v604
    %v606 = vpop.f32.mrb[0].mxu0
    %v607 = vadd.f32 %v412, %v606
    %608 = vmatprep.mubr.f32.mxu0 0.0
    %609 = vmatmul.mubr.f32.gmra.mrb[0].mxu0 %v425
    %v610 = vpop.f32.mrb[0].mxu0
    %v611 = vadd.f32 %v408, %v610
    %v612 = vpop.f32.mrb[0].mxu0
    %v613 = vadd.f32 %v412, %v612
    %614 = vmatprep.mubr.f32.mxu0 0.0
    %615 = vmatmul.mubr.f32.gmra.mrb[0].mxu0 %v428
    %v616 = vpop.f32.mrb[0].mxu0
    %v617 = vadd.f32 %v408, %v616
    %v618 = vpop.f32.mrb[0].mxu0
    %v619 = vadd.f32 %v412, %v618
    %620 = vdwg.mxu0
    %v621 = vmax.f32 %v510, 0.0
    %v622 = vmax.f32 %v512, 0.0
    %v623 = vmax.f32 %v599, 0.0
    %v624 = vmax.f32 %v601, 0.0
    %v625 = vmax.f32 %v516, 0.0
    %v626 = vmax.f32 %v518, 0.0
    %v627 = vmax.f32 %v605, 0.0
    %v628 = vmax.f32 %v607, 0.0
    %v629 = vmax.f32 %v522, 0.0
    %v630 = vmax.f32 %v524, 0.0
    %v631 = vmax.f32 %v611, 0.0
    %v632 = vmax.f32 %v613, 0.0
    %v633 = vmax.f32 %v528, 0.0
    %v634 = vmax.f32 %v530, 0.0
    %v635 = vmax.f32 %v617, 0.0
    %v636 = vmax.f32 %v619, 0.0
    %v637 = vld [vmem:[#allocation7] sm:$0xff]
    %v638 = vld [vmem:[#allocation7 + $0x8] sm:$0xff]
    %v639 = vld [vmem:[#allocation7 + $0x10] sm:$0xff]
    %v640 = vld [vmem:[#allocation7 + $0x18] sm:$0xff]
    %v641 = vld [vmem:[#allocation7 + $0x20] sm:$0xff]
    %v642 = vld [vmem:[#allocation7 + $0x28] sm:$0xff]
    %v643 = vld [vmem:[#allocation7 + $0x30] sm:$0xff]
    %v644 = vld [vmem:[#allocation7 + $0x38] sm:$0xff]
    %v645 = vld [vmem:[#allocation7 + $0x40] sm:$0xff]
    %v646 = vld [vmem:[#allocation7 + $0x48] sm:$0xff]
    %v647 = vld [vmem:[#allocation7 + $0x50] sm:$0xff]
    %v648 = vld [vmem:[#allocation7 + $0x58] sm:$0xff]
    %v649 = vld [vmem:[#allocation7 + $0x60] sm:$0xff]
    %v650 = vld [vmem:[#allocation7 + $0x68] sm:$0xff]
    %v651 = vld [vmem:[#allocation7 + $0x70] sm:$0xff]
    %v652 = vld [vmem:[#allocation7 + $0x78] sm:$0xff]
    %v653 = vld [vmem:[#allocation7 + $0x80] sm:$0xff]
    %v654 = vld [vmem:[#allocation7 + $0x88] sm:$0xff]
    %v655 = vld [vmem:[#allocation7 + $0x90] sm:$0xff]
    %v656 = vld [vmem:[#allocation7 + $0x98] sm:$0xff]
    %v657 = vld [vmem:[#allocation7 + $0xa0] sm:$0xff]
    %v658 = vld [vmem:[#allocation7 + $0xa8] sm:$0xff]
    %v659 = vld [vmem:[#allocation7 + $0xb0] sm:$0xff]
    %v660 = vld [vmem:[#allocation7 + $0xb8] sm:$0xff]
    %v661 = vld [vmem:[#allocation7 + $0xc0] sm:$0xff]
    %v662 = vld [vmem:[#allocation7 + $0xc8] sm:$0xff]
    %v663 = vld [vmem:[#allocation7 + $0xd0] sm:$0xff]
    %v664 = vld [vmem:[#allocation7 + $0xd8] sm:$0xff]
    %v665 = vld [vmem:[#allocation7 + $0xe0] sm:$0xff]
    %v666 = vld [vmem:[#allocation7 + $0xe8] sm:$0xff]
    %v667 = vld [vmem:[#allocation7 + $0xf0] sm:$0xff]
    %v668 = vld [vmem:[#allocation7 + $0xf8] sm:$0xff]
    %v669 = vld [vmem:[#allocation7 + $0x100] sm:$0xff]
    %v670 = vld [vmem:[#allocation7 + $0x108] sm:$0xff]
    %v671 = vld [vmem:[#allocation7 + $0x110] sm:$0xff]
    %v672 = vld [vmem:[#allocation7 + $0x118] sm:$0xff]
    %v673 = vld [vmem:[#allocation7 + $0x120] sm:$0xff]
    %v674 = vld [vmem:[#allocation7 + $0x128] sm:$0xff]
    %v675 = vld [vmem:[#allocation7 + $0x130] sm:$0xff]
    %v676 = vld [vmem:[#allocation7 + $0x138] sm:$0xff]
    %v677 = vld [vmem:[#allocation7 + $0x140] sm:$0xff]
    %v678 = vld [vmem:[#allocation7 + $0x148] sm:$0xff]
    %v679 = vld [vmem:[#allocation7 + $0x150] sm:$0xff]
    %v680 = vld [vmem:[#allocation7 + $0x158] sm:$0xff]
    %v681 = vld [vmem:[#allocation7 + $0x160] sm:$0xff]
    %v682 = vld [vmem:[#allocation7 + $0x168] sm:$0xff]
    %v683 = vld [vmem:[#allocation7 + $0x170] sm:$0xff]
    %v684 = vld [vmem:[#allocation7 + $0x178] sm:$0xff]
    %v685 = vld [vmem:[#allocation7 + $0x180] sm:$0xff]
    %v686 = vld [vmem:[#allocation7 + $0x188] sm:$0xff]
    %v687 = vld [vmem:[#allocation7 + $0x190] sm:$0xff]
    %v688 = vld [vmem:[#allocation7 + $0x198] sm:$0xff]
    %v689 = vld [vmem:[#allocation7 + $0x1a0] sm:$0xff]
    %v690 = vld [vmem:[#allocation7 + $0x1a8] sm:$0xff]
    %v691 = vld [vmem:[#allocation7 + $0x1b0] sm:$0xff]
    %v692 = vld [vmem:[#allocation7 + $0x1b8] sm:$0xff]
    %v693 = vld [vmem:[#allocation7 + $0x1c0] sm:$0xff]
    %v694 = vld [vmem:[#allocation7 + $0x1c8] sm:$0xff]
    %v695 = vld [vmem:[#allocation7 + $0x1d0] sm:$0xff]
    %v696 = vld [vmem:[#allocation7 + $0x1d8] sm:$0xff]
    %v697 = vld [vmem:[#allocation7 + $0x1e0] sm:$0xff]
    %v698 = vld [vmem:[#allocation7 + $0x1e8] sm:$0xff]
    %v699 = vld [vmem:[#allocation7 + $0x1f0] sm:$0xff]
    %v700 = vld [vmem:[#allocation7 + $0x1f8] sm:$0xff]
    %v701 = vld [vmem:[#allocation7 + $0x200] sm:$0xff]
    %v702 = vld [vmem:[#allocation7 + $0x208] sm:$0xff]
    %v703 = vld [vmem:[#allocation7 + $0x210] sm:$0xff]
    %v704 = vld [vmem:[#allocation7 + $0x218] sm:$0xff]
    %v705 = vld [vmem:[#allocation7 + $0x220] sm:$0xff]
    %v706 = vld [vmem:[#allocation7 + $0x228] sm:$0xff]
    %v707 = vld [vmem:[#allocation7 + $0x230] sm:$0xff]
    %v708 = vld [vmem:[#allocation7 + $0x238] sm:$0xff]
    %v709 = vld [vmem:[#allocation7 + $0x240] sm:$0xff]
    %v710 = vld [vmem:[#allocation7 + $0x248] sm:$0xff]
    %v711 = vld [vmem:[#allocation7 + $0x250] sm:$0xff]
    %v712 = vld [vmem:[#allocation7 + $0x258] sm:$0xff]
    %v713 = vld [vmem:[#allocation7 + $0x260] sm:$0xff]
    %v714 = vld [vmem:[#allocation7 + $0x268] sm:$0xff]
    %v715 = vld [vmem:[#allocation7 + $0x270] sm:$0xff]
    %v716 = vld [vmem:[#allocation7 + $0x278] sm:$0xff]
    %v717 = vld [vmem:[#allocation7 + $0x280] sm:$0xff]
    %v718 = vld [vmem:[#allocation7 + $0x288] sm:$0xff]
    %v719 = vld [vmem:[#allocation7 + $0x290] sm:$0xff]
    %v720 = vld [vmem:[#allocation7 + $0x298] sm:$0xff]
    %v721 = vld [vmem:[#allocation7 + $0x2a0] sm:$0xff]
    %v722 = vld [vmem:[#allocation7 + $0x2a8] sm:$0xff]
    %v723 = vld [vmem:[#allocation7 + $0x2b0] sm:$0xff]
    %v724 = vld [vmem:[#allocation7 + $0x2b8] sm:$0xff]
    %v725 = vld [vmem:[#allocation7 + $0x2c0] sm:$0xff]
    %v726 = vld [vmem:[#allocation7 + $0x2c8] sm:$0xff]
    %v727 = vld [vmem:[#allocation7 + $0x2d0] sm:$0xff]
    %v728 = vld [vmem:[#allocation7 + $0x2d8] sm:$0xff]
    %v729 = vld [vmem:[#allocation7 + $0x2e0] sm:$0xff]
    %v730 = vld [vmem:[#allocation7 + $0x2e8] sm:$0xff]
    %v731 = vld [vmem:[#allocation7 + $0x2f0] sm:$0xff]
    %v732 = vld [vmem:[#allocation7 + $0x2f8] sm:$0xff]
    %v733 = vld [vmem:[#allocation7 + $0x300] sm:$0xff]
    %v734 = vld [vmem:[#allocation7 + $0x308] sm:$0xff]
    %v735 = vld [vmem:[#allocation7 + $0x310] sm:$0xff]
    %v736 = vld [vmem:[#allocation7 + $0x318] sm:$0xff]
    %v737 = vld [vmem:[#allocation7 + $0x320] sm:$0xff]
    %v738 = vld [vmem:[#allocation7 + $0x328] sm:$0xff]
    %v739 = vld [vmem:[#allocation7 + $0x330] sm:$0xff]
    %v740 = vld [vmem:[#allocation7 + $0x338] sm:$0xff]
    %v741 = vld [vmem:[#allocation7 + $0x340] sm:$0xff]
    %v742 = vld [vmem:[#allocation7 + $0x348] sm:$0xff]
    %v743 = vld [vmem:[#allocation7 + $0x350] sm:$0xff]
    %v744 = vld [vmem:[#allocation7 + $0x358] sm:$0xff]
    %v745 = vld [vmem:[#allocation7 + $0x360] sm:$0xff]
    %v746 = vld [vmem:[#allocation7 + $0x368] sm:$0xff]
    %v747 = vld [vmem:[#allocation7 + $0x370] sm:$0xff]
    %v748 = vld [vmem:[#allocation7 + $0x378] sm:$0xff]
    %v749 = vld [vmem:[#allocation7 + $0x380] sm:$0xff]
    %v750 = vld [vmem:[#allocation7 + $0x388] sm:$0xff]
    %v751 = vld [vmem:[#allocation7 + $0x390] sm:$0xff]
    %v752 = vld [vmem:[#allocation7 + $0x398] sm:$0xff]
    %v753 = vld [vmem:[#allocation7 + $0x3a0] sm:$0xff]
    %v754 = vld [vmem:[#allocation7 + $0x3a8] sm:$0xff]
    %v755 = vld [vmem:[#allocation7 + $0x3b0] sm:$0xff]
    %v756 = vld [vmem:[#allocation7 + $0x3b8] sm:$0xff]
    %v757 = vld [vmem:[#allocation7 + $0x3c0] sm:$0xff]
    %v758 = vld [vmem:[#allocation7 + $0x3c8] sm:$0xff]
    %v759 = vld [vmem:[#allocation7 + $0x3d0] sm:$0xff]
    %v760 = vld [vmem:[#allocation7 + $0x3d8] sm:$0xff]
    %v761 = vld [vmem:[#allocation7 + $0x3e0] sm:$0xff]
    %v762 = vld [vmem:[#allocation7 + $0x3e8] sm:$0xff]
    %v763 = vld [vmem:[#allocation7 + $0x3f0] sm:$0xff]
    %v764 = vld [vmem:[#allocation7 + $0x3f8] sm:$0xff]
    %v765 = vld [vmem:[#allocation7 + $0x400] sm:$0xff]
    %v766 = vld [vmem:[#allocation7 + $0x408] sm:$0xff]
    %v767 = vld [vmem:[#allocation7 + $0x410] sm:$0xff]
    %v768 = vld [vmem:[#allocation7 + $0x418] sm:$0xff]
    %v769 = vld [vmem:[#allocation7 + $0x420] sm:$0xff]
    %v770 = vld [vmem:[#allocation7 + $0x428] sm:$0xff]
    %v771 = vld [vmem:[#allocation7 + $0x430] sm:$0xff]
    %v772 = vld [vmem:[#allocation7 + $0x438] sm:$0xff]
    %v773 = vld [vmem:[#allocation7 + $0x440] sm:$0xff]
    %v774 = vld [vmem:[#allocation7 + $0x448] sm:$0xff]
    %v775 = vld [vmem:[#allocation7 + $0x450] sm:$0xff]
    %v776 = vld [vmem:[#allocation7 + $0x458] sm:$0xff]
    %v777 = vld [vmem:[#allocation7 + $0x460] sm:$0xff]
    %v778 = vld [vmem:[#allocation7 + $0x468] sm:$0xff]
    %v779 = vld [vmem:[#allocation7 + $0x470] sm:$0xff]
    %v780 = vld [vmem:[#allocation7 + $0x478] sm:$0xff]
    %v781 = vld [vmem:[#allocation7 + $0x480] sm:$0xff]
    %v782 = vld [vmem:[#allocation7 + $0x488] sm:$0xff]
    %v783 = vld [vmem:[#allocation7 + $0x490] sm:$0xff]
    %v784 = vld [vmem:[#allocation7 + $0x498] sm:$0xff]
    %v785 = vld [vmem:[#allocation7 + $0x4a0] sm:$0xff]
    %v786 = vld [vmem:[#allocation7 + $0x4a8] sm:$0xff]
    %v787 = vld [vmem:[#allocation7 + $0x4b0] sm:$0xff]
    %v788 = vld [vmem:[#allocation7 + $0x4b8] sm:$0xff]
    %v789 = vld [vmem:[#allocation7 + $0x4c0] sm:$0xff]
    %v790 = vld [vmem:[#allocation7 + $0x4c8] sm:$0xff]
    %v791 = vld [vmem:[#allocation7 + $0x4d0] sm:$0xff]
    %v792 = vld [vmem:[#allocation7 + $0x4d8] sm:$0xff]
    %v793 = vld [vmem:[#allocation7 + $0x4e0] sm:$0xff]
    %v794 = vld [vmem:[#allocation7 + $0x4e8] sm:$0xff]
    %v795 = vld [vmem:[#allocation7 + $0x4f0] sm:$0xff]
    %v796 = vld [vmem:[#allocation7 + $0x4f8] sm:$0xff]
    %v797 = vld [vmem:[#allocation7 + $0x500] sm:$0xff]
    %v798 = vld [vmem:[#allocation7 + $0x508] sm:$0xff]
    %v799 = vld [vmem:[#allocation7 + $0x510] sm:$0xff]
    %v800 = vld [vmem:[#allocation7 + $0x518] sm:$0xff]
    %v801 = vld [vmem:[#allocation7 + $0x520] sm:$0xff]
    %v802 = vld [vmem:[#allocation7 + $0x528] sm:$0xff]
    %v803 = vld [vmem:[#allocation7 + $0x530] sm:$0xff]
    %v804 = vld [vmem:[#allocation7 + $0x538] sm:$0xff]
    %v805 = vld [vmem:[#allocation7 + $0x540] sm:$0xff]
    %v806 = vld [vmem:[#allocation7 + $0x548] sm:$0xff]
    %v807 = vld [vmem:[#allocation7 + $0x550] sm:$0xff]
    %v808 = vld [vmem:[#allocation7 + $0x558] sm:$0xff]
    %v809 = vld [vmem:[#allocation7 + $0x560] sm:$0xff]
    %v810 = vld [vmem:[#allocation7 + $0x568] sm:$0xff]
    %v811 = vld [vmem:[#allocation7 + $0x570] sm:$0xff]
    %v812 = vld [vmem:[#allocation7 + $0x578] sm:$0xff]
    %v813 = vld [vmem:[#allocation7 + $0x580] sm:$0xff]
    %v814 = vld [vmem:[#allocation7 + $0x588] sm:$0xff]
    %v815 = vld [vmem:[#allocation7 + $0x590] sm:$0xff]
    %v816 = vld [vmem:[#allocation7 + $0x598] sm:$0xff]
    %v817 = vld [vmem:[#allocation7 + $0x5a0] sm:$0xff]
    %v818 = vld [vmem:[#allocation7 + $0x5a8] sm:$0xff]
    %v819 = vld [vmem:[#allocation7 + $0x5b0] sm:$0xff]
    %v820 = vld [vmem:[#allocation7 + $0x5b8] sm:$0xff]
    %v821 = vld [vmem:[#allocation7 + $0x5c0] sm:$0xff]
    %v822 = vld [vmem:[#allocation7 + $0x5c8] sm:$0xff]
    %v823 = vld [vmem:[#allocation7 + $0x5d0] sm:$0xff]
    %v824 = vld [vmem:[#allocation7 + $0x5d8] sm:$0xff]
    %v825 = vld [vmem:[#allocation7 + $0x5e0] sm:$0xff]
    %v826 = vld [vmem:[#allocation7 + $0x5e8] sm:$0xff]
    %v827 = vld [vmem:[#allocation7 + $0x5f0] sm:$0xff]
    %v828 = vld [vmem:[#allocation7 + $0x5f8] sm:$0xff]
    %v829 = vld [vmem:[#allocation7 + $0x600] sm:$0xff]
    %v830 = vld [vmem:[#allocation7 + $0x608] sm:$0xff]
    %v831 = vld [vmem:[#allocation7 + $0x610] sm:$0xff]
    %v832 = vld [vmem:[#allocation7 + $0x618] sm:$0xff]
    %v833 = vld [vmem:[#allocation7 + $0x620] sm:$0xff]
    %v834 = vld [vmem:[#allocation7 + $0x628] sm:$0xff]
    %v835 = vld [vmem:[#allocation7 + $0x630] sm:$0xff]
    %v836 = vld [vmem:[#allocation7 + $0x638] sm:$0xff]
    %v837 = vld [vmem:[#allocation7 + $0x640] sm:$0xff]
    %v838 = vld [vmem:[#allocation7 + $0x648] sm:$0xff]
    %v839 = vld [vmem:[#allocation7 + $0x650] sm:$0xff]
    %v840 = vld [vmem:[#allocation7 + $0x658] sm:$0xff]
    %v841 = vld [vmem:[#allocation7 + $0x660] sm:$0xff]
    %v842 = vld [vmem:[#allocation7 + $0x668] sm:$0xff]
    %v843 = vld [vmem:[#allocation7 + $0x670] sm:$0xff]
    %v844 = vld [vmem:[#allocation7 + $0x678] sm:$0xff]
    %v845 = vld [vmem:[#allocation7 + $0x680] sm:$0xff]
    %v846 = vld [vmem:[#allocation7 + $0x688] sm:$0xff]
    %v847 = vld [vmem:[#allocation7 + $0x690] sm:$0xff]
    %v848 = vld [vmem:[#allocation7 + $0x698] sm:$0xff]
    %v849 = vld [vmem:[#allocation7 + $0x6a0] sm:$0xff]
    %v850 = vld [vmem:[#allocation7 + $0x6a8] sm:$0xff]
    %v851 = vld [vmem:[#allocation7 + $0x6b0] sm:$0xff]
    %v852 = vld [vmem:[#allocation7 + $0x6b8] sm:$0xff]
    %v853 = vld [vmem:[#allocation7 + $0x6c0] sm:$0xff]
    %v854 = vld [vmem:[#allocation7 + $0x6c8] sm:$0xff]
    %v855 = vld [vmem:[#allocation7 + $0x6d0] sm:$0xff]
    %v856 = vld [vmem:[#allocation7 + $0x6d8] sm:$0xff]
    %v857 = vld [vmem:[#allocation7 + $0x6e0] sm:$0xff]
    %v858 = vld [vmem:[#allocation7 + $0x6e8] sm:$0xff]
    %v859 = vld [vmem:[#allocation7 + $0x6f0] sm:$0xff]
    %v860 = vld [vmem:[#allocation7 + $0x6f8] sm:$0xff]
    %v861 = vld [vmem:[#allocation7 + $0x700] sm:$0xff]
    %v862 = vld [vmem:[#allocation7 + $0x708] sm:$0xff]
    %v863 = vld [vmem:[#allocation7 + $0x710] sm:$0xff]
    %v864 = vld [vmem:[#allocation7 + $0x718] sm:$0xff]
    %v865 = vld [vmem:[#allocation7 + $0x720] sm:$0xff]
    %v866 = vld [vmem:[#allocation7 + $0x728] sm:$0xff]
    %v867 = vld [vmem:[#allocation7 + $0x730] sm:$0xff]
    %v868 = vld [vmem:[#allocation7 + $0x738] sm:$0xff]
    %v869 = vld [vmem:[#allocation7 + $0x740] sm:$0xff]
    %v870 = vld [vmem:[#allocation7 + $0x748] sm:$0xff]
    %v871 = vld [vmem:[#allocation7 + $0x750] sm:$0xff]
    %v872 = vld [vmem:[#allocation7 + $0x758] sm:$0xff]
    %v873 = vld [vmem:[#allocation7 + $0x760] sm:$0xff]
    %v874 = vld [vmem:[#allocation7 + $0x768] sm:$0xff]
    %v875 = vld [vmem:[#allocation7 + $0x770] sm:$0xff]
    %v876 = vld [vmem:[#allocation7 + $0x778] sm:$0xff]
    %v877 = vld [vmem:[#allocation7 + $0x780] sm:$0xff]
    %v878 = vld [vmem:[#allocation7 + $0x788] sm:$0xff]
    %v879 = vld [vmem:[#allocation7 + $0x790] sm:$0xff]
    %v880 = vld [vmem:[#allocation7 + $0x798] sm:$0xff]
    %v881 = vld [vmem:[#allocation7 + $0x7a0] sm:$0xff]
    %v882 = vld [vmem:[#allocation7 + $0x7a8] sm:$0xff]
    %v883 = vld [vmem:[#allocation7 + $0x7b0] sm:$0xff]
    %v884 = vld [vmem:[#allocation7 + $0x7b8] sm:$0xff]
    %v885 = vld [vmem:[#allocation7 + $0x7c0] sm:$0xff]
    %v886 = vld [vmem:[#allocation7 + $0x7c8] sm:$0xff]
    %v887 = vld [vmem:[#allocation7 + $0x7d0] sm:$0xff]
    %v888 = vld [vmem:[#allocation7 + $0x7d8] sm:$0xff]
    %v889 = vld [vmem:[#allocation7 + $0x7e0] sm:$0xff]
    %v890 = vld [vmem:[#allocation7 + $0x7e8] sm:$0xff]
    %v891 = vld [vmem:[#allocation7 + $0x7f0] sm:$0xff]
    %v892 = vld [vmem:[#allocation7 + $0x7f8] sm:$0xff]
    %v893 = vld [vmem:[#allocation7 + $0x800] sm:$0xff]
    %v894 = vld [vmem:[#allocation7 + $0x808] sm:$0xff]
    %v895 = vld [vmem:[#allocation7 + $0x810] sm:$0xff]
    %v896 = vld [vmem:[#allocation7 + $0x818] sm:$0xff]
    %v897 = vld [vmem:[#allocation7 + $0x820] sm:$0xff]
    %v898 = vld [vmem:[#allocation7 + $0x828] sm:$0xff]
    %v899 = vld [vmem:[#allocation7 + $0x830] sm:$0xff]
    %v900 = vld [vmem:[#allocation7 + $0x838] sm:$0xff]
    %v901 = vld [vmem:[#allocation7 + $0x840] sm:$0xff]
    %v902 = vld [vmem:[#allocation7 + $0x848] sm:$0xff]
    %v903 = vld [vmem:[#allocation7 + $0x850] sm:$0xff]
    %v904 = vld [vmem:[#allocation7 + $0x858] sm:$0xff]
    %v905 = vld [vmem:[#allocation7 + $0x860] sm:$0xff]
    %v906 = vld [vmem:[#allocation7 + $0x868] sm:$0xff]
    %v907 = vld [vmem:[#allocation7 + $0x870] sm:$0xff]
    %v908 = vld [vmem:[#allocation7 + $0x878] sm:$0xff]
    %v909 = vld [vmem:[#allocation7 + $0x880] sm:$0xff]
    %v910 = vld [vmem:[#allocation7 + $0x888] sm:$0xff]
    %v911 = vld [vmem:[#allocation7 + $0x890] sm:$0xff]
    %v912 = vld [vmem:[#allocation7 + $0x898] sm:$0xff]
    %v913 = vld [vmem:[#allocation7 + $0x8a0] sm:$0xff]
    %v914 = vld [vmem:[#allocation7 + $0x8a8] sm:$0xff]
    %v915 = vld [vmem:[#allocation7 + $0x8b0] sm:$0xff]
    %v916 = vld [vmem:[#allocation7 + $0x8b8] sm:$0xff]
    %v917 = vld [vmem:[#allocation7 + $0x8c0] sm:$0xff]
    %v918 = vld [vmem:[#allocation7 + $0x8c8] sm:$0xff]
    %v919 = vld [vmem:[#allocation7 + $0x8d0] sm:$0xff]
    %v920 = vld [vmem:[#allocation7 + $0x8d8] sm:$0xff]
    %v921 = vld [vmem:[#allocation7 + $0x8e0] sm:$0xff]
    %v922 = vld [vmem:[#allocation7 + $0x8e8] sm:$0xff]
    %v923 = vld [vmem:[#allocation7 + $0x8f0] sm:$0xff]
    %v924 = vld [vmem:[#allocation7 + $0x8f8] sm:$0xff]
    %v925 = vld [vmem:[#allocation7 + $0x900] sm:$0xff]
    %v926 = vld [vmem:[#allocation7 + $0x908] sm:$0xff]
    %v927 = vld [vmem:[#allocation7 + $0x910] sm:$0xff]
    %v928 = vld [vmem:[#allocation7 + $0x918] sm:$0xff]
    %v929 = vld [vmem:[#allocation7 + $0x920] sm:$0xff]
    %v930 = vld [vmem:[#allocation7 + $0x928] sm:$0xff]
    %v931 = vld [vmem:[#allocation7 + $0x930] sm:$0xff]
    %v932 = vld [vmem:[#allocation7 + $0x938] sm:$0xff]
    %v933 = vld [vmem:[#allocation7 + $0x940] sm:$0xff]
    %v934 = vld [vmem:[#allocation7 + $0x948] sm:$0xff]
    %v935 = vld [vmem:[#allocation7 + $0x950] sm:$0xff]
    %v936 = vld [vmem:[#allocation7 + $0x958] sm:$0xff]
    %v937 = vld [vmem:[#allocation7 + $0x960] sm:$0xff]
    %v938 = vld [vmem:[#allocation7 + $0x968] sm:$0xff]
    %v939 = vld [vmem:[#allocation7 + $0x970] sm:$0xff]
    %v940 = vld [vmem:[#allocation7 + $0x978] sm:$0xff]
    %v941 = vld [vmem:[#allocation7 + $0x980] sm:$0xff]
    %v942 = vld [vmem:[#allocation7 + $0x988] sm:$0xff]
    %v943 = vld [vmem:[#allocation7 + $0x990] sm:$0xff]
    %v944 = vld [vmem:[#allocation7 + $0x998] sm:$0xff]
    %v945 = vld [vmem:[#allocation7 + $0x9a0] sm:$0xff]
    %v946 = vld [vmem:[#allocation7 + $0x9a8] sm:$0xff]
    %v947 = vld [vmem:[#allocation7 + $0x9b0] sm:$0xff]
    %v948 = vld [vmem:[#allocation7 + $0x9b8] sm:$0xff]
    %v949 = vld [vmem:[#allocation7 + $0x9c0] sm:$0xff]
    %v950 = vld [vmem:[#allocation7 + $0x9c8] sm:$0xff]
    %v951 = vld [vmem:[#allocation7 + $0x9d0] sm:$0xff]
    %v952 = vld [vmem:[#allocation7 + $0x9d8] sm:$0xff]
    %v953 = vld [vmem:[#allocation7 + $0x9e0] sm:$0xff]
    %v954 = vld [vmem:[#allocation7 + $0x9e8] sm:$0xff]
    %v955 = vld [vmem:[#allocation7 + $0x9f0] sm:$0xff]
    %v956 = vld [vmem:[#allocation7 + $0x9f8] sm:$0xff]
    %v957 = vld [vmem:[#allocation7 + $0xa00] sm:$0xff]
    %v958 = vld [vmem:[#allocation7 + $0xa08] sm:$0xff]
    %v959 = vld [vmem:[#allocation7 + $0xa10] sm:$0xff]
    %v960 = vld [vmem:[#allocation7 + $0xa18] sm:$0xff]
    %v961 = vld [vmem:[#allocation7 + $0xa20] sm:$0xff]
    %v962 = vld [vmem:[#allocation7 + $0xa28] sm:$0xff]
    %v963 = vld [vmem:[#allocation7 + $0xa30] sm:$0xff]
    %v964 = vld [vmem:[#allocation7 + $0xa38] sm:$0xff]
    %v965 = vld [vmem:[#allocation7 + $0xa40] sm:$0xff]
    %v966 = vld [vmem:[#allocation7 + $0xa48] sm:$0xff]
    %v967 = vld [vmem:[#allocation7 + $0xa50] sm:$0xff]
    %v968 = vld [vmem:[#allocation7 + $0xa58] sm:$0xff]
    %v969 = vld [vmem:[#allocation7 + $0xa60] sm:$0xff]
    %v970 = vld [vmem:[#allocation7 + $0xa68] sm:$0xff]
    %v971 = vld [vmem:[#allocation7 + $0xa70] sm:$0xff]
    %v972 = vld [vmem:[#allocation7 + $0xa78] sm:$0xff]
    %v973 = vld [vmem:[#allocation7 + $0xa80] sm:$0xff]
    %v974 = vld [vmem:[#allocation7 + $0xa88] sm:$0xff]
    %v975 = vld [vmem:[#allocation7 + $0xa90] sm:$0xff]
    %v976 = vld [vmem:[#allocation7 + $0xa98] sm:$0xff]
    %v977 = vld [vmem:[#allocation7 + $0xaa0] sm:$0xff]
    %v978 = vld [vmem:[#allocation7 + $0xaa8] sm:$0xff]
    %v979 = vld [vmem:[#allocation7 + $0xab0] sm:$0xff]
    %v980 = vld [vmem:[#allocation7 + $0xab8] sm:$0xff]
    %v981 = vld [vmem:[#allocation7 + $0xac0] sm:$0xff]
    %v982 = vld [vmem:[#allocation7 + $0xac8] sm:$0xff]
    %v983 = vld [vmem:[#allocation7 + $0xad0] sm:$0xff]
    %v984 = vld [vmem:[#allocation7 + $0xad8] sm:$0xff]
    %v985 = vld [vmem:[#allocation7 + $0xae0] sm:$0xff]
    %v986 = vld [vmem:[#allocation7 + $0xae8] sm:$0xff]
    %v987 = vld [vmem:[#allocation7 + $0xaf0] sm:$0xff]
    %v988 = vld [vmem:[#allocation7 + $0xaf8] sm:$0xff]
    %v989 = vld [vmem:[#allocation7 + $0xb00] sm:$0xff]
    %v990 = vld [vmem:[#allocation7 + $0xb08] sm:$0xff]
    %v991 = vld [vmem:[#allocation7 + $0xb10] sm:$0xff]
    %v992 = vld [vmem:[#allocation7 + $0xb18] sm:$0xff]
    %v993 = vld [vmem:[#allocation7 + $0xb20] sm:$0xff]
    %v994 = vld [vmem:[#allocation7 + $0xb28] sm:$0xff]
    %v995 = vld [vmem:[#allocation7 + $0xb30] sm:$0xff]
    %v996 = vld [vmem:[#allocation7 + $0xb38] sm:$0xff]
    %v997 = vld [vmem:[#allocation7 + $0xb40] sm:$0xff]
    %v998 = vld [vmem:[#allocation7 + $0xb48] sm:$0xff]
    %v999 = vld [vmem:[#allocation7 + $0xb50] sm:$0xff]
    %v1000 = vld [vmem:[#allocation7 + $0xb58] sm:$0xff]
    %v1001 = vld [vmem:[#allocation7 + $0xb60] sm:$0xff]
    %v1002 = vld [vmem:[#allocation7 + $0xb68] sm:$0xff]
    %v1003 = vld [vmem:[#allocation7 + $0xb70] sm:$0xff]
    %v1004 = vld [vmem:[#allocation7 + $0xb78] sm:$0xff]
    %v1005 = vld [vmem:[#allocation7 + $0xb80] sm:$0xff]
    %v1006 = vld [vmem:[#allocation7 + $0xb88] sm:$0xff]
    %v1007 = vld [vmem:[#allocation7 + $0xb90] sm:$0xff]
    %v1008 = vld [vmem:[#allocation7 + $0xb98] sm:$0xff]
    %v1009 = vld [vmem:[#allocation7 + $0xba0] sm:$0xff]
    %v1010 = vld [vmem:[#allocation7 + $0xba8] sm:$0xff]
    %v1011 = vld [vmem:[#allocation7 + $0xbb0] sm:$0xff]
    %v1012 = vld [vmem:[#allocation7 + $0xbb8] sm:$0xff]
    %v1013 = vld [vmem:[#allocation7 + $0xbc0] sm:$0xff]
    %v1014 = vld [vmem:[#allocation7 + $0xbc8] sm:$0xff]
    %v1015 = vld [vmem:[#allocation7 + $0xbd0] sm:$0xff]
    %v1016 = vld [vmem:[#allocation7 + $0xbd8] sm:$0xff]
    %v1017 = vld [vmem:[#allocation7 + $0xbe0] sm:$0xff]
    %v1018 = vld [vmem:[#allocation7 + $0xbe8] sm:$0xff]
    %v1019 = vld [vmem:[#allocation7 + $0xbf0] sm:$0xff]
    %v1020 = vld [vmem:[#allocation7 + $0xbf8] sm:$0xff]
    %v1021 = vld [vmem:[#allocation7 + $0xc00] sm:$0xff]
    %v1022 = vld [vmem:[#allocation7 + $0xc08] sm:$0xff]
    %v1023 = vld [vmem:[#allocation7 + $0xc10] sm:$0xff]
    %v1024 = vld [vmem:[#allocation7 + $0xc18] sm:$0xff]
    %v1025 = vld [vmem:[#allocation7 + $0xc20] sm:$0xff]
    %v1026 = vld [vmem:[#allocation7 + $0xc28] sm:$0xff]
    %v1027 = vld [vmem:[#allocation7 + $0xc30] sm:$0xff]
    %v1028 = vld [vmem:[#allocation7 + $0xc38] sm:$0xff]
    %v1029 = vld [vmem:[#allocation7 + $0xc40] sm:$0xff]
    %v1030 = vld [vmem:[#allocation7 + $0xc48] sm:$0xff]
    %v1031 = vld [vmem:[#allocation7 + $0xc50] sm:$0xff]
    %v1032 = vld [vmem:[#allocation7 + $0xc58] sm:$0xff]
    %v1033 = vld [vmem:[#allocation7 + $0xc60] sm:$0xff]
    %v1034 = vld [vmem:[#allocation7 + $0xc68] sm:$0xff]
    %v1035 = vld [vmem:[#allocation7 + $0xc70] sm:$0xff]
    %v1036 = vld [vmem:[#allocation7 + $0xc78] sm:$0xff]
    %v1037 = vld [vmem:[#allocation7 + $0xc80] sm:$0xff]
    %v1038 = vld [vmem:[#allocation7 + $0xc88] sm:$0xff]
    %v1039 = vld [vmem:[#allocation7 + $0xc90] sm:$0xff]
    %v1040 = vld [vmem:[#allocation7 + $0xc98] sm:$0xff]
    %v1041 = vld [vmem:[#allocation7 + $0xca0] sm:$0xff]
    %v1042 = vld [vmem:[#allocation7 + $0xca8] sm:$0xff]
    %v1043 = vld [vmem:[#allocation7 + $0xcb0] sm:$0xff]
    %v1044 = vld [vmem:[#allocation7 + $0xcb8] sm:$0xff]
    %v1045 = vld [vmem:[#allocation7 + $0xcc0] sm:$0xff]
    %v1046 = vld [vmem:[#allocation7 + $0xcc8] sm:$0xff]
    %v1047 = vld [vmem:[#allocation7 + $0xcd0] sm:$0xff]
    %v1048 = vld [vmem:[#allocation7 + $0xcd8] sm:$0xff]
    %v1049 = vld [vmem:[#allocation7 + $0xce0] sm:$0xff]
    %v1050 = vld [vmem:[#allocation7 + $0xce8] sm:$0xff]
    %v1051 = vld [vmem:[#allocation7 + $0xcf0] sm:$0xff]
    %v1052 = vld [vmem:[#allocation7 + $0xcf8] sm:$0xff]
    %v1053 = vld [vmem:[#allocation7 + $0xd00] sm:$0xff]
    %v1054 = vld [vmem:[#allocation7 + $0xd08] sm:$0xff]
    %v1055 = vld [vmem:[#allocation7 + $0xd10] sm:$0xff]
    %v1056 = vld [vmem:[#allocation7 + $0xd18] sm:$0xff]
    %v1057 = vld [vmem:[#allocation7 + $0xd20] sm:$0xff]
    %v1058 = vld [vmem:[#allocation7 + $0xd28] sm:$0xff]
    %v1059 = vld [vmem:[#allocation7 + $0xd30] sm:$0xff]
    %v1060 = vld [vmem:[#allocation7 + $0xd38] sm:$0xff]
    %v1061 = vld [vmem:[#allocation7 + $0xd40] sm:$0xff]
    %v1062 = vld [vmem:[#allocation7 + $0xd48] sm:$0xff]
    %v1063 = vld [vmem:[#allocation7 + $0xd50] sm:$0xff]
    %v1064 = vld [vmem:[#allocation7 + $0xd58] sm:$0xff]
    %v1065 = vld [vmem:[#allocation7 + $0xd60] sm:$0xff]
    %v1066 = vld [vmem:[#allocation7 + $0xd68] sm:$0xff]
    %v1067 = vld [vmem:[#allocation7 + $0xd70] sm:$0xff]
    %v1068 = vld [vmem:[#allocation7 + $0xd78] sm:$0xff]
    %v1069 = vld [vmem:[#allocation7 + $0xd80] sm:$0xff]
    %v1070 = vld [vmem:[#allocation7 + $0xd88] sm:$0xff]
    %v1071 = vld [vmem:[#allocation7 + $0xd90] sm:$0xff]
    %v1072 = vld [vmem:[#allocation7 + $0xd98] sm:$0xff]
    %v1073 = vld [vmem:[#allocation7 + $0xda0] sm:$0xff]
    %v1074 = vld [vmem:[#allocation7 + $0xda8] sm:$0xff]
    %v1075 = vld [vmem:[#allocation7 + $0xdb0] sm:$0xff]
    %v1076 = vld [vmem:[#allocation7 + $0xdb8] sm:$0xff]
    %v1077 = vld [vmem:[#allocation7 + $0xdc0] sm:$0xff]
    %v1078 = vld [vmem:[#allocation7 + $0xdc8] sm:$0xff]
    %v1079 = vld [vmem:[#allocation7 + $0xdd0] sm:$0xff]
    %v1080 = vld [vmem:[#allocation7 + $0xdd8] sm:$0xff]
    %v1081 = vld [vmem:[#allocation7 + $0xde0] sm:$0xff]
    %v1082 = vld [vmem:[#allocation7 + $0xde8] sm:$0xff]
    %v1083 = vld [vmem:[#allocation7 + $0xdf0] sm:$0xff]
    %v1084 = vld [vmem:[#allocation7 + $0xdf8] sm:$0xff]
    %v1085 = vld [vmem:[#allocation7 + $0xe00] sm:$0xff]
    %v1086 = vld [vmem:[#allocation7 + $0xe08] sm:$0xff]
    %v1087 = vld [vmem:[#allocation7 + $0xe10] sm:$0xff]
    %v1088 = vld [vmem:[#allocation7 + $0xe18] sm:$0xff]
    %v1089 = vld [vmem:[#allocation7 + $0xe20] sm:$0xff]
    %v1090 = vld [vmem:[#allocation7 + $0xe28] sm:$0xff]
    %v1091 = vld [vmem:[#allocation7 + $0xe30] sm:$0xff]
    %v1092 = vld [vmem:[#allocation7 + $0xe38] sm:$0xff]
    %v1093 = vld [vmem:[#allocation7 + $0xe40] sm:$0xff]
    %v1094 = vld [vmem:[#allocation7 + $0xe48] sm:$0xff]
    %v1095 = vld [vmem:[#allocation7 + $0xe50] sm:$0xff]
    %v1096 = vld [vmem:[#allocation7 + $0xe58] sm:$0xff]
    %v1097 = vld [vmem:[#allocation7 + $0xe60] sm:$0xff]
    %v1098 = vld [vmem:[#allocation7 + $0xe68] sm:$0xff]
    %v1099 = vld [vmem:[#allocation7 + $0xe70] sm:$0xff]
    %v1100 = vld [vmem:[#allocation7 + $0xe78] sm:$0xff]
    %v1101 = vld [vmem:[#allocation7 + $0xe80] sm:$0xff]
    %v1102 = vld [vmem:[#allocation7 + $0xe88] sm:$0xff]
    %v1103 = vld [vmem:[#allocation7 + $0xe90] sm:$0xff]
    %v1104 = vld [vmem:[#allocation7 + $0xe98] sm:$0xff]
    %v1105 = vld [vmem:[#allocation7 + $0xea0] sm:$0xff]
    %v1106 = vld [vmem:[#allocation7 + $0xea8] sm:$0xff]
    %v1107 = vld [vmem:[#allocation7 + $0xeb0] sm:$0xff]
    %v1108 = vld [vmem:[#allocation7 + $0xeb8] sm:$0xff]
    %v1109 = vld [vmem:[#allocation7 + $0xec0] sm:$0xff]
    %v1110 = vld [vmem:[#allocation7 + $0xec8] sm:$0xff]
    %v1111 = vld [vmem:[#allocation7 + $0xed0] sm:$0xff]
    %v1112 = vld [vmem:[#allocation7 + $0xed8] sm:$0xff]
    %v1113 = vld [vmem:[#allocation7 + $0xee0] sm:$0xff]
    %v1114 = vld [vmem:[#allocation7 + $0xee8] sm:$0xff]
    %v1115 = vld [vmem:[#allocation7 + $0xef0] sm:$0xff]
    %v1116 = vld [vmem:[#allocation7 + $0xef8] sm:$0xff]
    %v1117 = vld [vmem:[#allocation7 + $0xf00] sm:$0xff]
    %v1118 = vld [vmem:[#allocation7 + $0xf08] sm:$0xff]
    %v1119 = vld [vmem:[#allocation7 + $0xf10] sm:$0xff]
    %v1120 = vld [vmem:[#allocation7 + $0xf18] sm:$0xff]
    %v1121 = vld [vmem:[#allocation7 + $0xf20] sm:$0xff]
    %v1122 = vld [vmem:[#allocation7 + $0xf28] sm:$0xff]
    %v1123 = vld [vmem:[#allocation7 + $0xf30] sm:$0xff]
    %v1124 = vld [vmem:[#allocation7 + $0xf38] sm:$0xff]
    %v1125 = vld [vmem:[#allocation7 + $0xf40] sm:$0xff]
    %v1126 = vld [vmem:[#allocation7 + $0xf48] sm:$0xff]
    %v1127 = vld [vmem:[#allocation7 + $0xf50] sm:$0xff]
    %v1128 = vld [vmem:[#allocation7 + $0xf58] sm:$0xff]
    %v1129 = vld [vmem:[#allocation7 + $0xf60] sm:$0xff]
    %v1130 = vld [vmem:[#allocation7 + $0xf68] sm:$0xff]
    %v1131 = vld [vmem:[#allocation7 + $0xf70] sm:$0xff]
    %v1132 = vld [vmem:[#allocation7 + $0xf78] sm:$0xff]
    %v1133 = vld [vmem:[#allocation7 + $0xf80] sm:$0xff]
    %v1134 = vld [vmem:[#allocation7 + $0xf88] sm:$0xff]
    %v1135 = vld [vmem:[#allocation7 + $0xf90] sm:$0xff]
    %v1136 = vld [vmem:[#allocation7 + $0xf98] sm:$0xff]
    %v1137 = vld [vmem:[#allocation7 + $0xfa0] sm:$0xff]
    %v1138 = vld [vmem:[#allocation7 + $0xfa8] sm:$0xff]
    %v1139 = vld [vmem:[#allocation7 + $0xfb0] sm:$0xff]
    %v1140 = vld [vmem:[#allocation7 + $0xfb8] sm:$0xff]
    %v1141 = vld [vmem:[#allocation7 + $0xfc0] sm:$0xff]
    %v1142 = vld [vmem:[#allocation7 + $0xfc8] sm:$0xff]
    %v1143 = vld [vmem:[#allocation7 + $0xfd0] sm:$0xff]
    %v1144 = vld [vmem:[#allocation7 + $0xfd8] sm:$0xff]
    %v1145 = vld [vmem:[#allocation7 + $0xfe0] sm:$0xff]
    %v1146 = vld [vmem:[#allocation7 + $0xfe8] sm:$0xff]
    %v1147 = vld [vmem:[#allocation7 + $0xff0] sm:$0xff]
    %v1148 = vld [vmem:[#allocation7 + $0xff8] sm:$0xff]
    %v1165 = vrot.slane %v621, 2
    %v1166 = vrot.slane %v625, 2
    %v1167 = vsel %vm255, %v1165, %v1166
    %v1168 = vrot.slane %v622, 2
    %v1169 = vrot.slane %v626, 2
    %v1170 = vsel %vm255, %v1168, %v1169
    %v1171 = vrot.slane %v623, 2
    %v1172 = vrot.slane %v627, 2
    %v1173 = vsel %vm255, %v1171, %v1172
    %v1174 = vrot.slane %v624, 2
    %v1175 = vrot.slane %v628, 2
    %v1176 = vsel %vm255, %v1174, %v1175
    %v1177 = vrot.slane %v629, 2
    %v1178 = vsel %vm255, %v1166, %v1177
    %v1179 = vrot.slane %v630, 2
    %v1180 = vsel %vm255, %v1169, %v1179
    %v1181 = vrot.slane %v631, 2
    %v1182 = vsel %vm255, %v1172, %v1181
    %v1183 = vrot.slane %v632, 2
    %v1184 = vsel %vm255, %v1175, %v1183
    %v1185 = vrot.slane %v633, 2
    %v1186 = vsel %vm255, %v1177, %v1185
    %v1187 = vrot.slane %v634, 2
    %v1188 = vsel %vm255, %v1179, %v1187
    %v1189 = vrot.slane %v635, 2
    %v1190 = vsel %vm255, %v1181, %v1189
    %v1191 = vrot.slane %v636, 2
    %v1192 = vsel %vm255, %v1183, %v1191
    %1205 = vmatprep.subr.mxu0 %v894
    %1206 = vmatpush1.msra.mxu0 %v893
    %1207 = vmatprep.subr.mxu0 %v898
    %1208 = vmatpush1.msra.mxu0 %v897
    %1209 = vmatprep.subr.mxu0 %v902
    %1210 = vmatpush1.msra.mxu0 %v901
    %1211 = vmatprep.subr.mxu0 %v906
    %1212 = vmatpush1.msra.mxu0 %v905
    %1213 = vmatprep.subr.mxu0 %v910
    %1214 = vmatpush1.msra.mxu0 %v909
    %1215 = vmatprep.subr.mxu0 %v914
    %1216 = vmatpush1.msra.mxu0 %v913
    %1217 = vmatprep.subr.mxu0 %v918
    %1218 = vmatpush1.msra.mxu0 %v917
    %1219 = vmatprep.subr.mxu0 %v922
    %1220 = vmatpush1.msra.mxu0 %v921
    %1221 = vmatprep.subr.mxu0 %v926
    %1222 = vmatpush1.msra.mxu0 %v925
    %1223 = vmatprep.subr.mxu0 %v930
    %1224 = vmatpush1.msra.mxu0 %v929
    %1225 = vmatprep.subr.mxu0 %v934
    %1226 = vmatpush1.msra.mxu0 %v933
    %1227 = vmatprep.subr.mxu0 %v938
    %1228 = vmatpush1.msra.mxu0 %v937
    %1229 = vmatprep.subr.mxu0 %v942
    %1230 = vmatpush1.msra.mxu0 %v941
    %1231 = vmatprep.subr.mxu0 %v946
    %1232 = vmatpush1.msra.mxu0 %v945
    %1233 = vmatprep.subr.mxu0 %v950
    %1234 = vmatpush1.msra.mxu0 %v949
    %1235 = vmatprep.subr.mxu0 %v954
    %1236 = vmatpush1.msra.mxu0 %v953
    %1237 = vmatprep.subr.mxu0 %v958
    %1238 = vmatpush1.msra.mxu0 %v957
    %1239 = vmatprep.subr.mxu0 %v962
    %1240 = vmatpush1.msra.mxu0 %v961
    %1241 = vmatprep.subr.mxu0 %v966
    %1242 = vmatpush1.msra.mxu0 %v965
    %1243 = vmatprep.subr.mxu0 %v970
    %1244 = vmatpush1.msra.mxu0 %v969
    %1245 = vmatprep.subr.mxu0 %v974
    %1246 = vmatpush1.msra.mxu0 %v973
    %1247 = vmatprep.subr.mxu0 %v978
    %1248 = vmatpush1.msra.mxu0 %v977
    %1249 = vmatprep.subr.mxu0 %v982
    %1250 = vmatpush1.msra.mxu0 %v981
    %1251 = vmatprep.subr.mxu0 %v986
    %1252 = vmatpush1.msra.mxu0 %v985
    %1253 = vmatprep.subr.mxu0 %v990
    %1254 = vmatpush1.msra.mxu0 %v989
    %1255 = vmatprep.subr.mxu0 %v994
    %1256 = vmatpush1.msra.mxu0 %v993
    %1257 = vmatprep.subr.mxu0 %v998
    %1258 = vmatpush1.msra.mxu0 %v997
    %1259 = vmatprep.subr.mxu0 %v1002
    %1260 = vmatpush1.msra.mxu0 %v1001
    %1261 = vmatprep.subr.mxu0 %v1006
    %1262 = vmatpush1.msra.mxu0 %v1005
    %1263 = vmatprep.subr.mxu0 %v1010
    %1264 = vmatpush1.msra.mxu0 %v1009
    %1265 = vmatprep.subr.mxu0 %v1014
    %1266 = vmatpush1.msra.mxu0 %v1013
    %1267 = vmatprep.subr.mxu0 %v1018
    %1268 = vmatpush1.msra.mxu0 %v1017
    %1269 = vmatprep.mubr.f32.mxu0 %v1170
    %1270 = vmatmul.mubr.f32.gmra.mrb[0].mxu0 %v1167
    %v1271 = vpop.f32.mrb[0].mxu0
    %v1272 = vadd.f32 0.0, %v1271
    %v1273 = vpop.f32.mrb[0].mxu0
    %v1274 = vadd.f32 0.0, %v1273
    %1275 = vmatprep.mubr.f32.mxu0 %v1180
    %1276 = vmatmul.mubr.f32.gmra.mrb[0].mxu0 %v1178
    %v1277 = vpop.f32.mrb[0].mxu0
    %v1278 = vadd.f32 0.0, %v1277
    %v1279 = vpop.f32.mrb[0].mxu0
    %v1280 = vadd.f32 0.0, %v1279
    %1281 = vmatprep.mubr.f32.mxu0 %v1188
    %1282 = vmatmul.mubr.f32.gmra.mrb[0].mxu0 %v1186
    %v1283 = vpop.f32.mrb[0].mxu0
    %v1284 = vadd.f32 0.0, %v1283
    %v1285 = vpop.f32.mrb[0].mxu0
    %v1286 = vadd.f32 0.0, %v1285
    %1287 = vdwg.mxu0
    %1288 = vmatprep.subr.mxu0 %v1022
    %1289 = vmatpush1.msra.mxu0 %v1021
    %1290 = vmatprep.subr.mxu0 %v1026
    %1291 = vmatpush1.msra.mxu0 %v1025
    %1292 = vmatprep.subr.mxu0 %v1030
    %1293 = vmatpush1.msra.mxu0 %v1029
    %1294 = vmatprep.subr.mxu0 %v1034
    %1295 = vmatpush1.msra.mxu0 %v1033
    %1296 = vmatprep.subr.mxu0 %v1038
    %1297 = vmatpush1.msra.mxu0 %v1037
    %1298 = vmatprep.subr.mxu0 %v1042
    %1299 = vmatpush1.msra.mxu0 %v1041
    %1300 = vmatprep.subr.mxu0 %v1046
    %1301 = vmatpush1.msra.mxu0 %v1045
    %1302 = vmatprep.subr.mxu0 %v1050
    %1303 = vmatpush1.msra.mxu0 %v1049
    %1304 = vmatprep.subr.mxu0 %v1054
    %1305 = vmatpush1.msra.mxu0 %v1053
    %1306 = vmatprep.subr.mxu0 %v1058
    %1307 = vmatpush1.msra.mxu0 %v1057
    %1308 = vmatprep.subr.mxu0 %v1062
    %1309 = vmatpush1.msra.mxu0 %v1061
    %1310 = vmatprep.subr.mxu0 %v1066
    %1311 = vmatpush1.msra.mxu0 %v1065
    %1312 = vmatprep.subr.mxu0 %v1070
    %1313 = vmatpush1.msra.mxu0 %v1069
    %1314 = vmatprep.subr.mxu0 %v1074
    %1315 = vmatpush1.msra.mxu0 %v1073
    %1316 = vmatprep.subr.mxu0 %v1078
    %1317 = vmatpush1.msra.mxu0 %v1077
    %1318 = vmatprep.subr.mxu0 %v1082
    %1319 = vmatpush1.msra.mxu0 %v1081
    %1320 = vmatprep.subr.mxu0 %v1086
    %1321 = vmatpush1.msra.mxu0 %v1085
    %1322 = vmatprep.subr.mxu0 %v1090
    %1323 = vmatpush1.msra.mxu0 %v1089
    %1324 = vmatprep.subr.mxu0 %v1094
    %1325 = vmatpush1.msra.mxu0 %v1093
    %1326 = vmatprep.subr.mxu0 %v1098
    %1327 = vmatpush1.msra.mxu0 %v1097
    %1328 = vmatprep.subr.mxu0 %v1102
    %1329 = vmatpush1.msra.mxu0 %v1101
    %1330 = vmatprep.subr.mxu0 %v1106
    %1331 = vmatpush1.msra.mxu0 %v1105
    %1332 = vmatprep.subr.mxu0 %v1110
    %1333 = vmatpush1.msra.mxu0 %v1109
    %1334 = vmatprep.subr.mxu0 %v1114
    %1335 = vmatpush1.msra.mxu0 %v1113
    %1336 = vmatprep.subr.mxu0 %v1118
    %1337 = vmatpush1.msra.mxu0 %v1117
    %1338 = vmatprep.subr.mxu0 %v1122
    %1339 = vmatpush1.msra.mxu0 %v1121
    %1340 = vmatprep.subr.mxu0 %v1126
    %1341 = vmatpush1.msra.mxu0 %v1125
    %1342 = vmatprep.subr.mxu0 %v1130
    %1343 = vmatpush1.msra.mxu0 %v1129
    %1344 = vmatprep.subr.mxu0 %v1134
    %1345 = vmatpush1.msra.mxu0 %v1133
    %1346 = vmatprep.subr.mxu0 %v1138
    %1347 = vmatpush1.msra.mxu0 %v1137
    %1348 = vmatprep.subr.mxu0 %v1142
    %1349 = vmatpush1.msra.mxu0 %v1141
    %1350 = vmatprep.subr.mxu0 %v1146
    %1351 = vmatpush1.msra.mxu0 %v1145
    %1352 = vmatprep.mubr.f32.mxu0 %v1176
    %1353 = vmatmul.mubr.f32.gmra.mrb[0].mxu0 %v1173
    %v1354 = vpop.f32.mrb[0].mxu0
    %v1355 = vadd.f32 %v1272, %v1354
    %v1356 = vpop.f32.mrb[0].mxu0
    %v1357 = vadd.f32 %v1274, %v1356
    %1358 = vmatprep.mubr.f32.mxu0 %v1184
    %1359 = vmatmul.mubr.f32.gmra.mrb[0].mxu0 %v1182
    %v1360 = vpop.f32.mrb[0].mxu0
    %v1361 = vadd.f32 %v1278, %v1360
    %v1362 = vpop.f32.mrb[0].mxu0
    %v1363 = vadd.f32 %v1280, %v1362
    %1364 = vmatprep.mubr.f32.mxu0 %v1192
    %1365 = vmatmul.mubr.f32.gmra.mrb[0].mxu0 %v1190
    %v1366 = vpop.f32.mrb[0].mxu0
    %v1367 = vadd.f32 %v1284, %v1366
    %v1368 = vpop.f32.mrb[0].mxu0
    %v1369 = vadd.f32 %v1286, %v1368
    %1370 = vdwg.mxu0
    %1371 = vmatprep.subr.mxu0 %v896
    %1372 = vmatpush1.msra.mxu0 %v895
    %1373 = vmatprep.subr.mxu0 %v900
    %1374 = vmatpush1.msra.mxu0 %v899
    %1375 = vmatprep.subr.mxu0 %v904
    %1376 = vmatpush1.msra.mxu0 %v903
    %1377 = vmatprep.subr.mxu0 %v908
    %1378 = vmatpush1.msra.mxu0 %v907
    %1379 = vmatprep.subr.mxu0 %v912
    %1380 = vmatpush1.msra.mxu0 %v911
    %1381 = vmatprep.subr.mxu0 %v916
    %1382 = vmatpush1.msra.mxu0 %v915
    %1383 = vmatprep.subr.mxu0 %v920
    %1384 = vmatpush1.msra.mxu0 %v919
    %1385 = vmatprep.subr.mxu0 %v924
    %1386 = vmatpush1.msra.mxu0 %v923
    %1387 = vmatprep.subr.mxu0 %v928
    %1388 = vmatpush1.msra.mxu0 %v927
    %1389 = vmatprep.subr.mxu0 %v932
    %1390 = vmatpush1.msra.mxu0 %v931
    %1391 = vmatprep.subr.mxu0 %v936
    %1392 = vmatpush1.msra.mxu0 %v935
    %1393 = vmatprep.subr.mxu0 %v940
    %1394 = vmatpush1.msra.mxu0 %v939
    %1395 = vmatprep.subr.mxu0 %v944
    %1396 = vmatpush1.msra.mxu0 %v943
    %1397 = vmatprep.subr.mxu0 %v948
    %1398 = vmatpush1.msra.mxu0 %v947
    %1399 = vmatprep.subr.mxu0 %v952
    %1400 = vmatpush1.msra.mxu0 %v951
    %1401 = vmatprep.subr.mxu0 %v956
    %1402 = vmatpush1.msra.mxu0 %v955
    %1403 = vmatprep.subr.mxu0 %v960
    %1404 = vmatpush1.msra.mxu0 %v959
    %1405 = vmatprep.subr.mxu0 %v964
    %1406 = vmatpush1.msra.mxu0 %v963
    %1407 = vmatprep.subr.mxu0 %v968
    %1408 = vmatpush1.msra.mxu0 %v967
    %1409 = vmatprep.subr.mxu0 %v972
    %1410 = vmatpush1.msra.mxu0 %v971
    %1411 = vmatprep.subr.mxu0 %v976
    %1412 = vmatpush1.msra.mxu0 %v975
    %1413 = vmatprep.subr.mxu0 %v980
    %1414 = vmatpush1.msra.mxu0 %v979
    %1415 = vmatprep.subr.mxu0 %v984
    %1416 = vmatpush1.msra.mxu0 %v983
    %1417 = vmatprep.subr.mxu0 %v988
    %1418 = vmatpush1.msra.mxu0 %v987
    %1419 = vmatprep.subr.mxu0 %v992
    %1420 = vmatpush1.msra.mxu0 %v991
    %1421 = vmatprep.subr.mxu0 %v996
    %1422 = vmatpush1.msra.mxu0 %v995
    %1423 = vmatprep.subr.mxu0 %v1000
    %1424 = vmatpush1.msra.mxu0 %v999
    %1425 = vmatprep.subr.mxu0 %v1004
    %1426 = vmatpush1.msra.mxu0 %v1003
    %1427 = vmatprep.subr.mxu0 %v1008
    %1428 = vmatpush1.msra.mxu0 %v1007
    %1429 = vmatprep.subr.mxu0 %v1012
    %1430 = vmatpush1.msra.mxu0 %v1011
    %1431 = vmatprep.subr.mxu0 %v1016
    %1432 = vmatpush1.msra.mxu0 %v1015
    %1433 = vmatprep.subr.mxu0 %v1020
    %1434 = vmatpush1.msra.mxu0 %v1019
    %1435 = vmatprep.mubr.f32.mxu0 %v1170
    %1436 = vmatmul.mubr.f32.gmra.mrb[0].mxu0 %v1167
    %v1437 = vpop.f32.mrb[0].mxu0
    %v1438 = vadd.f32 0.0, %v1437
    %v1439 = vpop.f32.mrb[0].mxu0
    %v1440 = vadd.f32 0.0, %v1439
    %1441 = vmatprep.mubr.f32.mxu0 %v1180
    %1442 = vmatmul.mubr.f32.gmra.mrb[0].mxu0 %v1178
    %v1443 = vpop.f32.mrb[0].mxu0
    %v1444 = vadd.f32 0.0, %v1443
    %v1445 = vpop.f32.mrb[0].mxu0
    %v1446 = vadd.f32 0.0, %v1445
    %1447 = vmatprep.mubr.f32.mxu0 %v1188
    %1448 = vmatmul.mubr.f32.gmra.mrb[0].mxu0 %v1186
    %v1449 = vpop.f32.mrb[0].mxu0
    %v1450 = vadd.f32 0.0, %v1449
    %v1451 = vpop.f32.mrb[0].mxu0
    %v1452 = vadd.f32 0.0, %v1451
    %1453 = vdwg.mxu0
    %1454 = vmatprep.subr.mxu0 %v1024
    %1455 = vmatpush1.msra.mxu0 %v1023
    %1456 = vmatprep.subr.mxu0 %v1028
    %1457 = vmatpush1.msra.mxu0 %v1027
    %1458 = vmatprep.subr.mxu0 %v1032
    %1459 = vmatpush1.msra.mxu0 %v1031
    %1460 = vmatprep.subr.mxu0 %v1036
    %1461 = vmatpush1.msra.mxu0 %v1035
    %1462 = vmatprep.subr.mxu0 %v1040
    %1463 = vmatpush1.msra.mxu0 %v1039
    %1464 = vmatprep.subr.mxu0 %v1044
    %1465 = vmatpush1.msra.mxu0 %v1043
    %1466 = vmatprep.subr.mxu0 %v1048
    %1467 = vmatpush1.msra.mxu0 %v1047
    %1468 = vmatprep.subr.mxu0 %v1052
    %1469 = vmatpush1.msra.mxu0 %v1051
    %1470 = vmatprep.subr.mxu0 %v1056
    %1471 = vmatpush1.msra.mxu0 %v1055
    %1472 = vmatprep.subr.mxu0 %v1060
    %1473 = vmatpush1.msra.mxu0 %v1059
    %1474 = vmatprep.subr.mxu0 %v1064
    %1475 = vmatpush1.msra.mxu0 %v1063
    %1476 = vmatprep.subr.mxu0 %v1068
    %1477 = vmatpush1.msra.mxu0 %v1067
    %1478 = vmatprep.subr.mxu0 %v1072
    %1479 = vmatpush1.msra.mxu0 %v1071
    %1480 = vmatprep.subr.mxu0 %v1076
    %1481 = vmatpush1.msra.mxu0 %v1075
    %1482 = vmatprep.subr.mxu0 %v1080
    %1483 = vmatpush1.msra.mxu0 %v1079
    %1484 = vmatprep.subr.mxu0 %v1084
    %1485 = vmatpush1.msra.mxu0 %v1083
    %1486 = vmatprep.subr.mxu0 %v1088
    %1487 = vmatpush1.msra.mxu0 %v1087
    %1488 = vmatprep.subr.mxu0 %v1092
    %1489 = vmatpush1.msra.mxu0 %v1091
    %1490 = vmatprep.subr.mxu0 %v1096
    %1491 = vmatpush1.msra.mxu0 %v1095
    %1492 = vmatprep.subr.mxu0 %v1100
    %1493 = vmatpush1.msra.mxu0 %v1099
    %1494 = vmatprep.subr.mxu0 %v1104
    %1495 = vmatpush1.msra.mxu0 %v1103
    %1496 = vmatprep.subr.mxu0 %v1108
    %1497 = vmatpush1.msra.mxu0 %v1107
    %1498 = vmatprep.subr.mxu0 %v1112
    %1499 = vmatpush1.msra.mxu0 %v1111
    %1500 = vmatprep.subr.mxu0 %v1116
    %1501 = vmatpush1.msra.mxu0 %v1115
    %1502 = vmatprep.subr.mxu0 %v1120
    %1503 = vmatpush1.msra.mxu0 %v1119
    %1504 = vmatprep.subr.mxu0 %v1124
    %1505 = vmatpush1.msra.mxu0 %v1123
    %1506 = vmatprep.subr.mxu0 %v1128
    %1507 = vmatpush1.msra.mxu0 %v1127
    %1508 = vmatprep.subr.mxu0 %v1132
    %1509 = vmatpush1.msra.mxu0 %v1131
    %1510 = vmatprep.subr.mxu0 %v1136
    %1511 = vmatpush1.msra.mxu0 %v1135
    %1512 = vmatprep.subr.mxu0 %v1140
    %1513 = vmatpush1.msra.mxu0 %v1139
    %1514 = vmatprep.subr.mxu0 %v1144
    %1515 = vmatpush1.msra.mxu0 %v1143
    %1516 = vmatprep.subr.mxu0 %v1148
    %1517 = vmatpush1.msra.mxu0 %v1147
    %1518 = vmatprep.mubr.f32.mxu0 %v1176
    %1519 = vmatmul.mubr.f32.gmra.mrb[0].mxu0 %v1173
    %v1520 = vpop.f32.mrb[0].mxu0
    %v1521 = vadd.f32 %v1438, %v1520
    %v1522 = vpop.f32.mrb[0].mxu0
    %v1523 = vadd.f32 %v1440, %v1522
    %1524 = vmatprep.mubr.f32.mxu0 %v1184
    %1525 = vmatmul.mubr.f32.gmra.mrb[0].mxu0 %v1182
    %v1526 = vpop.f32.mrb[0].mxu0
    %v1527 = vadd.f32 %v1444, %v1526
    %v1528 = vpop.f32.mrb[0].mxu0
    %v1529 = vadd.f32 %v1446, %v1528
    %1530 = vmatprep.mubr.f32.mxu0 %v1192
    %1531 = vmatmul.mubr.f32.gmra.mrb[0].mxu0 %v1190
    %v1532 = vpop.f32.mrb[0].mxu0
    %v1533 = vadd.f32 %v1450, %v1532
    %v1534 = vpop.f32.mrb[0].mxu0
    %v1535 = vadd.f32 %v1452, %v1534
    %1536 = vdwg.mxu0
    %1537 = vmatprep.subr.mxu0 %v638
    %1538 = vmatpush1.msra.mxu0 %v637
    %1539 = vmatprep.subr.mxu0 %v642
    %1540 = vmatpush1.msra.mxu0 %v641
    %1541 = vmatprep.subr.mxu0 %v646
    %1542 = vmatpush1.msra.mxu0 %v645
    %1543 = vmatprep.subr.mxu0 %v650
    %1544 = vmatpush1.msra.mxu0 %v649
    %1545 = vmatprep.subr.mxu0 %v654
    %1546 = vmatpush1.msra.mxu0 %v653
    %1547 = vmatprep.subr.mxu0 %v658
    %1548 = vmatpush1.msra.mxu0 %v657
    %1549 = vmatprep.subr.mxu0 %v662
    %1550 = vmatpush1.msra.mxu0 %v661
    %1551 = vmatprep.subr.mxu0 %v666
    %1552 = vmatpush1.msra.mxu0 %v665
    %1553 = vmatprep.subr.mxu0 %v670
    %1554 = vmatpush1.msra.mxu0 %v669
    %1555 = vmatprep.subr.mxu0 %v674
    %1556 = vmatpush1.msra.mxu0 %v673
    %1557 = vmatprep.subr.mxu0 %v678
    %1558 = vmatpush1.msra.mxu0 %v677
    %1559 = vmatprep.subr.mxu0 %v682
    %1560 = vmatpush1.msra.mxu0 %v681
    %1561 = vmatprep.subr.mxu0 %v686
    %1562 = vmatpush1.msra.mxu0 %v685
    %1563 = vmatprep.subr.mxu0 %v690
    %1564 = vmatpush1.msra.mxu0 %v689
    %1565 = vmatprep.subr.mxu0 %v694
    %1566 = vmatpush1.msra.mxu0 %v693
    %1567 = vmatprep.subr.mxu0 %v698
    %1568 = vmatpush1.msra.mxu0 %v697
    %1569 = vmatprep.subr.mxu0 %v702
    %1570 = vmatpush1.msra.mxu0 %v701
    %1571 = vmatprep.subr.mxu0 %v706
    %1572 = vmatpush1.msra.mxu0 %v705
    %1573 = vmatprep.subr.mxu0 %v710
    %1574 = vmatpush1.msra.mxu0 %v709
    %1575 = vmatprep.subr.mxu0 %v714
    %1576 = vmatpush1.msra.mxu0 %v713
    %1577 = vmatprep.subr.mxu0 %v718
    %1578 = vmatpush1.msra.mxu0 %v717
    %1579 = vmatprep.subr.mxu0 %v722
    %1580 = vmatpush1.msra.mxu0 %v721
    %1581 = vmatprep.subr.mxu0 %v726
    %1582 = vmatpush1.msra.mxu0 %v725
    %1583 = vmatprep.subr.mxu0 %v730
    %1584 = vmatpush1.msra.mxu0 %v729
    %1585 = vmatprep.subr.mxu0 %v734
    %1586 = vmatpush1.msra.mxu0 %v733
    %1587 = vmatprep.subr.mxu0 %v738
    %1588 = vmatpush1.msra.mxu0 %v737
    %1589 = vmatprep.subr.mxu0 %v742
    %1590 = vmatpush1.msra.mxu0 %v741
    %1591 = vmatprep.subr.mxu0 %v746
    %1592 = vmatpush1.msra.mxu0 %v745
    %1593 = vmatprep.subr.mxu0 %v750
    %1594 = vmatpush1.msra.mxu0 %v749
    %1595 = vmatprep.subr.mxu0 %v754
    %1596 = vmatpush1.msra.mxu0 %v753
    %1597 = vmatprep.subr.mxu0 %v758
    %1598 = vmatpush1.msra.mxu0 %v757
    %1599 = vmatprep.subr.mxu0 %v762
    %1600 = vmatpush1.msra.mxu0 %v761
    %1601 = vmatprep.mubr.f32.mxu0 %v622
    %1602 = vmatmul.mubr.f32.gmra.mrb[0].mxu0 %v621
    %v1603 = vpop.f32.mrb[0].mxu0
    %v1604 = vadd.f32 %v1355, %v1603
    %v1605 = vpop.f32.mrb[0].mxu0
    %v1606 = vadd.f32 %v1357, %v1605
    %1607 = vmatprep.mubr.f32.mxu0 %v626
    %1608 = vmatmul.mubr.f32.gmra.mrb[0].mxu0 %v625
    %v1609 = vpop.f32.mrb[0].mxu0
    %v1610 = vadd.f32 %v1361, %v1609
    %v1611 = vpop.f32.mrb[0].mxu0
    %v1612 = vadd.f32 %v1363, %v1611
    %1613 = vmatprep.mubr.f32.mxu0 %v630
    %1614 = vmatmul.mubr.f32.gmra.mrb[0].mxu0 %v629
    %v1615 = vpop.f32.mrb[0].mxu0
    %v1616 = vadd.f32 %v1367, %v1615
    %v1617 = vpop.f32.mrb[0].mxu0
    %v1618 = vadd.f32 %v1369, %v1617
    %1619 = vdwg.mxu0
    %1620 = vmatprep.subr.mxu0 %v766
    %1621 = vmatpush1.msra.mxu0 %v765
    %1622 = vmatprep.subr.mxu0 %v770
    %1623 = vmatpush1.msra.mxu0 %v769
    %1624 = vmatprep.subr.mxu0 %v774
    %1625 = vmatpush1.msra.mxu0 %v773
    %1626 = vmatprep.subr.mxu0 %v778
    %1627 = vmatpush1.msra.mxu0 %v777
    %1628 = vmatprep.subr.mxu0 %v782
    %1629 = vmatpush1.msra.mxu0 %v781
    %1630 = vmatprep.subr.mxu0 %v786
    %1631 = vmatpush1.msra.mxu0 %v785
    %1632 = vmatprep.subr.mxu0 %v790
    %1633 = vmatpush1.msra.mxu0 %v789
    %1634 = vmatprep.subr.mxu0 %v794
    %1635 = vmatpush1.msra.mxu0 %v793
    %1636 = vmatprep.subr.mxu0 %v798
    %1637 = vmatpush1.msra.mxu0 %v797
    %1638 = vmatprep.subr.mxu0 %v802
    %1639 = vmatpush1.msra.mxu0 %v801
    %1640 = vmatprep.subr.mxu0 %v806
    %1641 = vmatpush1.msra.mxu0 %v805
    %1642 = vmatprep.subr.mxu0 %v810
    %1643 = vmatpush1.msra.mxu0 %v809
    %1644 = vmatprep.subr.mxu0 %v814
    %1645 = vmatpush1.msra.mxu0 %v813
    %1646 = vmatprep.subr.mxu0 %v818
    %1647 = vmatpush1.msra.mxu0 %v817
    %1648 = vmatprep.subr.mxu0 %v822
    %1649 = vmatpush1.msra.mxu0 %v821
    %1650 = vmatprep.subr.mxu0 %v826
    %1651 = vmatpush1.msra.mxu0 %v825
    %1652 = vmatprep.subr.mxu0 %v830
    %1653 = vmatpush1.msra.mxu0 %v829
    %1654 = vmatprep.subr.mxu0 %v834
    %1655 = vmatpush1.msra.mxu0 %v833
    %1656 = vmatprep.subr.mxu0 %v838
    %1657 = vmatpush1.msra.mxu0 %v837
    %1658 = vmatprep.subr.mxu0 %v842
    %1659 = vmatpush1.msra.mxu0 %v841
    %1660 = vmatprep.subr.mxu0 %v846
    %1661 = vmatpush1.msra.mxu0 %v845
    %1662 = vmatprep.subr.mxu0 %v850
    %1663 = vmatpush1.msra.mxu0 %v849
    %1664 = vmatprep.subr.mxu0 %v854
    %1665 = vmatpush1.msra.mxu0 %v853
    %1666 = vmatprep.subr.mxu0 %v858
    %1667 = vmatpush1.msra.mxu0 %v857
    %1668 = vmatprep.subr.mxu0 %v862
    %1669 = vmatpush1.msra.mxu0 %v861
    %1670 = vmatprep.subr.mxu0 %v866
    %1671 = vmatpush1.msra.mxu0 %v865
    %1672 = vmatprep.subr.mxu0 %v870
    %1673 = vmatpush1.msra.mxu0 %v869
    %1674 = vmatprep.subr.mxu0 %v874
    %1675 = vmatpush1.msra.mxu0 %v873
    %1676 = vmatprep.subr.mxu0 %v878
    %1677 = vmatpush1.msra.mxu0 %v877
    %1678 = vmatprep.subr.mxu0 %v882
    %1679 = vmatpush1.msra.mxu0 %v881
    %1680 = vmatprep.subr.mxu0 %v886
    %1681 = vmatpush1.msra.mxu0 %v885
    %1682 = vmatprep.subr.mxu0 %v890
    %1683 = vmatpush1.msra.mxu0 %v889
    %1684 = vmatprep.mubr.f32.mxu0 %v624
    %1685 = vmatmul.mubr.f32.gmra.mrb[0].mxu0 %v623
    %v1686 = vpop.f32.mrb[0].mxu0
    %v1687 = vadd.f32 %v1604, %v1686
    %v1688 = vpop.f32.mrb[0].mxu0
    %v1689 = vadd.f32 %v1606, %v1688
    %1690 = vmatprep.mubr.f32.mxu0 %v628
    %1691 = vmatmul.mubr.f32.gmra.mrb[0].mxu0 %v627
    %v1692 = vpop.f32.mrb[0].mxu0
    %v1693 = vadd.f32 %v1610, %v1692
    %v1694 = vpop.f32.mrb[0].mxu0
    %v1695 = vadd.f32 %v1612, %v1694
    %1696 = vmatprep.mubr.f32.mxu0 %v632
    %1697 = vmatmul.mubr.f32.gmra.mrb[0].mxu0 %v631
    %v1698 = vpop.f32.mrb[0].mxu0
    %v1699 = vadd.f32 %v1616, %v1698
    %v1700 = vpop.f32.mrb[0].mxu0
    %v1701 = vadd.f32 %v1618, %v1700
    %1702 = vdwg.mxu0
    %1703 = vmatprep.subr.mxu0 %v640
    %1704 = vmatpush1.msra.mxu0 %v639
    %1705 = vmatprep.subr.mxu0 %v644
    %1706 = vmatpush1.msra.mxu0 %v643
    %1707 = vmatprep.subr.mxu0 %v648
    %1708 = vmatpush1.msra.mxu0 %v647
    %1709 = vmatprep.subr.mxu0 %v652
    %1710 = vmatpush1.msra.mxu0 %v651
    %1711 = vmatprep.subr.mxu0 %v656
    %1712 = vmatpush1.msra.mxu0 %v655
    %1713 = vmatprep.subr.mxu0 %v660
    %1714 = vmatpush1.msra.mxu0 %v659
    %1715 = vmatprep.subr.mxu0 %v664
    %1716 = vmatpush1.msra.mxu0 %v663
    %1717 = vmatprep.subr.mxu0 %v668
    %1718 = vmatpush1.msra.mxu0 %v667
    %1719 = vmatprep.subr.mxu0 %v672
    %1720 = vmatpush1.msra.mxu0 %v671
    %1721 = vmatprep.subr.mxu0 %v676
    %1722 = vmatpush1.msra.mxu0 %v675
    %1723 = vmatprep.subr.mxu0 %v680
    %1724 = vmatpush1.msra.mxu0 %v679
    %1725 = vmatprep.subr.mxu0 %v684
    %1726 = vmatpush1.msra.mxu0 %v683
    %1727 = vmatprep.subr.mxu0 %v688
    %1728 = vmatpush1.msra.mxu0 %v687
    %1729 = vmatprep.subr.mxu0 %v692
    %1730 = vmatpush1.msra.mxu0 %v691
    %1731 = vmatprep.subr.mxu0 %v696
    %1732 = vmatpush1.msra.mxu0 %v695
    %1733 = vmatprep.subr.mxu0 %v700
    %1734 = vmatpush1.msra.mxu0 %v699
    %1735 = vmatprep.subr.mxu0 %v704
    %1736 = vmatpush1.msra.mxu0 %v703
    %1737 = vmatprep.subr.mxu0 %v708
    %1738 = vmatpush1.msra.mxu0 %v707
    %1739 = vmatprep.subr.mxu0 %v712
    %1740 = vmatpush1.msra.mxu0 %v711
    %1741 = vmatprep.subr.mxu0 %v716
    %1742 = vmatpush1.msra.mxu0 %v715
    %1743 = vmatprep.subr.mxu0 %v720
    %1744 = vmatpush1.msra.mxu0 %v719
    %1745 = vmatprep.subr.mxu0 %v724
    %1746 = vmatpush1.msra.mxu0 %v723
    %1747 = vmatprep.subr.mxu0 %v728
    %1748 = vmatpush1.msra.mxu0 %v727
    %1749 = vmatprep.subr.mxu0 %v732
    %1750 = vmatpush1.msra.mxu0 %v731
    %1751 = vmatprep.subr.mxu0 %v736
    %1752 = vmatpush1.msra.mxu0 %v735
    %1753 = vmatprep.subr.mxu0 %v740
    %1754 = vmatpush1.msra.mxu0 %v739
    %1755 = vmatprep.subr.mxu0 %v744
    %1756 = vmatpush1.msra.mxu0 %v743
    %1757 = vmatprep.subr.mxu0 %v748
    %1758 = vmatpush1.msra.mxu0 %v747
    %1759 = vmatprep.subr.mxu0 %v752
    %1760 = vmatpush1.msra.mxu0 %v751
    %1761 = vmatprep.subr.mxu0 %v756
    %1762 = vmatpush1.msra.mxu0 %v755
    %1763 = vmatprep.subr.mxu0 %v760
    %1764 = vmatpush1.msra.mxu0 %v759
    %1765 = vmatprep.subr.mxu0 %v764
    %1766 = vmatpush1.msra.mxu0 %v763
    %1767 = vmatprep.mubr.f32.mxu0 %v622
    %1768 = vmatmul.mubr.f32.gmra.mrb[0].mxu0 %v621
    %v1769 = vpop.f32.mrb[0].mxu0
    %v1770 = vadd.f32 %v1521, %v1769
    %v1771 = vpop.f32.mrb[0].mxu0
    %v1772 = vadd.f32 %v1523, %v1771
    %1773 = vmatprep.mubr.f32.mxu0 %v626
    %1774 = vmatmul.mubr.f32.gmra.mrb[0].mxu0 %v625
    %v1775 = vpop.f32.mrb[0].mxu0
    %v1776 = vadd.f32 %v1527, %v1775
    %v1777 = vpop.f32.mrb[0].mxu0
    %v1778 = vadd.f32 %v1529, %v1777
    %1779 = vmatprep.mubr.f32.mxu0 %v630
    %1780 = vmatmul.mubr.f32.gmra.mrb[0].mxu0 %v629
    %v1781 = vpop.f32.mrb[0].mxu0
    %v1782 = vadd.f32 %v1533, %v1781
    %v1783 = vpop.f32.mrb[0].mxu0
    %v1784 = vadd.f32 %v1535, %v1783
    %1785 = vdwg.mxu0
    %1786 = vmatprep.subr.mxu0 %v768
    %1787 = vmatpush1.msra.mxu0 %v767
    %1788 = vmatprep.subr.mxu0 %v772
    %1789 = vmatpush1.msra.mxu0 %v771
    %1790 = vmatprep.subr.mxu0 %v776
    %1791 = vmatpush1.msra.mxu0 %v775
    %1792 = vmatprep.subr.mxu0 %v780
    %1793 = vmatpush1.msra.mxu0 %v779
    %1794 = vmatprep.subr.mxu0 %v784
    %1795 = vmatpush1.msra.mxu0 %v783
    %1796 = vmatprep.subr.mxu0 %v788
    %1797 = vmatpush1.msra.mxu0 %v787
    %1798 = vmatprep.subr.mxu0 %v792
    %1799 = vmatpush1.msra.mxu0 %v791
    %1800 = vmatprep.subr.mxu0 %v796
    %1801 = vmatpush1.msra.mxu0 %v795
    %1802 = vmatprep.subr.mxu0 %v800
    %1803 = vmatpush1.msra.mxu0 %v799
    %1804 = vmatprep.subr.mxu0 %v804
    %1805 = vmatpush1.msra.mxu0 %v803
    %1806 = vmatprep.subr.mxu0 %v808
    %1807 = vmatpush1.msra.mxu0 %v807
    %1808 = vmatprep.subr.mxu0 %v812
    %1809 = vmatpush1.msra.mxu0 %v811
    %1810 = vmatprep.subr.mxu0 %v816
    %1811 = vmatpush1.msra.mxu0 %v815
    %1812 = vmatprep.subr.mxu0 %v820
    %1813 = vmatpush1.msra.mxu0 %v819
    %1814 = vmatprep.subr.mxu0 %v824
    %1815 = vmatpush1.msra.mxu0 %v823
    %1816 = vmatprep.subr.mxu0 %v828
    %1817 = vmatpush1.msra.mxu0 %v827
    %1818 = vmatprep.subr.mxu0 %v832
    %1819 = vmatpush1.msra.mxu0 %v831
    %1820 = vmatprep.subr.mxu0 %v836
    %1821 = vmatpush1.msra.mxu0 %v835
    %1822 = vmatprep.subr.mxu0 %v840
    %1823 = vmatpush1.msra.mxu0 %v839
    %1824 = vmatprep.subr.mxu0 %v844
    %1825 = vmatpush1.msra.mxu0 %v843
    %1826 = vmatprep.subr.mxu0 %v848
    %1827 = vmatpush1.msra.mxu0 %v847
    %1828 = vmatprep.subr.mxu0 %v852
    %1829 = vmatpush1.msra.mxu0 %v851
    %1830 = vmatprep.subr.mxu0 %v856
    %1831 = vmatpush1.msra.mxu0 %v855
    %1832 = vmatprep.subr.mxu0 %v860
    %1833 = vmatpush1.msra.mxu0 %v859
    %1834 = vmatprep.subr.mxu0 %v864
    %1835 = vmatpush1.msra.mxu0 %v863
    %1836 = vmatprep.subr.mxu0 %v868
    %1837 = vmatpush1.msra.mxu0 %v867
    %1838 = vmatprep.subr.mxu0 %v872
    %1839 = vmatpush1.msra.mxu0 %v871
    %1840 = vmatprep.subr.mxu0 %v876
    %1841 = vmatpush1.msra.mxu0 %v875
    %1842 = vmatprep.subr.mxu0 %v880
    %1843 = vmatpush1.msra.mxu0 %v879
    %1844 = vmatprep.subr.mxu0 %v884
    %1845 = vmatpush1.msra.mxu0 %v883
    %1846 = vmatprep.subr.mxu0 %v888
    %1847 = vmatpush1.msra.mxu0 %v887
    %1848 = vmatprep.subr.mxu0 %v892
    %1849 = vmatpush1.msra.mxu0 %v891
    %1850 = vmatprep.mubr.f32.mxu0 %v624
    %1851 = vmatmul.mubr.f32.gmra.mrb[0].mxu0 %v623
    %v1852 = vpop.f32.mrb[0].mxu0
    %v1853 = vadd.f32 %v1770, %v1852
    %v1854 = vpop.f32.mrb[0].mxu0
    %v1855 = vadd.f32 %v1772, %v1854
    %1856 = vmatprep.mubr.f32.mxu0 %v628
    %1857 = vmatmul.mubr.f32.gmra.mrb[0].mxu0 %v627
    %v1858 = vpop.f32.mrb[0].mxu0
    %v1859 = vadd.f32 %v1776, %v1858
    %v1860 = vpop.f32.mrb[0].mxu0
    %v1861 = vadd.f32 %v1778, %v1860
    %1862 = vmatprep.mubr.f32.mxu0 %v632
    %1863 = vmatmul.mubr.f32.gmra.mrb[0].mxu0 %v631
    %v1864 = vpop.f32.mrb[0].mxu0
    %v1865 = vadd.f32 %v1782, %v1864
    %v1866 = vpop.f32.mrb[0].mxu0
    %v1867 = vadd.f32 %v1784, %v1866
    %1868 = vdwg.mxu0
    %v1869 = vld [vmem:[#allocation7 + $0x1000] sm:$0xff]
    %v1870 = vld [vmem:[#allocation7 + $0x1008] sm:$0xff]
    %v1871 = vld [vmem:[#allocation7 + $0x1010] sm:$0xff]
    %v1872 = vld [vmem:[#allocation7 + $0x1018] sm:$0xff]
    %v1873 = vld [vmem:[#allocation7 + $0x1020] sm:$0xff]
    %v1874 = vld [vmem:[#allocation7 + $0x1028] sm:$0xff]
    %v1875 = vld [vmem:[#allocation7 + $0x1030] sm:$0xff]
    %v1876 = vld [vmem:[#allocation7 + $0x1038] sm:$0xff]
    %v1877 = vld [vmem:[#allocation7 + $0x1040] sm:$0xff]
    %v1878 = vld [vmem:[#allocation7 + $0x1048] sm:$0xff]
    %v1879 = vld [vmem:[#allocation7 + $0x1050] sm:$0xff]
    %v1880 = vld [vmem:[#allocation7 + $0x1058] sm:$0xff]
    %v1881 = vld [vmem:[#allocation7 + $0x1060] sm:$0xff]
    %v1882 = vld [vmem:[#allocation7 + $0x1068] sm:$0xff]
    %v1883 = vld [vmem:[#allocation7 + $0x1070] sm:$0xff]
    %v1884 = vld [vmem:[#allocation7 + $0x1078] sm:$0xff]
    %v1885 = vld [vmem:[#allocation7 + $0x1080] sm:$0xff]
    %v1886 = vld [vmem:[#allocation7 + $0x1088] sm:$0xff]
    %v1887 = vld [vmem:[#allocation7 + $0x1090] sm:$0xff]
    %v1888 = vld [vmem:[#allocation7 + $0x1098] sm:$0xff]
    %v1889 = vld [vmem:[#allocation7 + $0x10a0] sm:$0xff]
    %v1890 = vld [vmem:[#allocation7 + $0x10a8] sm:$0xff]
    %v1891 = vld [vmem:[#allocation7 + $0x10b0] sm:$0xff]
    %v1892 = vld [vmem:[#allocation7 + $0x10b8] sm:$0xff]
    %v1893 = vld [vmem:[#allocation7 + $0x10c0] sm:$0xff]
    %v1894 = vld [vmem:[#allocation7 + $0x10c8] sm:$0xff]
    %v1895 = vld [vmem:[#allocation7 + $0x10d0] sm:$0xff]
    %v1896 = vld [vmem:[#allocation7 + $0x10d8] sm:$0xff]
    %v1897 = vld [vmem:[#allocation7 + $0x10e0] sm:$0xff]
    %v1898 = vld [vmem:[#allocation7 + $0x10e8] sm:$0xff]
    %v1899 = vld [vmem:[#allocation7 + $0x10f0] sm:$0xff]
    %v1900 = vld [vmem:[#allocation7 + $0x10f8] sm:$0xff]
    %v1901 = vld [vmem:[#allocation7 + $0x1100] sm:$0xff]
    %v1902 = vld [vmem:[#allocation7 + $0x1108] sm:$0xff]
    %v1903 = vld [vmem:[#allocation7 + $0x1110] sm:$0xff]
    %v1904 = vld [vmem:[#allocation7 + $0x1118] sm:$0xff]
    %v1905 = vld [vmem:[#allocation7 + $0x1120] sm:$0xff]
    %v1906 = vld [vmem:[#allocation7 + $0x1128] sm:$0xff]
    %v1907 = vld [vmem:[#allocation7 + $0x1130] sm:$0xff]
    %v1908 = vld [vmem:[#allocation7 + $0x1138] sm:$0xff]
    %v1909 = vld [vmem:[#allocation7 + $0x1140] sm:$0xff]
    %v1910 = vld [vmem:[#allocation7 + $0x1148] sm:$0xff]
    %v1911 = vld [vmem:[#allocation7 + $0x1150] sm:$0xff]
    %v1912 = vld [vmem:[#allocation7 + $0x1158] sm:$0xff]
    %v1913 = vld [vmem:[#allocation7 + $0x1160] sm:$0xff]
    %v1914 = vld [vmem:[#allocation7 + $0x1168] sm:$0xff]
    %v1915 = vld [vmem:[#allocation7 + $0x1170] sm:$0xff]
    %v1916 = vld [vmem:[#allocation7 + $0x1178] sm:$0xff]
    %v1917 = vld [vmem:[#allocation7 + $0x1180] sm:$0xff]
    %v1918 = vld [vmem:[#allocation7 + $0x1188] sm:$0xff]
    %v1919 = vld [vmem:[#allocation7 + $0x1190] sm:$0xff]
    %v1920 = vld [vmem:[#allocation7 + $0x1198] sm:$0xff]
    %v1921 = vld [vmem:[#allocation7 + $0x11a0] sm:$0xff]
    %v1922 = vld [vmem:[#allocation7 + $0x11a8] sm:$0xff]
    %v1923 = vld [vmem:[#allocation7 + $0x11b0] sm:$0xff]
    %v1924 = vld [vmem:[#allocation7 + $0x11b8] sm:$0xff]
    %v1925 = vld [vmem:[#allocation7 + $0x11c0] sm:$0xff]
    %v1926 = vld [vmem:[#allocation7 + $0x11c8] sm:$0xff]
    %v1927 = vld [vmem:[#allocation7 + $0x11d0] sm:$0xff]
    %v1928 = vld [vmem:[#allocation7 + $0x11d8] sm:$0xff]
    %v1929 = vld [vmem:[#allocation7 + $0x11e0] sm:$0xff]
    %v1930 = vld [vmem:[#allocation7 + $0x11e8] sm:$0xff]
    %v1931 = vld [vmem:[#allocation7 + $0x11f0] sm:$0xff]
    %v1932 = vld [vmem:[#allocation7 + $0x11f8] sm:$0xff]
    %v1933 = vld [vmem:[#allocation7 + $0x1200] sm:$0xff]
    %v1934 = vld [vmem:[#allocation7 + $0x1208] sm:$0xff]
    %v1935 = vld [vmem:[#allocation7 + $0x1210] sm:$0xff]
    %v1936 = vld [vmem:[#allocation7 + $0x1218] sm:$0xff]
    %v1937 = vld [vmem:[#allocation7 + $0x1220] sm:$0xff]
    %v1938 = vld [vmem:[#allocation7 + $0x1228] sm:$0xff]
    %v1939 = vld [vmem:[#allocation7 + $0x1230] sm:$0xff]
    %v1940 = vld [vmem:[#allocation7 + $0x1238] sm:$0xff]
    %v1941 = vld [vmem:[#allocation7 + $0x1240] sm:$0xff]
    %v1942 = vld [vmem:[#allocation7 + $0x1248] sm:$0xff]
    %v1943 = vld [vmem:[#allocation7 + $0x1250] sm:$0xff]
    %v1944 = vld [vmem:[#allocation7 + $0x1258] sm:$0xff]
    %v1945 = vld [vmem:[#allocation7 + $0x1260] sm:$0xff]
    %v1946 = vld [vmem:[#allocation7 + $0x1268] sm:$0xff]
    %v1947 = vld [vmem:[#allocation7 + $0x1270] sm:$0xff]
    %v1948 = vld [vmem:[#allocation7 + $0x1278] sm:$0xff]
    %v1949 = vld [vmem:[#allocation7 + $0x1280] sm:$0xff]
    %v1950 = vld [vmem:[#allocation7 + $0x1288] sm:$0xff]
    %v1951 = vld [vmem:[#allocation7 + $0x1290] sm:$0xff]
    %v1952 = vld [vmem:[#allocation7 + $0x1298] sm:$0xff]
    %v1953 = vld [vmem:[#allocation7 + $0x12a0] sm:$0xff]
    %v1954 = vld [vmem:[#allocation7 + $0x12a8] sm:$0xff]
    %v1955 = vld [vmem:[#allocation7 + $0x12b0] sm:$0xff]
    %v1956 = vld [vmem:[#allocation7 + $0x12b8] sm:$0xff]
    %v1957 = vld [vmem:[#allocation7 + $0x12c0] sm:$0xff]
    %v1958 = vld [vmem:[#allocation7 + $0x12c8] sm:$0xff]
    %v1959 = vld [vmem:[#allocation7 + $0x12d0] sm:$0xff]
    %v1960 = vld [vmem:[#allocation7 + $0x12d8] sm:$0xff]
    %v1961 = vld [vmem:[#allocation7 + $0x12e0] sm:$0xff]
    %v1962 = vld [vmem:[#allocation7 + $0x12e8] sm:$0xff]
    %v1963 = vld [vmem:[#allocation7 + $0x12f0] sm:$0xff]
    %v1964 = vld [vmem:[#allocation7 + $0x12f8] sm:$0xff]
    %v1965 = vld [vmem:[#allocation7 + $0x1300] sm:$0xff]
    %v1966 = vld [vmem:[#allocation7 + $0x1308] sm:$0xff]
    %v1967 = vld [vmem:[#allocation7 + $0x1310] sm:$0xff]
    %v1968 = vld [vmem:[#allocation7 + $0x1318] sm:$0xff]
    %v1969 = vld [vmem:[#allocation7 + $0x1320] sm:$0xff]
    %v1970 = vld [vmem:[#allocation7 + $0x1328] sm:$0xff]
    %v1971 = vld [vmem:[#allocation7 + $0x1330] sm:$0xff]
    %v1972 = vld [vmem:[#allocation7 + $0x1338] sm:$0xff]
    %v1973 = vld [vmem:[#allocation7 + $0x1340] sm:$0xff]
    %v1974 = vld [vmem:[#allocation7 + $0x1348] sm:$0xff]
    %v1975 = vld [vmem:[#allocation7 + $0x1350] sm:$0xff]
    %v1976 = vld [vmem:[#allocation7 + $0x1358] sm:$0xff]
    %v1977 = vld [vmem:[#allocation7 + $0x1360] sm:$0xff]
    %v1978 = vld [vmem:[#allocation7 + $0x1368] sm:$0xff]
    %v1979 = vld [vmem:[#allocation7 + $0x1370] sm:$0xff]
    %v1980 = vld [vmem:[#allocation7 + $0x1378] sm:$0xff]
    %v1981 = vld [vmem:[#allocation7 + $0x1380] sm:$0xff]
    %v1982 = vld [vmem:[#allocation7 + $0x1388] sm:$0xff]
    %v1983 = vld [vmem:[#allocation7 + $0x1390] sm:$0xff]
    %v1984 = vld [vmem:[#allocation7 + $0x1398] sm:$0xff]
    %v1985 = vld [vmem:[#allocation7 + $0x13a0] sm:$0xff]
    %v1986 = vld [vmem:[#allocation7 + $0x13a8] sm:$0xff]
    %v1987 = vld [vmem:[#allocation7 + $0x13b0] sm:$0xff]
    %v1988 = vld [vmem:[#allocation7 + $0x13b8] sm:$0xff]
    %v1989 = vld [vmem:[#allocation7 + $0x13c0] sm:$0xff]
    %v1990 = vld [vmem:[#allocation7 + $0x13c8] sm:$0xff]
    %v1991 = vld [vmem:[#allocation7 + $0x13d0] sm:$0xff]
    %v1992 = vld [vmem:[#allocation7 + $0x13d8] sm:$0xff]
    %v1993 = vld [vmem:[#allocation7 + $0x13e0] sm:$0xff]
    %v1994 = vld [vmem:[#allocation7 + $0x13e8] sm:$0xff]
    %v1995 = vld [vmem:[#allocation7 + $0x13f0] sm:$0xff]
    %v1996 = vld [vmem:[#allocation7 + $0x13f8] sm:$0xff]
    %v1997 = vld [vmem:[#allocation7 + $0x1400] sm:$0xff]
    %v1998 = vld [vmem:[#allocation7 + $0x1408] sm:$0xff]
    %v1999 = vld [vmem:[#allocation7 + $0x1410] sm:$0xff]
    %v2000 = vld [vmem:[#allocation7 + $0x1418] sm:$0xff]
    %v2001 = vld [vmem:[#allocation7 + $0x1420] sm:$0xff]
    %v2002 = vld [vmem:[#allocation7 + $0x1428] sm:$0xff]
    %v2003 = vld [vmem:[#allocation7 + $0x1430] sm:$0xff]
    %v2004 = vld [vmem:[#allocation7 + $0x1438] sm:$0xff]
    %v2005 = vld [vmem:[#allocation7 + $0x1440] sm:$0xff]
    %v2006 = vld [vmem:[#allocation7 + $0x1448] sm:$0xff]
    %v2007 = vld [vmem:[#allocation7 + $0x1450] sm:$0xff]
    %v2008 = vld [vmem:[#allocation7 + $0x1458] sm:$0xff]
    %v2009 = vld [vmem:[#allocation7 + $0x1460] sm:$0xff]
    %v2010 = vld [vmem:[#allocation7 + $0x1468] sm:$0xff]
    %v2011 = vld [vmem:[#allocation7 + $0x1470] sm:$0xff]
    %v2012 = vld [vmem:[#allocation7 + $0x1478] sm:$0xff]
    %v2013 = vld [vmem:[#allocation7 + $0x1480] sm:$0xff]
    %v2014 = vld [vmem:[#allocation7 + $0x1488] sm:$0xff]
    %v2015 = vld [vmem:[#allocation7 + $0x1490] sm:$0xff]
    %v2016 = vld [vmem:[#allocation7 + $0x1498] sm:$0xff]
    %v2017 = vld [vmem:[#allocation7 + $0x14a0] sm:$0xff]
    %v2018 = vld [vmem:[#allocation7 + $0x14a8] sm:$0xff]
    %v2019 = vld [vmem:[#allocation7 + $0x14b0] sm:$0xff]
    %v2020 = vld [vmem:[#allocation7 + $0x14b8] sm:$0xff]
    %v2021 = vld [vmem:[#allocation7 + $0x14c0] sm:$0xff]
    %v2022 = vld [vmem:[#allocation7 + $0x14c8] sm:$0xff]
    %v2023 = vld [vmem:[#allocation7 + $0x14d0] sm:$0xff]
    %v2024 = vld [vmem:[#allocation7 + $0x14d8] sm:$0xff]
    %v2025 = vld [vmem:[#allocation7 + $0x14e0] sm:$0xff]
    %v2026 = vld [vmem:[#allocation7 + $0x14e8] sm:$0xff]
    %v2027 = vld [vmem:[#allocation7 + $0x14f0] sm:$0xff]
    %v2028 = vld [vmem:[#allocation7 + $0x14f8] sm:$0xff]
    %v2029 = vld [vmem:[#allocation7 + $0x1500] sm:$0xff]
    %v2030 = vld [vmem:[#allocation7 + $0x1508] sm:$0xff]
    %v2031 = vld [vmem:[#allocation7 + $0x1510] sm:$0xff]
    %v2032 = vld [vmem:[#allocation7 + $0x1518] sm:$0xff]
    %v2033 = vld [vmem:[#allocation7 + $0x1520] sm:$0xff]
    %v2034 = vld [vmem:[#allocation7 + $0x1528] sm:$0xff]
    %v2035 = vld [vmem:[#allocation7 + $0x1530] sm:$0xff]
    %v2036 = vld [vmem:[#allocation7 + $0x1538] sm:$0xff]
    %v2037 = vld [vmem:[#allocation7 + $0x1540] sm:$0xff]
    %v2038 = vld [vmem:[#allocation7 + $0x1548] sm:$0xff]
    %v2039 = vld [vmem:[#allocation7 + $0x1550] sm:$0xff]
    %v2040 = vld [vmem:[#allocation7 + $0x1558] sm:$0xff]
    %v2041 = vld [vmem:[#allocation7 + $0x1560] sm:$0xff]
    %v2042 = vld [vmem:[#allocation7 + $0x1568] sm:$0xff]
    %v2043 = vld [vmem:[#allocation7 + $0x1570] sm:$0xff]
    %v2044 = vld [vmem:[#allocation7 + $0x1578] sm:$0xff]
    %v2045 = vld [vmem:[#allocation7 + $0x1580] sm:$0xff]
    %v2046 = vld [vmem:[#allocation7 + $0x1588] sm:$0xff]
    %v2047 = vld [vmem:[#allocation7 + $0x1590] sm:$0xff]
    %v2048 = vld [vmem:[#allocation7 + $0x1598] sm:$0xff]
    %v2049 = vld [vmem:[#allocation7 + $0x15a0] sm:$0xff]
    %v2050 = vld [vmem:[#allocation7 + $0x15a8] sm:$0xff]
    %v2051 = vld [vmem:[#allocation7 + $0x15b0] sm:$0xff]
    %v2052 = vld [vmem:[#allocation7 + $0x15b8] sm:$0xff]
    %v2053 = vld [vmem:[#allocation7 + $0x15c0] sm:$0xff]
    %v2054 = vld [vmem:[#allocation7 + $0x15c8] sm:$0xff]
    %v2055 = vld [vmem:[#allocation7 + $0x15d0] sm:$0xff]
    %v2056 = vld [vmem:[#allocation7 + $0x15d8] sm:$0xff]
    %v2057 = vld [vmem:[#allocation7 + $0x15e0] sm:$0xff]
    %v2058 = vld [vmem:[#allocation7 + $0x15e8] sm:$0xff]
    %v2059 = vld [vmem:[#allocation7 + $0x15f0] sm:$0xff]
    %v2060 = vld [vmem:[#allocation7 + $0x15f8] sm:$0xff]
    %v2061 = vld [vmem:[#allocation7 + $0x1600] sm:$0xff]
    %v2062 = vld [vmem:[#allocation7 + $0x1608] sm:$0xff]
    %v2063 = vld [vmem:[#allocation7 + $0x1610] sm:$0xff]
    %v2064 = vld [vmem:[#allocation7 + $0x1618] sm:$0xff]
    %v2065 = vld [vmem:[#allocation7 + $0x1620] sm:$0xff]
    %v2066 = vld [vmem:[#allocation7 + $0x1628] sm:$0xff]
    %v2067 = vld [vmem:[#allocation7 + $0x1630] sm:$0xff]
    %v2068 = vld [vmem:[#allocation7 + $0x1638] sm:$0xff]
    %v2069 = vld [vmem:[#allocation7 + $0x1640] sm:$0xff]
    %v2070 = vld [vmem:[#allocation7 + $0x1648] sm:$0xff]
    %v2071 = vld [vmem:[#allocation7 + $0x1650] sm:$0xff]
    %v2072 = vld [vmem:[#allocation7 + $0x1658] sm:$0xff]
    %v2073 = vld [vmem:[#allocation7 + $0x1660] sm:$0xff]
    %v2074 = vld [vmem:[#allocation7 + $0x1668] sm:$0xff]
    %v2075 = vld [vmem:[#allocation7 + $0x1670] sm:$0xff]
    %v2076 = vld [vmem:[#allocation7 + $0x1678] sm:$0xff]
    %v2077 = vld [vmem:[#allocation7 + $0x1680] sm:$0xff]
    %v2078 = vld [vmem:[#allocation7 + $0x1688] sm:$0xff]
    %v2079 = vld [vmem:[#allocation7 + $0x1690] sm:$0xff]
    %v2080 = vld [vmem:[#allocation7 + $0x1698] sm:$0xff]
    %v2081 = vld [vmem:[#allocation7 + $0x16a0] sm:$0xff]
    %v2082 = vld [vmem:[#allocation7 + $0x16a8] sm:$0xff]
    %v2083 = vld [vmem:[#allocation7 + $0x16b0] sm:$0xff]
    %v2084 = vld [vmem:[#allocation7 + $0x16b8] sm:$0xff]
    %v2085 = vld [vmem:[#allocation7 + $0x16c0] sm:$0xff]
    %v2086 = vld [vmem:[#allocation7 + $0x16c8] sm:$0xff]
    %v2087 = vld [vmem:[#allocation7 + $0x16d0] sm:$0xff]
    %v2088 = vld [vmem:[#allocation7 + $0x16d8] sm:$0xff]
    %v2089 = vld [vmem:[#allocation7 + $0x16e0] sm:$0xff]
    %v2090 = vld [vmem:[#allocation7 + $0x16e8] sm:$0xff]
    %v2091 = vld [vmem:[#allocation7 + $0x16f0] sm:$0xff]
    %v2092 = vld [vmem:[#allocation7 + $0x16f8] sm:$0xff]
    %v2093 = vld [vmem:[#allocation7 + $0x1700] sm:$0xff]
    %v2094 = vld [vmem:[#allocation7 + $0x1708] sm:$0xff]
    %v2095 = vld [vmem:[#allocation7 + $0x1710] sm:$0xff]
    %v2096 = vld [vmem:[#allocation7 + $0x1718] sm:$0xff]
    %v2097 = vld [vmem:[#allocation7 + $0x1720] sm:$0xff]
    %v2098 = vld [vmem:[#allocation7 + $0x1728] sm:$0xff]
    %v2099 = vld [vmem:[#allocation7 + $0x1730] sm:$0xff]
    %v2100 = vld [vmem:[#allocation7 + $0x1738] sm:$0xff]
    %v2101 = vld [vmem:[#allocation7 + $0x1740] sm:$0xff]
    %v2102 = vld [vmem:[#allocation7 + $0x1748] sm:$0xff]
    %v2103 = vld [vmem:[#allocation7 + $0x1750] sm:$0xff]
    %v2104 = vld [vmem:[#allocation7 + $0x1758] sm:$0xff]
    %v2105 = vld [vmem:[#allocation7 + $0x1760] sm:$0xff]
    %v2106 = vld [vmem:[#allocation7 + $0x1768] sm:$0xff]
    %v2107 = vld [vmem:[#allocation7 + $0x1770] sm:$0xff]
    %v2108 = vld [vmem:[#allocation7 + $0x1778] sm:$0xff]
    %v2109 = vld [vmem:[#allocation7 + $0x1780] sm:$0xff]
    %v2110 = vld [vmem:[#allocation7 + $0x1788] sm:$0xff]
    %v2111 = vld [vmem:[#allocation7 + $0x1790] sm:$0xff]
    %v2112 = vld [vmem:[#allocation7 + $0x1798] sm:$0xff]
    %v2113 = vld [vmem:[#allocation7 + $0x17a0] sm:$0xff]
    %v2114 = vld [vmem:[#allocation7 + $0x17a8] sm:$0xff]
    %v2115 = vld [vmem:[#allocation7 + $0x17b0] sm:$0xff]
    %v2116 = vld [vmem:[#allocation7 + $0x17b8] sm:$0xff]
    %v2117 = vld [vmem:[#allocation7 + $0x17c0] sm:$0xff]
    %v2118 = vld [vmem:[#allocation7 + $0x17c8] sm:$0xff]
    %v2119 = vld [vmem:[#allocation7 + $0x17d0] sm:$0xff]
    %v2120 = vld [vmem:[#allocation7 + $0x17d8] sm:$0xff]
    %v2121 = vld [vmem:[#allocation7 + $0x17e0] sm:$0xff]
    %v2122 = vld [vmem:[#allocation7 + $0x17e8] sm:$0xff]
    %v2123 = vld [vmem:[#allocation7 + $0x17f0] sm:$0xff]
    %v2124 = vld [vmem:[#allocation7 + $0x17f8] sm:$0xff]
    %v2125 = vrot.slane %v621, 4
    %v2126 = vrot.slane %v625, 4
    %v2127 = vsel %vm295, %v2125, %v2126
    %v2128 = vrot.slane %v622, 4
    %v2129 = vrot.slane %v626, 4
    %v2130 = vsel %vm295, %v2128, %v2129
    %v2131 = vrot.slane %v623, 4
    %v2132 = vrot.slane %v627, 4
    %v2133 = vsel %vm295, %v2131, %v2132
    %v2134 = vrot.slane %v624, 4
    %v2135 = vrot.slane %v628, 4
    %v2136 = vsel %vm295, %v2134, %v2135
    %v2137 = vrot.slane %v629, 4
    %v2138 = vsel %vm295, %v2126, %v2137
    %v2139 = vrot.slane %v630, 4
    %v2140 = vsel %vm295, %v2129, %v2139
    %v2141 = vrot.slane %v631, 4
    %v2142 = vsel %vm295, %v2132, %v2141
    %v2143 = vrot.slane %v632, 4
    %v2144 = vsel %vm295, %v2135, %v2143
    %v2145 = vrot.slane %v633, 4
    %v2146 = vsel %vm295, %v2137, %v2145
    %v2147 = vrot.slane %v634, 4
    %v2148 = vsel %vm295, %v2139, %v2147
    %v2149 = vrot.slane %v635, 4
    %v2150 = vsel %vm295, %v2141, %v2149
    %v2151 = vrot.slane %v636, 4
    %v2152 = vsel %vm295, %v2143, %v2151
    %2165 = vmatprep.subr.mxu0 %v1870
    %2166 = vmatpush1.msra.mxu0 %v1869
    %2167 = vmatprep.subr.mxu0 %v1874
    %2168 = vmatpush1.msra.mxu0 %v1873
    %2169 = vmatprep.subr.mxu0 %v1878
    %2170 = vmatpush1.msra.mxu0 %v1877
    %2171 = vmatprep.subr.mxu0 %v1882
    %2172 = vmatpush1.msra.mxu0 %v1881
    %2173 = vmatprep.subr.mxu0 %v1886
    %2174 = vmatpush1.msra.mxu0 %v1885
    %2175 = vmatprep.subr.mxu0 %v1890
    %2176 = vmatpush1.msra.mxu0 %v1889
    %2177 = vmatprep.subr.mxu0 %v1894
    %2178 = vmatpush1.msra.mxu0 %v1893
    %2179 = vmatprep.subr.mxu0 %v1898
    %2180 = vmatpush1.msra.mxu0 %v1897
    %2181 = vmatprep.subr.mxu0 %v1902
    %2182 = vmatpush1.msra.mxu0 %v1901
    %2183 = vmatprep.subr.mxu0 %v1906
    %2184 = vmatpush1.msra.mxu0 %v1905
    %2185 = vmatprep.subr.mxu0 %v1910
    %2186 = vmatpush1.msra.mxu0 %v1909
    %2187 = vmatprep.subr.mxu0 %v1914
    %2188 = vmatpush1.msra.mxu0 %v1913
    %2189 = vmatprep.subr.mxu0 %v1918
    %2190 = vmatpush1.msra.mxu0 %v1917
    %2191 = vmatprep.subr.mxu0 %v1922
    %2192 = vmatpush1.msra.mxu0 %v1921
    %2193 = vmatprep.subr.mxu0 %v1926
    %2194 = vmatpush1.msra.mxu0 %v1925
    %2195 = vmatprep.subr.mxu0 %v1930
    %2196 = vmatpush1.msra.mxu0 %v1929
    %2197 = vmatprep.subr.mxu0 %v1934
    %2198 = vmatpush1.msra.mxu0 %v1933
    %2199 = vmatprep.subr.mxu0 %v1938
    %2200 = vmatpush1.msra.mxu0 %v1937
    %2201 = vmatprep.subr.mxu0 %v1942
    %2202 = vmatpush1.msra.mxu0 %v1941
    %2203 = vmatprep.subr.mxu0 %v1946
    %2204 = vmatpush1.msra.mxu0 %v1945
    %2205 = vmatprep.subr.mxu0 %v1950
    %2206 = vmatpush1.msra.mxu0 %v1949
    %2207 = vmatprep.subr.mxu0 %v1954
    %2208 = vmatpush1.msra.mxu0 %v1953
    %2209 = vmatprep.subr.mxu0 %v1958
    %2210 = vmatpush1.msra.mxu0 %v1957
    %2211 = vmatprep.subr.mxu0 %v1962
    %2212 = vmatpush1.msra.mxu0 %v1961
    %2213 = vmatprep.subr.mxu0 %v1966
    %2214 = vmatpush1.msra.mxu0 %v1965
    %2215 = vmatprep.subr.mxu0 %v1970
    %2216 = vmatpush1.msra.mxu0 %v1969
    %2217 = vmatprep.subr.mxu0 %v1974
    %2218 = vmatpush1.msra.mxu0 %v1973
    %2219 = vmatprep.subr.mxu0 %v1978
    %2220 = vmatpush1.msra.mxu0 %v1977
    %2221 = vmatprep.subr.mxu0 %v1982
    %2222 = vmatpush1.msra.mxu0 %v1981
    %2223 = vmatprep.subr.mxu0 %v1986
    %2224 = vmatpush1.msra.mxu0 %v1985
    %2225 = vmatprep.subr.mxu0 %v1990
    %2226 = vmatpush1.msra.mxu0 %v1989
    %2227 = vmatprep.subr.mxu0 %v1994
    %2228 = vmatpush1.msra.mxu0 %v1993
    %2229 = vmatprep.mubr.f32.mxu0 %v2130
    %2230 = vmatmul.mubr.f32.gmra.mrb[0].mxu0 %v2127
    %v2231 = vpop.f32.mrb[0].mxu0
    %v2232 = vadd.f32 0.0, %v2231
    %v2233 = vpop.f32.mrb[0].mxu0
    %v2234 = vadd.f32 0.0, %v2233
    %2235 = vmatprep.mubr.f32.mxu0 %v2140
    %2236 = vmatmul.mubr.f32.gmra.mrb[0].mxu0 %v2138
    %v2237 = vpop.f32.mrb[0].mxu0
    %v2238 = vadd.f32 0.0, %v2237
    %v2239 = vpop.f32.mrb[0].mxu0
    %v2240 = vadd.f32 0.0, %v2239
    %2241 = vmatprep.mubr.f32.mxu0 %v2148
    %2242 = vmatmul.mubr.f32.gmra.mrb[0].mxu0 %v2146
    %v2243 = vpop.f32.mrb[0].mxu0
    %v2244 = vadd.f32 0.0, %v2243
    %v2245 = vpop.f32.mrb[0].mxu0
    %v2246 = vadd.f32 0.0, %v2245
    %2247 = vdwg.mxu0
    %2248 = vmatprep.subr.mxu0 %v1998
    %2249 = vmatpush1.msra.mxu0 %v1997
    %2250 = vmatprep.subr.mxu0 %v2002
    %2251 = vmatpush1.msra.mxu0 %v2001
    %2252 = vmatprep.subr.mxu0 %v2006
    %2253 = vmatpush1.msra.mxu0 %v2005
    %2254 = vmatprep.subr.mxu0 %v2010
    %2255 = vmatpush1.msra.mxu0 %v2009
    %2256 = vmatprep.subr.mxu0 %v2014
    %2257 = vmatpush1.msra.mxu0 %v2013
    %2258 = vmatprep.subr.mxu0 %v2018
    %2259 = vmatpush1.msra.mxu0 %v2017
    %2260 = vmatprep.subr.mxu0 %v2022
    %2261 = vmatpush1.msra.mxu0 %v2021
    %2262 = vmatprep.subr.mxu0 %v2026
    %2263 = vmatpush1.msra.mxu0 %v2025
    %2264 = vmatprep.subr.mxu0 %v2030
    %2265 = vmatpush1.msra.mxu0 %v2029
    %2266 = vmatprep.subr.mxu0 %v2034
    %2267 = vmatpush1.msra.mxu0 %v2033
    %2268 = vmatprep.subr.mxu0 %v2038
    %2269 = vmatpush1.msra.mxu0 %v2037
    %2270 = vmatprep.subr.mxu0 %v2042
    %2271 = vmatpush1.msra.mxu0 %v2041
    %2272 = vmatprep.subr.mxu0 %v2046
    %2273 = vmatpush1.msra.mxu0 %v2045
    %2274 = vmatprep.subr.mxu0 %v2050
    %2275 = vmatpush1.msra.mxu0 %v2049
    %2276 = vmatprep.subr.mxu0 %v2054
    %2277 = vmatpush1.msra.mxu0 %v2053
    %2278 = vmatprep.subr.mxu0 %v2058
    %2279 = vmatpush1.msra.mxu0 %v2057
    %2280 = vmatprep.subr.mxu0 %v2062
    %2281 = vmatpush1.msra.mxu0 %v2061
    %2282 = vmatprep.subr.mxu0 %v2066
    %2283 = vmatpush1.msra.mxu0 %v2065
    %2284 = vmatprep.subr.mxu0 %v2070
    %2285 = vmatpush1.msra.mxu0 %v2069
    %2286 = vmatprep.subr.mxu0 %v2074
    %2287 = vmatpush1.msra.mxu0 %v2073
    %2288 = vmatprep.subr.mxu0 %v2078
    %2289 = vmatpush1.msra.mxu0 %v2077
    %2290 = vmatprep.subr.mxu0 %v2082
    %2291 = vmatpush1.msra.mxu0 %v2081
    %2292 = vmatprep.subr.mxu0 %v2086
    %2293 = vmatpush1.msra.mxu0 %v2085
    %2294 = vmatprep.subr.mxu0 %v2090
    %2295 = vmatpush1.msra.mxu0 %v2089
    %2296 = vmatprep.subr.mxu0 %v2094
    %2297 = vmatpush1.msra.mxu0 %v2093
    %2298 = vmatprep.subr.mxu0 %v2098
    %2299 = vmatpush1.msra.mxu0 %v2097
    %2300 = vmatprep.subr.mxu0 %v2102
    %2301 = vmatpush1.msra.mxu0 %v2101
    %2302 = vmatprep.subr.mxu0 %v2106
    %2303 = vmatpush1.msra.mxu0 %v2105
    %2304 = vmatprep.subr.mxu0 %v2110
    %2305 = vmatpush1.msra.mxu0 %v2109
    %2306 = vmatprep.subr.mxu0 %v2114
    %2307 = vmatpush1.msra.mxu0 %v2113
    %2308 = vmatprep.subr.mxu0 %v2118
    %2309 = vmatpush1.msra.mxu0 %v2117
    %2310 = vmatprep.subr.mxu0 %v2122
    %2311 = vmatpush1.msra.mxu0 %v2121
    %2312 = vmatprep.mubr.f32.mxu0 %v2136
    %2313 = vmatmul.mubr.f32.gmra.mrb[0].mxu0 %v2133
    %v2314 = vpop.f32.mrb[0].mxu0
    %v2315 = vadd.f32 %v2232, %v2314
    %v2316 = vpop.f32.mrb[0].mxu0
    %v2317 = vadd.f32 %v2234, %v2316
    %2318 = vmatprep.mubr.f32.mxu0 %v2144
    %2319 = vmatmul.mubr.f32.gmra.mrb[0].mxu0 %v2142
    %v2320 = vpop.f32.mrb[0].mxu0
    %v2321 = vadd.f32 %v2238, %v2320
    %v2322 = vpop.f32.mrb[0].mxu0
    %v2323 = vadd.f32 %v2240, %v2322
    %2324 = vmatprep.mubr.f32.mxu0 %v2152
    %2325 = vmatmul.mubr.f32.gmra.mrb[0].mxu0 %v2150
    %v2326 = vpop.f32.mrb[0].mxu0
    %v2327 = vadd.f32 %v2244, %v2326
    %v2328 = vpop.f32.mrb[0].mxu0
    %v2329 = vadd.f32 %v2246, %v2328
    %2330 = vdwg.mxu0
    %2331 = vmatprep.subr.mxu0 %v1872
    %2332 = vmatpush1.msra.mxu0 %v1871
    %2333 = vmatprep.subr.mxu0 %v1876
    %2334 = vmatpush1.msra.mxu0 %v1875
    %2335 = vmatprep.subr.mxu0 %v1880
    %2336 = vmatpush1.msra.mxu0 %v1879
    %2337 = vmatprep.subr.mxu0 %v1884
    %2338 = vmatpush1.msra.mxu0 %v1883
    %2339 = vmatprep.subr.mxu0 %v1888
    %2340 = vmatpush1.msra.mxu0 %v1887
    %2341 = vmatprep.subr.mxu0 %v1892
    %2342 = vmatpush1.msra.mxu0 %v1891
    %2343 = vmatprep.subr.mxu0 %v1896
    %2344 = vmatpush1.msra.mxu0 %v1895
    %2345 = vmatprep.subr.mxu0 %v1900
    %2346 = vmatpush1.msra.mxu0 %v1899
    %2347 = vmatprep.subr.mxu0 %v1904
    %2348 = vmatpush1.msra.mxu0 %v1903
    %2349 = vmatprep.subr.mxu0 %v1908
    %2350 = vmatpush1.msra.mxu0 %v1907
    %2351 = vmatprep.subr.mxu0 %v1912
    %2352 = vmatpush1.msra.mxu0 %v1911
    %2353 = vmatprep.subr.mxu0 %v1916
    %2354 = vmatpush1.msra.mxu0 %v1915
    %2355 = vmatprep.subr.mxu0 %v1920
    %2356 = vmatpush1.msra.mxu0 %v1919
    %2357 = vmatprep.subr.mxu0 %v1924
    %2358 = vmatpush1.msra.mxu0 %v1923
    %2359 = vmatprep.subr.mxu0 %v1928
    %2360 = vmatpush1.msra.mxu0 %v1927
    %2361 = vmatprep.subr.mxu0 %v1932
    %2362 = vmatpush1.msra.mxu0 %v1931
    %2363 = vmatprep.subr.mxu0 %v1936
    %2364 = vmatpush1.msra.mxu0 %v1935
    %2365 = vmatprep.subr.mxu0 %v1940
    %2366 = vmatpush1.msra.mxu0 %v1939
    %2367 = vmatprep.subr.mxu0 %v1944
    %2368 = vmatpush1.msra.mxu0 %v1943
    %2369 = vmatprep.subr.mxu0 %v1948
    %2370 = vmatpush1.msra.mxu0 %v1947
    %2371 = vmatprep.subr.mxu0 %v1952
    %2372 = vmatpush1.msra.mxu0 %v1951
    %2373 = vmatprep.subr.mxu0 %v1956
    %2374 = vmatpush1.msra.mxu0 %v1955
    %2375 = vmatprep.subr.mxu0 %v1960
    %2376 = vmatpush1.msra.mxu0 %v1959
    %2377 = vmatprep.subr.mxu0 %v1964
    %2378 = vmatpush1.msra.mxu0 %v1963
    %2379 = vmatprep.subr.mxu0 %v1968
    %2380 = vmatpush1.msra.mxu0 %v1967
    %2381 = vmatprep.subr.mxu0 %v1972
    %2382 = vmatpush1.msra.mxu0 %v1971
    %2383 = vmatprep.subr.mxu0 %v1976
    %2384 = vmatpush1.msra.mxu0 %v1975
    %2385 = vmatprep.subr.mxu0 %v1980
    %2386 = vmatpush1.msra.mxu0 %v1979
    %2387 = vmatprep.subr.mxu0 %v1984
    %2388 = vmatpush1.msra.mxu0 %v1983
    %2389 = vmatprep.subr.mxu0 %v1988
    %2390 = vmatpush1.msra.mxu0 %v1987
    %2391 = vmatprep.subr.mxu0 %v1992
    %2392 = vmatpush1.msra.mxu0 %v1991
    %2393 = vmatprep.subr.mxu0 %v1996
    %2394 = vmatpush1.msra.mxu0 %v1995
    %2395 = vmatprep.mubr.f32.mxu0 %v2130
    %2396 = vmatmul.mubr.f32.gmra.mrb[0].mxu0 %v2127
    %v2397 = vpop.f32.mrb[0].mxu0
    %v2398 = vadd.f32 0.0, %v2397
    %v2399 = vpop.f32.mrb[0].mxu0
    %v2400 = vadd.f32 0.0, %v2399
    %2401 = vmatprep.mubr.f32.mxu0 %v2140
    %2402 = vmatmul.mubr.f32.gmra.mrb[0].mxu0 %v2138
    %v2403 = vpop.f32.mrb[0].mxu0
    %v2404 = vadd.f32 0.0, %v2403
    %v2405 = vpop.f32.mrb[0].mxu0
    %v2406 = vadd.f32 0.0, %v2405
    %2407 = vmatprep.mubr.f32.mxu0 %v2148
    %2408 = vmatmul.mubr.f32.gmra.mrb[0].mxu0 %v2146
    %v2409 = vpop.f32.mrb[0].mxu0
    %v2410 = vadd.f32 0.0, %v2409
    %v2411 = vpop.f32.mrb[0].mxu0
    %v2412 = vadd.f32 0.0, %v2411
    %2413 = vdwg.mxu0
    %2414 = vmatprep.subr.mxu0 %v2000
    %2415 = vmatpush1.msra.mxu0 %v1999
    %2416 = vmatprep.subr.mxu0 %v2004
    %2417 = vmatpush1.msra.mxu0 %v2003
    %2418 = vmatprep.subr.mxu0 %v2008
    %2419 = vmatpush1.msra.mxu0 %v2007
    %2420 = vmatprep.subr.mxu0 %v2012
    %2421 = vmatpush1.msra.mxu0 %v2011
    %2422 = vmatprep.subr.mxu0 %v2016
    %2423 = vmatpush1.msra.mxu0 %v2015
    %2424 = vmatprep.subr.mxu0 %v2020
    %2425 = vmatpush1.msra.mxu0 %v2019
    %2426 = vmatprep.subr.mxu0 %v2024
    %2427 = vmatpush1.msra.mxu0 %v2023
    %2428 = vmatprep.subr.mxu0 %v2028
    %2429 = vmatpush1.msra.mxu0 %v2027
    %2430 = vmatprep.subr.mxu0 %v2032
    %2431 = vmatpush1.msra.mxu0 %v2031
    %2432 = vmatprep.subr.mxu0 %v2036
    %2433 = vmatpush1.msra.mxu0 %v2035
    %2434 = vmatprep.subr.mxu0 %v2040
    %2435 = vmatpush1.msra.mxu0 %v2039
    %2436 = vmatprep.subr.mxu0 %v2044
    %2437 = vmatpush1.msra.mxu0 %v2043
    %2438 = vmatprep.subr.mxu0 %v2048
    %2439 = vmatpush1.msra.mxu0 %v2047
    %2440 = vmatprep.subr.mxu0 %v2052
    %2441 = vmatpush1.msra.mxu0 %v2051
    %2442 = vmatprep.subr.mxu0 %v2056
    %2443 = vmatpush1.msra.mxu0 %v2055
    %2444 = vmatprep.subr.mxu0 %v2060
    %2445 = vmatpush1.msra.mxu0 %v2059
    %2446 = vmatprep.subr.mxu0 %v2064
    %2447 = vmatpush1.msra.mxu0 %v2063
    %2448 = vmatprep.subr.mxu0 %v2068
    %2449 = vmatpush1.msra.mxu0 %v2067
    %2450 = vmatprep.subr.mxu0 %v2072
    %2451 = vmatpush1.msra.mxu0 %v2071
    %2452 = vmatprep.subr.mxu0 %v2076
    %2453 = vmatpush1.msra.mxu0 %v2075
    %2454 = vmatprep.subr.mxu0 %v2080
    %2455 = vmatpush1.msra.mxu0 %v2079
    %2456 = vmatprep.subr.mxu0 %v2084
    %2457 = vmatpush1.msra.mxu0 %v2083
    %2458 = vmatprep.subr.mxu0 %v2088
    %2459 = vmatpush1.msra.mxu0 %v2087
    %2460 = vmatprep.subr.mxu0 %v2092
    %2461 = vmatpush1.msra.mxu0 %v2091
    %2462 = vmatprep.subr.mxu0 %v2096
    %2463 = vmatpush1.msra.mxu0 %v2095
    %2464 = vmatprep.subr.mxu0 %v2100
    %2465 = vmatpush1.msra.mxu0 %v2099
    %2466 = vmatprep.subr.mxu0 %v2104
    %2467 = vmatpush1.msra.mxu0 %v2103
    %2468 = vmatprep.subr.mxu0 %v2108
    %2469 = vmatpush1.msra.mxu0 %v2107
    %2470 = vmatprep.subr.mxu0 %v2112
    %2471 = vmatpush1.msra.mxu0 %v2111
    %2472 = vmatprep.subr.mxu0 %v2116
    %2473 = vmatpush1.msra.mxu0 %v2115
    %2474 = vmatprep.subr.mxu0 %v2120
    %2475 = vmatpush1.msra.mxu0 %v2119
    %2476 = vmatprep.subr.mxu0 %v2124
    %2477 = vmatpush1.msra.mxu0 %v2123
    %2478 = vmatprep.mubr.f32.mxu0 %v2136
    %2479 = vmatmul.mubr.f32.gmra.mrb[0].mxu0 %v2133
    %v2480 = vpop.f32.mrb[0].mxu0
    %v2481 = vadd.f32 %v2398, %v2480
    %v2482 = vpop.f32.mrb[0].mxu0
    %v2483 = vadd.f32 %v2400, %v2482
    %2484 = vmatprep.mubr.f32.mxu0 %v2144
    %2485 = vmatmul.mubr.f32.gmra.mrb[0].mxu0 %v2142
    %v2486 = vpop.f32.mrb[0].mxu0
    %v2487 = vadd.f32 %v2404, %v2486
    %v2488 = vpop.f32.mrb[0].mxu0
    %v2489 = vadd.f32 %v2406, %v2488
    %2490 = vmatprep.mubr.f32.mxu0 %v2152
    %2491 = vmatmul.mubr.f32.gmra.mrb[0].mxu0 %v2150
    %v2492 = vpop.f32.mrb[0].mxu0
    %v2493 = vadd.f32 %v2410, %v2492
    %v2494 = vpop.f32.mrb[0].mxu0
    %v2495 = vadd.f32 %v2412, %v2494
    %2496 = vdwg.mxu0
    %v2497 = vadd.f32 %v1687, %v2315
    %v2498 = vadd.f32 %v1689, %v2317
    %v2499 = vadd.f32 %v1853, %v2481
    %v2500 = vadd.f32 %v1855, %v2483
    %v2501 = vadd.f32 %v1693, %v2321
    %v2502 = vadd.f32 %v1695, %v2323
    %v2503 = vadd.f32 %v1859, %v2487
    %v2504 = vadd.f32 %v1861, %v2489
    %v2505 = vadd.f32 %v1699, %v2327
    %v2506 = vadd.f32 %v1701, %v2329
    %v2507 = vadd.f32 %v1865, %v2493
    %v2508 = vadd.f32 %v1867, %v2495
    %v2509 = vld [vmem:[#allocation8] sm:$0xf]
    %v2511 = vlaneseq
    %v2512 = vshrl.u32 %v2511, 7
    %v2513 = vsub.s32 0, %v2512
    %v2514 = vrot.slane %v2509, %v2513
    %v2515 = vlaneseq
    %v2516 = vshrl.u32 %v2515, 7
    %v2517 = vsub.s32 1, %v2516
    %v2518 = vrot.slane %v2509, %v2517
    %v2519 = vlaneseq
    %v2520 = vshrl.u32 %v2519, 7
    %v2521 = vsub.s32 2, %v2520
    %v2522 = vrot.slane %v2509, %v2521
    %v2523 = vlaneseq
    %v2524 = vshrl.u32 %v2523, 7
    %v2525 = vsub.s32 3, %v2524
    %v2526 = vrot.slane %v2509, %v2525
    %v2531 = vadd.f32 %v2497, %v2514
    %v2532 = vadd.f32 %v2498, %v2518
    %v2533 = vadd.f32 %v2499, %v2522
    %v2534 = vadd.f32 %v2500, %v2526
    %v2535 = vadd.f32 %v2501, %v2514
    %v2536 = vadd.f32 %v2502, %v2518
    %v2537 = vadd.f32 %v2503, %v2522
    %v2538 = vadd.f32 %v2504, %v2526
    %v2539 = vadd.f32 %v2505, %v2514
    %v2540 = vadd.f32 %v2506, %v2518
    %v2541 = vadd.f32 %v2507, %v2522
    %v2542 = vadd.f32 %v2508, %v2526
    %v2543 = vmax.f32 %v2531, 0.0
    %v2544 = vmax.f32 %v2532, 0.0
    %v2545 = vmax.f32 %v2533, 0.0
    %v2546 = vmax.f32 %v2534, 0.0
    %v2547 = vmax.f32 %v2535, 0.0
    %v2548 = vmax.f32 %v2536, 0.0
    %v2549 = vmax.f32 %v2537, 0.0
    %v2550 = vmax.f32 %v2538, 0.0
    %v2551 = vmax.f32 %v2539, 0.0
    %v2552 = vmax.f32 %v2540, 0.0
    %v2553 = vmax.f32 %v2541, 0.0
    %v2554 = vmax.f32 %v2542, 0.0
    %v2555 = vld [vmem:[#allocation10] sm:$0xff]
    %v2556 = vld [vmem:[#allocation10 + $0x8] sm:$0xff]
    %v2557 = vld [vmem:[#allocation10 + $0x10] sm:$0xff]
    %v2558 = vld [vmem:[#allocation10 + $0x18] sm:$0xff]
    %v2559 = vld [vmem:[#allocation10 + $0x20] sm:$0xff]
    %v2560 = vld [vmem:[#allocation10 + $0x28] sm:$0xff]
    %v2561 = vld [vmem:[#allocation10 + $0x30] sm:$0xff]
    %v2562 = vld [vmem:[#allocation10 + $0x38] sm:$0xff]
    %v2563 = vld [vmem:[#allocation10 + $0x40] sm:$0xff]
    %v2564 = vld [vmem:[#allocation10 + $0x48] sm:$0xff]
    %v2565 = vld [vmem:[#allocation10 + $0x50] sm:$0xff]
    %v2566 = vld [vmem:[#allocation10 + $0x58] sm:$0xff]
    %v2567 = vld [vmem:[#allocation10 + $0x60] sm:$0xff]
    %v2568 = vld [vmem:[#allocation10 + $0x68] sm:$0xff]
    %v2569 = vld [vmem:[#allocation10 + $0x70] sm:$0xff]
    %v2570 = vld [vmem:[#allocation10 + $0x78] sm:$0xff]
    %v2571 = vld [vmem:[#allocation10 + $0x80] sm:$0xff]
    %v2572 = vld [vmem:[#allocation10 + $0x88] sm:$0xff]
    %v2573 = vld [vmem:[#allocation10 + $0x90] sm:$0xff]
    %v2574 = vld [vmem:[#allocation10 + $0x98] sm:$0xff]
    %v2575 = vld [vmem:[#allocation10 + $0xa0] sm:$0xff]
    %v2576 = vld [vmem:[#allocation10 + $0xa8] sm:$0xff]
    %v2577 = vld [vmem:[#allocation10 + $0xb0] sm:$0xff]
    %v2578 = vld [vmem:[#allocation10 + $0xb8] sm:$0xff]
    %v2579 = vld [vmem:[#allocation10 + $0xc0] sm:$0xff]
    %v2580 = vld [vmem:[#allocation10 + $0xc8] sm:$0xff]
    %v2581 = vld [vmem:[#allocation10 + $0xd0] sm:$0xff]
    %v2582 = vld [vmem:[#allocation10 + $0xd8] sm:$0xff]
    %v2583 = vld [vmem:[#allocation10 + $0xe0] sm:$0xff]
    %v2584 = vld [vmem:[#allocation10 + $0xe8] sm:$0xff]
    %v2585 = vld [vmem:[#allocation10 + $0xf0] sm:$0xff]
    %v2586 = vld [vmem:[#allocation10 + $0xf8] sm:$0xff]
    %v2587 = vld [vmem:[#allocation10 + $0x100] sm:$0xff]
    %v2588 = vld [vmem:[#allocation10 + $0x108] sm:$0xff]
    %v2589 = vld [vmem:[#allocation10 + $0x110] sm:$0xff]
    %v2590 = vld [vmem:[#allocation10 + $0x118] sm:$0xff]
    %v2591 = vld [vmem:[#allocation10 + $0x120] sm:$0xff]
    %v2592 = vld [vmem:[#allocation10 + $0x128] sm:$0xff]
    %v2593 = vld [vmem:[#allocation10 + $0x130] sm:$0xff]
    %v2594 = vld [vmem:[#allocation10 + $0x138] sm:$0xff]
    %v2595 = vld [vmem:[#allocation10 + $0x140] sm:$0xff]
    %v2596 = vld [vmem:[#allocation10 + $0x148] sm:$0xff]
    %v2597 = vld [vmem:[#allocation10 + $0x150] sm:$0xff]
    %v2598 = vld [vmem:[#allocation10 + $0x158] sm:$0xff]
    %v2599 = vld [vmem:[#allocation10 + $0x160] sm:$0xff]
    %v2600 = vld [vmem:[#allocation10 + $0x168] sm:$0xff]
    %v2601 = vld [vmem:[#allocation10 + $0x170] sm:$0xff]
    %v2602 = vld [vmem:[#allocation10 + $0x178] sm:$0xff]
    %v2603 = vld [vmem:[#allocation10 + $0x180] sm:$0xff]
    %v2604 = vld [vmem:[#allocation10 + $0x188] sm:$0xff]
    %v2605 = vld [vmem:[#allocation10 + $0x190] sm:$0xff]
    %v2606 = vld [vmem:[#allocation10 + $0x198] sm:$0xff]
    %v2607 = vld [vmem:[#allocation10 + $0x1a0] sm:$0xff]
    %v2608 = vld [vmem:[#allocation10 + $0x1a8] sm:$0xff]
    %v2609 = vld [vmem:[#allocation10 + $0x1b0] sm:$0xff]
    %v2610 = vld [vmem:[#allocation10 + $0x1b8] sm:$0xff]
    %v2611 = vld [vmem:[#allocation10 + $0x1c0] sm:$0xff]
    %v2612 = vld [vmem:[#allocation10 + $0x1c8] sm:$0xff]
    %v2613 = vld [vmem:[#allocation10 + $0x1d0] sm:$0xff]
    %v2614 = vld [vmem:[#allocation10 + $0x1d8] sm:$0xff]
    %v2615 = vld [vmem:[#allocation10 + $0x1e0] sm:$0xff]
    %v2616 = vld [vmem:[#allocation10 + $0x1e8] sm:$0xff]
    %v2617 = vld [vmem:[#allocation10 + $0x1f0] sm:$0xff]
    %v2618 = vld [vmem:[#allocation10 + $0x1f8] sm:$0xff]
    %v2619 = vld [vmem:[#allocation10 + $0x200] sm:$0xff]
    %v2620 = vld [vmem:[#allocation10 + $0x208] sm:$0xff]
    %v2621 = vld [vmem:[#allocation10 + $0x210] sm:$0xff]
    %v2622 = vld [vmem:[#allocation10 + $0x218] sm:$0xff]
    %v2623 = vld [vmem:[#allocation10 + $0x220] sm:$0xff]
    %v2624 = vld [vmem:[#allocation10 + $0x228] sm:$0xff]
    %v2625 = vld [vmem:[#allocation10 + $0x230] sm:$0xff]
    %v2626 = vld [vmem:[#allocation10 + $0x238] sm:$0xff]
    %v2627 = vld [vmem:[#allocation10 + $0x240] sm:$0xff]
    %v2628 = vld [vmem:[#allocation10 + $0x248] sm:$0xff]
    %v2629 = vld [vmem:[#allocation10 + $0x250] sm:$0xff]
    %v2630 = vld [vmem:[#allocation10 + $0x258] sm:$0xff]
    %v2631 = vld [vmem:[#allocation10 + $0x260] sm:$0xff]
    %v2632 = vld [vmem:[#allocation10 + $0x268] sm:$0xff]
    %v2633 = vld [vmem:[#allocation10 + $0x270] sm:$0xff]
    %v2634 = vld [vmem:[#allocation10 + $0x278] sm:$0xff]
    %v2635 = vld [vmem:[#allocation10 + $0x280] sm:$0xff]
    %v2636 = vld [vmem:[#allocation10 + $0x288] sm:$0xff]
    %v2637 = vld [vmem:[#allocation10 + $0x290] sm:$0xff]
    %v2638 = vld [vmem:[#allocation10 + $0x298] sm:$0xff]
    %v2639 = vld [vmem:[#allocation10 + $0x2a0] sm:$0xff]
    %v2640 = vld [vmem:[#allocation10 + $0x2a8] sm:$0xff]
    %v2641 = vld [vmem:[#allocation10 + $0x2b0] sm:$0xff]
    %v2642 = vld [vmem:[#allocation10 + $0x2b8] sm:$0xff]
    %v2643 = vld [vmem:[#allocation10 + $0x2c0] sm:$0xff]
    %v2644 = vld [vmem:[#allocation10 + $0x2c8] sm:$0xff]
    %v2645 = vld [vmem:[#allocation10 + $0x2d0] sm:$0xff]
    %v2646 = vld [vmem:[#allocation10 + $0x2d8] sm:$0xff]
    %v2647 = vld [vmem:[#allocation10 + $0x2e0] sm:$0xff]
    %v2648 = vld [vmem:[#allocation10 + $0x2e8] sm:$0xff]
    %v2649 = vld [vmem:[#allocation10 + $0x2f0] sm:$0xff]
    %v2650 = vld [vmem:[#allocation10 + $0x2f8] sm:$0xff]
    %v2651 = vld [vmem:[#allocation10 + $0x300] sm:$0xff]
    %v2652 = vld [vmem:[#allocation10 + $0x308] sm:$0xff]
    %v2653 = vld [vmem:[#allocation10 + $0x310] sm:$0xff]
    %v2654 = vld [vmem:[#allocation10 + $0x318] sm:$0xff]
    %v2655 = vld [vmem:[#allocation10 + $0x320] sm:$0xff]
    %v2656 = vld [vmem:[#allocation10 + $0x328] sm:$0xff]
    %v2657 = vld [vmem:[#allocation10 + $0x330] sm:$0xff]
    %v2658 = vld [vmem:[#allocation10 + $0x338] sm:$0xff]
    %v2659 = vld [vmem:[#allocation10 + $0x340] sm:$0xff]
    %v2660 = vld [vmem:[#allocation10 + $0x348] sm:$0xff]
    %v2661 = vld [vmem:[#allocation10 + $0x350] sm:$0xff]
    %v2662 = vld [vmem:[#allocation10 + $0x358] sm:$0xff]
    %v2663 = vld [vmem:[#allocation10 + $0x360] sm:$0xff]
    %v2664 = vld [vmem:[#allocation10 + $0x368] sm:$0xff]
    %v2665 = vld [vmem:[#allocation10 + $0x370] sm:$0xff]
    %v2666 = vld [vmem:[#allocation10 + $0x378] sm:$0xff]
    %v2667 = vld [vmem:[#allocation10 + $0x380] sm:$0xff]
    %v2668 = vld [vmem:[#allocation10 + $0x388] sm:$0xff]
    %v2669 = vld [vmem:[#allocation10 + $0x390] sm:$0xff]
    %v2670 = vld [vmem:[#allocation10 + $0x398] sm:$0xff]
    %v2671 = vld [vmem:[#allocation10 + $0x3a0] sm:$0xff]
    %v2672 = vld [vmem:[#allocation10 + $0x3a8] sm:$0xff]
    %v2673 = vld [vmem:[#allocation10 + $0x3b0] sm:$0xff]
    %v2674 = vld [vmem:[#allocation10 + $0x3b8] sm:$0xff]
    %v2675 = vld [vmem:[#allocation10 + $0x3c0] sm:$0xff]
    %v2676 = vld [vmem:[#allocation10 + $0x3c8] sm:$0xff]
    %v2677 = vld [vmem:[#allocation10 + $0x3d0] sm:$0xff]
    %v2678 = vld [vmem:[#allocation10 + $0x3d8] sm:$0xff]
    %v2679 = vld [vmem:[#allocation10 + $0x3e0] sm:$0xff]
    %v2680 = vld [vmem:[#allocation10 + $0x3e8] sm:$0xff]
    %v2681 = vld [vmem:[#allocation10 + $0x3f0] sm:$0xff]
    %v2682 = vld [vmem:[#allocation10 + $0x3f8] sm:$0xff]
    %v2683 = vld [vmem:[#allocation10 + $0x400] sm:$0xff]
    %v2684 = vld [vmem:[#allocation10 + $0x408] sm:$0xff]
    %v2685 = vld [vmem:[#allocation10 + $0x410] sm:$0xff]
    %v2686 = vld [vmem:[#allocation10 + $0x418] sm:$0xff]
    %v2687 = vld [vmem:[#allocation10 + $0x420] sm:$0xff]
    %v2688 = vld [vmem:[#allocation10 + $0x428] sm:$0xff]
    %v2689 = vld [vmem:[#allocation10 + $0x430] sm:$0xff]
    %v2690 = vld [vmem:[#allocation10 + $0x438] sm:$0xff]
    %v2691 = vld [vmem:[#allocation10 + $0x440] sm:$0xff]
    %v2692 = vld [vmem:[#allocation10 + $0x448] sm:$0xff]
    %v2693 = vld [vmem:[#allocation10 + $0x450] sm:$0xff]
    %v2694 = vld [vmem:[#allocation10 + $0x458] sm:$0xff]
    %v2695 = vld [vmem:[#allocation10 + $0x460] sm:$0xff]
    %v2696 = vld [vmem:[#allocation10 + $0x468] sm:$0xff]
    %v2697 = vld [vmem:[#allocation10 + $0x470] sm:$0xff]
    %v2698 = vld [vmem:[#allocation10 + $0x478] sm:$0xff]
    %v2699 = vld [vmem:[#allocation10 + $0x480] sm:$0xff]
    %v2700 = vld [vmem:[#allocation10 + $0x488] sm:$0xff]
    %v2701 = vld [vmem:[#allocation10 + $0x490] sm:$0xff]
    %v2702 = vld [vmem:[#allocation10 + $0x498] sm:$0xff]
    %v2703 = vld [vmem:[#allocation10 + $0x4a0] sm:$0xff]
    %v2704 = vld [vmem:[#allocation10 + $0x4a8] sm:$0xff]
    %v2705 = vld [vmem:[#allocation10 + $0x4b0] sm:$0xff]
    %v2706 = vld [vmem:[#allocation10 + $0x4b8] sm:$0xff]
    %v2707 = vld [vmem:[#allocation10 + $0x4c0] sm:$0xff]
    %v2708 = vld [vmem:[#allocation10 + $0x4c8] sm:$0xff]
    %v2709 = vld [vmem:[#allocation10 + $0x4d0] sm:$0xff]
    %v2710 = vld [vmem:[#allocation10 + $0x4d8] sm:$0xff]
    %v2711 = vld [vmem:[#allocation10 + $0x4e0] sm:$0xff]
    %v2712 = vld [vmem:[#allocation10 + $0x4e8] sm:$0xff]
    %v2713 = vld [vmem:[#allocation10 + $0x4f0] sm:$0xff]
    %v2714 = vld [vmem:[#allocation10 + $0x4f8] sm:$0xff]
    %v2715 = vld [vmem:[#allocation10 + $0x500] sm:$0xff]
    %v2716 = vld [vmem:[#allocation10 + $0x508] sm:$0xff]
    %v2717 = vld [vmem:[#allocation10 + $0x510] sm:$0xff]
    %v2718 = vld [vmem:[#allocation10 + $0x518] sm:$0xff]
    %v2719 = vld [vmem:[#allocation10 + $0x520] sm:$0xff]
    %v2720 = vld [vmem:[#allocation10 + $0x528] sm:$0xff]
    %v2721 = vld [vmem:[#allocation10 + $0x530] sm:$0xff]
    %v2722 = vld [vmem:[#allocation10 + $0x538] sm:$0xff]
    %v2723 = vld [vmem:[#allocation10 + $0x540] sm:$0xff]
    %v2724 = vld [vmem:[#allocation10 + $0x548] sm:$0xff]
    %v2725 = vld [vmem:[#allocation10 + $0x550] sm:$0xff]
    %v2726 = vld [vmem:[#allocation10 + $0x558] sm:$0xff]
    %v2727 = vld [vmem:[#allocation10 + $0x560] sm:$0xff]
    %v2728 = vld [vmem:[#allocation10 + $0x568] sm:$0xff]
    %v2729 = vld [vmem:[#allocation10 + $0x570] sm:$0xff]
    %v2730 = vld [vmem:[#allocation10 + $0x578] sm:$0xff]
    %v2731 = vld [vmem:[#allocation10 + $0x580] sm:$0xff]
    %v2732 = vld [vmem:[#allocation10 + $0x588] sm:$0xff]
    %v2733 = vld [vmem:[#allocation10 + $0x590] sm:$0xff]
    %v2734 = vld [vmem:[#allocation10 + $0x598] sm:$0xff]
    %v2735 = vld [vmem:[#allocation10 + $0x5a0] sm:$0xff]
    %v2736 = vld [vmem:[#allocation10 + $0x5a8] sm:$0xff]
    %v2737 = vld [vmem:[#allocation10 + $0x5b0] sm:$0xff]
    %v2738 = vld [vmem:[#allocation10 + $0x5b8] sm:$0xff]
    %v2739 = vld [vmem:[#allocation10 + $0x5c0] sm:$0xff]
    %v2740 = vld [vmem:[#allocation10 + $0x5c8] sm:$0xff]
    %v2741 = vld [vmem:[#allocation10 + $0x5d0] sm:$0xff]
    %v2742 = vld [vmem:[#allocation10 + $0x5d8] sm:$0xff]
    %v2743 = vld [vmem:[#allocation10 + $0x5e0] sm:$0xff]
    %v2744 = vld [vmem:[#allocation10 + $0x5e8] sm:$0xff]
    %v2745 = vld [vmem:[#allocation10 + $0x5f0] sm:$0xff]
    %v2746 = vld [vmem:[#allocation10 + $0x5f8] sm:$0xff]
    %v2747 = vld [vmem:[#allocation10 + $0x600] sm:$0xff]
    %v2748 = vld [vmem:[#allocation10 + $0x608] sm:$0xff]
    %v2749 = vld [vmem:[#allocation10 + $0x610] sm:$0xff]
    %v2750 = vld [vmem:[#allocation10 + $0x618] sm:$0xff]
    %v2751 = vld [vmem:[#allocation10 + $0x620] sm:$0xff]
    %v2752 = vld [vmem:[#allocation10 + $0x628] sm:$0xff]
    %v2753 = vld [vmem:[#allocation10 + $0x630] sm:$0xff]
    %v2754 = vld [vmem:[#allocation10 + $0x638] sm:$0xff]
    %v2755 = vld [vmem:[#allocation10 + $0x640] sm:$0xff]
    %v2756 = vld [vmem:[#allocation10 + $0x648] sm:$0xff]
    %v2757 = vld [vmem:[#allocation10 + $0x650] sm:$0xff]
    %v2758 = vld [vmem:[#allocation10 + $0x658] sm:$0xff]
    %v2759 = vld [vmem:[#allocation10 + $0x660] sm:$0xff]
    %v2760 = vld [vmem:[#allocation10 + $0x668] sm:$0xff]
    %v2761 = vld [vmem:[#allocation10 + $0x670] sm:$0xff]
    %v2762 = vld [vmem:[#allocation10 + $0x678] sm:$0xff]
    %v2763 = vld [vmem:[#allocation10 + $0x680] sm:$0xff]
    %v2764 = vld [vmem:[#allocation10 + $0x688] sm:$0xff]
    %v2765 = vld [vmem:[#allocation10 + $0x690] sm:$0xff]
    %v2766 = vld [vmem:[#allocation10 + $0x698] sm:$0xff]
    %v2767 = vld [vmem:[#allocation10 + $0x6a0] sm:$0xff]
    %v2768 = vld [vmem:[#allocation10 + $0x6a8] sm:$0xff]
    %v2769 = vld [vmem:[#allocation10 + $0x6b0] sm:$0xff]
    %v2770 = vld [vmem:[#allocation10 + $0x6b8] sm:$0xff]
    %v2771 = vld [vmem:[#allocation10 + $0x6c0] sm:$0xff]
    %v2772 = vld [vmem:[#allocation10 + $0x6c8] sm:$0xff]
    %v2773 = vld [vmem:[#allocation10 + $0x6d0] sm:$0xff]
    %v2774 = vld [vmem:[#allocation10 + $0x6d8] sm:$0xff]
    %v2775 = vld [vmem:[#allocation10 + $0x6e0] sm:$0xff]
    %v2776 = vld [vmem:[#allocation10 + $0x6e8] sm:$0xff]
    %v2777 = vld [vmem:[#allocation10 + $0x6f0] sm:$0xff]
    %v2778 = vld [vmem:[#allocation10 + $0x6f8] sm:$0xff]
    %v2779 = vld [vmem:[#allocation10 + $0x700] sm:$0xff]
    %v2780 = vld [vmem:[#allocation10 + $0x708] sm:$0xff]
    %v2781 = vld [vmem:[#allocation10 + $0x710] sm:$0xff]
    %v2782 = vld [vmem:[#allocation10 + $0x718] sm:$0xff]
    %v2783 = vld [vmem:[#allocation10 + $0x720] sm:$0xff]
    %v2784 = vld [vmem:[#allocation10 + $0x728] sm:$0xff]
    %v2785 = vld [vmem:[#allocation10 + $0x730] sm:$0xff]
    %v2786 = vld [vmem:[#allocation10 + $0x738] sm:$0xff]
    %v2787 = vld [vmem:[#allocation10 + $0x740] sm:$0xff]
    %v2788 = vld [vmem:[#allocation10 + $0x748] sm:$0xff]
    %v2789 = vld [vmem:[#allocation10 + $0x750] sm:$0xff]
    %v2790 = vld [vmem:[#allocation10 + $0x758] sm:$0xff]
    %v2791 = vld [vmem:[#allocation10 + $0x760] sm:$0xff]
    %v2792 = vld [vmem:[#allocation10 + $0x768] sm:$0xff]
    %v2793 = vld [vmem:[#allocation10 + $0x770] sm:$0xff]
    %v2794 = vld [vmem:[#allocation10 + $0x778] sm:$0xff]
    %v2795 = vld [vmem:[#allocation10 + $0x780] sm:$0xff]
    %v2796 = vld [vmem:[#allocation10 + $0x788] sm:$0xff]
    %v2797 = vld [vmem:[#allocation10 + $0x790] sm:$0xff]
    %v2798 = vld [vmem:[#allocation10 + $0x798] sm:$0xff]
    %v2799 = vld [vmem:[#allocation10 + $0x7a0] sm:$0xff]
    %v2800 = vld [vmem:[#allocation10 + $0x7a8] sm:$0xff]
    %v2801 = vld [vmem:[#allocation10 + $0x7b0] sm:$0xff]
    %v2802 = vld [vmem:[#allocation10 + $0x7b8] sm:$0xff]
    %v2803 = vld [vmem:[#allocation10 + $0x7c0] sm:$0xff]
    %v2804 = vld [vmem:[#allocation10 + $0x7c8] sm:$0xff]
    %v2805 = vld [vmem:[#allocation10 + $0x7d0] sm:$0xff]
    %v2806 = vld [vmem:[#allocation10 + $0x7d8] sm:$0xff]
    %v2807 = vld [vmem:[#allocation10 + $0x7e0] sm:$0xff]
    %v2808 = vld [vmem:[#allocation10 + $0x7e8] sm:$0xff]
    %v2809 = vld [vmem:[#allocation10 + $0x7f0] sm:$0xff]
    %v2810 = vld [vmem:[#allocation10 + $0x7f8] sm:$0xff]
    %v2811 = vld [vmem:[#allocation10 + $0x800] sm:$0xff]
    %v2812 = vld [vmem:[#allocation10 + $0x808] sm:$0xff]
    %v2813 = vld [vmem:[#allocation10 + $0x810] sm:$0xff]
    %v2814 = vld [vmem:[#allocation10 + $0x818] sm:$0xff]
    %v2815 = vld [vmem:[#allocation10 + $0x820] sm:$0xff]
    %v2816 = vld [vmem:[#allocation10 + $0x828] sm:$0xff]
    %v2817 = vld [vmem:[#allocation10 + $0x830] sm:$0xff]
    %v2818 = vld [vmem:[#allocation10 + $0x838] sm:$0xff]
    %v2819 = vld [vmem:[#allocation10 + $0x840] sm:$0xff]
    %v2820 = vld [vmem:[#allocation10 + $0x848] sm:$0xff]
    %v2821 = vld [vmem:[#allocation10 + $0x850] sm:$0xff]
    %v2822 = vld [vmem:[#allocation10 + $0x858] sm:$0xff]
    %v2823 = vld [vmem:[#allocation10 + $0x860] sm:$0xff]
    %v2824 = vld [vmem:[#allocation10 + $0x868] sm:$0xff]
    %v2825 = vld [vmem:[#allocation10 + $0x870] sm:$0xff]
    %v2826 = vld [vmem:[#allocation10 + $0x878] sm:$0xff]
    %v2827 = vld [vmem:[#allocation10 + $0x880] sm:$0xff]
    %v2828 = vld [vmem:[#allocation10 + $0x888] sm:$0xff]
    %v2829 = vld [vmem:[#allocation10 + $0x890] sm:$0xff]
    %v2830 = vld [vmem:[#allocation10 + $0x898] sm:$0xff]
    %v2831 = vld [vmem:[#allocation10 + $0x8a0] sm:$0xff]
    %v2832 = vld [vmem:[#allocation10 + $0x8a8] sm:$0xff]
    %v2833 = vld [vmem:[#allocation10 + $0x8b0] sm:$0xff]
    %v2834 = vld [vmem:[#allocation10 + $0x8b8] sm:$0xff]
    %v2835 = vld [vmem:[#allocation10 + $0x8c0] sm:$0xff]
    %v2836 = vld [vmem:[#allocation10 + $0x8c8] sm:$0xff]
    %v2837 = vld [vmem:[#allocation10 + $0x8d0] sm:$0xff]
    %v2838 = vld [vmem:[#allocation10 + $0x8d8] sm:$0xff]
    %v2839 = vld [vmem:[#allocation10 + $0x8e0] sm:$0xff]
    %v2840 = vld [vmem:[#allocation10 + $0x8e8] sm:$0xff]
    %v2841 = vld [vmem:[#allocation10 + $0x8f0] sm:$0xff]
    %v2842 = vld [vmem:[#allocation10 + $0x8f8] sm:$0xff]
    %v2843 = vld [vmem:[#allocation10 + $0x900] sm:$0xff]
    %v2844 = vld [vmem:[#allocation10 + $0x908] sm:$0xff]
    %v2845 = vld [vmem:[#allocation10 + $0x910] sm:$0xff]
    %v2846 = vld [vmem:[#allocation10 + $0x918] sm:$0xff]
    %v2847 = vld [vmem:[#allocation10 + $0x920] sm:$0xff]
    %v2848 = vld [vmem:[#allocation10 + $0x928] sm:$0xff]
    %v2849 = vld [vmem:[#allocation10 + $0x930] sm:$0xff]
    %v2850 = vld [vmem:[#allocation10 + $0x938] sm:$0xff]
    %v2851 = vld [vmem:[#allocation10 + $0x940] sm:$0xff]
    %v2852 = vld [vmem:[#allocation10 + $0x948] sm:$0xff]
    %v2853 = vld [vmem:[#allocation10 + $0x950] sm:$0xff]
    %v2854 = vld [vmem:[#allocation10 + $0x958] sm:$0xff]
    %v2855 = vld [vmem:[#allocation10 + $0x960] sm:$0xff]
    %v2856 = vld [vmem:[#allocation10 + $0x968] sm:$0xff]
    %v2857 = vld [vmem:[#allocation10 + $0x970] sm:$0xff]
    %v2858 = vld [vmem:[#allocation10 + $0x978] sm:$0xff]
    %v2859 = vld [vmem:[#allocation10 + $0x980] sm:$0xff]
    %v2860 = vld [vmem:[#allocation10 + $0x988] sm:$0xff]
    %v2861 = vld [vmem:[#allocation10 + $0x990] sm:$0xff]
    %v2862 = vld [vmem:[#allocation10 + $0x998] sm:$0xff]
    %v2863 = vld [vmem:[#allocation10 + $0x9a0] sm:$0xff]
    %v2864 = vld [vmem:[#allocation10 + $0x9a8] sm:$0xff]
    %v2865 = vld [vmem:[#allocation10 + $0x9b0] sm:$0xff]
    %v2866 = vld [vmem:[#allocation10 + $0x9b8] sm:$0xff]
    %v2867 = vld [vmem:[#allocation10 + $0x9c0] sm:$0xff]
    %v2868 = vld [vmem:[#allocation10 + $0x9c8] sm:$0xff]
    %v2869 = vld [vmem:[#allocation10 + $0x9d0] sm:$0xff]
    %v2870 = vld [vmem:[#allocation10 + $0x9d8] sm:$0xff]
    %v2871 = vld [vmem:[#allocation10 + $0x9e0] sm:$0xff]
    %v2872 = vld [vmem:[#allocation10 + $0x9e8] sm:$0xff]
    %v2873 = vld [vmem:[#allocation10 + $0x9f0] sm:$0xff]
    %v2874 = vld [vmem:[#allocation10 + $0x9f8] sm:$0xff]
    %v2875 = vld [vmem:[#allocation10 + $0xa00] sm:$0xff]
    %v2876 = vld [vmem:[#allocation10 + $0xa08] sm:$0xff]
    %v2877 = vld [vmem:[#allocation10 + $0xa10] sm:$0xff]
    %v2878 = vld [vmem:[#allocation10 + $0xa18] sm:$0xff]
    %v2879 = vld [vmem:[#allocation10 + $0xa20] sm:$0xff]
    %v2880 = vld [vmem:[#allocation10 + $0xa28] sm:$0xff]
    %v2881 = vld [vmem:[#allocation10 + $0xa30] sm:$0xff]
    %v2882 = vld [vmem:[#allocation10 + $0xa38] sm:$0xff]
    %v2883 = vld [vmem:[#allocation10 + $0xa40] sm:$0xff]
    %v2884 = vld [vmem:[#allocation10 + $0xa48] sm:$0xff]
    %v2885 = vld [vmem:[#allocation10 + $0xa50] sm:$0xff]
    %v2886 = vld [vmem:[#allocation10 + $0xa58] sm:$0xff]
    %v2887 = vld [vmem:[#allocation10 + $0xa60] sm:$0xff]
    %v2888 = vld [vmem:[#allocation10 + $0xa68] sm:$0xff]
    %v2889 = vld [vmem:[#allocation10 + $0xa70] sm:$0xff]
    %v2890 = vld [vmem:[#allocation10 + $0xa78] sm:$0xff]
    %v2891 = vld [vmem:[#allocation10 + $0xa80] sm:$0xff]
    %v2892 = vld [vmem:[#allocation10 + $0xa88] sm:$0xff]
    %v2893 = vld [vmem:[#allocation10 + $0xa90] sm:$0xff]
    %v2894 = vld [vmem:[#allocation10 + $0xa98] sm:$0xff]
    %v2895 = vld [vmem:[#allocation10 + $0xaa0] sm:$0xff]
    %v2896 = vld [vmem:[#allocation10 + $0xaa8] sm:$0xff]
    %v2897 = vld [vmem:[#allocation10 + $0xab0] sm:$0xff]
    %v2898 = vld [vmem:[#allocation10 + $0xab8] sm:$0xff]
    %v2899 = vld [vmem:[#allocation10 + $0xac0] sm:$0xff]
    %v2900 = vld [vmem:[#allocation10 + $0xac8] sm:$0xff]
    %v2901 = vld [vmem:[#allocation10 + $0xad0] sm:$0xff]
    %v2902 = vld [vmem:[#allocation10 + $0xad8] sm:$0xff]
    %v2903 = vld [vmem:[#allocation10 + $0xae0] sm:$0xff]
    %v2904 = vld [vmem:[#allocation10 + $0xae8] sm:$0xff]
    %v2905 = vld [vmem:[#allocation10 + $0xaf0] sm:$0xff]
    %v2906 = vld [vmem:[#allocation10 + $0xaf8] sm:$0xff]
    %v2907 = vld [vmem:[#allocation10 + $0xb00] sm:$0xff]
    %v2908 = vld [vmem:[#allocation10 + $0xb08] sm:$0xff]
    %v2909 = vld [vmem:[#allocation10 + $0xb10] sm:$0xff]
    %v2910 = vld [vmem:[#allocation10 + $0xb18] sm:$0xff]
    %v2911 = vld [vmem:[#allocation10 + $0xb20] sm:$0xff]
    %v2912 = vld [vmem:[#allocation10 + $0xb28] sm:$0xff]
    %v2913 = vld [vmem:[#allocation10 + $0xb30] sm:$0xff]
    %v2914 = vld [vmem:[#allocation10 + $0xb38] sm:$0xff]
    %v2915 = vld [vmem:[#allocation10 + $0xb40] sm:$0xff]
    %v2916 = vld [vmem:[#allocation10 + $0xb48] sm:$0xff]
    %v2917 = vld [vmem:[#allocation10 + $0xb50] sm:$0xff]
    %v2918 = vld [vmem:[#allocation10 + $0xb58] sm:$0xff]
    %v2919 = vld [vmem:[#allocation10 + $0xb60] sm:$0xff]
    %v2920 = vld [vmem:[#allocation10 + $0xb68] sm:$0xff]
    %v2921 = vld [vmem:[#allocation10 + $0xb70] sm:$0xff]
    %v2922 = vld [vmem:[#allocation10 + $0xb78] sm:$0xff]
    %v2923 = vld [vmem:[#allocation10 + $0xb80] sm:$0xff]
    %v2924 = vld [vmem:[#allocation10 + $0xb88] sm:$0xff]
    %v2925 = vld [vmem:[#allocation10 + $0xb90] sm:$0xff]
    %v2926 = vld [vmem:[#allocation10 + $0xb98] sm:$0xff]
    %v2927 = vld [vmem:[#allocation10 + $0xba0] sm:$0xff]
    %v2928 = vld [vmem:[#allocation10 + $0xba8] sm:$0xff]
    %v2929 = vld [vmem:[#allocation10 + $0xbb0] sm:$0xff]
    %v2930 = vld [vmem:[#allocation10 + $0xbb8] sm:$0xff]
    %v2931 = vld [vmem:[#allocation10 + $0xbc0] sm:$0xff]
    %v2932 = vld [vmem:[#allocation10 + $0xbc8] sm:$0xff]
    %v2933 = vld [vmem:[#allocation10 + $0xbd0] sm:$0xff]
    %v2934 = vld [vmem:[#allocation10 + $0xbd8] sm:$0xff]
    %v2935 = vld [vmem:[#allocation10 + $0xbe0] sm:$0xff]
    %v2936 = vld [vmem:[#allocation10 + $0xbe8] sm:$0xff]
    %v2937 = vld [vmem:[#allocation10 + $0xbf0] sm:$0xff]
    %v2938 = vld [vmem:[#allocation10 + $0xbf8] sm:$0xff]
    %v2939 = vld [vmem:[#allocation10 + $0xc00] sm:$0xff]
    %v2940 = vld [vmem:[#allocation10 + $0xc08] sm:$0xff]
    %v2941 = vld [vmem:[#allocation10 + $0xc10] sm:$0xff]
    %v2942 = vld [vmem:[#allocation10 + $0xc18] sm:$0xff]
    %v2943 = vld [vmem:[#allocation10 + $0xc20] sm:$0xff]
    %v2944 = vld [vmem:[#allocation10 + $0xc28] sm:$0xff]
    %v2945 = vld [vmem:[#allocation10 + $0xc30] sm:$0xff]
    %v2946 = vld [vmem:[#allocation10 + $0xc38] sm:$0xff]
    %v2947 = vld [vmem:[#allocation10 + $0xc40] sm:$0xff]
    %v2948 = vld [vmem:[#allocation10 + $0xc48] sm:$0xff]
    %v2949 = vld [vmem:[#allocation10 + $0xc50] sm:$0xff]
    %v2950 = vld [vmem:[#allocation10 + $0xc58] sm:$0xff]
    %v2951 = vld [vmem:[#allocation10 + $0xc60] sm:$0xff]
    %v2952 = vld [vmem:[#allocation10 + $0xc68] sm:$0xff]
    %v2953 = vld [vmem:[#allocation10 + $0xc70] sm:$0xff]
    %v2954 = vld [vmem:[#allocation10 + $0xc78] sm:$0xff]
    %v2955 = vld [vmem:[#allocation10 + $0xc80] sm:$0xff]
    %v2956 = vld [vmem:[#allocation10 + $0xc88] sm:$0xff]
    %v2957 = vld [vmem:[#allocation10 + $0xc90] sm:$0xff]
    %v2958 = vld [vmem:[#allocation10 + $0xc98] sm:$0xff]
    %v2959 = vld [vmem:[#allocation10 + $0xca0] sm:$0xff]
    %v2960 = vld [vmem:[#allocation10 + $0xca8] sm:$0xff]
    %v2961 = vld [vmem:[#allocation10 + $0xcb0] sm:$0xff]
    %v2962 = vld [vmem:[#allocation10 + $0xcb8] sm:$0xff]
    %v2963 = vld [vmem:[#allocation10 + $0xcc0] sm:$0xff]
    %v2964 = vld [vmem:[#allocation10 + $0xcc8] sm:$0xff]
    %v2965 = vld [vmem:[#allocation10 + $0xcd0] sm:$0xff]
    %v2966 = vld [vmem:[#allocation10 + $0xcd8] sm:$0xff]
    %v2967 = vld [vmem:[#allocation10 + $0xce0] sm:$0xff]
    %v2968 = vld [vmem:[#allocation10 + $0xce8] sm:$0xff]
    %v2969 = vld [vmem:[#allocation10 + $0xcf0] sm:$0xff]
    %v2970 = vld [vmem:[#allocation10 + $0xcf8] sm:$0xff]
    %v2971 = vld [vmem:[#allocation10 + $0xd00] sm:$0xff]
    %v2972 = vld [vmem:[#allocation10 + $0xd08] sm:$0xff]
    %v2973 = vld [vmem:[#allocation10 + $0xd10] sm:$0xff]
    %v2974 = vld [vmem:[#allocation10 + $0xd18] sm:$0xff]
    %v2975 = vld [vmem:[#allocation10 + $0xd20] sm:$0xff]
    %v2976 = vld [vmem:[#allocation10 + $0xd28] sm:$0xff]
    %v2977 = vld [vmem:[#allocation10 + $0xd30] sm:$0xff]
    %v2978 = vld [vmem:[#allocation10 + $0xd38] sm:$0xff]
    %v2979 = vld [vmem:[#allocation10 + $0xd40] sm:$0xff]
    %v2980 = vld [vmem:[#allocation10 + $0xd48] sm:$0xff]
    %v2981 = vld [vmem:[#allocation10 + $0xd50] sm:$0xff]
    %v2982 = vld [vmem:[#allocation10 + $0xd58] sm:$0xff]
    %v2983 = vld [vmem:[#allocation10 + $0xd60] sm:$0xff]
    %v2984 = vld [vmem:[#allocation10 + $0xd68] sm:$0xff]
    %v2985 = vld [vmem:[#allocation10 + $0xd70] sm:$0xff]
    %v2986 = vld [vmem:[#allocation10 + $0xd78] sm:$0xff]
    %v2987 = vld [vmem:[#allocation10 + $0xd80] sm:$0xff]
    %v2988 = vld [vmem:[#allocation10 + $0xd88] sm:$0xff]
    %v2989 = vld [vmem:[#allocation10 + $0xd90] sm:$0xff]
    %v2990 = vld [vmem:[#allocation10 + $0xd98] sm:$0xff]
    %v2991 = vld [vmem:[#allocation10 + $0xda0] sm:$0xff]
    %v2992 = vld [vmem:[#allocation10 + $0xda8] sm:$0xff]
    %v2993 = vld [vmem:[#allocation10 + $0xdb0] sm:$0xff]
    %v2994 = vld [vmem:[#allocation10 + $0xdb8] sm:$0xff]
    %v2995 = vld [vmem:[#allocation10 + $0xdc0] sm:$0xff]
    %v2996 = vld [vmem:[#allocation10 + $0xdc8] sm:$0xff]
    %v2997 = vld [vmem:[#allocation10 + $0xdd0] sm:$0xff]
    %v2998 = vld [vmem:[#allocation10 + $0xdd8] sm:$0xff]
    %v2999 = vld [vmem:[#allocation10 + $0xde0] sm:$0xff]
    %v3000 = vld [vmem:[#allocation10 + $0xde8] sm:$0xff]
    %v3001 = vld [vmem:[#allocation10 + $0xdf0] sm:$0xff]
    %v3002 = vld [vmem:[#allocation10 + $0xdf8] sm:$0xff]
    %v3003 = vld [vmem:[#allocation10 + $0xe00] sm:$0xff]
    %v3004 = vld [vmem:[#allocation10 + $0xe08] sm:$0xff]
    %v3005 = vld [vmem:[#allocation10 + $0xe10] sm:$0xff]
    %v3006 = vld [vmem:[#allocation10 + $0xe18] sm:$0xff]
    %v3007 = vld [vmem:[#allocation10 + $0xe20] sm:$0xff]
    %v3008 = vld [vmem:[#allocation10 + $0xe28] sm:$0xff]
    %v3009 = vld [vmem:[#allocation10 + $0xe30] sm:$0xff]
    %v3010 = vld [vmem:[#allocation10 + $0xe38] sm:$0xff]
    %v3011 = vld [vmem:[#allocation10 + $0xe40] sm:$0xff]
    %v3012 = vld [vmem:[#allocation10 + $0xe48] sm:$0xff]
    %v3013 = vld [vmem:[#allocation10 + $0xe50] sm:$0xff]
    %v3014 = vld [vmem:[#allocation10 + $0xe58] sm:$0xff]
    %v3015 = vld [vmem:[#allocation10 + $0xe60] sm:$0xff]
    %v3016 = vld [vmem:[#allocation10 + $0xe68] sm:$0xff]
    %v3017 = vld [vmem:[#allocation10 + $0xe70] sm:$0xff]
    %v3018 = vld [vmem:[#allocation10 + $0xe78] sm:$0xff]
    %v3019 = vld [vmem:[#allocation10 + $0xe80] sm:$0xff]
    %v3020 = vld [vmem:[#allocation10 + $0xe88] sm:$0xff]
    %v3021 = vld [vmem:[#allocation10 + $0xe90] sm:$0xff]
    %v3022 = vld [vmem:[#allocation10 + $0xe98] sm:$0xff]
    %v3023 = vld [vmem:[#allocation10 + $0xea0] sm:$0xff]
    %v3024 = vld [vmem:[#allocation10 + $0xea8] sm:$0xff]
    %v3025 = vld [vmem:[#allocation10 + $0xeb0] sm:$0xff]
    %v3026 = vld [vmem:[#allocation10 + $0xeb8] sm:$0xff]
    %v3027 = vld [vmem:[#allocation10 + $0xec0] sm:$0xff]
    %v3028 = vld [vmem:[#allocation10 + $0xec8] sm:$0xff]
    %v3029 = vld [vmem:[#allocation10 + $0xed0] sm:$0xff]
    %v3030 = vld [vmem:[#allocation10 + $0xed8] sm:$0xff]
    %v3031 = vld [vmem:[#allocation10 + $0xee0] sm:$0xff]
    %v3032 = vld [vmem:[#allocation10 + $0xee8] sm:$0xff]
    %v3033 = vld [vmem:[#allocation10 + $0xef0] sm:$0xff]
    %v3034 = vld [vmem:[#allocation10 + $0xef8] sm:$0xff]
    %v3035 = vld [vmem:[#allocation10 + $0xf00] sm:$0xff]
    %v3036 = vld [vmem:[#allocation10 + $0xf08] sm:$0xff]
    %v3037 = vld [vmem:[#allocation10 + $0xf10] sm:$0xff]
    %v3038 = vld [vmem:[#allocation10 + $0xf18] sm:$0xff]
    %v3039 = vld [vmem:[#allocation10 + $0xf20] sm:$0xff]
    %v3040 = vld [vmem:[#allocation10 + $0xf28] sm:$0xff]
    %v3041 = vld [vmem:[#allocation10 + $0xf30] sm:$0xff]
    %v3042 = vld [vmem:[#allocation10 + $0xf38] sm:$0xff]
    %v3043 = vld [vmem:[#allocation10 + $0xf40] sm:$0xff]
    %v3044 = vld [vmem:[#allocation10 + $0xf48] sm:$0xff]
    %v3045 = vld [vmem:[#allocation10 + $0xf50] sm:$0xff]
    %v3046 = vld [vmem:[#allocation10 + $0xf58] sm:$0xff]
    %v3047 = vld [vmem:[#allocation10 + $0xf60] sm:$0xff]
    %v3048 = vld [vmem:[#allocation10 + $0xf68] sm:$0xff]
    %v3049 = vld [vmem:[#allocation10 + $0xf70] sm:$0xff]
    %v3050 = vld [vmem:[#allocation10 + $0xf78] sm:$0xff]
    %v3051 = vld [vmem:[#allocation10 + $0xf80] sm:$0xff]
    %v3052 = vld [vmem:[#allocation10 + $0xf88] sm:$0xff]
    %v3053 = vld [vmem:[#allocation10 + $0xf90] sm:$0xff]
    %v3054 = vld [vmem:[#allocation10 + $0xf98] sm:$0xff]
    %v3055 = vld [vmem:[#allocation10 + $0xfa0] sm:$0xff]
    %v3056 = vld [vmem:[#allocation10 + $0xfa8] sm:$0xff]
    %v3057 = vld [vmem:[#allocation10 + $0xfb0] sm:$0xff]
    %v3058 = vld [vmem:[#allocation10 + $0xfb8] sm:$0xff]
    %v3059 = vld [vmem:[#allocation10 + $0xfc0] sm:$0xff]
    %v3060 = vld [vmem:[#allocation10 + $0xfc8] sm:$0xff]
    %v3061 = vld [vmem:[#allocation10 + $0xfd0] sm:$0xff]
    %v3062 = vld [vmem:[#allocation10 + $0xfd8] sm:$0xff]
    %v3063 = vld [vmem:[#allocation10 + $0xfe0] sm:$0xff]
    %v3064 = vld [vmem:[#allocation10 + $0xfe8] sm:$0xff]
    %v3065 = vld [vmem:[#allocation10 + $0xff0] sm:$0xff]
    %v3066 = vld [vmem:[#allocation10 + $0xff8] sm:$0xff]
    %v3079 = vrot.slane %v2543, 3
    %v3080 = vrot.slane %v2547, 3
    %v3081 = vsel %vm275, %v3079, %v3080
    %v3082 = vrot.slane %v2544, 3
    %v3083 = vrot.slane %v2548, 3
    %v3084 = vsel %vm275, %v3082, %v3083
    %v3085 = vrot.slane %v2545, 3
    %v3086 = vrot.slane %v2549, 3
    %v3087 = vsel %vm275, %v3085, %v3086
    %v3088 = vrot.slane %v2546, 3
    %v3089 = vrot.slane %v2550, 3
    %v3090 = vsel %vm275, %v3088, %v3089
    %v3091 = vrot.slane %v2551, 3
    %v3092 = vsel %vm275, %v3080, %v3091
    %v3093 = vrot.slane %v2552, 3
    %v3094 = vsel %vm275, %v3083, %v3093
    %v3095 = vrot.slane %v2553, 3
    %v3096 = vsel %vm275, %v3086, %v3095
    %v3097 = vrot.slane %v2554, 3
    %v3098 = vsel %vm275, %v3089, %v3097
    %3111 = vmatprep.subr.mxu0 %v2812
    %3112 = vmatpush1.msra.mxu0 %v2811
    %3113 = vmatprep.subr.mxu0 %v2816
    %3114 = vmatpush1.msra.mxu0 %v2815
    %3115 = vmatprep.subr.mxu0 %v2820
    %3116 = vmatpush1.msra.mxu0 %v2819
    %3117 = vmatprep.subr.mxu0 %v2824
    %3118 = vmatpush1.msra.mxu0 %v2823
    %3119 = vmatprep.subr.mxu0 %v2828
    %3120 = vmatpush1.msra.mxu0 %v2827
    %3121 = vmatprep.subr.mxu0 %v2832
    %3122 = vmatpush1.msra.mxu0 %v2831
    %3123 = vmatprep.subr.mxu0 %v2836
    %3124 = vmatpush1.msra.mxu0 %v2835
    %3125 = vmatprep.subr.mxu0 %v2840
    %3126 = vmatpush1.msra.mxu0 %v2839
    %3127 = vmatprep.subr.mxu0 %v2844
    %3128 = vmatpush1.msra.mxu0 %v2843
    %3129 = vmatprep.subr.mxu0 %v2848
    %3130 = vmatpush1.msra.mxu0 %v2847
    %3131 = vmatprep.subr.mxu0 %v2852
    %3132 = vmatpush1.msra.mxu0 %v2851
    %3133 = vmatprep.subr.mxu0 %v2856
    %3134 = vmatpush1.msra.mxu0 %v2855
    %3135 = vmatprep.subr.mxu0 %v2860
    %3136 = vmatpush1.msra.mxu0 %v2859
    %3137 = vmatprep.subr.mxu0 %v2864
    %3138 = vmatpush1.msra.mxu0 %v2863
    %3139 = vmatprep.subr.mxu0 %v2868
    %3140 = vmatpush1.msra.mxu0 %v2867
    %3141 = vmatprep.subr.mxu0 %v2872
    %3142 = vmatpush1.msra.mxu0 %v2871
    %3143 = vmatprep.subr.mxu0 %v2876
    %3144 = vmatpush1.msra.mxu0 %v2875
    %3145 = vmatprep.subr.mxu0 %v2880
    %3146 = vmatpush1.msra.mxu0 %v2879
    %3147 = vmatprep.subr.mxu0 %v2884
    %3148 = vmatpush1.msra.mxu0 %v2883
    %3149 = vmatprep.subr.mxu0 %v2888
    %3150 = vmatpush1.msra.mxu0 %v2887
    %3151 = vmatprep.subr.mxu0 %v2892
    %3152 = vmatpush1.msra.mxu0 %v2891
    %3153 = vmatprep.subr.mxu0 %v2896
    %3154 = vmatpush1.msra.mxu0 %v2895
    %3155 = vmatprep.subr.mxu0 %v2900
    %3156 = vmatpush1.msra.mxu0 %v2899
    %3157 = vmatprep.subr.mxu0 %v2904
    %3158 = vmatpush1.msra.mxu0 %v2903
    %3159 = vmatprep.subr.mxu0 %v2908
    %3160 = vmatpush1.msra.mxu0 %v2907
    %3161 = vmatprep.subr.mxu0 %v2912
    %3162 = vmatpush1.msra.mxu0 %v2911
    %3163 = vmatprep.subr.mxu0 %v2916
    %3164 = vmatpush1.msra.mxu0 %v2915
    %3165 = vmatprep.subr.mxu0 %v2920
    %3166 = vmatpush1.msra.mxu0 %v2919
    %3167 = vmatprep.subr.mxu0 %v2924
    %3168 = vmatpush1.msra.mxu0 %v2923
    %3169 = vmatprep.subr.mxu0 %v2928
    %3170 = vmatpush1.msra.mxu0 %v2927
    %3171 = vmatprep.subr.mxu0 %v2932
    %3172 = vmatpush1.msra.mxu0 %v2931
    %3173 = vmatprep.subr.mxu0 %v2936
    %3174 = vmatpush1.msra.mxu0 %v2935
    %3175 = vmatprep.mubr.f32.mxu0 %v3084
    %3176 = vmatmul.mubr.f32.gmra.mrb[0].mxu0 %v3081
    %v3177 = vpop.f32.mrb[0].mxu0
    %v3178 = vadd.f32 0.0, %v3177
    %v3179 = vpop.f32.mrb[0].mxu0
    %v3180 = vadd.f32 0.0, %v3179
    %3181 = vmatprep.mubr.f32.mxu0 %v3094
    %3182 = vmatmul.mubr.f32.gmra.mrb[0].mxu0 %v3092
    %v3183 = vpop.f32.mrb[0].mxu0
    %v3184 = vadd.f32 0.0, %v3183
    %v3185 = vpop.f32.mrb[0].mxu0
    %v3186 = vadd.f32 0.0, %v3185
    %3187 = vmatprep.mubr.f32.mxu0 %v3093
    %3188 = vmatmul.mubr.f32.gmra.mrb[0].mxu0 %v3091
    %v3189 = vpop.f32.mrb[0].mxu0
    %v3190 = vadd.f32 0.0, %v3189
    %v3191 = vpop.f32.mrb[0].mxu0
    %v3192 = vadd.f32 0.0, %v3191
    %3193 = vdwg.mxu0
    %3194 = vmatprep.subr.mxu0 %v2940
    %3195 = vmatpush1.msra.mxu0 %v2939
    %3196 = vmatprep.subr.mxu0 %v2944
    %3197 = vmatpush1.msra.mxu0 %v2943
    %3198 = vmatprep.subr.mxu0 %v2948
    %3199 = vmatpush1.msra.mxu0 %v2947
    %3200 = vmatprep.subr.mxu0 %v2952
    %3201 = vmatpush1.msra.mxu0 %v2951
    %3202 = vmatprep.subr.mxu0 %v2956
    %3203 = vmatpush1.msra.mxu0 %v2955
    %3204 = vmatprep.subr.mxu0 %v2960
    %3205 = vmatpush1.msra.mxu0 %v2959
    %3206 = vmatprep.subr.mxu0 %v2964
    %3207 = vmatpush1.msra.mxu0 %v2963
    %3208 = vmatprep.subr.mxu0 %v2968
    %3209 = vmatpush1.msra.mxu0 %v2967
    %3210 = vmatprep.subr.mxu0 %v2972
    %3211 = vmatpush1.msra.mxu0 %v2971
    %3212 = vmatprep.subr.mxu0 %v2976
    %3213 = vmatpush1.msra.mxu0 %v2975
    %3214 = vmatprep.subr.mxu0 %v2980
    %3215 = vmatpush1.msra.mxu0 %v2979
    %3216 = vmatprep.subr.mxu0 %v2984
    %3217 = vmatpush1.msra.mxu0 %v2983
    %3218 = vmatprep.subr.mxu0 %v2988
    %3219 = vmatpush1.msra.mxu0 %v2987
    %3220 = vmatprep.subr.mxu0 %v2992
    %3221 = vmatpush1.msra.mxu0 %v2991
    %3222 = vmatprep.subr.mxu0 %v2996
    %3223 = vmatpush1.msra.mxu0 %v2995
    %3224 = vmatprep.subr.mxu0 %v3000
    %3225 = vmatpush1.msra.mxu0 %v2999
    %3226 = vmatprep.subr.mxu0 %v3004
    %3227 = vmatpush1.msra.mxu0 %v3003
    %3228 = vmatprep.subr.mxu0 %v3008
    %3229 = vmatpush1.msra.mxu0 %v3007
    %3230 = vmatprep.subr.mxu0 %v3012
    %3231 = vmatpush1.msra.mxu0 %v3011
    %3232 = vmatprep.subr.mxu0 %v3016
    %3233 = vmatpush1.msra.mxu0 %v3015
    %3234 = vmatprep.subr.mxu0 %v3020
    %3235 = vmatpush1.msra.mxu0 %v3019
    %3236 = vmatprep.subr.mxu0 %v3024
    %3237 = vmatpush1.msra.mxu0 %v3023
    %3238 = vmatprep.subr.mxu0 %v3028
    %3239 = vmatpush1.msra.mxu0 %v3027
    %3240 = vmatprep.subr.mxu0 %v3032
    %3241 = vmatpush1.msra.mxu0 %v3031
    %3242 = vmatprep.subr.mxu0 %v3036
    %3243 = vmatpush1.msra.mxu0 %v3035
    %3244 = vmatprep.subr.mxu0 %v3040
    %3245 = vmatpush1.msra.mxu0 %v3039
    %3246 = vmatprep.subr.mxu0 %v3044
    %3247 = vmatpush1.msra.mxu0 %v3043
    %3248 = vmatprep.subr.mxu0 %v3048
    %3249 = vmatpush1.msra.mxu0 %v3047
    %3250 = vmatprep.subr.mxu0 %v3052
    %3251 = vmatpush1.msra.mxu0 %v3051
    %3252 = vmatprep.subr.mxu0 %v3056
    %3253 = vmatpush1.msra.mxu0 %v3055
    %3254 = vmatprep.subr.mxu0 %v3060
    %3255 = vmatpush1.msra.mxu0 %v3059
    %3256 = vmatprep.subr.mxu0 %v3064
    %3257 = vmatpush1.msra.mxu0 %v3063
    %3258 = vmatprep.mubr.f32.mxu0 %v3090
    %3259 = vmatmul.mubr.f32.gmra.mrb[0].mxu0 %v3087
    %v3260 = vpop.f32.mrb[0].mxu0
    %v3261 = vadd.f32 %v3178, %v3260
    %v3262 = vpop.f32.mrb[0].mxu0
    %v3263 = vadd.f32 %v3180, %v3262
    %3264 = vmatprep.mubr.f32.mxu0 %v3098
    %3265 = vmatmul.mubr.f32.gmra.mrb[0].mxu0 %v3096
    %v3266 = vpop.f32.mrb[0].mxu0
    %v3267 = vadd.f32 %v3184, %v3266
    %v3268 = vpop.f32.mrb[0].mxu0
    %v3269 = vadd.f32 %v3186, %v3268
    %3270 = vmatprep.mubr.f32.mxu0 %v3097
    %3271 = vmatmul.mubr.f32.gmra.mrb[0].mxu0 %v3095
    %v3272 = vpop.f32.mrb[0].mxu0
    %v3273 = vadd.f32 %v3190, %v3272
    %v3274 = vpop.f32.mrb[0].mxu0
    %v3275 = vadd.f32 %v3192, %v3274
    %3276 = vdwg.mxu0
    %3277 = vmatprep.subr.mxu0 %v2814
    %3278 = vmatpush1.msra.mxu0 %v2813
    %3279 = vmatprep.subr.mxu0 %v2818
    %3280 = vmatpush1.msra.mxu0 %v2817
    %3281 = vmatprep.subr.mxu0 %v2822
    %3282 = vmatpush1.msra.mxu0 %v2821
    %3283 = vmatprep.subr.mxu0 %v2826
    %3284 = vmatpush1.msra.mxu0 %v2825
    %3285 = vmatprep.subr.mxu0 %v2830
    %3286 = vmatpush1.msra.mxu0 %v2829
    %3287 = vmatprep.subr.mxu0 %v2834
    %3288 = vmatpush1.msra.mxu0 %v2833
    %3289 = vmatprep.subr.mxu0 %v2838
    %3290 = vmatpush1.msra.mxu0 %v2837
    %3291 = vmatprep.subr.mxu0 %v2842
    %3292 = vmatpush1.msra.mxu0 %v2841
    %3293 = vmatprep.subr.mxu0 %v2846
    %3294 = vmatpush1.msra.mxu0 %v2845
    %3295 = vmatprep.subr.mxu0 %v2850
    %3296 = vmatpush1.msra.mxu0 %v2849
    %3297 = vmatprep.subr.mxu0 %v2854
    %3298 = vmatpush1.msra.mxu0 %v2853
    %3299 = vmatprep.subr.mxu0 %v2858
    %3300 = vmatpush1.msra.mxu0 %v2857
    %3301 = vmatprep.subr.mxu0 %v2862
    %3302 = vmatpush1.msra.mxu0 %v2861
    %3303 = vmatprep.subr.mxu0 %v2866
    %3304 = vmatpush1.msra.mxu0 %v2865
    %3305 = vmatprep.subr.mxu0 %v2870
    %3306 = vmatpush1.msra.mxu0 %v2869
    %3307 = vmatprep.subr.mxu0 %v2874
    %3308 = vmatpush1.msra.mxu0 %v2873
    %3309 = vmatprep.subr.mxu0 %v2878
    %3310 = vmatpush1.msra.mxu0 %v2877
    %3311 = vmatprep.subr.mxu0 %v2882
    %3312 = vmatpush1.msra.mxu0 %v2881
    %3313 = vmatprep.subr.mxu0 %v2886
    %3314 = vmatpush1.msra.mxu0 %v2885
    %3315 = vmatprep.subr.mxu0 %v2890
    %3316 = vmatpush1.msra.mxu0 %v2889
    %3317 = vmatprep.subr.mxu0 %v2894
    %3318 = vmatpush1.msra.mxu0 %v2893
    %3319 = vmatprep.subr.mxu0 %v2898
    %3320 = vmatpush1.msra.mxu0 %v2897
    %3321 = vmatprep.subr.mxu0 %v2902
    %3322 = vmatpush1.msra.mxu0 %v2901
    %3323 = vmatprep.subr.mxu0 %v2906
    %3324 = vmatpush1.msra.mxu0 %v2905
    %3325 = vmatprep.subr.mxu0 %v2910
    %3326 = vmatpush1.msra.mxu0 %v2909
    %3327 = vmatprep.subr.mxu0 %v2914
    %3328 = vmatpush1.msra.mxu0 %v2913
    %3329 = vmatprep.subr.mxu0 %v2918
    %3330 = vmatpush1.msra.mxu0 %v2917
    %3331 = vmatprep.subr.mxu0 %v2922
    %3332 = vmatpush1.msra.mxu0 %v2921
    %3333 = vmatprep.subr.mxu0 %v2926
    %3334 = vmatpush1.msra.mxu0 %v2925
    %3335 = vmatprep.subr.mxu0 %v2930
    %3336 = vmatpush1.msra.mxu0 %v2929
    %3337 = vmatprep.subr.mxu0 %v2934
    %3338 = vmatpush1.msra.mxu0 %v2933
    %3339 = vmatprep.subr.mxu0 %v2938
    %3340 = vmatpush1.msra.mxu0 %v2937
    %3341 = vmatprep.mubr.f32.mxu0 %v3084
    %3342 = vmatmul.mubr.f32.gmra.mrb[0].mxu0 %v3081
    %v3343 = vpop.f32.mrb[0].mxu0
    %v3344 = vadd.f32 0.0, %v3343
    %v3345 = vpop.f32.mrb[0].mxu0
    %v3346 = vadd.f32 0.0, %v3345
    %3347 = vmatprep.mubr.f32.mxu0 %v3094
    %3348 = vmatmul.mubr.f32.gmra.mrb[0].mxu0 %v3092
    %v3349 = vpop.f32.mrb[0].mxu0
    %v3350 = vadd.f32 0.0, %v3349
    %v3351 = vpop.f32.mrb[0].mxu0
    %v3352 = vadd.f32 0.0, %v3351
    %3353 = vmatprep.mubr.f32.mxu0 %v3093
    %3354 = vmatmul.mubr.f32.gmra.mrb[0].mxu0 %v3091
    %v3355 = vpop.f32.mrb[0].mxu0
    %v3356 = vadd.f32 0.0, %v3355
    %v3357 = vpop.f32.mrb[0].mxu0
    %v3358 = vadd.f32 0.0, %v3357
    %3359 = vdwg.mxu0
    %3360 = vmatprep.subr.mxu0 %v2942
    %3361 = vmatpush1.msra.mxu0 %v2941
    %3362 = vmatprep.subr.mxu0 %v2946
    %3363 = vmatpush1.msra.mxu0 %v2945
    %3364 = vmatprep.subr.mxu0 %v2950
    %3365 = vmatpush1.msra.mxu0 %v2949
    %3366 = vmatprep.subr.mxu0 %v2954
    %3367 = vmatpush1.msra.mxu0 %v2953
    %3368 = vmatprep.subr.mxu0 %v2958
    %3369 = vmatpush1.msra.mxu0 %v2957
    %3370 = vmatprep.subr.mxu0 %v2962
    %3371 = vmatpush1.msra.mxu0 %v2961
    %3372 = vmatprep.subr.mxu0 %v2966
    %3373 = vmatpush1.msra.mxu0 %v2965
    %3374 = vmatprep.subr.mxu0 %v2970
    %3375 = vmatpush1.msra.mxu0 %v2969
    %3376 = vmatprep.subr.mxu0 %v2974
    %3377 = vmatpush1.msra.mxu0 %v2973
    %3378 = vmatprep.subr.mxu0 %v2978
    %3379 = vmatpush1.msra.mxu0 %v2977
    %3380 = vmatprep.subr.mxu0 %v2982
    %3381 = vmatpush1.msra.mxu0 %v2981
    %3382 = vmatprep.subr.mxu0 %v2986
    %3383 = vmatpush1.msra.mxu0 %v2985
    %3384 = vmatprep.subr.mxu0 %v2990
    %3385 = vmatpush1.msra.mxu0 %v2989
    %3386 = vmatprep.subr.mxu0 %v2994
    %3387 = vmatpush1.msra.mxu0 %v2993
    %3388 = vmatprep.subr.mxu0 %v2998
    %3389 = vmatpush1.msra.mxu0 %v2997
    %3390 = vmatprep.subr.mxu0 %v3002
    %3391 = vmatpush1.msra.mxu0 %v3001
    %3392 = vmatprep.subr.mxu0 %v3006
    %3393 = vmatpush1.msra.mxu0 %v3005
    %3394 = vmatprep.subr.mxu0 %v3010
    %3395 = vmatpush1.msra.mxu0 %v3009
    %3396 = vmatprep.subr.mxu0 %v3014
    %3397 = vmatpush1.msra.mxu0 %v3013
    %3398 = vmatprep.subr.mxu0 %v3018
    %3399 = vmatpush1.msra.mxu0 %v3017
    %3400 = vmatprep.subr.mxu0 %v3022
    %3401 = vmatpush1.msra.mxu0 %v3021
    %3402 = vmatprep.subr.mxu0 %v3026
    %3403 = vmatpush1.msra.mxu0 %v3025
    %3404 = vmatprep.subr.mxu0 %v3030
    %3405 = vmatpush1.msra.mxu0 %v3029
    %3406 = vmatprep.subr.mxu0 %v3034
    %3407 = vmatpush1.msra.mxu0 %v3033
    %3408 = vmatprep.subr.mxu0 %v3038
    %3409 = vmatpush1.msra.mxu0 %v3037
    %3410 = vmatprep.subr.mxu0 %v3042
    %3411 = vmatpush1.msra.mxu0 %v3041
    %3412 = vmatprep.subr.mxu0 %v3046
    %3413 = vmatpush1.msra.mxu0 %v3045
    %3414 = vmatprep.subr.mxu0 %v3050
    %3415 = vmatpush1.msra.mxu0 %v3049
    %3416 = vmatprep.subr.mxu0 %v3054
    %3417 = vmatpush1.msra.mxu0 %v3053
    %3418 = vmatprep.subr.mxu0 %v3058
    %3419 = vmatpush1.msra.mxu0 %v3057
    %3420 = vmatprep.subr.mxu0 %v3062
    %3421 = vmatpush1.msra.mxu0 %v3061
    %3422 = vmatprep.subr.mxu0 %v3066
    %3423 = vmatpush1.msra.mxu0 %v3065
    %3424 = vmatprep.mubr.f32.mxu0 %v3090
    %3425 = vmatmul.mubr.f32.gmra.mrb[0].mxu0 %v3087
    %v3426 = vpop.f32.mrb[0].mxu0
    %v3427 = vadd.f32 %v3344, %v3426
    %v3428 = vpop.f32.mrb[0].mxu0
    %v3429 = vadd.f32 %v3346, %v3428
    %3430 = vmatprep.mubr.f32.mxu0 %v3098
    %3431 = vmatmul.mubr.f32.gmra.mrb[0].mxu0 %v3096
    %v3432 = vpop.f32.mrb[0].mxu0
    %v3433 = vadd.f32 %v3350, %v3432
    %v3434 = vpop.f32.mrb[0].mxu0
    %v3435 = vadd.f32 %v3352, %v3434
    %3436 = vmatprep.mubr.f32.mxu0 %v3097
    %3437 = vmatmul.mubr.f32.gmra.mrb[0].mxu0 %v3095
    %v3438 = vpop.f32.mrb[0].mxu0
    %v3439 = vadd.f32 %v3356, %v3438
    %v3440 = vpop.f32.mrb[0].mxu0
    %v3441 = vadd.f32 %v3358, %v3440
    %3442 = vdwg.mxu0
    %3443 = vmatprep.subr.mxu0 %v2556
    %3444 = vmatpush1.msra.mxu0 %v2555
    %3445 = vmatprep.subr.mxu0 %v2560
    %3446 = vmatpush1.msra.mxu0 %v2559
    %3447 = vmatprep.subr.mxu0 %v2564
    %3448 = vmatpush1.msra.mxu0 %v2563
    %3449 = vmatprep.subr.mxu0 %v2568
    %3450 = vmatpush1.msra.mxu0 %v2567
    %3451 = vmatprep.subr.mxu0 %v2572
    %3452 = vmatpush1.msra.mxu0 %v2571
    %3453 = vmatprep.subr.mxu0 %v2576
    %3454 = vmatpush1.msra.mxu0 %v2575
    %3455 = vmatprep.subr.mxu0 %v2580
    %3456 = vmatpush1.msra.mxu0 %v2579
    %3457 = vmatprep.subr.mxu0 %v2584
    %3458 = vmatpush1.msra.mxu0 %v2583
    %3459 = vmatprep.subr.mxu0 %v2588
    %3460 = vmatpush1.msra.mxu0 %v2587
    %3461 = vmatprep.subr.mxu0 %v2592
    %3462 = vmatpush1.msra.mxu0 %v2591
    %3463 = vmatprep.subr.mxu0 %v2596
    %3464 = vmatpush1.msra.mxu0 %v2595
    %3465 = vmatprep.subr.mxu0 %v2600
    %3466 = vmatpush1.msra.mxu0 %v2599
    %3467 = vmatprep.subr.mxu0 %v2604
    %3468 = vmatpush1.msra.mxu0 %v2603
    %3469 = vmatprep.subr.mxu0 %v2608
    %3470 = vmatpush1.msra.mxu0 %v2607
    %3471 = vmatprep.subr.mxu0 %v2612
    %3472 = vmatpush1.msra.mxu0 %v2611
    %3473 = vmatprep.subr.mxu0 %v2616
    %3474 = vmatpush1.msra.mxu0 %v2615
    %3475 = vmatprep.subr.mxu0 %v2620
    %3476 = vmatpush1.msra.mxu0 %v2619
    %3477 = vmatprep.subr.mxu0 %v2624
    %3478 = vmatpush1.msra.mxu0 %v2623
    %3479 = vmatprep.subr.mxu0 %v2628
    %3480 = vmatpush1.msra.mxu0 %v2627
    %3481 = vmatprep.subr.mxu0 %v2632
    %3482 = vmatpush1.msra.mxu0 %v2631
    %3483 = vmatprep.subr.mxu0 %v2636
    %3484 = vmatpush1.msra.mxu0 %v2635
    %3485 = vmatprep.subr.mxu0 %v2640
    %3486 = vmatpush1.msra.mxu0 %v2639
    %3487 = vmatprep.subr.mxu0 %v2644
    %3488 = vmatpush1.msra.mxu0 %v2643
    %3489 = vmatprep.subr.mxu0 %v2648
    %3490 = vmatpush1.msra.mxu0 %v2647
    %3491 = vmatprep.subr.mxu0 %v2652
    %3492 = vmatpush1.msra.mxu0 %v2651
    %3493 = vmatprep.subr.mxu0 %v2656
    %3494 = vmatpush1.msra.mxu0 %v2655
    %3495 = vmatprep.subr.mxu0 %v2660
    %3496 = vmatpush1.msra.mxu0 %v2659
    %3497 = vmatprep.subr.mxu0 %v2664
    %3498 = vmatpush1.msra.mxu0 %v2663
    %3499 = vmatprep.subr.mxu0 %v2668
    %3500 = vmatpush1.msra.mxu0 %v2667
    %3501 = vmatprep.subr.mxu0 %v2672
    %3502 = vmatpush1.msra.mxu0 %v2671
    %3503 = vmatprep.subr.mxu0 %v2676
    %3504 = vmatpush1.msra.mxu0 %v2675
    %3505 = vmatprep.subr.mxu0 %v2680
    %3506 = vmatpush1.msra.mxu0 %v2679
    %3507 = vmatprep.mubr.f32.mxu0 %v2544
    %3508 = vmatmul.mubr.f32.gmra.mrb[0].mxu0 %v2543
    %v3509 = vpop.f32.mrb[0].mxu0
    %v3510 = vadd.f32 %v3261, %v3509
    %v3511 = vpop.f32.mrb[0].mxu0
    %v3512 = vadd.f32 %v3263, %v3511
    %3513 = vmatprep.mubr.f32.mxu0 %v2548
    %3514 = vmatmul.mubr.f32.gmra.mrb[0].mxu0 %v2547
    %v3515 = vpop.f32.mrb[0].mxu0
    %v3516 = vadd.f32 %v3267, %v3515
    %v3517 = vpop.f32.mrb[0].mxu0
    %v3518 = vadd.f32 %v3269, %v3517
    %3519 = vmatprep.mubr.f32.mxu0 %v2552
    %3520 = vmatmul.mubr.f32.gmra.mrb[0].mxu0 %v2551
    %v3521 = vpop.f32.mrb[0].mxu0
    %v3522 = vadd.f32 %v3273, %v3521
    %v3523 = vpop.f32.mrb[0].mxu0
    %v3524 = vadd.f32 %v3275, %v3523
    %3525 = vdwg.mxu0
    %3526 = vmatprep.subr.mxu0 %v2684
    %3527 = vmatpush1.msra.mxu0 %v2683
    %3528 = vmatprep.subr.mxu0 %v2688
    %3529 = vmatpush1.msra.mxu0 %v2687
    %3530 = vmatprep.subr.mxu0 %v2692
    %3531 = vmatpush1.msra.mxu0 %v2691
    %3532 = vmatprep.subr.mxu0 %v2696
    %3533 = vmatpush1.msra.mxu0 %v2695
    %3534 = vmatprep.subr.mxu0 %v2700
    %3535 = vmatpush1.msra.mxu0 %v2699
    %3536 = vmatprep.subr.mxu0 %v2704
    %3537 = vmatpush1.msra.mxu0 %v2703
    %3538 = vmatprep.subr.mxu0 %v2708
    %3539 = vmatpush1.msra.mxu0 %v2707
    %3540 = vmatprep.subr.mxu0 %v2712
    %3541 = vmatpush1.msra.mxu0 %v2711
    %3542 = vmatprep.subr.mxu0 %v2716
    %3543 = vmatpush1.msra.mxu0 %v2715
    %3544 = vmatprep.subr.mxu0 %v2720
    %3545 = vmatpush1.msra.mxu0 %v2719
    %3546 = vmatprep.subr.mxu0 %v2724
    %3547 = vmatpush1.msra.mxu0 %v2723
    %3548 = vmatprep.subr.mxu0 %v2728
    %3549 = vmatpush1.msra.mxu0 %v2727
    %3550 = vmatprep.subr.mxu0 %v2732
    %3551 = vmatpush1.msra.mxu0 %v2731
    %3552 = vmatprep.subr.mxu0 %v2736
    %3553 = vmatpush1.msra.mxu0 %v2735
    %3554 = vmatprep.subr.mxu0 %v2740
    %3555 = vmatpush1.msra.mxu0 %v2739
    %3556 = vmatprep.subr.mxu0 %v2744
    %3557 = vmatpush1.msra.mxu0 %v2743
    %3558 = vmatprep.subr.mxu0 %v2748
    %3559 = vmatpush1.msra.mxu0 %v2747
    %3560 = vmatprep.subr.mxu0 %v2752
    %3561 = vmatpush1.msra.mxu0 %v2751
    %3562 = vmatprep.subr.mxu0 %v2756
    %3563 = vmatpush1.msra.mxu0 %v2755
    %3564 = vmatprep.subr.mxu0 %v2760
    %3565 = vmatpush1.msra.mxu0 %v2759
    %3566 = vmatprep.subr.mxu0 %v2764
    %3567 = vmatpush1.msra.mxu0 %v2763
    %3568 = vmatprep.subr.mxu0 %v2768
    %3569 = vmatpush1.msra.mxu0 %v2767
    %3570 = vmatprep.subr.mxu0 %v2772
    %3571 = vmatpush1.msra.mxu0 %v2771
    %3572 = vmatprep.subr.mxu0 %v2776
    %3573 = vmatpush1.msra.mxu0 %v2775
    %3574 = vmatprep.subr.mxu0 %v2780
    %3575 = vmatpush1.msra.mxu0 %v2779
    %3576 = vmatprep.subr.mxu0 %v2784
    %3577 = vmatpush1.msra.mxu0 %v2783
    %3578 = vmatprep.subr.mxu0 %v2788
    %3579 = vmatpush1.msra.mxu0 %v2787
    %3580 = vmatprep.subr.mxu0 %v2792
    %3581 = vmatpush1.msra.mxu0 %v2791
    %3582 = vmatprep.subr.mxu0 %v2796
    %3583 = vmatpush1.msra.mxu0 %v2795
    %3584 = vmatprep.subr.mxu0 %v2800
    %3585 = vmatpush1.msra.mxu0 %v2799
    %3586 = vmatprep.subr.mxu0 %v2804
    %3587 = vmatpush1.msra.mxu0 %v2803
    %3588 = vmatprep.subr.mxu0 %v2808
    %3589 = vmatpush1.msra.mxu0 %v2807
    %3590 = vmatprep.mubr.f32.mxu0 %v2546
    %3591 = vmatmul.mubr.f32.gmra.mrb[0].mxu0 %v2545
    %v3592 = vpop.f32.mrb[0].mxu0
    %v3593 = vadd.f32 %v3510, %v3592
    %v3594 = vpop.f32.mrb[0].mxu0
    %v3595 = vadd.f32 %v3512, %v3594
    %3596 = vmatprep.mubr.f32.mxu0 %v2550
    %3597 = vmatmul.mubr.f32.gmra.mrb[0].mxu0 %v2549
    %v3598 = vpop.f32.mrb[0].mxu0
    %v3599 = vadd.f32 %v3516, %v3598
    %v3600 = vpop.f32.mrb[0].mxu0
    %v3601 = vadd.f32 %v3518, %v3600
    %3602 = vmatprep.mubr.f32.mxu0 %v2554
    %3603 = vmatmul.mubr.f32.gmra.mrb[0].mxu0 %v2553
    %v3604 = vpop.f32.mrb[0].mxu0
    %v3605 = vadd.f32 %v3522, %v3604
    %v3606 = vpop.f32.mrb[0].mxu0
    %v3607 = vadd.f32 %v3524, %v3606
    %3608 = vdwg.mxu0
    %3609 = vmatprep.subr.mxu0 %v2558
    %3610 = vmatpush1.msra.mxu0 %v2557
    %3611 = vmatprep.subr.mxu0 %v2562
    %3612 = vmatpush1.msra.mxu0 %v2561
    %3613 = vmatprep.subr.mxu0 %v2566
    %3614 = vmatpush1.msra.mxu0 %v2565
    %3615 = vmatprep.subr.mxu0 %v2570
    %3616 = vmatpush1.msra.mxu0 %v2569
    %3617 = vmatprep.subr.mxu0 %v2574
    %3618 = vmatpush1.msra.mxu0 %v2573
    %3619 = vmatprep.subr.mxu0 %v2578
    %3620 = vmatpush1.msra.mxu0 %v2577
    %3621 = vmatprep.subr.mxu0 %v2582
    %3622 = vmatpush1.msra.mxu0 %v2581
    %3623 = vmatprep.subr.mxu0 %v2586
    %3624 = vmatpush1.msra.mxu0 %v2585
    %3625 = vmatprep.subr.mxu0 %v2590
    %3626 = vmatpush1.msra.mxu0 %v2589
    %3627 = vmatprep.subr.mxu0 %v2594
    %3628 = vmatpush1.msra.mxu0 %v2593
    %3629 = vmatprep.subr.mxu0 %v2598
    %3630 = vmatpush1.msra.mxu0 %v2597
    %3631 = vmatprep.subr.mxu0 %v2602
    %3632 = vmatpush1.msra.mxu0 %v2601
    %3633 = vmatprep.subr.mxu0 %v2606
    %3634 = vmatpush1.msra.mxu0 %v2605
    %3635 = vmatprep.subr.mxu0 %v2610
    %3636 = vmatpush1.msra.mxu0 %v2609
    %3637 = vmatprep.subr.mxu0 %v2614
    %3638 = vmatpush1.msra.mxu0 %v2613
    %3639 = vmatprep.subr.mxu0 %v2618
    %3640 = vmatpush1.msra.mxu0 %v2617
    %3641 = vmatprep.subr.mxu0 %v2622
    %3642 = vmatpush1.msra.mxu0 %v2621
    %3643 = vmatprep.subr.mxu0 %v2626
    %3644 = vmatpush1.msra.mxu0 %v2625
    %3645 = vmatprep.subr.mxu0 %v2630
    %3646 = vmatpush1.msra.mxu0 %v2629
    %3647 = vmatprep.subr.mxu0 %v2634
    %3648 = vmatpush1.msra.mxu0 %v2633
    %3649 = vmatprep.subr.mxu0 %v2638
    %3650 = vmatpush1.msra.mxu0 %v2637
    %3651 = vmatprep.subr.mxu0 %v2642
    %3652 = vmatpush1.msra.mxu0 %v2641
    %3653 = vmatprep.subr.mxu0 %v2646
    %3654 = vmatpush1.msra.mxu0 %v2645
    %3655 = vmatprep.subr.mxu0 %v2650
    %3656 = vmatpush1.msra.mxu0 %v2649
    %3657 = vmatprep.subr.mxu0 %v2654
    %3658 = vmatpush1.msra.mxu0 %v2653
    %3659 = vmatprep.subr.mxu0 %v2658
    %3660 = vmatpush1.msra.mxu0 %v2657
    %3661 = vmatprep.subr.mxu0 %v2662
    %3662 = vmatpush1.msra.mxu0 %v2661
    %3663 = vmatprep.subr.mxu0 %v2666
    %3664 = vmatpush1.msra.mxu0 %v2665
    %3665 = vmatprep.subr.mxu0 %v2670
    %3666 = vmatpush1.msra.mxu0 %v2669
    %3667 = vmatprep.subr.mxu0 %v2674
    %3668 = vmatpush1.msra.mxu0 %v2673
    %3669 = vmatprep.subr.mxu0 %v2678
    %3670 = vmatpush1.msra.mxu0 %v2677
    %3671 = vmatprep.subr.mxu0 %v2682
    %3672 = vmatpush1.msra.mxu0 %v2681
    %3673 = vmatprep.mubr.f32.mxu0 %v2544
    %3674 = vmatmul.mubr.f32.gmra.mrb[0].mxu0 %v2543
    %v3675 = vpop.f32.mrb[0].mxu0
    %v3676 = vadd.f32 %v3427, %v3675
    %v3677 = vpop.f32.mrb[0].mxu0
    %v3678 = vadd.f32 %v3429, %v3677
    %3679 = vmatprep.mubr.f32.mxu0 %v2548
    %3680 = vmatmul.mubr.f32.gmra.mrb[0].mxu0 %v2547
    %v3681 = vpop.f32.mrb[0].mxu0
    %v3682 = vadd.f32 %v3433, %v3681
    %v3683 = vpop.f32.mrb[0].mxu0
    %v3684 = vadd.f32 %v3435, %v3683
    %3685 = vmatprep.mubr.f32.mxu0 %v2552
    %3686 = vmatmul.mubr.f32.gmra.mrb[0].mxu0 %v2551
    %v3687 = vpop.f32.mrb[0].mxu0
    %v3688 = vadd.f32 %v3439, %v3687
    %v3689 = vpop.f32.mrb[0].mxu0
    %v3690 = vadd.f32 %v3441, %v3689
    %3691 = vdwg.mxu0
    %3692 = vmatprep.subr.mxu0 %v2686
    %3693 = vmatpush1.msra.mxu0 %v2685
    %3694 = vmatprep.subr.mxu0 %v2690
    %3695 = vmatpush1.msra.mxu0 %v2689
    %3696 = vmatprep.subr.mxu0 %v2694
    %3697 = vmatpush1.msra.mxu0 %v2693
    %3698 = vmatprep.subr.mxu0 %v2698
    %3699 = vmatpush1.msra.mxu0 %v2697
    %3700 = vmatprep.subr.mxu0 %v2702
    %3701 = vmatpush1.msra.mxu0 %v2701
    %3702 = vmatprep.subr.mxu0 %v2706
    %3703 = vmatpush1.msra.mxu0 %v2705
    %3704 = vmatprep.subr.mxu0 %v2710
    %3705 = vmatpush1.msra.mxu0 %v2709
    %3706 = vmatprep.subr.mxu0 %v2714
    %3707 = vmatpush1.msra.mxu0 %v2713
    %3708 = vmatprep.subr.mxu0 %v2718
    %3709 = vmatpush1.msra.mxu0 %v2717
    %3710 = vmatprep.subr.mxu0 %v2722
    %3711 = vmatpush1.msra.mxu0 %v2721
    %3712 = vmatprep.subr.mxu0 %v2726
    %3713 = vmatpush1.msra.mxu0 %v2725
    %3714 = vmatprep.subr.mxu0 %v2730
    %3715 = vmatpush1.msra.mxu0 %v2729
    %3716 = vmatprep.subr.mxu0 %v2734
    %3717 = vmatpush1.msra.mxu0 %v2733
    %3718 = vmatprep.subr.mxu0 %v2738
    %3719 = vmatpush1.msra.mxu0 %v2737
    %3720 = vmatprep.subr.mxu0 %v2742
    %3721 = vmatpush1.msra.mxu0 %v2741
    %3722 = vmatprep.subr.mxu0 %v2746
    %3723 = vmatpush1.msra.mxu0 %v2745
    %3724 = vmatprep.subr.mxu0 %v2750
    %3725 = vmatpush1.msra.mxu0 %v2749
    %3726 = vmatprep.subr.mxu0 %v2754
    %3727 = vmatpush1.msra.mxu0 %v2753
    %3728 = vmatprep.subr.mxu0 %v2758
    %3729 = vmatpush1.msra.mxu0 %v2757
    %3730 = vmatprep.subr.mxu0 %v2762
    %3731 = vmatpush1.msra.mxu0 %v2761
    %3732 = vmatprep.subr.mxu0 %v2766
    %3733 = vmatpush1.msra.mxu0 %v2765
    %3734 = vmatprep.subr.mxu0 %v2770
    %3735 = vmatpush1.msra.mxu0 %v2769
    %3736 = vmatprep.subr.mxu0 %v2774
    %3737 = vmatpush1.msra.mxu0 %v2773
    %3738 = vmatprep.subr.mxu0 %v2778
    %3739 = vmatpush1.msra.mxu0 %v2777
    %3740 = vmatprep.subr.mxu0 %v2782
    %3741 = vmatpush1.msra.mxu0 %v2781
    %3742 = vmatprep.subr.mxu0 %v2786
    %3743 = vmatpush1.msra.mxu0 %v2785
    %3744 = vmatprep.subr.mxu0 %v2790
    %3745 = vmatpush1.msra.mxu0 %v2789
    %3746 = vmatprep.subr.mxu0 %v2794
    %3747 = vmatpush1.msra.mxu0 %v2793
    %3748 = vmatprep.subr.mxu0 %v2798
    %3749 = vmatpush1.msra.mxu0 %v2797
    %3750 = vmatprep.subr.mxu0 %v2802
    %3751 = vmatpush1.msra.mxu0 %v2801
    %3752 = vmatprep.subr.mxu0 %v2806
    %3753 = vmatpush1.msra.mxu0 %v2805
    %3754 = vmatprep.subr.mxu0 %v2810
    %3755 = vmatpush1.msra.mxu0 %v2809
    %3756 = vmatprep.mubr.f32.mxu0 %v2546
    %3757 = vmatmul.mubr.f32.gmra.mrb[0].mxu0 %v2545
    %v3758 = vpop.f32.mrb[0].mxu0
    %v3759 = vadd.f32 %v3676, %v3758
    %v3760 = vpop.f32.mrb[0].mxu0
    %v3761 = vadd.f32 %v3678, %v3760
    %3762 = vmatprep.mubr.f32.mxu0 %v2550
    %3763 = vmatmul.mubr.f32.gmra.mrb[0].mxu0 %v2549
    %v3764 = vpop.f32.mrb[0].mxu0
    %v3765 = vadd.f32 %v3682, %v3764
    %v3766 = vpop.f32.mrb[0].mxu0
    %v3767 = vadd.f32 %v3684, %v3766
    %3768 = vmatprep.mubr.f32.mxu0 %v2554
    %3769 = vmatmul.mubr.f32.gmra.mrb[0].mxu0 %v2553
    %v3770 = vpop.f32.mrb[0].mxu0
    %v3771 = vadd.f32 %v3688, %v3770
    %v3772 = vpop.f32.mrb[0].mxu0
    %v3773 = vadd.f32 %v3690, %v3772
    %3774 = vdwg.mxu0
    %v3775 = vld [vmem:[#allocation10 + $0x1000] sm:$0xff]
    %v3776 = vld [vmem:[#allocation10 + $0x1008] sm:$0xff]
    %v3777 = vld [vmem:[#allocation10 + $0x1010] sm:$0xff]
    %v3778 = vld [vmem:[#allocation10 + $0x1018] sm:$0xff]
    %v3779 = vld [vmem:[#allocation10 + $0x1020] sm:$0xff]
    %v3780 = vld [vmem:[#allocation10 + $0x1028] sm:$0xff]
    %v3781 = vld [vmem:[#allocation10 + $0x1030] sm:$0xff]
    %v3782 = vld [vmem:[#allocation10 + $0x1038] sm:$0xff]
    %v3783 = vld [vmem:[#allocation10 + $0x1040] sm:$0xff]
    %v3784 = vld [vmem:[#allocation10 + $0x1048] sm:$0xff]
    %v3785 = vld [vmem:[#allocation10 + $0x1050] sm:$0xff]
    %v3786 = vld [vmem:[#allocation10 + $0x1058] sm:$0xff]
    %v3787 = vld [vmem:[#allocation10 + $0x1060] sm:$0xff]
    %v3788 = vld [vmem:[#allocation10 + $0x1068] sm:$0xff]
    %v3789 = vld [vmem:[#allocation10 + $0x1070] sm:$0xff]
    %v3790 = vld [vmem:[#allocation10 + $0x1078] sm:$0xff]
    %v3791 = vld [vmem:[#allocation10 + $0x1080] sm:$0xff]
    %v3792 = vld [vmem:[#allocation10 + $0x1088] sm:$0xff]
    %v3793 = vld [vmem:[#allocation10 + $0x1090] sm:$0xff]
    %v3794 = vld [vmem:[#allocation10 + $0x1098] sm:$0xff]
    %v3795 = vld [vmem:[#allocation10 + $0x10a0] sm:$0xff]
    %v3796 = vld [vmem:[#allocation10 + $0x10a8] sm:$0xff]
    %v3797 = vld [vmem:[#allocation10 + $0x10b0] sm:$0xff]
    %v3798 = vld [vmem:[#allocation10 + $0x10b8] sm:$0xff]
    %v3799 = vld [vmem:[#allocation10 + $0x10c0] sm:$0xff]
    %v3800 = vld [vmem:[#allocation10 + $0x10c8] sm:$0xff]
    %v3801 = vld [vmem:[#allocation10 + $0x10d0] sm:$0xff]
    %v3802 = vld [vmem:[#allocation10 + $0x10d8] sm:$0xff]
    %v3803 = vld [vmem:[#allocation10 + $0x10e0] sm:$0xff]
    %v3804 = vld [vmem:[#allocation10 + $0x10e8] sm:$0xff]
    %v3805 = vld [vmem:[#allocation10 + $0x10f0] sm:$0xff]
    %v3806 = vld [vmem:[#allocation10 + $0x10f8] sm:$0xff]
    %v3807 = vld [vmem:[#allocation10 + $0x1100] sm:$0xff]
    %v3808 = vld [vmem:[#allocation10 + $0x1108] sm:$0xff]
    %v3809 = vld [vmem:[#allocation10 + $0x1110] sm:$0xff]
    %v3810 = vld [vmem:[#allocation10 + $0x1118] sm:$0xff]
    %v3811 = vld [vmem:[#allocation10 + $0x1120] sm:$0xff]
    %v3812 = vld [vmem:[#allocation10 + $0x1128] sm:$0xff]
    %v3813 = vld [vmem:[#allocation10 + $0x1130] sm:$0xff]
    %v3814 = vld [vmem:[#allocation10 + $0x1138] sm:$0xff]
    %v3815 = vld [vmem:[#allocation10 + $0x1140] sm:$0xff]
    %v3816 = vld [vmem:[#allocation10 + $0x1148] sm:$0xff]
    %v3817 = vld [vmem:[#allocation10 + $0x1150] sm:$0xff]
    %v3818 = vld [vmem:[#allocation10 + $0x1158] sm:$0xff]
    %v3819 = vld [vmem:[#allocation10 + $0x1160] sm:$0xff]
    %v3820 = vld [vmem:[#allocation10 + $0x1168] sm:$0xff]
    %v3821 = vld [vmem:[#allocation10 + $0x1170] sm:$0xff]
    %v3822 = vld [vmem:[#allocation10 + $0x1178] sm:$0xff]
    %v3823 = vld [vmem:[#allocation10 + $0x1180] sm:$0xff]
    %v3824 = vld [vmem:[#allocation10 + $0x1188] sm:$0xff]
    %v3825 = vld [vmem:[#allocation10 + $0x1190] sm:$0xff]
    %v3826 = vld [vmem:[#allocation10 + $0x1198] sm:$0xff]
    %v3827 = vld [vmem:[#allocation10 + $0x11a0] sm:$0xff]
    %v3828 = vld [vmem:[#allocation10 + $0x11a8] sm:$0xff]
    %v3829 = vld [vmem:[#allocation10 + $0x11b0] sm:$0xff]
    %v3830 = vld [vmem:[#allocation10 + $0x11b8] sm:$0xff]
    %v3831 = vld [vmem:[#allocation10 + $0x11c0] sm:$0xff]
    %v3832 = vld [vmem:[#allocation10 + $0x11c8] sm:$0xff]
    %v3833 = vld [vmem:[#allocation10 + $0x11d0] sm:$0xff]
    %v3834 = vld [vmem:[#allocation10 + $0x11d8] sm:$0xff]
    %v3835 = vld [vmem:[#allocation10 + $0x11e0] sm:$0xff]
    %v3836 = vld [vmem:[#allocation10 + $0x11e8] sm:$0xff]
    %v3837 = vld [vmem:[#allocation10 + $0x11f0] sm:$0xff]
    %v3838 = vld [vmem:[#allocation10 + $0x11f8] sm:$0xff]
    %v3839 = vld [vmem:[#allocation10 + $0x1200] sm:$0xff]
    %v3840 = vld [vmem:[#allocation10 + $0x1208] sm:$0xff]
    %v3841 = vld [vmem:[#allocation10 + $0x1210] sm:$0xff]
    %v3842 = vld [vmem:[#allocation10 + $0x1218] sm:$0xff]
    %v3843 = vld [vmem:[#allocation10 + $0x1220] sm:$0xff]
    %v3844 = vld [vmem:[#allocation10 + $0x1228] sm:$0xff]
    %v3845 = vld [vmem:[#allocation10 + $0x1230] sm:$0xff]
    %v3846 = vld [vmem:[#allocation10 + $0x1238] sm:$0xff]
    %v3847 = vld [vmem:[#allocation10 + $0x1240] sm:$0xff]
    %v3848 = vld [vmem:[#allocation10 + $0x1248] sm:$0xff]
    %v3849 = vld [vmem:[#allocation10 + $0x1250] sm:$0xff]
    %v3850 = vld [vmem:[#allocation10 + $0x1258] sm:$0xff]
    %v3851 = vld [vmem:[#allocation10 + $0x1260] sm:$0xff]
    %v3852 = vld [vmem:[#allocation10 + $0x1268] sm:$0xff]
    %v3853 = vld [vmem:[#allocation10 + $0x1270] sm:$0xff]
    %v3854 = vld [vmem:[#allocation10 + $0x1278] sm:$0xff]
    %v3855 = vld [vmem:[#allocation10 + $0x1280] sm:$0xff]
    %v3856 = vld [vmem:[#allocation10 + $0x1288] sm:$0xff]
    %v3857 = vld [vmem:[#allocation10 + $0x1290] sm:$0xff]
    %v3858 = vld [vmem:[#allocation10 + $0x1298] sm:$0xff]
    %v3859 = vld [vmem:[#allocation10 + $0x12a0] sm:$0xff]
    %v3860 = vld [vmem:[#allocation10 + $0x12a8] sm:$0xff]
    %v3861 = vld [vmem:[#allocation10 + $0x12b0] sm:$0xff]
    %v3862 = vld [vmem:[#allocation10 + $0x12b8] sm:$0xff]
    %v3863 = vld [vmem:[#allocation10 + $0x12c0] sm:$0xff]
    %v3864 = vld [vmem:[#allocation10 + $0x12c8] sm:$0xff]
    %v3865 = vld [vmem:[#allocation10 + $0x12d0] sm:$0xff]
    %v3866 = vld [vmem:[#allocation10 + $0x12d8] sm:$0xff]
    %v3867 = vld [vmem:[#allocation10 + $0x12e0] sm:$0xff]
    %v3868 = vld [vmem:[#allocation10 + $0x12e8] sm:$0xff]
    %v3869 = vld [vmem:[#allocation10 + $0x12f0] sm:$0xff]
    %v3870 = vld [vmem:[#allocation10 + $0x12f8] sm:$0xff]
    %v3871 = vld [vmem:[#allocation10 + $0x1300] sm:$0xff]
    %v3872 = vld [vmem:[#allocation10 + $0x1308] sm:$0xff]
    %v3873 = vld [vmem:[#allocation10 + $0x1310] sm:$0xff]
    %v3874 = vld [vmem:[#allocation10 + $0x1318] sm:$0xff]
    %v3875 = vld [vmem:[#allocation10 + $0x1320] sm:$0xff]
    %v3876 = vld [vmem:[#allocation10 + $0x1328] sm:$0xff]
    %v3877 = vld [vmem:[#allocation10 + $0x1330] sm:$0xff]
    %v3878 = vld [vmem:[#allocation10 + $0x1338] sm:$0xff]
    %v3879 = vld [vmem:[#allocation10 + $0x1340] sm:$0xff]
    %v3880 = vld [vmem:[#allocation10 + $0x1348] sm:$0xff]
    %v3881 = vld [vmem:[#allocation10 + $0x1350] sm:$0xff]
    %v3882 = vld [vmem:[#allocation10 + $0x1358] sm:$0xff]
    %v3883 = vld [vmem:[#allocation10 + $0x1360] sm:$0xff]
    %v3884 = vld [vmem:[#allocation10 + $0x1368] sm:$0xff]
    %v3885 = vld [vmem:[#allocation10 + $0x1370] sm:$0xff]
    %v3886 = vld [vmem:[#allocation10 + $0x1378] sm:$0xff]
    %v3887 = vld [vmem:[#allocation10 + $0x1380] sm:$0xff]
    %v3888 = vld [vmem:[#allocation10 + $0x1388] sm:$0xff]
    %v3889 = vld [vmem:[#allocation10 + $0x1390] sm:$0xff]
    %v3890 = vld [vmem:[#allocation10 + $0x1398] sm:$0xff]
    %v3891 = vld [vmem:[#allocation10 + $0x13a0] sm:$0xff]
    %v3892 = vld [vmem:[#allocation10 + $0x13a8] sm:$0xff]
    %v3893 = vld [vmem:[#allocation10 + $0x13b0] sm:$0xff]
    %v3894 = vld [vmem:[#allocation10 + $0x13b8] sm:$0xff]
    %v3895 = vld [vmem:[#allocation10 + $0x13c0] sm:$0xff]
    %v3896 = vld [vmem:[#allocation10 + $0x13c8] sm:$0xff]
    %v3897 = vld [vmem:[#allocation10 + $0x13d0] sm:$0xff]
    %v3898 = vld [vmem:[#allocation10 + $0x13d8] sm:$0xff]
    %v3899 = vld [vmem:[#allocation10 + $0x13e0] sm:$0xff]
    %v3900 = vld [vmem:[#allocation10 + $0x13e8] sm:$0xff]
    %v3901 = vld [vmem:[#allocation10 + $0x13f0] sm:$0xff]
    %v3902 = vld [vmem:[#allocation10 + $0x13f8] sm:$0xff]
    %v3903 = vld [vmem:[#allocation10 + $0x1400] sm:$0xff]
    %v3904 = vld [vmem:[#allocation10 + $0x1408] sm:$0xff]
    %v3905 = vld [vmem:[#allocation10 + $0x1410] sm:$0xff]
    %v3906 = vld [vmem:[#allocation10 + $0x1418] sm:$0xff]
    %v3907 = vld [vmem:[#allocation10 + $0x1420] sm:$0xff]
    %v3908 = vld [vmem:[#allocation10 + $0x1428] sm:$0xff]
    %v3909 = vld [vmem:[#allocation10 + $0x1430] sm:$0xff]
    %v3910 = vld [vmem:[#allocation10 + $0x1438] sm:$0xff]
    %v3911 = vld [vmem:[#allocation10 + $0x1440] sm:$0xff]
    %v3912 = vld [vmem:[#allocation10 + $0x1448] sm:$0xff]
    %v3913 = vld [vmem:[#allocation10 + $0x1450] sm:$0xff]
    %v3914 = vld [vmem:[#allocation10 + $0x1458] sm:$0xff]
    %v3915 = vld [vmem:[#allocation10 + $0x1460] sm:$0xff]
    %v3916 = vld [vmem:[#allocation10 + $0x1468] sm:$0xff]
    %v3917 = vld [vmem:[#allocation10 + $0x1470] sm:$0xff]
    %v3918 = vld [vmem:[#allocation10 + $0x1478] sm:$0xff]
    %v3919 = vld [vmem:[#allocation10 + $0x1480] sm:$0xff]
    %v3920 = vld [vmem:[#allocation10 + $0x1488] sm:$0xff]
    %v3921 = vld [vmem:[#allocation10 + $0x1490] sm:$0xff]
    %v3922 = vld [vmem:[#allocation10 + $0x1498] sm:$0xff]
    %v3923 = vld [vmem:[#allocation10 + $0x14a0] sm:$0xff]
    %v3924 = vld [vmem:[#allocation10 + $0x14a8] sm:$0xff]
    %v3925 = vld [vmem:[#allocation10 + $0x14b0] sm:$0xff]
    %v3926 = vld [vmem:[#allocation10 + $0x14b8] sm:$0xff]
    %v3927 = vld [vmem:[#allocation10 + $0x14c0] sm:$0xff]
    %v3928 = vld [vmem:[#allocation10 + $0x14c8] sm:$0xff]
    %v3929 = vld [vmem:[#allocation10 + $0x14d0] sm:$0xff]
    %v3930 = vld [vmem:[#allocation10 + $0x14d8] sm:$0xff]
    %v3931 = vld [vmem:[#allocation10 + $0x14e0] sm:$0xff]
    %v3932 = vld [vmem:[#allocation10 + $0x14e8] sm:$0xff]
    %v3933 = vld [vmem:[#allocation10 + $0x14f0] sm:$0xff]
    %v3934 = vld [vmem:[#allocation10 + $0x14f8] sm:$0xff]
    %v3935 = vld [vmem:[#allocation10 + $0x1500] sm:$0xff]
    %v3936 = vld [vmem:[#allocation10 + $0x1508] sm:$0xff]
    %v3937 = vld [vmem:[#allocation10 + $0x1510] sm:$0xff]
    %v3938 = vld [vmem:[#allocation10 + $0x1518] sm:$0xff]
    %v3939 = vld [vmem:[#allocation10 + $0x1520] sm:$0xff]
    %v3940 = vld [vmem:[#allocation10 + $0x1528] sm:$0xff]
    %v3941 = vld [vmem:[#allocation10 + $0x1530] sm:$0xff]
    %v3942 = vld [vmem:[#allocation10 + $0x1538] sm:$0xff]
    %v3943 = vld [vmem:[#allocation10 + $0x1540] sm:$0xff]
    %v3944 = vld [vmem:[#allocation10 + $0x1548] sm:$0xff]
    %v3945 = vld [vmem:[#allocation10 + $0x1550] sm:$0xff]
    %v3946 = vld [vmem:[#allocation10 + $0x1558] sm:$0xff]
    %v3947 = vld [vmem:[#allocation10 + $0x1560] sm:$0xff]
    %v3948 = vld [vmem:[#allocation10 + $0x1568] sm:$0xff]
    %v3949 = vld [vmem:[#allocation10 + $0x1570] sm:$0xff]
    %v3950 = vld [vmem:[#allocation10 + $0x1578] sm:$0xff]
    %v3951 = vld [vmem:[#allocation10 + $0x1580] sm:$0xff]
    %v3952 = vld [vmem:[#allocation10 + $0x1588] sm:$0xff]
    %v3953 = vld [vmem:[#allocation10 + $0x1590] sm:$0xff]
    %v3954 = vld [vmem:[#allocation10 + $0x1598] sm:$0xff]
    %v3955 = vld [vmem:[#allocation10 + $0x15a0] sm:$0xff]
    %v3956 = vld [vmem:[#allocation10 + $0x15a8] sm:$0xff]
    %v3957 = vld [vmem:[#allocation10 + $0x15b0] sm:$0xff]
    %v3958 = vld [vmem:[#allocation10 + $0x15b8] sm:$0xff]
    %v3959 = vld [vmem:[#allocation10 + $0x15c0] sm:$0xff]
    %v3960 = vld [vmem:[#allocation10 + $0x15c8] sm:$0xff]
    %v3961 = vld [vmem:[#allocation10 + $0x15d0] sm:$0xff]
    %v3962 = vld [vmem:[#allocation10 + $0x15d8] sm:$0xff]
    %v3963 = vld [vmem:[#allocation10 + $0x15e0] sm:$0xff]
    %v3964 = vld [vmem:[#allocation10 + $0x15e8] sm:$0xff]
    %v3965 = vld [vmem:[#allocation10 + $0x15f0] sm:$0xff]
    %v3966 = vld [vmem:[#allocation10 + $0x15f8] sm:$0xff]
    %v3967 = vld [vmem:[#allocation10 + $0x1600] sm:$0xff]
    %v3968 = vld [vmem:[#allocation10 + $0x1608] sm:$0xff]
    %v3969 = vld [vmem:[#allocation10 + $0x1610] sm:$0xff]
    %v3970 = vld [vmem:[#allocation10 + $0x1618] sm:$0xff]
    %v3971 = vld [vmem:[#allocation10 + $0x1620] sm:$0xff]
    %v3972 = vld [vmem:[#allocation10 + $0x1628] sm:$0xff]
    %v3973 = vld [vmem:[#allocation10 + $0x1630] sm:$0xff]
    %v3974 = vld [vmem:[#allocation10 + $0x1638] sm:$0xff]
    %v3975 = vld [vmem:[#allocation10 + $0x1640] sm:$0xff]
    %v3976 = vld [vmem:[#allocation10 + $0x1648] sm:$0xff]
    %v3977 = vld [vmem:[#allocation10 + $0x1650] sm:$0xff]
    %v3978 = vld [vmem:[#allocation10 + $0x1658] sm:$0xff]
    %v3979 = vld [vmem:[#allocation10 + $0x1660] sm:$0xff]
    %v3980 = vld [vmem:[#allocation10 + $0x1668] sm:$0xff]
    %v3981 = vld [vmem:[#allocation10 + $0x1670] sm:$0xff]
    %v3982 = vld [vmem:[#allocation10 + $0x1678] sm:$0xff]
    %v3983 = vld [vmem:[#allocation10 + $0x1680] sm:$0xff]
    %v3984 = vld [vmem:[#allocation10 + $0x1688] sm:$0xff]
    %v3985 = vld [vmem:[#allocation10 + $0x1690] sm:$0xff]
    %v3986 = vld [vmem:[#allocation10 + $0x1698] sm:$0xff]
    %v3987 = vld [vmem:[#allocation10 + $0x16a0] sm:$0xff]
    %v3988 = vld [vmem:[#allocation10 + $0x16a8] sm:$0xff]
    %v3989 = vld [vmem:[#allocation10 + $0x16b0] sm:$0xff]
    %v3990 = vld [vmem:[#allocation10 + $0x16b8] sm:$0xff]
    %v3991 = vld [vmem:[#allocation10 + $0x16c0] sm:$0xff]
    %v3992 = vld [vmem:[#allocation10 + $0x16c8] sm:$0xff]
    %v3993 = vld [vmem:[#allocation10 + $0x16d0] sm:$0xff]
    %v3994 = vld [vmem:[#allocation10 + $0x16d8] sm:$0xff]
    %v3995 = vld [vmem:[#allocation10 + $0x16e0] sm:$0xff]
    %v3996 = vld [vmem:[#allocation10 + $0x16e8] sm:$0xff]
    %v3997 = vld [vmem:[#allocation10 + $0x16f0] sm:$0xff]
    %v3998 = vld [vmem:[#allocation10 + $0x16f8] sm:$0xff]
    %v3999 = vld [vmem:[#allocation10 + $0x1700] sm:$0xff]
    %v4000 = vld [vmem:[#allocation10 + $0x1708] sm:$0xff]
    %v4001 = vld [vmem:[#allocation10 + $0x1710] sm:$0xff]
    %v4002 = vld [vmem:[#allocation10 + $0x1718] sm:$0xff]
    %v4003 = vld [vmem:[#allocation10 + $0x1720] sm:$0xff]
    %v4004 = vld [vmem:[#allocation10 + $0x1728] sm:$0xff]
    %v4005 = vld [vmem:[#allocation10 + $0x1730] sm:$0xff]
    %v4006 = vld [vmem:[#allocation10 + $0x1738] sm:$0xff]
    %v4007 = vld [vmem:[#allocation10 + $0x1740] sm:$0xff]
    %v4008 = vld [vmem:[#allocation10 + $0x1748] sm:$0xff]
    %v4009 = vld [vmem:[#allocation10 + $0x1750] sm:$0xff]
    %v4010 = vld [vmem:[#allocation10 + $0x1758] sm:$0xff]
    %v4011 = vld [vmem:[#allocation10 + $0x1760] sm:$0xff]
    %v4012 = vld [vmem:[#allocation10 + $0x1768] sm:$0xff]
    %v4013 = vld [vmem:[#allocation10 + $0x1770] sm:$0xff]
    %v4014 = vld [vmem:[#allocation10 + $0x1778] sm:$0xff]
    %v4015 = vld [vmem:[#allocation10 + $0x1780] sm:$0xff]
    %v4016 = vld [vmem:[#allocation10 + $0x1788] sm:$0xff]
    %v4017 = vld [vmem:[#allocation10 + $0x1790] sm:$0xff]
    %v4018 = vld [vmem:[#allocation10 + $0x1798] sm:$0xff]
    %v4019 = vld [vmem:[#allocation10 + $0x17a0] sm:$0xff]
    %v4020 = vld [vmem:[#allocation10 + $0x17a8] sm:$0xff]
    %v4021 = vld [vmem:[#allocation10 + $0x17b0] sm:$0xff]
    %v4022 = vld [vmem:[#allocation10 + $0x17b8] sm:$0xff]
    %v4023 = vld [vmem:[#allocation10 + $0x17c0] sm:$0xff]
    %v4024 = vld [vmem:[#allocation10 + $0x17c8] sm:$0xff]
    %v4025 = vld [vmem:[#allocation10 + $0x17d0] sm:$0xff]
    %v4026 = vld [vmem:[#allocation10 + $0x17d8] sm:$0xff]
    %v4027 = vld [vmem:[#allocation10 + $0x17e0] sm:$0xff]
    %v4028 = vld [vmem:[#allocation10 + $0x17e8] sm:$0xff]
    %v4029 = vld [vmem:[#allocation10 + $0x17f0] sm:$0xff]
    %v4030 = vld [vmem:[#allocation10 + $0x17f8] sm:$0xff]
    %vm4031 = vcmask 1041408
    %v4032 = vrot.slane %v2543, 6
    %v4033 = vrot.slane %v2547, 6
    %v4034 = vsel %vm4031, %v4032, %v4033
    %v4035 = vrot.slane %v2544, 6
    %v4036 = vrot.slane %v2548, 6
    %v4037 = vsel %vm4031, %v4035, %v4036
    %v4038 = vrot.slane %v2545, 6
    %v4039 = vrot.slane %v2549, 6
    %v4040 = vsel %vm4031, %v4038, %v4039
    %v4041 = vrot.slane %v2546, 6
    %v4042 = vrot.slane %v2550, 6
    %v4043 = vsel %vm4031, %v4041, %v4042
    %v4044 = vrot.slane %v2551, 6
    %v4045 = vsel %vm4031, %v4033, %v4044
    %v4046 = vrot.slane %v2552, 6
    %v4047 = vsel %vm4031, %v4036, %v4046
    %v4048 = vrot.slane %v2553, 6
    %v4049 = vsel %vm4031, %v4039, %v4048
    %v4050 = vrot.slane %v2554, 6
    %v4051 = vsel %vm4031, %v4042, %v4050
    %4064 = vmatprep.subr.mxu0 %v3776
    %4065 = vmatpush1.msra.mxu0 %v3775
    %4066 = vmatprep.subr.mxu0 %v3780
    %4067 = vmatpush1.msra.mxu0 %v3779
    %4068 = vmatprep.subr.mxu0 %v3784
    %4069 = vmatpush1.msra.mxu0 %v3783
    %4070 = vmatprep.subr.mxu0 %v3788
    %4071 = vmatpush1.msra.mxu0 %v3787
    %4072 = vmatprep.subr.mxu0 %v3792
    %4073 = vmatpush1.msra.mxu0 %v3791
    %4074 = vmatprep.subr.mxu0 %v3796
    %4075 = vmatpush1.msra.mxu0 %v3795
    %4076 = vmatprep.subr.mxu0 %v3800
    %4077 = vmatpush1.msra.mxu0 %v3799
    %4078 = vmatprep.subr.mxu0 %v3804
    %4079 = vmatpush1.msra.mxu0 %v3803
    %4080 = vmatprep.subr.mxu0 %v3808
    %4081 = vmatpush1.msra.mxu0 %v3807
    %4082 = vmatprep.subr.mxu0 %v3812
    %4083 = vmatpush1.msra.mxu0 %v3811
    %4084 = vmatprep.subr.mxu0 %v3816
    %4085 = vmatpush1.msra.mxu0 %v3815
    %4086 = vmatprep.subr.mxu0 %v3820
    %4087 = vmatpush1.msra.mxu0 %v3819
    %4088 = vmatprep.subr.mxu0 %v3824
    %4089 = vmatpush1.msra.mxu0 %v3823
    %4090 = vmatprep.subr.mxu0 %v3828
    %4091 = vmatpush1.msra.mxu0 %v3827
    %4092 = vmatprep.subr.mxu0 %v3832
    %4093 = vmatpush1.msra.mxu0 %v3831
    %4094 = vmatprep.subr.mxu0 %v3836
    %4095 = vmatpush1.msra.mxu0 %v3835
    %4096 = vmatprep.subr.mxu0 %v3840
    %4097 = vmatpush1.msra.mxu0 %v3839
    %4098 = vmatprep.subr.mxu0 %v3844
    %4099 = vmatpush1.msra.mxu0 %v3843
    %4100 = vmatprep.subr.mxu0 %v3848
    %4101 = vmatpush1.msra.mxu0 %v3847
    %4102 = vmatprep.subr.mxu0 %v3852
    %4103 = vmatpush1.msra.mxu0 %v3851
    %4104 = vmatprep.subr.mxu0 %v3856
    %4105 = vmatpush1.msra.mxu0 %v3855
    %4106 = vmatprep.subr.mxu0 %v3860
    %4107 = vmatpush1.msra.mxu0 %v3859
    %4108 = vmatprep.subr.mxu0 %v3864
    %4109 = vmatpush1.msra.mxu0 %v3863
    %4110 = vmatprep.subr.mxu0 %v3868
    %4111 = vmatpush1.msra.mxu0 %v3867
    %4112 = vmatprep.subr.mxu0 %v3872
    %4113 = vmatpush1.msra.mxu0 %v3871
    %4114 = vmatprep.subr.mxu0 %v3876
    %4115 = vmatpush1.msra.mxu0 %v3875
    %4116 = vmatprep.subr.mxu0 %v3880
    %4117 = vmatpush1.msra.mxu0 %v3879
    %4118 = vmatprep.subr.mxu0 %v3884
    %4119 = vmatpush1.msra.mxu0 %v3883
    %4120 = vmatprep.subr.mxu0 %v3888
    %4121 = vmatpush1.msra.mxu0 %v3887
    %4122 = vmatprep.subr.mxu0 %v3892
    %4123 = vmatpush1.msra.mxu0 %v3891
    %4124 = vmatprep.subr.mxu0 %v3896
    %4125 = vmatpush1.msra.mxu0 %v3895
    %4126 = vmatprep.subr.mxu0 %v3900
    %4127 = vmatpush1.msra.mxu0 %v3899
    %4128 = vmatprep.mubr.f32.mxu0 %v4037
    %4129 = vmatmul.mubr.f32.gmra.mrb[0].mxu0 %v4034
    %v4130 = vpop.f32.mrb[0].mxu0
    %v4131 = vadd.f32 0.0, %v4130
    %v4132 = vpop.f32.mrb[0].mxu0
    %v4133 = vadd.f32 0.0, %v4132
    %4134 = vmatprep.mubr.f32.mxu0 %v4047
    %4135 = vmatmul.mubr.f32.gmra.mrb[0].mxu0 %v4045
    %v4136 = vpop.f32.mrb[0].mxu0
    %v4137 = vadd.f32 0.0, %v4136
    %v4138 = vpop.f32.mrb[0].mxu0
    %v4139 = vadd.f32 0.0, %v4138
    %4140 = vmatprep.mubr.f32.mxu0 %v4046
    %4141 = vmatmul.mubr.f32.gmra.mrb[0].mxu0 %v4044
    %v4142 = vpop.f32.mrb[0].mxu0
    %v4143 = vadd.f32 0.0, %v4142
    %v4144 = vpop.f32.mrb[0].mxu0
    %v4145 = vadd.f32 0.0, %v4144
    %4146 = vdwg.mxu0
    %4147 = vmatprep.subr.mxu0 %v3904
    %4148 = vmatpush1.msra.mxu0 %v3903
    %4149 = vmatprep.subr.mxu0 %v3908
    %4150 = vmatpush1.msra.mxu0 %v3907
    %4151 = vmatprep.subr.mxu0 %v3912
    %4152 = vmatpush1.msra.mxu0 %v3911
    %4153 = vmatprep.subr.mxu0 %v3916
    %4154 = vmatpush1.msra.mxu0 %v3915
    %4155 = vmatprep.subr.mxu0 %v3920
    %4156 = vmatpush1.msra.mxu0 %v3919
    %4157 = vmatprep.subr.mxu0 %v3924
    %4158 = vmatpush1.msra.mxu0 %v3923
    %4159 = vmatprep.subr.mxu0 %v3928
    %4160 = vmatpush1.msra.mxu0 %v3927
    %4161 = vmatprep.subr.mxu0 %v3932
    %4162 = vmatpush1.msra.mxu0 %v3931
    %4163 = vmatprep.subr.mxu0 %v3936
    %4164 = vmatpush1.msra.mxu0 %v3935
    %4165 = vmatprep.subr.mxu0 %v3940
    %4166 = vmatpush1.msra.mxu0 %v3939
    %4167 = vmatprep.subr.mxu0 %v3944
    %4168 = vmatpush1.msra.mxu0 %v3943
    %4169 = vmatprep.subr.mxu0 %v3948
    %4170 = vmatpush1.msra.mxu0 %v3947
    %4171 = vmatprep.subr.mxu0 %v3952
    %4172 = vmatpush1.msra.mxu0 %v3951
    %4173 = vmatprep.subr.mxu0 %v3956
    %4174 = vmatpush1.msra.mxu0 %v3955
    %4175 = vmatprep.subr.mxu0 %v3960
    %4176 = vmatpush1.msra.mxu0 %v3959
    %4177 = vmatprep.subr.mxu0 %v3964
    %4178 = vmatpush1.msra.mxu0 %v3963
    %4179 = vmatprep.subr.mxu0 %v3968
    %4180 = vmatpush1.msra.mxu0 %v3967
    %4181 = vmatprep.subr.mxu0 %v3972
    %4182 = vmatpush1.msra.mxu0 %v3971
    %4183 = vmatprep.subr.mxu0 %v3976
    %4184 = vmatpush1.msra.mxu0 %v3975
    %4185 = vmatprep.subr.mxu0 %v3980
    %4186 = vmatpush1.msra.mxu0 %v3979
    %4187 = vmatprep.subr.mxu0 %v3984
    %4188 = vmatpush1.msra.mxu0 %v3983
    %4189 = vmatprep.subr.mxu0 %v3988
    %4190 = vmatpush1.msra.mxu0 %v3987
    %4191 = vmatprep.subr.mxu0 %v3992
    %4192 = vmatpush1.msra.mxu0 %v3991
    %4193 = vmatprep.subr.mxu0 %v3996
    %4194 = vmatpush1.msra.mxu0 %v3995
    %4195 = vmatprep.subr.mxu0 %v4000
    %4196 = vmatpush1.msra.mxu0 %v3999
    %4197 = vmatprep.subr.mxu0 %v4004
    %4198 = vmatpush1.msra.mxu0 %v4003
    %4199 = vmatprep.subr.mxu0 %v4008
    %4200 = vmatpush1.msra.mxu0 %v4007
    %4201 = vmatprep.subr.mxu0 %v4012
    %4202 = vmatpush1.msra.mxu0 %v4011
    %4203 = vmatprep.subr.mxu0 %v4016
    %4204 = vmatpush1.msra.mxu0 %v4015
    %4205 = vmatprep.subr.mxu0 %v4020
    %4206 = vmatpush1.msra.mxu0 %v4019
    %4207 = vmatprep.subr.mxu0 %v4024
    %4208 = vmatpush1.msra.mxu0 %v4023
    %4209 = vmatprep.subr.mxu0 %v4028
    %4210 = vmatpush1.msra.mxu0 %v4027
    %4211 = vmatprep.mubr.f32.mxu0 %v4043
    %4212 = vmatmul.mubr.f32.gmra.mrb[0].mxu0 %v4040
    %v4213 = vpop.f32.mrb[0].mxu0
    %v4214 = vadd.f32 %v4131, %v4213
    %v4215 = vpop.f32.mrb[0].mxu0
    %v4216 = vadd.f32 %v4133, %v4215
    %4217 = vmatprep.mubr.f32.mxu0 %v4051
    %4218 = vmatmul.mubr.f32.gmra.mrb[0].mxu0 %v4049
    %v4219 = vpop.f32.mrb[0].mxu0
    %v4220 = vadd.f32 %v4137, %v4219
    %v4221 = vpop.f32.mrb[0].mxu0
    %v4222 = vadd.f32 %v4139, %v4221
    %4223 = vmatprep.mubr.f32.mxu0 %v4050
    %4224 = vmatmul.mubr.f32.gmra.mrb[0].mxu0 %v4048
    %v4225 = vpop.f32.mrb[0].mxu0
    %v4226 = vadd.f32 %v4143, %v4225
    %v4227 = vpop.f32.mrb[0].mxu0
    %v4228 = vadd.f32 %v4145, %v4227
    %4229 = vdwg.mxu0
    %4230 = vmatprep.subr.mxu0 %v3778
    %4231 = vmatpush1.msra.mxu0 %v3777
    %4232 = vmatprep.subr.mxu0 %v3782
    %4233 = vmatpush1.msra.mxu0 %v3781
    %4234 = vmatprep.subr.mxu0 %v3786
    %4235 = vmatpush1.msra.mxu0 %v3785
    %4236 = vmatprep.subr.mxu0 %v3790
    %4237 = vmatpush1.msra.mxu0 %v3789
    %4238 = vmatprep.subr.mxu0 %v3794
    %4239 = vmatpush1.msra.mxu0 %v3793
    %4240 = vmatprep.subr.mxu0 %v3798
    %4241 = vmatpush1.msra.mxu0 %v3797
    %4242 = vmatprep.subr.mxu0 %v3802
    %4243 = vmatpush1.msra.mxu0 %v3801
    %4244 = vmatprep.subr.mxu0 %v3806
    %4245 = vmatpush1.msra.mxu0 %v3805
    %4246 = vmatprep.subr.mxu0 %v3810
    %4247 = vmatpush1.msra.mxu0 %v3809
    %4248 = vmatprep.subr.mxu0 %v3814
    %4249 = vmatpush1.msra.mxu0 %v3813
    %4250 = vmatprep.subr.mxu0 %v3818
    %4251 = vmatpush1.msra.mxu0 %v3817
    %4252 = vmatprep.subr.mxu0 %v3822
    %4253 = vmatpush1.msra.mxu0 %v3821
    %4254 = vmatprep.subr.mxu0 %v3826
    %4255 = vmatpush1.msra.mxu0 %v3825
    %4256 = vmatprep.subr.mxu0 %v3830
    %4257 = vmatpush1.msra.mxu0 %v3829
    %4258 = vmatprep.subr.mxu0 %v3834
    %4259 = vmatpush1.msra.mxu0 %v3833
    %4260 = vmatprep.subr.mxu0 %v3838
    %4261 = vmatpush1.msra.mxu0 %v3837
    %4262 = vmatprep.subr.mxu0 %v3842
    %4263 = vmatpush1.msra.mxu0 %v3841
    %4264 = vmatprep.subr.mxu0 %v3846
    %4265 = vmatpush1.msra.mxu0 %v3845
    %4266 = vmatprep.subr.mxu0 %v3850
    %4267 = vmatpush1.msra.mxu0 %v3849
    %4268 = vmatprep.subr.mxu0 %v3854
    %4269 = vmatpush1.msra.mxu0 %v3853
    %4270 = vmatprep.subr.mxu0 %v3858
    %4271 = vmatpush1.msra.mxu0 %v3857
    %4272 = vmatprep.subr.mxu0 %v3862
    %4273 = vmatpush1.msra.mxu0 %v3861
    %4274 = vmatprep.subr.mxu0 %v3866
    %4275 = vmatpush1.msra.mxu0 %v3865
    %4276 = vmatprep.subr.mxu0 %v3870
    %4277 = vmatpush1.msra.mxu0 %v3869
    %4278 = vmatprep.subr.mxu0 %v3874
    %4279 = vmatpush1.msra.mxu0 %v3873
    %4280 = vmatprep.subr.mxu0 %v3878
    %4281 = vmatpush1.msra.mxu0 %v3877
    %4282 = vmatprep.subr.mxu0 %v3882
    %4283 = vmatpush1.msra.mxu0 %v3881
    %4284 = vmatprep.subr.mxu0 %v3886
    %4285 = vmatpush1.msra.mxu0 %v3885
    %4286 = vmatprep.subr.mxu0 %v3890
    %4287 = vmatpush1.msra.mxu0 %v3889
    %4288 = vmatprep.subr.mxu0 %v3894
    %4289 = vmatpush1.msra.mxu0 %v3893
    %4290 = vmatprep.subr.mxu0 %v3898
    %4291 = vmatpush1.msra.mxu0 %v3897
    %4292 = vmatprep.subr.mxu0 %v3902
    %4293 = vmatpush1.msra.mxu0 %v3901
    %4294 = vmatprep.mubr.f32.mxu0 %v4037
    %4295 = vmatmul.mubr.f32.gmra.mrb[0].mxu0 %v4034
    %v4296 = vpop.f32.mrb[0].mxu0
    %v4297 = vadd.f32 0.0, %v4296
    %v4298 = vpop.f32.mrb[0].mxu0
    %v4299 = vadd.f32 0.0, %v4298
    %4300 = vmatprep.mubr.f32.mxu0 %v4047
    %4301 = vmatmul.mubr.f32.gmra.mrb[0].mxu0 %v4045
    %v4302 = vpop.f32.mrb[0].mxu0
    %v4303 = vadd.f32 0.0, %v4302
    %v4304 = vpop.f32.mrb[0].mxu0
    %v4305 = vadd.f32 0.0, %v4304
    %4306 = vmatprep.mubr.f32.mxu0 %v4046
    %4307 = vmatmul.mubr.f32.gmra.mrb[0].mxu0 %v4044
    %v4308 = vpop.f32.mrb[0].mxu0
    %v4309 = vadd.f32 0.0, %v4308
    %v4310 = vpop.f32.mrb[0].mxu0
    %v4311 = vadd.f32 0.0, %v4310
    %4312 = vdwg.mxu0
    %4313 = vmatprep.subr.mxu0 %v3906
    %4314 = vmatpush1.msra.mxu0 %v3905
    %4315 = vmatprep.subr.mxu0 %v3910
    %4316 = vmatpush1.msra.mxu0 %v3909
    %4317 = vmatprep.subr.mxu0 %v3914
    %4318 = vmatpush1.msra.mxu0 %v3913
    %4319 = vmatprep.subr.mxu0 %v3918
    %4320 = vmatpush1.msra.mxu0 %v3917
    %4321 = vmatprep.subr.mxu0 %v3922
    %4322 = vmatpush1.msra.mxu0 %v3921
    %4323 = vmatprep.subr.mxu0 %v3926
    %4324 = vmatpush1.msra.mxu0 %v3925
    %4325 = vmatprep.subr.mxu0 %v3930
    %4326 = vmatpush1.msra.mxu0 %v3929
    %4327 = vmatprep.subr.mxu0 %v3934
    %4328 = vmatpush1.msra.mxu0 %v3933
    %4329 = vmatprep.subr.mxu0 %v3938
    %4330 = vmatpush1.msra.mxu0 %v3937
    %4331 = vmatprep.subr.mxu0 %v3942
    %4332 = vmatpush1.msra.mxu0 %v3941
    %4333 = vmatprep.subr.mxu0 %v3946
    %4334 = vmatpush1.msra.mxu0 %v3945
    %4335 = vmatprep.subr.mxu0 %v3950
    %4336 = vmatpush1.msra.mxu0 %v3949
    %4337 = vmatprep.subr.mxu0 %v3954
    %4338 = vmatpush1.msra.mxu0 %v3953
    %4339 = vmatprep.subr.mxu0 %v3958
    %4340 = vmatpush1.msra.mxu0 %v3957
    %4341 = vmatprep.subr.mxu0 %v3962
    %4342 = vmatpush1.msra.mxu0 %v3961
    %4343 = vmatprep.subr.mxu0 %v3966
    %4344 = vmatpush1.msra.mxu0 %v3965
    %4345 = vmatprep.subr.mxu0 %v3970
    %4346 = vmatpush1.msra.mxu0 %v3969
    %4347 = vmatprep.subr.mxu0 %v3974
    %4348 = vmatpush1.msra.mxu0 %v3973
    %4349 = vmatprep.subr.mxu0 %v3978
    %4350 = vmatpush1.msra.mxu0 %v3977
    %4351 = vmatprep.subr.mxu0 %v3982
    %4352 = vmatpush1.msra.mxu0 %v3981
    %4353 = vmatprep.subr.mxu0 %v3986
    %4354 = vmatpush1.msra.mxu0 %v3985
    %4355 = vmatprep.subr.mxu0 %v3990
    %4356 = vmatpush1.msra.mxu0 %v3989
    %4357 = vmatprep.subr.mxu0 %v3994
    %4358 = vmatpush1.msra.mxu0 %v3993
    %4359 = vmatprep.subr.mxu0 %v3998
    %4360 = vmatpush1.msra.mxu0 %v3997
    %4361 = vmatprep.subr.mxu0 %v4002
    %4362 = vmatpush1.msra.mxu0 %v4001
    %4363 = vmatprep.subr.mxu0 %v4006
    %4364 = vmatpush1.msra.mxu0 %v4005
    %4365 = vmatprep.subr.mxu0 %v4010
    %4366 = vmatpush1.msra.mxu0 %v4009
    %4367 = vmatprep.subr.mxu0 %v4014
    %4368 = vmatpush1.msra.mxu0 %v4013
    %4369 = vmatprep.subr.mxu0 %v4018
    %4370 = vmatpush1.msra.mxu0 %v4017
    %4371 = vmatprep.subr.mxu0 %v4022
    %4372 = vmatpush1.msra.mxu0 %v4021
    %4373 = vmatprep.subr.mxu0 %v4026
    %4374 = vmatpush1.msra.mxu0 %v4025
    %4375 = vmatprep.subr.mxu0 %v4030
    %4376 = vmatpush1.msra.mxu0 %v4029
    %4377 = vmatprep.mubr.f32.mxu0 %v4043
    %4378 = vmatmul.mubr.f32.gmra.mrb[0].mxu0 %v4040
    %v4379 = vpop.f32.mrb[0].mxu0
    %v4380 = vadd.f32 %v4297, %v4379
    %v4381 = vpop.f32.mrb[0].mxu0
    %v4382 = vadd.f32 %v4299, %v4381
    %4383 = vmatprep.mubr.f32.mxu0 %v4051
    %4384 = vmatmul.mubr.f32.gmra.mrb[0].mxu0 %v4049
    %v4385 = vpop.f32.mrb[0].mxu0
    %v4386 = vadd.f32 %v4303, %v4385
    %v4387 = vpop.f32.mrb[0].mxu0
    %v4388 = vadd.f32 %v4305, %v4387
    %4389 = vmatprep.mubr.f32.mxu0 %v4050
    %4390 = vmatmul.mubr.f32.gmra.mrb[0].mxu0 %v4048
    %v4391 = vpop.f32.mrb[0].mxu0
    %v4392 = vadd.f32 %v4309, %v4391
    %v4393 = vpop.f32.mrb[0].mxu0
    %v4394 = vadd.f32 %v4311, %v4393
    %4395 = vdwg.mxu0
    %v4396 = vadd.f32 %v3593, %v4214
    %v4397 = vadd.f32 %v3595, %v4216
    %v4398 = vadd.f32 %v3759, %v4380
    %v4399 = vadd.f32 %v3761, %v4382
    %v4400 = vadd.f32 %v3599, %v4220
    %v4401 = vadd.f32 %v3601, %v4222
    %v4402 = vadd.f32 %v3765, %v4386
    %v4403 = vadd.f32 %v3767, %v4388
    %v4404 = vadd.f32 %v3605, %v4226
    %v4405 = vadd.f32 %v3607, %v4228
    %v4406 = vadd.f32 %v3771, %v4392
    %v4407 = vadd.f32 %v3773, %v4394
    %v4408 = vld [vmem:[#allocation11] sm:$0xf]
    %v4410 = vlaneseq
    %v4411 = vshrl.u32 %v4410, 7
    %v4412 = vsub.s32 0, %v4411
    %v4413 = vrot.slane %v4408, %v4412
    %v4414 = vlaneseq
    %v4415 = vshrl.u32 %v4414, 7
    %v4416 = vsub.s32 1, %v4415
    %v4417 = vrot.slane %v4408, %v4416
    %v4418 = vlaneseq
    %v4419 = vshrl.u32 %v4418, 7
    %v4420 = vsub.s32 2, %v4419
    %v4421 = vrot.slane %v4408, %v4420
    %v4422 = vlaneseq
    %v4423 = vshrl.u32 %v4422, 7
    %v4424 = vsub.s32 3, %v4423
    %v4425 = vrot.slane %v4408, %v4424
    %v4430 = vadd.f32 %v4396, %v4413
    %v4431 = vadd.f32 %v4397, %v4417
    %v4432 = vadd.f32 %v4398, %v4421
    %v4433 = vadd.f32 %v4399, %v4425
    %v4434 = vadd.f32 %v4400, %v4413
    %v4435 = vadd.f32 %v4401, %v4417
    %v4436 = vadd.f32 %v4402, %v4421
    %v4437 = vadd.f32 %v4403, %v4425
    %v4438 = vadd.f32 %v4404, %v4413
    %v4439 = vadd.f32 %v4405, %v4417
    %v4440 = vadd.f32 %v4406, %v4421
    %v4441 = vadd.f32 %v4407, %v4425
    %v4442 = vmax.f32 %v4430, 0.0
    %v4443 = vmax.f32 %v4431, 0.0
    %v4444 = vmax.f32 %v4432, 0.0
    %v4445 = vmax.f32 %v4433, 0.0
    %v4446 = vmax.f32 %v4434, 0.0
    %v4447 = vmax.f32 %v4435, 0.0
    %v4448 = vmax.f32 %v4436, 0.0
    %v4449 = vmax.f32 %v4437, 0.0
    %v4450 = vmax.f32 %v4438, 0.0
    %v4451 = vmax.f32 %v4439, 0.0
    %v4452 = vmax.f32 %v4440, 0.0
    %v4453 = vmax.f32 %v4441, 0.0
    %v4454 = vld [vmem:[#allocation13] sm:$0xff]
    %v4455 = vld [vmem:[#allocation13 + $0x8] sm:$0xff]
    %v4456 = vld [vmem:[#allocation13 + $0x10] sm:$0xff]
    %v4457 = vld [vmem:[#allocation13 + $0x18] sm:$0xff]
    %v4458 = vld [vmem:[#allocation13 + $0x20] sm:$0xff]
    %v4459 = vld [vmem:[#allocation13 + $0x28] sm:$0xff]
    %v4460 = vld [vmem:[#allocation13 + $0x30] sm:$0xff]
    %v4461 = vld [vmem:[#allocation13 + $0x38] sm:$0xff]
    %v4462 = vld [vmem:[#allocation13 + $0x40] sm:$0xff]
    %v4463 = vld [vmem:[#allocation13 + $0x48] sm:$0xff]
    %v4464 = vld [vmem:[#allocation13 + $0x50] sm:$0xff]
    %v4465 = vld [vmem:[#allocation13 + $0x58] sm:$0xff]
    %v4466 = vld [vmem:[#allocation13 + $0x60] sm:$0xff]
    %v4467 = vld [vmem:[#allocation13 + $0x68] sm:$0xff]
    %v4468 = vld [vmem:[#allocation13 + $0x70] sm:$0xff]
    %v4469 = vld [vmem:[#allocation13 + $0x78] sm:$0xff]
    %v4470 = vld [vmem:[#allocation13 + $0x80] sm:$0xff]
    %v4471 = vld [vmem:[#allocation13 + $0x88] sm:$0xff]
    %v4472 = vld [vmem:[#allocation13 + $0x90] sm:$0xff]
    %v4473 = vld [vmem:[#allocation13 + $0x98] sm:$0xff]
    %v4474 = vld [vmem:[#allocation13 + $0xa0] sm:$0xff]
    %v4475 = vld [vmem:[#allocation13 + $0xa8] sm:$0xff]
    %v4476 = vld [vmem:[#allocation13 + $0xb0] sm:$0xff]
    %v4477 = vld [vmem:[#allocation13 + $0xb8] sm:$0xff]
    %v4478 = vld [vmem:[#allocation13 + $0xc0] sm:$0xff]
    %v4479 = vld [vmem:[#allocation13 + $0xc8] sm:$0xff]
    %v4480 = vld [vmem:[#allocation13 + $0xd0] sm:$0xff]
    %v4481 = vld [vmem:[#allocation13 + $0xd8] sm:$0xff]
    %v4482 = vld [vmem:[#allocation13 + $0xe0] sm:$0xff]
    %v4483 = vld [vmem:[#allocation13 + $0xe8] sm:$0xff]
    %v4484 = vld [vmem:[#allocation13 + $0xf0] sm:$0xff]
    %v4485 = vld [vmem:[#allocation13 + $0xf8] sm:$0xff]
    %v4486 = vld [vmem:[#allocation13 + $0x100] sm:$0xff]
    %v4487 = vld [vmem:[#allocation13 + $0x108] sm:$0xff]
    %v4488 = vld [vmem:[#allocation13 + $0x110] sm:$0xff]
    %v4489 = vld [vmem:[#allocation13 + $0x118] sm:$0xff]
    %v4490 = vld [vmem:[#allocation13 + $0x120] sm:$0xff]
    %v4491 = vld [vmem:[#allocation13 + $0x128] sm:$0xff]
    %v4492 = vld [vmem:[#allocation13 + $0x130] sm:$0xff]
    %v4493 = vld [vmem:[#allocation13 + $0x138] sm:$0xff]
    %v4494 = vld [vmem:[#allocation13 + $0x140] sm:$0xff]
    %v4495 = vld [vmem:[#allocation13 + $0x148] sm:$0xff]
    %v4496 = vld [vmem:[#allocation13 + $0x150] sm:$0xff]
    %v4497 = vld [vmem:[#allocation13 + $0x158] sm:$0xff]
    %v4498 = vld [vmem:[#allocation13 + $0x160] sm:$0xff]
    %v4499 = vld [vmem:[#allocation13 + $0x168] sm:$0xff]
    %v4500 = vld [vmem:[#allocation13 + $0x170] sm:$0xff]
    %v4501 = vld [vmem:[#allocation13 + $0x178] sm:$0xff]
    %v4502 = vld [vmem:[#allocation13 + $0x180] sm:$0xff]
    %v4503 = vld [vmem:[#allocation13 + $0x188] sm:$0xff]
    %v4504 = vld [vmem:[#allocation13 + $0x190] sm:$0xff]
    %v4505 = vld [vmem:[#allocation13 + $0x198] sm:$0xff]
    %v4506 = vld [vmem:[#allocation13 + $0x1a0] sm:$0xff]
    %v4507 = vld [vmem:[#allocation13 + $0x1a8] sm:$0xff]
    %v4508 = vld [vmem:[#allocation13 + $0x1b0] sm:$0xff]
    %v4509 = vld [vmem:[#allocation13 + $0x1b8] sm:$0xff]
    %v4510 = vld [vmem:[#allocation13 + $0x1c0] sm:$0xff]
    %v4511 = vld [vmem:[#allocation13 + $0x1c8] sm:$0xff]
    %v4512 = vld [vmem:[#allocation13 + $0x1d0] sm:$0xff]
    %v4513 = vld [vmem:[#allocation13 + $0x1d8] sm:$0xff]
    %v4514 = vld [vmem:[#allocation13 + $0x1e0] sm:$0xff]
    %v4515 = vld [vmem:[#allocation13 + $0x1e8] sm:$0xff]
    %v4516 = vld [vmem:[#allocation13 + $0x1f0] sm:$0xff]
    %v4517 = vld [vmem:[#allocation13 + $0x1f8] sm:$0xff]
    %v4518 = vld [vmem:[#allocation13 + $0x200] sm:$0xff]
    %v4519 = vld [vmem:[#allocation13 + $0x208] sm:$0xff]
    %v4520 = vld [vmem:[#allocation13 + $0x210] sm:$0xff]
    %v4521 = vld [vmem:[#allocation13 + $0x218] sm:$0xff]
    %v4522 = vld [vmem:[#allocation13 + $0x220] sm:$0xff]
    %v4523 = vld [vmem:[#allocation13 + $0x228] sm:$0xff]
    %v4524 = vld [vmem:[#allocation13 + $0x230] sm:$0xff]
    %v4525 = vld [vmem:[#allocation13 + $0x238] sm:$0xff]
    %v4526 = vld [vmem:[#allocation13 + $0x240] sm:$0xff]
    %v4527 = vld [vmem:[#allocation13 + $0x248] sm:$0xff]
    %v4528 = vld [vmem:[#allocation13 + $0x250] sm:$0xff]
    %v4529 = vld [vmem:[#allocation13 + $0x258] sm:$0xff]
    %v4530 = vld [vmem:[#allocation13 + $0x260] sm:$0xff]
    %v4531 = vld [vmem:[#allocation13 + $0x268] sm:$0xff]
    %v4532 = vld [vmem:[#allocation13 + $0x270] sm:$0xff]
    %v4533 = vld [vmem:[#allocation13 + $0x278] sm:$0xff]
    %v4534 = vld [vmem:[#allocation13 + $0x280] sm:$0xff]
    %v4535 = vld [vmem:[#allocation13 + $0x288] sm:$0xff]
    %v4536 = vld [vmem:[#allocation13 + $0x290] sm:$0xff]
    %v4537 = vld [vmem:[#allocation13 + $0x298] sm:$0xff]
    %v4538 = vld [vmem:[#allocation13 + $0x2a0] sm:$0xff]
    %v4539 = vld [vmem:[#allocation13 + $0x2a8] sm:$0xff]
    %v4540 = vld [vmem:[#allocation13 + $0x2b0] sm:$0xff]
    %v4541 = vld [vmem:[#allocation13 + $0x2b8] sm:$0xff]
    %v4542 = vld [vmem:[#allocation13 + $0x2c0] sm:$0xff]
    %v4543 = vld [vmem:[#allocation13 + $0x2c8] sm:$0xff]
    %v4544 = vld [vmem:[#allocation13 + $0x2d0] sm:$0xff]
    %v4545 = vld [vmem:[#allocation13 + $0x2d8] sm:$0xff]
    %v4546 = vld [vmem:[#allocation13 + $0x2e0] sm:$0xff]
    %v4547 = vld [vmem:[#allocation13 + $0x2e8] sm:$0xff]
    %v4548 = vld [vmem:[#allocation13 + $0x2f0] sm:$0xff]
    %v4549 = vld [vmem:[#allocation13 + $0x2f8] sm:$0xff]
    %v4550 = vld [vmem:[#allocation13 + $0x300] sm:$0xff]
    %v4551 = vld [vmem:[#allocation13 + $0x308] sm:$0xff]
    %v4552 = vld [vmem:[#allocation13 + $0x310] sm:$0xff]
    %v4553 = vld [vmem:[#allocation13 + $0x318] sm:$0xff]
    %v4554 = vld [vmem:[#allocation13 + $0x320] sm:$0xff]
    %v4555 = vld [vmem:[#allocation13 + $0x328] sm:$0xff]
    %v4556 = vld [vmem:[#allocation13 + $0x330] sm:$0xff]
    %v4557 = vld [vmem:[#allocation13 + $0x338] sm:$0xff]
    %v4558 = vld [vmem:[#allocation13 + $0x340] sm:$0xff]
    %v4559 = vld [vmem:[#allocation13 + $0x348] sm:$0xff]
    %v4560 = vld [vmem:[#allocation13 + $0x350] sm:$0xff]
    %v4561 = vld [vmem:[#allocation13 + $0x358] sm:$0xff]
    %v4562 = vld [vmem:[#allocation13 + $0x360] sm:$0xff]
    %v4563 = vld [vmem:[#allocation13 + $0x368] sm:$0xff]
    %v4564 = vld [vmem:[#allocation13 + $0x370] sm:$0xff]
    %v4565 = vld [vmem:[#allocation13 + $0x378] sm:$0xff]
    %v4566 = vld [vmem:[#allocation13 + $0x380] sm:$0xff]
    %v4567 = vld [vmem:[#allocation13 + $0x388] sm:$0xff]
    %v4568 = vld [vmem:[#allocation13 + $0x390] sm:$0xff]
    %v4569 = vld [vmem:[#allocation13 + $0x398] sm:$0xff]
    %v4570 = vld [vmem:[#allocation13 + $0x3a0] sm:$0xff]
    %v4571 = vld [vmem:[#allocation13 + $0x3a8] sm:$0xff]
    %v4572 = vld [vmem:[#allocation13 + $0x3b0] sm:$0xff]
    %v4573 = vld [vmem:[#allocation13 + $0x3b8] sm:$0xff]
    %v4574 = vld [vmem:[#allocation13 + $0x3c0] sm:$0xff]
    %v4575 = vld [vmem:[#allocation13 + $0x3c8] sm:$0xff]
    %v4576 = vld [vmem:[#allocation13 + $0x3d0] sm:$0xff]
    %v4577 = vld [vmem:[#allocation13 + $0x3d8] sm:$0xff]
    %v4578 = vld [vmem:[#allocation13 + $0x3e0] sm:$0xff]
    %v4579 = vld [vmem:[#allocation13 + $0x3e8] sm:$0xff]
    %v4580 = vld [vmem:[#allocation13 + $0x3f0] sm:$0xff]
    %v4581 = vld [vmem:[#allocation13 + $0x3f8] sm:$0xff]
    %v4582 = vld [vmem:[#allocation13 + $0x400] sm:$0xff]
    %v4583 = vld [vmem:[#allocation13 + $0x408] sm:$0xff]
    %v4584 = vld [vmem:[#allocation13 + $0x410] sm:$0xff]
    %v4585 = vld [vmem:[#allocation13 + $0x418] sm:$0xff]
    %v4586 = vld [vmem:[#allocation13 + $0x420] sm:$0xff]
    %v4587 = vld [vmem:[#allocation13 + $0x428] sm:$0xff]
    %v4588 = vld [vmem:[#allocation13 + $0x430] sm:$0xff]
    %v4589 = vld [vmem:[#allocation13 + $0x438] sm:$0xff]
    %v4590 = vld [vmem:[#allocation13 + $0x440] sm:$0xff]
    %v4591 = vld [vmem:[#allocation13 + $0x448] sm:$0xff]
    %v4592 = vld [vmem:[#allocation13 + $0x450] sm:$0xff]
    %v4593 = vld [vmem:[#allocation13 + $0x458] sm:$0xff]
    %v4594 = vld [vmem:[#allocation13 + $0x460] sm:$0xff]
    %v4595 = vld [vmem:[#allocation13 + $0x468] sm:$0xff]
    %v4596 = vld [vmem:[#allocation13 + $0x470] sm:$0xff]
    %v4597 = vld [vmem:[#allocation13 + $0x478] sm:$0xff]
    %v4598 = vld [vmem:[#allocation13 + $0x480] sm:$0xff]
    %v4599 = vld [vmem:[#allocation13 + $0x488] sm:$0xff]
    %v4600 = vld [vmem:[#allocation13 + $0x490] sm:$0xff]
    %v4601 = vld [vmem:[#allocation13 + $0x498] sm:$0xff]
    %v4602 = vld [vmem:[#allocation13 + $0x4a0] sm:$0xff]
    %v4603 = vld [vmem:[#allocation13 + $0x4a8] sm:$0xff]
    %v4604 = vld [vmem:[#allocation13 + $0x4b0] sm:$0xff]
    %v4605 = vld [vmem:[#allocation13 + $0x4b8] sm:$0xff]
    %v4606 = vld [vmem:[#allocation13 + $0x4c0] sm:$0xff]
    %v4607 = vld [vmem:[#allocation13 + $0x4c8] sm:$0xff]
    %v4608 = vld [vmem:[#allocation13 + $0x4d0] sm:$0xff]
    %v4609 = vld [vmem:[#allocation13 + $0x4d8] sm:$0xff]
    %v4610 = vld [vmem:[#allocation13 + $0x4e0] sm:$0xff]
    %v4611 = vld [vmem:[#allocation13 + $0x4e8] sm:$0xff]
    %v4612 = vld [vmem:[#allocation13 + $0x4f0] sm:$0xff]
    %v4613 = vld [vmem:[#allocation13 + $0x4f8] sm:$0xff]
    %v4614 = vld [vmem:[#allocation13 + $0x500] sm:$0xff]
    %v4615 = vld [vmem:[#allocation13 + $0x508] sm:$0xff]
    %v4616 = vld [vmem:[#allocation13 + $0x510] sm:$0xff]
    %v4617 = vld [vmem:[#allocation13 + $0x518] sm:$0xff]
    %v4618 = vld [vmem:[#allocation13 + $0x520] sm:$0xff]
    %v4619 = vld [vmem:[#allocation13 + $0x528] sm:$0xff]
    %v4620 = vld [vmem:[#allocation13 + $0x530] sm:$0xff]
    %v4621 = vld [vmem:[#allocation13 + $0x538] sm:$0xff]
    %v4622 = vld [vmem:[#allocation13 + $0x540] sm:$0xff]
    %v4623 = vld [vmem:[#allocation13 + $0x548] sm:$0xff]
    %v4624 = vld [vmem:[#allocation13 + $0x550] sm:$0xff]
    %v4625 = vld [vmem:[#allocation13 + $0x558] sm:$0xff]
    %v4626 = vld [vmem:[#allocation13 + $0x560] sm:$0xff]
    %v4627 = vld [vmem:[#allocation13 + $0x568] sm:$0xff]
    %v4628 = vld [vmem:[#allocation13 + $0x570] sm:$0xff]
    %v4629 = vld [vmem:[#allocation13 + $0x578] sm:$0xff]
    %v4630 = vld [vmem:[#allocation13 + $0x580] sm:$0xff]
    %v4631 = vld [vmem:[#allocation13 + $0x588] sm:$0xff]
    %v4632 = vld [vmem:[#allocation13 + $0x590] sm:$0xff]
    %v4633 = vld [vmem:[#allocation13 + $0x598] sm:$0xff]
    %v4634 = vld [vmem:[#allocation13 + $0x5a0] sm:$0xff]
    %v4635 = vld [vmem:[#allocation13 + $0x5a8] sm:$0xff]
    %v4636 = vld [vmem:[#allocation13 + $0x5b0] sm:$0xff]
    %v4637 = vld [vmem:[#allocation13 + $0x5b8] sm:$0xff]
    %v4638 = vld [vmem:[#allocation13 + $0x5c0] sm:$0xff]
    %v4639 = vld [vmem:[#allocation13 + $0x5c8] sm:$0xff]
    %v4640 = vld [vmem:[#allocation13 + $0x5d0] sm:$0xff]
    %v4641 = vld [vmem:[#allocation13 + $0x5d8] sm:$0xff]
    %v4642 = vld [vmem:[#allocation13 + $0x5e0] sm:$0xff]
    %v4643 = vld [vmem:[#allocation13 + $0x5e8] sm:$0xff]
    %v4644 = vld [vmem:[#allocation13 + $0x5f0] sm:$0xff]
    %v4645 = vld [vmem:[#allocation13 + $0x5f8] sm:$0xff]
    %v4646 = vld [vmem:[#allocation13 + $0x600] sm:$0xff]
    %v4647 = vld [vmem:[#allocation13 + $0x608] sm:$0xff]
    %v4648 = vld [vmem:[#allocation13 + $0x610] sm:$0xff]
    %v4649 = vld [vmem:[#allocation13 + $0x618] sm:$0xff]
    %v4650 = vld [vmem:[#allocation13 + $0x620] sm:$0xff]
    %v4651 = vld [vmem:[#allocation13 + $0x628] sm:$0xff]
    %v4652 = vld [vmem:[#allocation13 + $0x630] sm:$0xff]
    %v4653 = vld [vmem:[#allocation13 + $0x638] sm:$0xff]
    %v4654 = vld [vmem:[#allocation13 + $0x640] sm:$0xff]
    %v4655 = vld [vmem:[#allocation13 + $0x648] sm:$0xff]
    %v4656 = vld [vmem:[#allocation13 + $0x650] sm:$0xff]
    %v4657 = vld [vmem:[#allocation13 + $0x658] sm:$0xff]
    %v4658 = vld [vmem:[#allocation13 + $0x660] sm:$0xff]
    %v4659 = vld [vmem:[#allocation13 + $0x668] sm:$0xff]
    %v4660 = vld [vmem:[#allocation13 + $0x670] sm:$0xff]
    %v4661 = vld [vmem:[#allocation13 + $0x678] sm:$0xff]
    %v4662 = vld [vmem:[#allocation13 + $0x680] sm:$0xff]
    %v4663 = vld [vmem:[#allocation13 + $0x688] sm:$0xff]
    %v4664 = vld [vmem:[#allocation13 + $0x690] sm:$0xff]
    %v4665 = vld [vmem:[#allocation13 + $0x698] sm:$0xff]
    %v4666 = vld [vmem:[#allocation13 + $0x6a0] sm:$0xff]
    %v4667 = vld [vmem:[#allocation13 + $0x6a8] sm:$0xff]
    %v4668 = vld [vmem:[#allocation13 + $0x6b0] sm:$0xff]
    %v4669 = vld [vmem:[#allocation13 + $0x6b8] sm:$0xff]
    %v4670 = vld [vmem:[#allocation13 + $0x6c0] sm:$0xff]
    %v4671 = vld [vmem:[#allocation13 + $0x6c8] sm:$0xff]
    %v4672 = vld [vmem:[#allocation13 + $0x6d0] sm:$0xff]
    %v4673 = vld [vmem:[#allocation13 + $0x6d8] sm:$0xff]
    %v4674 = vld [vmem:[#allocation13 + $0x6e0] sm:$0xff]
    %v4675 = vld [vmem:[#allocation13 + $0x6e8] sm:$0xff]
    %v4676 = vld [vmem:[#allocation13 + $0x6f0] sm:$0xff]
    %v4677 = vld [vmem:[#allocation13 + $0x6f8] sm:$0xff]
    %v4678 = vld [vmem:[#allocation13 + $0x700] sm:$0xff]
    %v4679 = vld [vmem:[#allocation13 + $0x708] sm:$0xff]
    %v4680 = vld [vmem:[#allocation13 + $0x710] sm:$0xff]
    %v4681 = vld [vmem:[#allocation13 + $0x718] sm:$0xff]
    %v4682 = vld [vmem:[#allocation13 + $0x720] sm:$0xff]
    %v4683 = vld [vmem:[#allocation13 + $0x728] sm:$0xff]
    %v4684 = vld [vmem:[#allocation13 + $0x730] sm:$0xff]
    %v4685 = vld [vmem:[#allocation13 + $0x738] sm:$0xff]
    %v4686 = vld [vmem:[#allocation13 + $0x740] sm:$0xff]
    %v4687 = vld [vmem:[#allocation13 + $0x748] sm:$0xff]
    %v4688 = vld [vmem:[#allocation13 + $0x750] sm:$0xff]
    %v4689 = vld [vmem:[#allocation13 + $0x758] sm:$0xff]
    %v4690 = vld [vmem:[#allocation13 + $0x760] sm:$0xff]
    %v4691 = vld [vmem:[#allocation13 + $0x768] sm:$0xff]
    %v4692 = vld [vmem:[#allocation13 + $0x770] sm:$0xff]
    %v4693 = vld [vmem:[#allocation13 + $0x778] sm:$0xff]
    %v4694 = vld [vmem:[#allocation13 + $0x780] sm:$0xff]
    %v4695 = vld [vmem:[#allocation13 + $0x788] sm:$0xff]
    %v4696 = vld [vmem:[#allocation13 + $0x790] sm:$0xff]
    %v4697 = vld [vmem:[#allocation13 + $0x798] sm:$0xff]
    %v4698 = vld [vmem:[#allocation13 + $0x7a0] sm:$0xff]
    %v4699 = vld [vmem:[#allocation13 + $0x7a8] sm:$0xff]
    %v4700 = vld [vmem:[#allocation13 + $0x7b0] sm:$0xff]
    %v4701 = vld [vmem:[#allocation13 + $0x7b8] sm:$0xff]
    %v4702 = vld [vmem:[#allocation13 + $0x7c0] sm:$0xff]
    %v4703 = vld [vmem:[#allocation13 + $0x7c8] sm:$0xff]
    %v4704 = vld [vmem:[#allocation13 + $0x7d0] sm:$0xff]
    %v4705 = vld [vmem:[#allocation13 + $0x7d8] sm:$0xff]
    %v4706 = vld [vmem:[#allocation13 + $0x7e0] sm:$0xff]
    %v4707 = vld [vmem:[#allocation13 + $0x7e8] sm:$0xff]
    %v4708 = vld [vmem:[#allocation13 + $0x7f0] sm:$0xff]
    %v4709 = vld [vmem:[#allocation13 + $0x7f8] sm:$0xff]
    %v4710 = vld [vmem:[#allocation14] sm:$0xf]
    %v4712 = vlaneseq
    %v4713 = vshrl.u32 %v4712, 7
    %v4714 = vsub.s32 0, %v4713
    %v4715 = vrot.slane %v4710, %v4714
    %v4716 = vlaneseq
    %v4717 = vshrl.u32 %v4716, 7
    %v4718 = vsub.s32 1, %v4717
    %v4719 = vrot.slane %v4710, %v4718
    %v4720 = vlaneseq
    %v4721 = vshrl.u32 %v4720, 7
    %v4722 = vsub.s32 2, %v4721
    %v4723 = vrot.slane %v4710, %v4722
    %v4724 = vlaneseq
    %v4725 = vshrl.u32 %v4724, 7
    %v4726 = vsub.s32 3, %v4725
    %v4727 = vrot.slane %v4710, %v4726
    %4732 = vmatprep.subr.mxu0 %v4455
    %4733 = vmatpush1.msra.mxu0 %v4454
    %4734 = vmatprep.subr.mxu0 %v4459
    %4735 = vmatpush1.msra.mxu0 %v4458
    %4736 = vmatprep.subr.mxu0 %v4463
    %4737 = vmatpush1.msra.mxu0 %v4462
    %4738 = vmatprep.subr.mxu0 %v4467
    %4739 = vmatpush1.msra.mxu0 %v4466
    %4740 = vmatprep.subr.mxu0 %v4471
    %4741 = vmatpush1.msra.mxu0 %v4470
    %4742 = vmatprep.subr.mxu0 %v4475
    %4743 = vmatpush1.msra.mxu0 %v4474
    %4744 = vmatprep.subr.mxu0 %v4479
    %4745 = vmatpush1.msra.mxu0 %v4478
    %4746 = vmatprep.subr.mxu0 %v4483
    %4747 = vmatpush1.msra.mxu0 %v4482
    %4748 = vmatprep.subr.mxu0 %v4487
    %4749 = vmatpush1.msra.mxu0 %v4486
    %4750 = vmatprep.subr.mxu0 %v4491
    %4751 = vmatpush1.msra.mxu0 %v4490
    %4752 = vmatprep.subr.mxu0 %v4495
    %4753 = vmatpush1.msra.mxu0 %v4494
    %4754 = vmatprep.subr.mxu0 %v4499
    %4755 = vmatpush1.msra.mxu0 %v4498
    %4756 = vmatprep.subr.mxu0 %v4503
    %4757 = vmatpush1.msra.mxu0 %v4502
    %4758 = vmatprep.subr.mxu0 %v4507
    %4759 = vmatpush1.msra.mxu0 %v4506
    %4760 = vmatprep.subr.mxu0 %v4511
    %4761 = vmatpush1.msra.mxu0 %v4510
    %4762 = vmatprep.subr.mxu0 %v4515
    %4763 = vmatpush1.msra.mxu0 %v4514
    %4764 = vmatprep.subr.mxu0 %v4519
    %4765 = vmatpush1.msra.mxu0 %v4518
    %4766 = vmatprep.subr.mxu0 %v4523
    %4767 = vmatpush1.msra.mxu0 %v4522
    %4768 = vmatprep.subr.mxu0 %v4527
    %4769 = vmatpush1.msra.mxu0 %v4526
    %4770 = vmatprep.subr.mxu0 %v4531
    %4771 = vmatpush1.msra.mxu0 %v4530
    %4772 = vmatprep.subr.mxu0 %v4535
    %4773 = vmatpush1.msra.mxu0 %v4534
    %4774 = vmatprep.subr.mxu0 %v4539
    %4775 = vmatpush1.msra.mxu0 %v4538
    %4776 = vmatprep.subr.mxu0 %v4543
    %4777 = vmatpush1.msra.mxu0 %v4542
    %4778 = vmatprep.subr.mxu0 %v4547
    %4779 = vmatpush1.msra.mxu0 %v4546
    %4780 = vmatprep.subr.mxu0 %v4551
    %4781 = vmatpush1.msra.mxu0 %v4550
    %4782 = vmatprep.subr.mxu0 %v4555
    %4783 = vmatpush1.msra.mxu0 %v4554
    %4784 = vmatprep.subr.mxu0 %v4559
    %4785 = vmatpush1.msra.mxu0 %v4558
    %4786 = vmatprep.subr.mxu0 %v4563
    %4787 = vmatpush1.msra.mxu0 %v4562
    %4788 = vmatprep.subr.mxu0 %v4567
    %4789 = vmatpush1.msra.mxu0 %v4566
    %4790 = vmatprep.subr.mxu0 %v4571
    %4791 = vmatpush1.msra.mxu0 %v4570
    %4792 = vmatprep.subr.mxu0 %v4575
    %4793 = vmatpush1.msra.mxu0 %v4574
    %4794 = vmatprep.subr.mxu0 %v4579
    %4795 = vmatpush1.msra.mxu0 %v4578
    %4796 = vmatprep.mubr.f32.mxu0 %v4443
    %4797 = vmatmul.mubr.f32.gmra.mrb[0].mxu0 %v4442
    %v4798 = vpop.f32.mrb[0].mxu0
    %v4799 = vadd.f32 %v4715, %v4798
    %v4800 = vpop.f32.mrb[0].mxu0
    %v4801 = vadd.f32 %v4719, %v4800
    %4802 = vmatprep.mubr.f32.mxu0 %v4447
    %4803 = vmatmul.mubr.f32.gmra.mrb[0].mxu0 %v4446
    %v4804 = vpop.f32.mrb[0].mxu0
    %v4805 = vadd.f32 %v4715, %v4804
    %v4806 = vpop.f32.mrb[0].mxu0
    %v4807 = vadd.f32 %v4719, %v4806
    %4808 = vmatprep.mubr.f32.mxu0 %v4451
    %4809 = vmatmul.mubr.f32.gmra.mrb[0].mxu0 %v4450
    %v4810 = vpop.f32.mrb[0].mxu0
    %v4811 = vadd.f32 %v4715, %v4810
    %v4812 = vpop.f32.mrb[0].mxu0
    %v4813 = vadd.f32 %v4719, %v4812
    %4814 = vdwg.mxu0
    %4815 = vmatprep.subr.mxu0 %v4583
    %4816 = vmatpush1.msra.mxu0 %v4582
    %4817 = vmatprep.subr.mxu0 %v4587
    %4818 = vmatpush1.msra.mxu0 %v4586
    %4819 = vmatprep.subr.mxu0 %v4591
    %4820 = vmatpush1.msra.mxu0 %v4590
    %4821 = vmatprep.subr.mxu0 %v4595
    %4822 = vmatpush1.msra.mxu0 %v4594
    %4823 = vmatprep.subr.mxu0 %v4599
    %4824 = vmatpush1.msra.mxu0 %v4598
    %4825 = vmatprep.subr.mxu0 %v4603
    %4826 = vmatpush1.msra.mxu0 %v4602
    %4827 = vmatprep.subr.mxu0 %v4607
    %4828 = vmatpush1.msra.mxu0 %v4606
    %4829 = vmatprep.subr.mxu0 %v4611
    %4830 = vmatpush1.msra.mxu0 %v4610
    %4831 = vmatprep.subr.mxu0 %v4615
    %4832 = vmatpush1.msra.mxu0 %v4614
    %4833 = vmatprep.subr.mxu0 %v4619
    %4834 = vmatpush1.msra.mxu0 %v4618
    %4835 = vmatprep.subr.mxu0 %v4623
    %4836 = vmatpush1.msra.mxu0 %v4622
    %4837 = vmatprep.subr.mxu0 %v4627
    %4838 = vmatpush1.msra.mxu0 %v4626
    %4839 = vmatprep.subr.mxu0 %v4631
    %4840 = vmatpush1.msra.mxu0 %v4630
    %4841 = vmatprep.subr.mxu0 %v4635
    %4842 = vmatpush1.msra.mxu0 %v4634
    %4843 = vmatprep.subr.mxu0 %v4639
    %4844 = vmatpush1.msra.mxu0 %v4638
    %4845 = vmatprep.subr.mxu0 %v4643
    %4846 = vmatpush1.msra.mxu0 %v4642
    %4847 = vmatprep.subr.mxu0 %v4647
    %4848 = vmatpush1.msra.mxu0 %v4646
    %4849 = vmatprep.subr.mxu0 %v4651
    %4850 = vmatpush1.msra.mxu0 %v4650
    %4851 = vmatprep.subr.mxu0 %v4655
    %4852 = vmatpush1.msra.mxu0 %v4654
    %4853 = vmatprep.subr.mxu0 %v4659
    %4854 = vmatpush1.msra.mxu0 %v4658
    %4855 = vmatprep.subr.mxu0 %v4663
    %4856 = vmatpush1.msra.mxu0 %v4662
    %4857 = vmatprep.subr.mxu0 %v4667
    %4858 = vmatpush1.msra.mxu0 %v4666
    %4859 = vmatprep.subr.mxu0 %v4671
    %4860 = vmatpush1.msra.mxu0 %v4670
    %4861 = vmatprep.subr.mxu0 %v4675
    %4862 = vmatpush1.msra.mxu0 %v4674
    %4863 = vmatprep.subr.mxu0 %v4679
    %4864 = vmatpush1.msra.mxu0 %v4678
    %4865 = vmatprep.subr.mxu0 %v4683
    %4866 = vmatpush1.msra.mxu0 %v4682
    %4867 = vmatprep.subr.mxu0 %v4687
    %4868 = vmatpush1.msra.mxu0 %v4686
    %4869 = vmatprep.subr.mxu0 %v4691
    %4870 = vmatpush1.msra.mxu0 %v4690
    %4871 = vmatprep.subr.mxu0 %v4695
    %4872 = vmatpush1.msra.mxu0 %v4694
    %4873 = vmatprep.subr.mxu0 %v4699
    %4874 = vmatpush1.msra.mxu0 %v4698
    %4875 = vmatprep.subr.mxu0 %v4703
    %4876 = vmatpush1.msra.mxu0 %v4702
    %4877 = vmatprep.subr.mxu0 %v4707
    %4878 = vmatpush1.msra.mxu0 %v4706
    %4879 = vmatprep.mubr.f32.mxu0 %v4445
    %4880 = vmatmul.mubr.f32.gmra.mrb[0].mxu0 %v4444
    %v4881 = vpop.f32.mrb[0].mxu0
    %v4882 = vadd.f32 %v4799, %v4881
    %v4883 = vpop.f32.mrb[0].mxu0
    %v4884 = vadd.f32 %v4801, %v4883
    %4885 = vmatprep.mubr.f32.mxu0 %v4449
    %4886 = vmatmul.mubr.f32.gmra.mrb[0].mxu0 %v4448
    %v4887 = vpop.f32.mrb[0].mxu0
    %v4888 = vadd.f32 %v4805, %v4887
    %v4889 = vpop.f32.mrb[0].mxu0
    %v4890 = vadd.f32 %v4807, %v4889
    %4891 = vmatprep.mubr.f32.mxu0 %v4453
    %4892 = vmatmul.mubr.f32.gmra.mrb[0].mxu0 %v4452
    %v4893 = vpop.f32.mrb[0].mxu0
    %v4894 = vadd.f32 %v4811, %v4893
    %v4895 = vpop.f32.mrb[0].mxu0
    %v4896 = vadd.f32 %v4813, %v4895
    %4897 = vdwg.mxu0
    %4898 = vmatprep.subr.mxu0 %v4457
    %4899 = vmatpush1.msra.mxu0 %v4456
    %4900 = vmatprep.subr.mxu0 %v4461
    %4901 = vmatpush1.msra.mxu0 %v4460
    %4902 = vmatprep.subr.mxu0 %v4465
    %4903 = vmatpush1.msra.mxu0 %v4464
    %4904 = vmatprep.subr.mxu0 %v4469
    %4905 = vmatpush1.msra.mxu0 %v4468
    %4906 = vmatprep.subr.mxu0 %v4473
    %4907 = vmatpush1.msra.mxu0 %v4472
    %4908 = vmatprep.subr.mxu0 %v4477
    %4909 = vmatpush1.msra.mxu0 %v4476
    %4910 = vmatprep.subr.mxu0 %v4481
    %4911 = vmatpush1.msra.mxu0 %v4480
    %4912 = vmatprep.subr.mxu0 %v4485
    %4913 = vmatpush1.msra.mxu0 %v4484
    %4914 = vmatprep.subr.mxu0 %v4489
    %4915 = vmatpush1.msra.mxu0 %v4488
    %4916 = vmatprep.subr.mxu0 %v4493
    %4917 = vmatpush1.msra.mxu0 %v4492
    %4918 = vmatprep.subr.mxu0 %v4497
    %4919 = vmatpush1.msra.mxu0 %v4496
    %4920 = vmatprep.subr.mxu0 %v4501
    %4921 = vmatpush1.msra.mxu0 %v4500
    %4922 = vmatprep.subr.mxu0 %v4505
    %4923 = vmatpush1.msra.mxu0 %v4504
    %4924 = vmatprep.subr.mxu0 %v4509
    %4925 = vmatpush1.msra.mxu0 %v4508
    %4926 = vmatprep.subr.mxu0 %v4513
    %4927 = vmatpush1.msra.mxu0 %v4512
    %4928 = vmatprep.subr.mxu0 %v4517
    %4929 = vmatpush1.msra.mxu0 %v4516
    %4930 = vmatprep.subr.mxu0 %v4521
    %4931 = vmatpush1.msra.mxu0 %v4520
    %4932 = vmatprep.subr.mxu0 %v4525
    %4933 = vmatpush1.msra.mxu0 %v4524
    %4934 = vmatprep.subr.mxu0 %v4529
    %4935 = vmatpush1.msra.mxu0 %v4528
    %4936 = vmatprep.subr.mxu0 %v4533
    %4937 = vmatpush1.msra.mxu0 %v4532
    %4938 = vmatprep.subr.mxu0 %v4537
    %4939 = vmatpush1.msra.mxu0 %v4536
    %4940 = vmatprep.subr.mxu0 %v4541
    %4941 = vmatpush1.msra.mxu0 %v4540
    %4942 = vmatprep.subr.mxu0 %v4545
    %4943 = vmatpush1.msra.mxu0 %v4544
    %4944 = vmatprep.subr.mxu0 %v4549
    %4945 = vmatpush1.msra.mxu0 %v4548
    %4946 = vmatprep.subr.mxu0 %v4553
    %4947 = vmatpush1.msra.mxu0 %v4552
    %4948 = vmatprep.subr.mxu0 %v4557
    %4949 = vmatpush1.msra.mxu0 %v4556
    %4950 = vmatprep.subr.mxu0 %v4561
    %4951 = vmatpush1.msra.mxu0 %v4560
    %4952 = vmatprep.subr.mxu0 %v4565
    %4953 = vmatpush1.msra.mxu0 %v4564
    %4954 = vmatprep.subr.mxu0 %v4569
    %4955 = vmatpush1.msra.mxu0 %v4568
    %4956 = vmatprep.subr.mxu0 %v4573
    %4957 = vmatpush1.msra.mxu0 %v4572
    %4958 = vmatprep.subr.mxu0 %v4577
    %4959 = vmatpush1.msra.mxu0 %v4576
    %4960 = vmatprep.subr.mxu0 %v4581
    %4961 = vmatpush1.msra.mxu0 %v4580
    %4962 = vmatprep.mubr.f32.mxu0 %v4443
    %4963 = vmatmul.mubr.f32.gmra.mrb[0].mxu0 %v4442
    %v4964 = vpop.f32.mrb[0].mxu0
    %v4965 = vadd.f32 %v4723, %v4964
    %v4966 = vpop.f32.mrb[0].mxu0
    %v4967 = vadd.f32 %v4727, %v4966
    %4968 = vmatprep.mubr.f32.mxu0 %v4447
    %4969 = vmatmul.mubr.f32.gmra.mrb[0].mxu0 %v4446
    %v4970 = vpop.f32.mrb[0].mxu0
    %v4971 = vadd.f32 %v4723, %v4970
    %v4972 = vpop.f32.mrb[0].mxu0
    %v4973 = vadd.f32 %v4727, %v4972
    %4974 = vmatprep.mubr.f32.mxu0 %v4451
    %4975 = vmatmul.mubr.f32.gmra.mrb[0].mxu0 %v4450
    %v4976 = vpop.f32.mrb[0].mxu0
    %v4977 = vadd.f32 %v4723, %v4976
    %v4978 = vpop.f32.mrb[0].mxu0
    %v4979 = vadd.f32 %v4727, %v4978
    %4980 = vdwg.mxu0
    %4981 = vmatprep.subr.mxu0 %v4585
    %4982 = vmatpush1.msra.mxu0 %v4584
    %4983 = vmatprep.subr.mxu0 %v4589
    %4984 = vmatpush1.msra.mxu0 %v4588
    %4985 = vmatprep.subr.mxu0 %v4593
    %4986 = vmatpush1.msra.mxu0 %v4592
    %4987 = vmatprep.subr.mxu0 %v4597
    %4988 = vmatpush1.msra.mxu0 %v4596
    %4989 = vmatprep.subr.mxu0 %v4601
    %4990 = vmatpush1.msra.mxu0 %v4600
    %4991 = vmatprep.subr.mxu0 %v4605
    %4992 = vmatpush1.msra.mxu0 %v4604
    %4993 = vmatprep.subr.mxu0 %v4609
    %4994 = vmatpush1.msra.mxu0 %v4608
    %4995 = vmatprep.subr.mxu0 %v4613
    %4996 = vmatpush1.msra.mxu0 %v4612
    %4997 = vmatprep.subr.mxu0 %v4617
    %4998 = vmatpush1.msra.mxu0 %v4616
    %4999 = vmatprep.subr.mxu0 %v4621
    %5000 = vmatpush1.msra.mxu0 %v4620
    %5001 = vmatprep.subr.mxu0 %v4625
    %5002 = vmatpush1.msra.mxu0 %v4624
    %5003 = vmatprep.subr.mxu0 %v4629
    %5004 = vmatpush1.msra.mxu0 %v4628
    %5005 = vmatprep.subr.mxu0 %v4633
    %5006 = vmatpush1.msra.mxu0 %v4632
    %5007 = vmatprep.subr.mxu0 %v4637
    %5008 = vmatpush1.msra.mxu0 %v4636
    %5009 = vmatprep.subr.mxu0 %v4641
    %5010 = vmatpush1.msra.mxu0 %v4640
    %5011 = vmatprep.subr.mxu0 %v4645
    %5012 = vmatpush1.msra.mxu0 %v4644
    %5013 = vmatprep.subr.mxu0 %v4649
    %5014 = vmatpush1.msra.mxu0 %v4648
    %5015 = vmatprep.subr.mxu0 %v4653
    %5016 = vmatpush1.msra.mxu0 %v4652
    %5017 = vmatprep.subr.mxu0 %v4657
    %5018 = vmatpush1.msra.mxu0 %v4656
    %5019 = vmatprep.subr.mxu0 %v4661
    %5020 = vmatpush1.msra.mxu0 %v4660
    %5021 = vmatprep.subr.mxu0 %v4665
    %5022 = vmatpush1.msra.mxu0 %v4664
    %5023 = vmatprep.subr.mxu0 %v4669
    %5024 = vmatpush1.msra.mxu0 %v4668
    %5025 = vmatprep.subr.mxu0 %v4673
    %5026 = vmatpush1.msra.mxu0 %v4672
    %5027 = vmatprep.subr.mxu0 %v4677
    %5028 = vmatpush1.msra.mxu0 %v4676
    %5029 = vmatprep.subr.mxu0 %v4681
    %5030 = vmatpush1.msra.mxu0 %v4680
    %5031 = vmatprep.subr.mxu0 %v4685
    %5032 = vmatpush1.msra.mxu0 %v4684
    %5033 = vmatprep.subr.mxu0 %v4689
    %5034 = vmatpush1.msra.mxu0 %v4688
    %5035 = vmatprep.subr.mxu0 %v4693
    %5036 = vmatpush1.msra.mxu0 %v4692
    %5037 = vmatprep.subr.mxu0 %v4697
    %5038 = vmatpush1.msra.mxu0 %v4696
    %5039 = vmatprep.subr.mxu0 %v4701
    %5040 = vmatpush1.msra.mxu0 %v4700
    %5041 = vmatprep.subr.mxu0 %v4705
    %5042 = vmatpush1.msra.mxu0 %v4704
    %5043 = vmatprep.subr.mxu0 %v4709
    %5044 = vmatpush1.msra.mxu0 %v4708
    %5045 = vmatprep.mubr.f32.mxu0 %v4445
    %5046 = vmatmul.mubr.f32.gmra.mrb[0].mxu0 %v4444
    %v5047 = vpop.f32.mrb[0].mxu0
    %v5048 = vadd.f32 %v4965, %v5047
    %v5049 = vpop.f32.mrb[0].mxu0
    %v5050 = vadd.f32 %v4967, %v5049
    %5051 = vmatprep.mubr.f32.mxu0 %v4449
    %5052 = vmatmul.mubr.f32.gmra.mrb[0].mxu0 %v4448
    %v5053 = vpop.f32.mrb[0].mxu0
    %v5054 = vadd.f32 %v4971, %v5053
    %v5055 = vpop.f32.mrb[0].mxu0
    %v5056 = vadd.f32 %v4973, %v5055
    %5057 = vmatprep.mubr.f32.mxu0 %v4453
    %5058 = vmatmul.mubr.f32.gmra.mrb[0].mxu0 %v4452
    %v5059 = vpop.f32.mrb[0].mxu0
    %v5060 = vadd.f32 %v4977, %v5059
    %v5061 = vpop.f32.mrb[0].mxu0
    %v5062 = vadd.f32 %v4979, %v5061
    %5063 = vdwg.mxu0
    %v5064 = vmax.f32 %v4882, 0.0
    %v5065 = vmax.f32 %v4884, 0.0
    %v5066 = vmax.f32 %v5048, 0.0
    %v5067 = vmax.f32 %v5050, 0.0
    %v5068 = vmax.f32 %v4888, 0.0
    %v5069 = vmax.f32 %v4890, 0.0
    %v5070 = vmax.f32 %v5054, 0.0
    %v5071 = vmax.f32 %v5056, 0.0
    %v5072 = vmax.f32 %v4894, 0.0
    %v5073 = vmax.f32 %v4896, 0.0
    %v5074 = vmax.f32 %v5060, 0.0
    %v5075 = vmax.f32 %v5062, 0.0
    %v5076 = vld [vmem:[#allocation16] sm:$0xff]
    %v5077 = vld [vmem:[#allocation16 + $0x8] sm:$0xff]
    %v5078 = vld [vmem:[#allocation16 + $0x10] sm:$0xff]
    %v5079 = vld [vmem:[#allocation16 + $0x18] sm:$0xff]
    %v5080 = vld [vmem:[#allocation16 + $0x20] sm:$0xff]
    %v5081 = vld [vmem:[#allocation16 + $0x28] sm:$0xff]
    %v5082 = vld [vmem:[#allocation16 + $0x30] sm:$0xff]
    %v5083 = vld [vmem:[#allocation16 + $0x38] sm:$0xff]
    %v5084 = vld [vmem:[#allocation16 + $0x40] sm:$0xff]
    %v5085 = vld [vmem:[#allocation16 + $0x48] sm:$0xff]
    %v5086 = vld [vmem:[#allocation16 + $0x50] sm:$0xff]
    %v5087 = vld [vmem:[#allocation16 + $0x58] sm:$0xff]
    %v5088 = vld [vmem:[#allocation16 + $0x60] sm:$0xff]
    %v5089 = vld [vmem:[#allocation16 + $0x68] sm:$0xff]
    %v5090 = vld [vmem:[#allocation16 + $0x70] sm:$0xff]
    %v5091 = vld [vmem:[#allocation16 + $0x78] sm:$0xff]
    %v5092 = vld [vmem:[#allocation16 + $0x80] sm:$0xff]
    %v5093 = vld [vmem:[#allocation16 + $0x88] sm:$0xff]
    %v5094 = vld [vmem:[#allocation16 + $0x90] sm:$0xff]
    %v5095 = vld [vmem:[#allocation16 + $0x98] sm:$0xff]
    %v5096 = vld [vmem:[#allocation16 + $0xa0] sm:$0xff]
    %v5097 = vld [vmem:[#allocation16 + $0xa8] sm:$0xff]
    %v5098 = vld [vmem:[#allocation16 + $0xb0] sm:$0xff]
    %v5099 = vld [vmem:[#allocation16 + $0xb8] sm:$0xff]
    %v5100 = vld [vmem:[#allocation16 + $0xc0] sm:$0xff]
    %v5101 = vld [vmem:[#allocation16 + $0xc8] sm:$0xff]
    %v5102 = vld [vmem:[#allocation16 + $0xd0] sm:$0xff]
    %v5103 = vld [vmem:[#allocation16 + $0xd8] sm:$0xff]
    %v5104 = vld [vmem:[#allocation16 + $0xe0] sm:$0xff]
    %v5105 = vld [vmem:[#allocation16 + $0xe8] sm:$0xff]
    %v5106 = vld [vmem:[#allocation16 + $0xf0] sm:$0xff]
    %v5107 = vld [vmem:[#allocation16 + $0xf8] sm:$0xff]
    %v5108 = vld [vmem:[#allocation16 + $0x100] sm:$0xff]
    %v5109 = vld [vmem:[#allocation16 + $0x108] sm:$0xff]
    %v5110 = vld [vmem:[#allocation16 + $0x110] sm:$0xff]
    %v5111 = vld [vmem:[#allocation16 + $0x118] sm:$0xff]
    %v5112 = vld [vmem:[#allocation16 + $0x120] sm:$0xff]
    %v5113 = vld [vmem:[#allocation16 + $0x128] sm:$0xff]
    %v5114 = vld [vmem:[#allocation16 + $0x130] sm:$0xff]
    %v5115 = vld [vmem:[#allocation16 + $0x138] sm:$0xff]
    %v5116 = vld [vmem:[#allocation16 + $0x140] sm:$0xff]
    %v5117 = vld [vmem:[#allocation16 + $0x148] sm:$0xff]
    %v5118 = vld [vmem:[#allocation16 + $0x150] sm:$0xff]
    %v5119 = vld [vmem:[#allocation16 + $0x158] sm:$0xff]
    %v5120 = vld [vmem:[#allocation16 + $0x160] sm:$0xff]
    %v5121 = vld [vmem:[#allocation16 + $0x168] sm:$0xff]
    %v5122 = vld [vmem:[#allocation16 + $0x170] sm:$0xff]
    %v5123 = vld [vmem:[#allocation16 + $0x178] sm:$0xff]
    %v5124 = vld [vmem:[#allocation16 + $0x180] sm:$0xff]
    %v5125 = vld [vmem:[#allocation16 + $0x188] sm:$0xff]
    %v5126 = vld [vmem:[#allocation16 + $0x190] sm:$0xff]
    %v5127 = vld [vmem:[#allocation16 + $0x198] sm:$0xff]
    %v5128 = vld [vmem:[#allocation16 + $0x1a0] sm:$0xff]
    %v5129 = vld [vmem:[#allocation16 + $0x1a8] sm:$0xff]
    %v5130 = vld [vmem:[#allocation16 + $0x1b0] sm:$0xff]
    %v5131 = vld [vmem:[#allocation16 + $0x1b8] sm:$0xff]
    %v5132 = vld [vmem:[#allocation16 + $0x1c0] sm:$0xff]
    %v5133 = vld [vmem:[#allocation16 + $0x1c8] sm:$0xff]
    %v5134 = vld [vmem:[#allocation16 + $0x1d0] sm:$0xff]
    %v5135 = vld [vmem:[#allocation16 + $0x1d8] sm:$0xff]
    %v5136 = vld [vmem:[#allocation16 + $0x1e0] sm:$0xff]
    %v5137 = vld [vmem:[#allocation16 + $0x1e8] sm:$0xff]
    %v5138 = vld [vmem:[#allocation16 + $0x1f0] sm:$0xff]
    %v5139 = vld [vmem:[#allocation16 + $0x1f8] sm:$0xff]
    %v5140 = vld [vmem:[#allocation16 + $0x200] sm:$0xff]
    %v5141 = vld [vmem:[#allocation16 + $0x208] sm:$0xff]
    %v5142 = vld [vmem:[#allocation16 + $0x210] sm:$0xff]
    %v5143 = vld [vmem:[#allocation16 + $0x218] sm:$0xff]
    %v5144 = vld [vmem:[#allocation16 + $0x220] sm:$0xff]
    %v5145 = vld [vmem:[#allocation16 + $0x228] sm:$0xff]
    %v5146 = vld [vmem:[#allocation16 + $0x230] sm:$0xff]
    %v5147 = vld [vmem:[#allocation16 + $0x238] sm:$0xff]
    %v5148 = vld [vmem:[#allocation16 + $0x240] sm:$0xff]
    %v5149 = vld [vmem:[#allocation16 + $0x248] sm:$0xff]
    %v5150 = vld [vmem:[#allocation16 + $0x250] sm:$0xff]
    %v5151 = vld [vmem:[#allocation16 + $0x258] sm:$0xff]
    %v5152 = vld [vmem:[#allocation16 + $0x260] sm:$0xff]
    %v5153 = vld [vmem:[#allocation16 + $0x268] sm:$0xff]
    %v5154 = vld [vmem:[#allocation16 + $0x270] sm:$0xff]
    %v5155 = vld [vmem:[#allocation16 + $0x278] sm:$0xff]
    %v5156 = vld [vmem:[#allocation16 + $0x280] sm:$0xff]
    %v5157 = vld [vmem:[#allocation16 + $0x288] sm:$0xff]
    %v5158 = vld [vmem:[#allocation16 + $0x290] sm:$0xff]
    %v5159 = vld [vmem:[#allocation16 + $0x298] sm:$0xff]
    %v5160 = vld [vmem:[#allocation16 + $0x2a0] sm:$0xff]
    %v5161 = vld [vmem:[#allocation16 + $0x2a8] sm:$0xff]
    %v5162 = vld [vmem:[#allocation16 + $0x2b0] sm:$0xff]
    %v5163 = vld [vmem:[#allocation16 + $0x2b8] sm:$0xff]
    %v5164 = vld [vmem:[#allocation16 + $0x2c0] sm:$0xff]
    %v5165 = vld [vmem:[#allocation16 + $0x2c8] sm:$0xff]
    %v5166 = vld [vmem:[#allocation16 + $0x2d0] sm:$0xff]
    %v5167 = vld [vmem:[#allocation16 + $0x2d8] sm:$0xff]
    %v5168 = vld [vmem:[#allocation16 + $0x2e0] sm:$0xff]
    %v5169 = vld [vmem:[#allocation16 + $0x2e8] sm:$0xff]
    %v5170 = vld [vmem:[#allocation16 + $0x2f0] sm:$0xff]
    %v5171 = vld [vmem:[#allocation16 + $0x2f8] sm:$0xff]
    %v5172 = vld [vmem:[#allocation16 + $0x300] sm:$0xff]
    %v5173 = vld [vmem:[#allocation16 + $0x308] sm:$0xff]
    %v5174 = vld [vmem:[#allocation16 + $0x310] sm:$0xff]
    %v5175 = vld [vmem:[#allocation16 + $0x318] sm:$0xff]
    %v5176 = vld [vmem:[#allocation16 + $0x320] sm:$0xff]
    %v5177 = vld [vmem:[#allocation16 + $0x328] sm:$0xff]
    %v5178 = vld [vmem:[#allocation16 + $0x330] sm:$0xff]
    %v5179 = vld [vmem:[#allocation16 + $0x338] sm:$0xff]
    %v5180 = vld [vmem:[#allocation16 + $0x340] sm:$0xff]
    %v5181 = vld [vmem:[#allocation16 + $0x348] sm:$0xff]
    %v5182 = vld [vmem:[#allocation16 + $0x350] sm:$0xff]
    %v5183 = vld [vmem:[#allocation16 + $0x358] sm:$0xff]
    %v5184 = vld [vmem:[#allocation16 + $0x360] sm:$0xff]
    %v5185 = vld [vmem:[#allocation16 + $0x368] sm:$0xff]
    %v5186 = vld [vmem:[#allocation16 + $0x370] sm:$0xff]
    %v5187 = vld [vmem:[#allocation16 + $0x378] sm:$0xff]
    %v5188 = vld [vmem:[#allocation16 + $0x380] sm:$0xff]
    %v5189 = vld [vmem:[#allocation16 + $0x388] sm:$0xff]
    %v5190 = vld [vmem:[#allocation16 + $0x390] sm:$0xff]
    %v5191 = vld [vmem:[#allocation16 + $0x398] sm:$0xff]
    %v5192 = vld [vmem:[#allocation16 + $0x3a0] sm:$0xff]
    %v5193 = vld [vmem:[#allocation16 + $0x3a8] sm:$0xff]
    %v5194 = vld [vmem:[#allocation16 + $0x3b0] sm:$0xff]
    %v5195 = vld [vmem:[#allocation16 + $0x3b8] sm:$0xff]
    %v5196 = vld [vmem:[#allocation16 + $0x3c0] sm:$0xff]
    %v5197 = vld [vmem:[#allocation16 + $0x3c8] sm:$0xff]
    %v5198 = vld [vmem:[#allocation16 + $0x3d0] sm:$0xff]
    %v5199 = vld [vmem:[#allocation16 + $0x3d8] sm:$0xff]
    %v5200 = vld [vmem:[#allocation16 + $0x3e0] sm:$0xff]
    %v5201 = vld [vmem:[#allocation16 + $0x3e8] sm:$0xff]
    %v5202 = vld [vmem:[#allocation16 + $0x3f0] sm:$0xff]
    %v5203 = vld [vmem:[#allocation16 + $0x3f8] sm:$0xff]
    %v5204 = vld [vmem:[#allocation16 + $0x400] sm:$0xff]
    %v5205 = vld [vmem:[#allocation16 + $0x408] sm:$0xff]
    %v5206 = vld [vmem:[#allocation16 + $0x410] sm:$0xff]
    %v5207 = vld [vmem:[#allocation16 + $0x418] sm:$0xff]
    %v5208 = vld [vmem:[#allocation16 + $0x420] sm:$0xff]
    %v5209 = vld [vmem:[#allocation16 + $0x428] sm:$0xff]
    %v5210 = vld [vmem:[#allocation16 + $0x430] sm:$0xff]
    %v5211 = vld [vmem:[#allocation16 + $0x438] sm:$0xff]
    %v5212 = vld [vmem:[#allocation16 + $0x440] sm:$0xff]
    %v5213 = vld [vmem:[#allocation16 + $0x448] sm:$0xff]
    %v5214 = vld [vmem:[#allocation16 + $0x450] sm:$0xff]
    %v5215 = vld [vmem:[#allocation16 + $0x458] sm:$0xff]
    %v5216 = vld [vmem:[#allocation16 + $0x460] sm:$0xff]
    %v5217 = vld [vmem:[#allocation16 + $0x468] sm:$0xff]
    %v5218 = vld [vmem:[#allocation16 + $0x470] sm:$0xff]
    %v5219 = vld [vmem:[#allocation16 + $0x478] sm:$0xff]
    %v5220 = vld [vmem:[#allocation16 + $0x480] sm:$0xff]
    %v5221 = vld [vmem:[#allocation16 + $0x488] sm:$0xff]
    %v5222 = vld [vmem:[#allocation16 + $0x490] sm:$0xff]
    %v5223 = vld [vmem:[#allocation16 + $0x498] sm:$0xff]
    %v5224 = vld [vmem:[#allocation16 + $0x4a0] sm:$0xff]
    %v5225 = vld [vmem:[#allocation16 + $0x4a8] sm:$0xff]
    %v5226 = vld [vmem:[#allocation16 + $0x4b0] sm:$0xff]
    %v5227 = vld [vmem:[#allocation16 + $0x4b8] sm:$0xff]
    %v5228 = vld [vmem:[#allocation16 + $0x4c0] sm:$0xff]
    %v5229 = vld [vmem:[#allocation16 + $0x4c8] sm:$0xff]
    %v5230 = vld [vmem:[#allocation16 + $0x4d0] sm:$0xff]
    %v5231 = vld [vmem:[#allocation16 + $0x4d8] sm:$0xff]
    %v5232 = vld [vmem:[#allocation16 + $0x4e0] sm:$0xff]
    %v5233 = vld [vmem:[#allocation16 + $0x4e8] sm:$0xff]
    %v5234 = vld [vmem:[#allocation16 + $0x4f0] sm:$0xff]
    %v5235 = vld [vmem:[#allocation16 + $0x4f8] sm:$0xff]
    %v5236 = vld [vmem:[#allocation16 + $0x500] sm:$0xff]
    %v5237 = vld [vmem:[#allocation16 + $0x508] sm:$0xff]
    %v5238 = vld [vmem:[#allocation16 + $0x510] sm:$0xff]
    %v5239 = vld [vmem:[#allocation16 + $0x518] sm:$0xff]
    %v5240 = vld [vmem:[#allocation16 + $0x520] sm:$0xff]
    %v5241 = vld [vmem:[#allocation16 + $0x528] sm:$0xff]
    %v5242 = vld [vmem:[#allocation16 + $0x530] sm:$0xff]
    %v5243 = vld [vmem:[#allocation16 + $0x538] sm:$0xff]
    %v5244 = vld [vmem:[#allocation16 + $0x540] sm:$0xff]
    %v5245 = vld [vmem:[#allocation16 + $0x548] sm:$0xff]
    %v5246 = vld [vmem:[#allocation16 + $0x550] sm:$0xff]
    %v5247 = vld [vmem:[#allocation16 + $0x558] sm:$0xff]
    %v5248 = vld [vmem:[#allocation16 + $0x560] sm:$0xff]
    %v5249 = vld [vmem:[#allocation16 + $0x568] sm:$0xff]
    %v5250 = vld [vmem:[#allocation16 + $0x570] sm:$0xff]
    %v5251 = vld [vmem:[#allocation16 + $0x578] sm:$0xff]
    %v5252 = vld [vmem:[#allocation16 + $0x580] sm:$0xff]
    %v5253 = vld [vmem:[#allocation16 + $0x588] sm:$0xff]
    %v5254 = vld [vmem:[#allocation16 + $0x590] sm:$0xff]
    %v5255 = vld [vmem:[#allocation16 + $0x598] sm:$0xff]
    %v5256 = vld [vmem:[#allocation16 + $0x5a0] sm:$0xff]
    %v5257 = vld [vmem:[#allocation16 + $0x5a8] sm:$0xff]
    %v5258 = vld [vmem:[#allocation16 + $0x5b0] sm:$0xff]
    %v5259 = vld [vmem:[#allocation16 + $0x5b8] sm:$0xff]
    %v5260 = vld [vmem:[#allocation16 + $0x5c0] sm:$0xff]
    %v5261 = vld [vmem:[#allocation16 + $0x5c8] sm:$0xff]
    %v5262 = vld [vmem:[#allocation16 + $0x5d0] sm:$0xff]
    %v5263 = vld [vmem:[#allocation16 + $0x5d8] sm:$0xff]
    %v5264 = vld [vmem:[#allocation16 + $0x5e0] sm:$0xff]
    %v5265 = vld [vmem:[#allocation16 + $0x5e8] sm:$0xff]
    %v5266 = vld [vmem:[#allocation16 + $0x5f0] sm:$0xff]
    %v5267 = vld [vmem:[#allocation16 + $0x5f8] sm:$0xff]
    %v5268 = vld [vmem:[#allocation16 + $0x600] sm:$0xff]
    %v5269 = vld [vmem:[#allocation16 + $0x608] sm:$0xff]
    %v5270 = vld [vmem:[#allocation16 + $0x610] sm:$0xff]
    %v5271 = vld [vmem:[#allocation16 + $0x618] sm:$0xff]
    %v5272 = vld [vmem:[#allocation16 + $0x620] sm:$0xff]
    %v5273 = vld [vmem:[#allocation16 + $0x628] sm:$0xff]
    %v5274 = vld [vmem:[#allocation16 + $0x630] sm:$0xff]
    %v5275 = vld [vmem:[#allocation16 + $0x638] sm:$0xff]
    %v5276 = vld [vmem:[#allocation16 + $0x640] sm:$0xff]
    %v5277 = vld [vmem:[#allocation16 + $0x648] sm:$0xff]
    %v5278 = vld [vmem:[#allocation16 + $0x650] sm:$0xff]
    %v5279 = vld [vmem:[#allocation16 + $0x658] sm:$0xff]
    %v5280 = vld [vmem:[#allocation16 + $0x660] sm:$0xff]
    %v5281 = vld [vmem:[#allocation16 + $0x668] sm:$0xff]
    %v5282 = vld [vmem:[#allocation16 + $0x670] sm:$0xff]
    %v5283 = vld [vmem:[#allocation16 + $0x678] sm:$0xff]
    %v5284 = vld [vmem:[#allocation16 + $0x680] sm:$0xff]
    %v5285 = vld [vmem:[#allocation16 + $0x688] sm:$0xff]
    %v5286 = vld [vmem:[#allocation16 + $0x690] sm:$0xff]
    %v5287 = vld [vmem:[#allocation16 + $0x698] sm:$0xff]
    %v5288 = vld [vmem:[#allocation16 + $0x6a0] sm:$0xff]
    %v5289 = vld [vmem:[#allocation16 + $0x6a8] sm:$0xff]
    %v5290 = vld [vmem:[#allocation16 + $0x6b0] sm:$0xff]
    %v5291 = vld [vmem:[#allocation16 + $0x6b8] sm:$0xff]
    %v5292 = vld [vmem:[#allocation16 + $0x6c0] sm:$0xff]
    %v5293 = vld [vmem:[#allocation16 + $0x6c8] sm:$0xff]
    %v5294 = vld [vmem:[#allocation16 + $0x6d0] sm:$0xff]
    %v5295 = vld [vmem:[#allocation16 + $0x6d8] sm:$0xff]
    %v5296 = vld [vmem:[#allocation16 + $0x6e0] sm:$0xff]
    %v5297 = vld [vmem:[#allocation16 + $0x6e8] sm:$0xff]
    %v5298 = vld [vmem:[#allocation16 + $0x6f0] sm:$0xff]
    %v5299 = vld [vmem:[#allocation16 + $0x6f8] sm:$0xff]
    %v5300 = vld [vmem:[#allocation16 + $0x700] sm:$0xff]
    %v5301 = vld [vmem:[#allocation16 + $0x708] sm:$0xff]
    %v5302 = vld [vmem:[#allocation16 + $0x710] sm:$0xff]
    %v5303 = vld [vmem:[#allocation16 + $0x718] sm:$0xff]
    %v5304 = vld [vmem:[#allocation16 + $0x720] sm:$0xff]
    %v5305 = vld [vmem:[#allocation16 + $0x728] sm:$0xff]
    %v5306 = vld [vmem:[#allocation16 + $0x730] sm:$0xff]
    %v5307 = vld [vmem:[#allocation16 + $0x738] sm:$0xff]
    %v5308 = vld [vmem:[#allocation16 + $0x740] sm:$0xff]
    %v5309 = vld [vmem:[#allocation16 + $0x748] sm:$0xff]
    %v5310 = vld [vmem:[#allocation16 + $0x750] sm:$0xff]
    %v5311 = vld [vmem:[#allocation16 + $0x758] sm:$0xff]
    %v5312 = vld [vmem:[#allocation16 + $0x760] sm:$0xff]
    %v5313 = vld [vmem:[#allocation16 + $0x768] sm:$0xff]
    %v5314 = vld [vmem:[#allocation16 + $0x770] sm:$0xff]
    %v5315 = vld [vmem:[#allocation16 + $0x778] sm:$0xff]
    %v5316 = vld [vmem:[#allocation16 + $0x780] sm:$0xff]
    %v5317 = vld [vmem:[#allocation16 + $0x788] sm:$0xff]
    %v5318 = vld [vmem:[#allocation16 + $0x790] sm:$0xff]
    %v5319 = vld [vmem:[#allocation16 + $0x798] sm:$0xff]
    %v5320 = vld [vmem:[#allocation16 + $0x7a0] sm:$0xff]
    %v5321 = vld [vmem:[#allocation16 + $0x7a8] sm:$0xff]
    %v5322 = vld [vmem:[#allocation16 + $0x7b0] sm:$0xff]
    %v5323 = vld [vmem:[#allocation16 + $0x7b8] sm:$0xff]
    %v5324 = vld [vmem:[#allocation16 + $0x7c0] sm:$0xff]
    %v5325 = vld [vmem:[#allocation16 + $0x7c8] sm:$0xff]
    %v5326 = vld [vmem:[#allocation16 + $0x7d0] sm:$0xff]
    %v5327 = vld [vmem:[#allocation16 + $0x7d8] sm:$0xff]
    %v5328 = vld [vmem:[#allocation16 + $0x7e0] sm:$0xff]
    %v5329 = vld [vmem:[#allocation16 + $0x7e8] sm:$0xff]
    %v5330 = vld [vmem:[#allocation16 + $0x7f0] sm:$0xff]
    %v5331 = vld [vmem:[#allocation16 + $0x7f8] sm:$0xff]
    %v5332 = vld [vmem:[#allocation17] sm:$0xf]
    %v5334 = vlaneseq
    %v5335 = vshrl.u32 %v5334, 7
    %v5336 = vsub.s32 0, %v5335
    %v5337 = vrot.slane %v5332, %v5336
    %v5338 = vlaneseq
    %v5339 = vshrl.u32 %v5338, 7
    %v5340 = vsub.s32 1, %v5339
    %v5341 = vrot.slane %v5332, %v5340
    %v5342 = vlaneseq
    %v5343 = vshrl.u32 %v5342, 7
    %v5344 = vsub.s32 2, %v5343
    %v5345 = vrot.slane %v5332, %v5344
    %v5346 = vlaneseq
    %v5347 = vshrl.u32 %v5346, 7
    %v5348 = vsub.s32 3, %v5347
    %v5349 = vrot.slane %v5332, %v5348
    %5354 = vmatprep.subr.mxu0 %v5077
    %5355 = vmatpush1.msra.mxu0 %v5076
    %5356 = vmatprep.subr.mxu0 %v5081
    %5357 = vmatpush1.msra.mxu0 %v5080
    %5358 = vmatprep.subr.mxu0 %v5085
    %5359 = vmatpush1.msra.mxu0 %v5084
    %5360 = vmatprep.subr.mxu0 %v5089
    %5361 = vmatpush1.msra.mxu0 %v5088
    %5362 = vmatprep.subr.mxu0 %v5093
    %5363 = vmatpush1.msra.mxu0 %v5092
    %5364 = vmatprep.subr.mxu0 %v5097
    %5365 = vmatpush1.msra.mxu0 %v5096
    %5366 = vmatprep.subr.mxu0 %v5101
    %5367 = vmatpush1.msra.mxu0 %v5100
    %5368 = vmatprep.subr.mxu0 %v5105
    %5369 = vmatpush1.msra.mxu0 %v5104
    %5370 = vmatprep.subr.mxu0 %v5109
    %5371 = vmatpush1.msra.mxu0 %v5108
    %5372 = vmatprep.subr.mxu0 %v5113
    %5373 = vmatpush1.msra.mxu0 %v5112
    %5374 = vmatprep.subr.mxu0 %v5117
    %5375 = vmatpush1.msra.mxu0 %v5116
    %5376 = vmatprep.subr.mxu0 %v5121
    %5377 = vmatpush1.msra.mxu0 %v5120
    %5378 = vmatprep.subr.mxu0 %v5125
    %5379 = vmatpush1.msra.mxu0 %v5124
    %5380 = vmatprep.subr.mxu0 %v5129
    %5381 = vmatpush1.msra.mxu0 %v5128
    %5382 = vmatprep.subr.mxu0 %v5133
    %5383 = vmatpush1.msra.mxu0 %v5132
    %5384 = vmatprep.subr.mxu0 %v5137
    %5385 = vmatpush1.msra.mxu0 %v5136
    %5386 = vmatprep.subr.mxu0 %v5141
    %5387 = vmatpush1.msra.mxu0 %v5140
    %5388 = vmatprep.subr.mxu0 %v5145
    %5389 = vmatpush1.msra.mxu0 %v5144
    %5390 = vmatprep.subr.mxu0 %v5149
    %5391 = vmatpush1.msra.mxu0 %v5148
    %5392 = vmatprep.subr.mxu0 %v5153
    %5393 = vmatpush1.msra.mxu0 %v5152
    %5394 = vmatprep.subr.mxu0 %v5157
    %5395 = vmatpush1.msra.mxu0 %v5156
    %5396 = vmatprep.subr.mxu0 %v5161
    %5397 = vmatpush1.msra.mxu0 %v5160
    %5398 = vmatprep.subr.mxu0 %v5165
    %5399 = vmatpush1.msra.mxu0 %v5164
    %5400 = vmatprep.subr.mxu0 %v5169
    %5401 = vmatpush1.msra.mxu0 %v5168
    %5402 = vmatprep.subr.mxu0 %v5173
    %5403 = vmatpush1.msra.mxu0 %v5172
    %5404 = vmatprep.subr.mxu0 %v5177
    %5405 = vmatpush1.msra.mxu0 %v5176
    %5406 = vmatprep.subr.mxu0 %v5181
    %5407 = vmatpush1.msra.mxu0 %v5180
    %5408 = vmatprep.subr.mxu0 %v5185
    %5409 = vmatpush1.msra.mxu0 %v5184
    %5410 = vmatprep.subr.mxu0 %v5189
    %5411 = vmatpush1.msra.mxu0 %v5188
    %5412 = vmatprep.subr.mxu0 %v5193
    %5413 = vmatpush1.msra.mxu0 %v5192
    %5414 = vmatprep.subr.mxu0 %v5197
    %5415 = vmatpush1.msra.mxu0 %v5196
    %5416 = vmatprep.subr.mxu0 %v5201
    %5417 = vmatpush1.msra.mxu0 %v5200
    %5418 = vmatprep.mubr.f32.mxu0 %v5065
    %5419 = vmatmul.mubr.f32.gmra.mrb[0].mxu0 %v5064
    %v5420 = vpop.f32.mrb[0].mxu0
    %v5421 = vadd.f32 %v5337, %v5420
    %v5422 = vpop.f32.mrb[0].mxu0
    %v5423 = vadd.f32 %v5341, %v5422
    %5424 = vmatprep.mubr.f32.mxu0 %v5069
    %5425 = vmatmul.mubr.f32.gmra.mrb[0].mxu0 %v5068
    %v5426 = vpop.f32.mrb[0].mxu0
    %v5427 = vadd.f32 %v5337, %v5426
    %v5428 = vpop.f32.mrb[0].mxu0
    %v5429 = vadd.f32 %v5341, %v5428
    %5430 = vmatprep.mubr.f32.mxu0 %v5073
    %5431 = vmatmul.mubr.f32.gmra.mrb[0].mxu0 %v5072
    %v5432 = vpop.f32.mrb[0].mxu0
    %v5433 = vadd.f32 %v5337, %v5432
    %v5434 = vpop.f32.mrb[0].mxu0
    %v5435 = vadd.f32 %v5341, %v5434
    %5436 = vdwg.mxu0
    %5437 = vmatprep.subr.mxu0 %v5205
    %5438 = vmatpush1.msra.mxu0 %v5204
    %5439 = vmatprep.subr.mxu0 %v5209
    %5440 = vmatpush1.msra.mxu0 %v5208
    %5441 = vmatprep.subr.mxu0 %v5213
    %5442 = vmatpush1.msra.mxu0 %v5212
    %5443 = vmatprep.subr.mxu0 %v5217
    %5444 = vmatpush1.msra.mxu0 %v5216
    %5445 = vmatprep.subr.mxu0 %v5221
    %5446 = vmatpush1.msra.mxu0 %v5220
    %5447 = vmatprep.subr.mxu0 %v5225
    %5448 = vmatpush1.msra.mxu0 %v5224
    %5449 = vmatprep.subr.mxu0 %v5229
    %5450 = vmatpush1.msra.mxu0 %v5228
    %5451 = vmatprep.subr.mxu0 %v5233
    %5452 = vmatpush1.msra.mxu0 %v5232
    %5453 = vmatprep.subr.mxu0 %v5237
    %5454 = vmatpush1.msra.mxu0 %v5236
    %5455 = vmatprep.subr.mxu0 %v5241
    %5456 = vmatpush1.msra.mxu0 %v5240
    %5457 = vmatprep.subr.mxu0 %v5245
    %5458 = vmatpush1.msra.mxu0 %v5244
    %5459 = vmatprep.subr.mxu0 %v5249
    %5460 = vmatpush1.msra.mxu0 %v5248
    %5461 = vmatprep.subr.mxu0 %v5253
    %5462 = vmatpush1.msra.mxu0 %v5252
    %5463 = vmatprep.subr.mxu0 %v5257
    %5464 = vmatpush1.msra.mxu0 %v5256
    %5465 = vmatprep.subr.mxu0 %v5261
    %5466 = vmatpush1.msra.mxu0 %v5260
    %5467 = vmatprep.subr.mxu0 %v5265
    %5468 = vmatpush1.msra.mxu0 %v5264
    %5469 = vmatprep.subr.mxu0 %v5269
    %5470 = vmatpush1.msra.mxu0 %v5268
    %5471 = vmatprep.subr.mxu0 %v5273
    %5472 = vmatpush1.msra.mxu0 %v5272
    %5473 = vmatprep.subr.mxu0 %v5277
    %5474 = vmatpush1.msra.mxu0 %v5276
    %5475 = vmatprep.subr.mxu0 %v5281
    %5476 = vmatpush1.msra.mxu0 %v5280
    %5477 = vmatprep.subr.mxu0 %v5285
    %5478 = vmatpush1.msra.mxu0 %v5284
    %5479 = vmatprep.subr.mxu0 %v5289
    %5480 = vmatpush1.msra.mxu0 %v5288
    %5481 = vmatprep.subr.mxu0 %v5293
    %5482 = vmatpush1.msra.mxu0 %v5292
    %5483 = vmatprep.subr.mxu0 %v5297
    %5484 = vmatpush1.msra.mxu0 %v5296
    %5485 = vmatprep.subr.mxu0 %v5301
    %5486 = vmatpush1.msra.mxu0 %v5300
    %5487 = vmatprep.subr.mxu0 %v5305
    %5488 = vmatpush1.msra.mxu0 %v5304
    %5489 = vmatprep.subr.mxu0 %v5309
    %5490 = vmatpush1.msra.mxu0 %v5308
    %5491 = vmatprep.subr.mxu0 %v5313
    %5492 = vmatpush1.msra.mxu0 %v5312
    %5493 = vmatprep.subr.mxu0 %v5317
    %5494 = vmatpush1.msra.mxu0 %v5316
    %5495 = vmatprep.subr.mxu0 %v5321
    %5496 = vmatpush1.msra.mxu0 %v5320
    %5497 = vmatprep.subr.mxu0 %v5325
    %5498 = vmatpush1.msra.mxu0 %v5324
    %5499 = vmatprep.subr.mxu0 %v5329
    %5500 = vmatpush1.msra.mxu0 %v5328
    %5501 = vmatprep.mubr.f32.mxu0 %v5067
    %5502 = vmatmul.mubr.f32.gmra.mrb[0].mxu0 %v5066
    %v5503 = vpop.f32.mrb[0].mxu0
    %v5504 = vadd.f32 %v5421, %v5503
    %v5505 = vpop.f32.mrb[0].mxu0
    %v5506 = vadd.f32 %v5423, %v5505
    %5507 = vmatprep.mubr.f32.mxu0 %v5071
    %5508 = vmatmul.mubr.f32.gmra.mrb[0].mxu0 %v5070
    %v5509 = vpop.f32.mrb[0].mxu0
    %v5510 = vadd.f32 %v5427, %v5509
    %v5511 = vpop.f32.mrb[0].mxu0
    %v5512 = vadd.f32 %v5429, %v5511
    %5513 = vmatprep.mubr.f32.mxu0 %v5075
    %5514 = vmatmul.mubr.f32.gmra.mrb[0].mxu0 %v5074
    %v5515 = vpop.f32.mrb[0].mxu0
    %v5516 = vadd.f32 %v5433, %v5515
    %v5517 = vpop.f32.mrb[0].mxu0
    %v5518 = vadd.f32 %v5435, %v5517
    %5519 = vdwg.mxu0
    %5520 = vmatprep.subr.mxu0 %v5079
    %5521 = vmatpush1.msra.mxu0 %v5078
    %5522 = vmatprep.subr.mxu0 %v5083
    %5523 = vmatpush1.msra.mxu0 %v5082
    %5524 = vmatprep.subr.mxu0 %v5087
    %5525 = vmatpush1.msra.mxu0 %v5086
    %5526 = vmatprep.subr.mxu0 %v5091
    %5527 = vmatpush1.msra.mxu0 %v5090
    %5528 = vmatprep.subr.mxu0 %v5095
    %5529 = vmatpush1.msra.mxu0 %v5094
    %5530 = vmatprep.subr.mxu0 %v5099
    %5531 = vmatpush1.msra.mxu0 %v5098
    %5532 = vmatprep.subr.mxu0 %v5103
    %5533 = vmatpush1.msra.mxu0 %v5102
    %5534 = vmatprep.subr.mxu0 %v5107
    %5535 = vmatpush1.msra.mxu0 %v5106
    %5536 = vmatprep.subr.mxu0 %v5111
    %5537 = vmatpush1.msra.mxu0 %v5110
    %5538 = vmatprep.subr.mxu0 %v5115
    %5539 = vmatpush1.msra.mxu0 %v5114
    %5540 = vmatprep.subr.mxu0 %v5119
    %5541 = vmatpush1.msra.mxu0 %v5118
    %5542 = vmatprep.subr.mxu0 %v5123
    %5543 = vmatpush1.msra.mxu0 %v5122
    %5544 = vmatprep.subr.mxu0 %v5127
    %5545 = vmatpush1.msra.mxu0 %v5126
    %5546 = vmatprep.subr.mxu0 %v5131
    %5547 = vmatpush1.msra.mxu0 %v5130
    %5548 = vmatprep.subr.mxu0 %v5135
    %5549 = vmatpush1.msra.mxu0 %v5134
    %5550 = vmatprep.subr.mxu0 %v5139
    %5551 = vmatpush1.msra.mxu0 %v5138
    %5552 = vmatprep.subr.mxu0 %v5143
    %5553 = vmatpush1.msra.mxu0 %v5142
    %5554 = vmatprep.subr.mxu0 %v5147
    %5555 = vmatpush1.msra.mxu0 %v5146
    %5556 = vmatprep.subr.mxu0 %v5151
    %5557 = vmatpush1.msra.mxu0 %v5150
    %5558 = vmatprep.subr.mxu0 %v5155
    %5559 = vmatpush1.msra.mxu0 %v5154
    %5560 = vmatprep.subr.mxu0 %v5159
    %5561 = vmatpush1.msra.mxu0 %v5158
    %5562 = vmatprep.subr.mxu0 %v5163
    %5563 = vmatpush1.msra.mxu0 %v5162
    %5564 = vmatprep.subr.mxu0 %v5167
    %5565 = vmatpush1.msra.mxu0 %v5166
    %5566 = vmatprep.subr.mxu0 %v5171
    %5567 = vmatpush1.msra.mxu0 %v5170
    %5568 = vmatprep.subr.mxu0 %v5175
    %5569 = vmatpush1.msra.mxu0 %v5174
    %5570 = vmatprep.subr.mxu0 %v5179
    %5571 = vmatpush1.msra.mxu0 %v5178
    %5572 = vmatprep.subr.mxu0 %v5183
    %5573 = vmatpush1.msra.mxu0 %v5182
    %5574 = vmatprep.subr.mxu0 %v5187
    %5575 = vmatpush1.msra.mxu0 %v5186
    %5576 = vmatprep.subr.mxu0 %v5191
    %5577 = vmatpush1.msra.mxu0 %v5190
    %5578 = vmatprep.subr.mxu0 %v5195
    %5579 = vmatpush1.msra.mxu0 %v5194
    %5580 = vmatprep.subr.mxu0 %v5199
    %5581 = vmatpush1.msra.mxu0 %v5198
    %5582 = vmatprep.subr.mxu0 %v5203
    %5583 = vmatpush1.msra.mxu0 %v5202
    %5584 = vmatprep.mubr.f32.mxu0 %v5065
    %5585 = vmatmul.mubr.f32.gmra.mrb[0].mxu0 %v5064
    %v5586 = vpop.f32.mrb[0].mxu0
    %v5587 = vadd.f32 %v5345, %v5586
    %v5588 = vpop.f32.mrb[0].mxu0
    %v5589 = vadd.f32 %v5349, %v5588
    %5590 = vmatprep.mubr.f32.mxu0 %v5069
    %5591 = vmatmul.mubr.f32.gmra.mrb[0].mxu0 %v5068
    %v5592 = vpop.f32.mrb[0].mxu0
    %v5593 = vadd.f32 %v5345, %v5592
    %v5594 = vpop.f32.mrb[0].mxu0
    %v5595 = vadd.f32 %v5349, %v5594
    %5596 = vmatprep.mubr.f32.mxu0 %v5073
    %5597 = vmatmul.mubr.f32.gmra.mrb[0].mxu0 %v5072
    %v5598 = vpop.f32.mrb[0].mxu0
    %v5599 = vadd.f32 %v5345, %v5598
    %v5600 = vpop.f32.mrb[0].mxu0
    %v5601 = vadd.f32 %v5349, %v5600
    %5602 = vdwg.mxu0
    %5603 = vmatprep.subr.mxu0 %v5207
    %5604 = vmatpush1.msra.mxu0 %v5206
    %5605 = vmatprep.subr.mxu0 %v5211
    %5606 = vmatpush1.msra.mxu0 %v5210
    %5607 = vmatprep.subr.mxu0 %v5215
    %5608 = vmatpush1.msra.mxu0 %v5214
    %5609 = vmatprep.subr.mxu0 %v5219
    %5610 = vmatpush1.msra.mxu0 %v5218
    %5611 = vmatprep.subr.mxu0 %v5223
    %5612 = vmatpush1.msra.mxu0 %v5222
    %5613 = vmatprep.subr.mxu0 %v5227
    %5614 = vmatpush1.msra.mxu0 %v5226
    %5615 = vmatprep.subr.mxu0 %v5231
    %5616 = vmatpush1.msra.mxu0 %v5230
    %5617 = vmatprep.subr.mxu0 %v5235
    %5618 = vmatpush1.msra.mxu0 %v5234
    %5619 = vmatprep.subr.mxu0 %v5239
    %5620 = vmatpush1.msra.mxu0 %v5238
    %5621 = vmatprep.subr.mxu0 %v5243
    %5622 = vmatpush1.msra.mxu0 %v5242
    %5623 = vmatprep.subr.mxu0 %v5247
    %5624 = vmatpush1.msra.mxu0 %v5246
    %5625 = vmatprep.subr.mxu0 %v5251
    %5626 = vmatpush1.msra.mxu0 %v5250
    %5627 = vmatprep.subr.mxu0 %v5255
    %5628 = vmatpush1.msra.mxu0 %v5254
    %5629 = vmatprep.subr.mxu0 %v5259
    %5630 = vmatpush1.msra.mxu0 %v5258
    %5631 = vmatprep.subr.mxu0 %v5263
    %5632 = vmatpush1.msra.mxu0 %v5262
    %5633 = vmatprep.subr.mxu0 %v5267
    %5634 = vmatpush1.msra.mxu0 %v5266
    %5635 = vmatprep.subr.mxu0 %v5271
    %5636 = vmatpush1.msra.mxu0 %v5270
    %5637 = vmatprep.subr.mxu0 %v5275
    %5638 = vmatpush1.msra.mxu0 %v5274
    %5639 = vmatprep.subr.mxu0 %v5279
    %5640 = vmatpush1.msra.mxu0 %v5278
    %5641 = vmatprep.subr.mxu0 %v5283
    %5642 = vmatpush1.msra.mxu0 %v5282
    %5643 = vmatprep.subr.mxu0 %v5287
    %5644 = vmatpush1.msra.mxu0 %v5286
    %5645 = vmatprep.subr.mxu0 %v5291
    %5646 = vmatpush1.msra.mxu0 %v5290
    %5647 = vmatprep.subr.mxu0 %v5295
    %5648 = vmatpush1.msra.mxu0 %v5294
    %5649 = vmatprep.subr.mxu0 %v5299
    %5650 = vmatpush1.msra.mxu0 %v5298
    %5651 = vmatprep.subr.mxu0 %v5303
    %5652 = vmatpush1.msra.mxu0 %v5302
    %5653 = vmatprep.subr.mxu0 %v5307
    %5654 = vmatpush1.msra.mxu0 %v5306
    %5655 = vmatprep.subr.mxu0 %v5311
    %5656 = vmatpush1.msra.mxu0 %v5310
    %5657 = vmatprep.subr.mxu0 %v5315
    %5658 = vmatpush1.msra.mxu0 %v5314
    %5659 = vmatprep.subr.mxu0 %v5319
    %5660 = vmatpush1.msra.mxu0 %v5318
    %5661 = vmatprep.subr.mxu0 %v5323
    %5662 = vmatpush1.msra.mxu0 %v5322
    %5663 = vmatprep.subr.mxu0 %v5327
    %5664 = vmatpush1.msra.mxu0 %v5326
    %5665 = vmatprep.subr.mxu0 %v5331
    %5666 = vmatpush1.msra.mxu0 %v5330
    %5667 = vmatprep.mubr.f32.mxu0 %v5067
    %5668 = vmatmul.mubr.f32.gmra.mrb[0].mxu0 %v5066
    %v5669 = vpop.f32.mrb[0].mxu0
    %v5670 = vadd.f32 %v5587, %v5669
    %v5671 = vpop.f32.mrb[0].mxu0
    %v5672 = vadd.f32 %v5589, %v5671
    %5673 = vmatprep.mubr.f32.mxu0 %v5071
    %5674 = vmatmul.mubr.f32.gmra.mrb[0].mxu0 %v5070
    %v5675 = vpop.f32.mrb[0].mxu0
    %v5676 = vadd.f32 %v5593, %v5675
    %v5677 = vpop.f32.mrb[0].mxu0
    %v5678 = vadd.f32 %v5595, %v5677
    %5679 = vmatprep.mubr.f32.mxu0 %v5075
    %5680 = vmatmul.mubr.f32.gmra.mrb[0].mxu0 %v5074
    %v5681 = vpop.f32.mrb[0].mxu0
    %v5682 = vadd.f32 %v5599, %v5681
    %v5683 = vpop.f32.mrb[0].mxu0
    %v5684 = vadd.f32 %v5601, %v5683
    %5685 = vdwg.mxu0
    %v5686 = vmax.f32 %v5504, 0.0
    %v5687 = vmax.f32 %v5506, 0.0
    %v5688 = vmax.f32 %v5670, 0.0
    %v5689 = vmax.f32 %v5672, 0.0
    %v5690 = vmax.f32 %v5510, 0.0
    %v5691 = vmax.f32 %v5512, 0.0
    %v5692 = vmax.f32 %v5676, 0.0
    %v5693 = vmax.f32 %v5678, 0.0
    %v5694 = vmax.f32 %v5516, 0.0
    %v5695 = vmax.f32 %v5518, 0.0
    %v5696 = vmax.f32 %v5682, 0.0
    %v5697 = vmax.f32 %v5684, 0.0
    %v5698 = vadd.f32 %v5686, %v5690
    %v5699 = vsel %vm4031, %v5694, 0.0
    %v5700 = vadd.f32 %v5698, %v5699
    %v5701 = vrot.slane %v5700, 4
    %v5702 = vadd.f32 %v5700, %v5701
    %v5703 = vrot.slane %v5702, 2
    %v5704 = vadd.f32 %v5702, %v5703
    %v5705 = vrot.slane %v5704, 1
    %v5706 = vadd.f32 %v5704, %v5705
    %v5707 = vadd.f32 %v5687, %v5691
    %v5708 = vsel %vm4031, %v5695, 0.0
    %v5709 = vadd.f32 %v5707, %v5708
    %v5710 = vrot.slane %v5709, 4
    %v5711 = vadd.f32 %v5709, %v5710
    %v5712 = vrot.slane %v5711, 2
    %v5713 = vadd.f32 %v5711, %v5712
    %v5714 = vrot.slane %v5713, 1
    %v5715 = vadd.f32 %v5713, %v5714
    %v5716 = vadd.f32 %v5688, %v5692
    %v5717 = vsel %vm4031, %v5696, 0.0
    %v5718 = vadd.f32 %v5716, %v5717
    %v5719 = vrot.slane %v5718, 4
    %v5720 = vadd.f32 %v5718, %v5719
    %v5721 = vrot.slane %v5720, 2
    %v5722 = vadd.f32 %v5720, %v5721
    %v5723 = vrot.slane %v5722, 1
    %v5724 = vadd.f32 %v5722, %v5723
    %v5725 = vadd.f32 %v5689, %v5693
    %v5726 = vsel %vm4031, %v5697, 0.0
    %v5727 = vadd.f32 %v5725, %v5726
    %v5728 = vrot.slane %v5727, 4
    %v5729 = vadd.f32 %v5727, %v5728
    %v5730 = vrot.slane %v5729, 2
    %v5731 = vadd.f32 %v5729, %v5730
    %v5732 = vrot.slane %v5731, 1
    %v5733 = vadd.f32 %v5731, %v5732
    %v5734 = vrcp.pop 18.0
    %v5735 = vmul.f32 %v5706, %v5734
    %v5736 = vmul.f32 %v5715, %v5734
    %v5737 = vmul.f32 %v5724, %v5734
    %v5738 = vmul.f32 %v5733, %v5734
    %v5739 = vsub.f32 %v5686, %v5735
    %v5740 = vsub.f32 %v5687, %v5736
    %v5741 = vsub.f32 %v5688, %v5737
    %v5742 = vsub.f32 %v5689, %v5738
    %v5743 = vsub.f32 %v5690, %v5735
    %v5744 = vsub.f32 %v5691, %v5736
    %v5745 = vsub.f32 %v5692, %v5737
    %v5746 = vsub.f32 %v5693, %v5738
    %v5747 = vsub.f32 %v5694, %v5735
    %v5748 = vsub.f32 %v5695, %v5736
    %v5749 = vsub.f32 %v5696, %v5737
    %v5750 = vsub.f32 %v5697, %v5738
    %v5751 = vmul.f32 %v5739, %v5739
    %v5752 = vmul.f32 %v5740, %v5740
    %v5753 = vmul.f32 %v5741, %v5741
    %v5754 = vmul.f32 %v5742, %v5742
    %v5755 = vmul.f32 %v5743, %v5743
    %v5756 = vmul.f32 %v5744, %v5744
    %v5757 = vmul.f32 %v5745, %v5745
    %v5758 = vmul.f32 %v5746, %v5746
    %v5759 = vmul.f32 %v5747, %v5747
    %v5760 = vmul.f32 %v5748, %v5748
    %v5761 = vmul.f32 %v5749, %v5749
    %v5762 = vmul.f32 %v5750, %v5750
    %v5763 = vadd.f32 %v5751, %v5755
    %v5764 = vsel %vm4031, %v5759, 0.0
    %v5765 = vadd.f32 %v5763, %v5764
    %v5766 = vrot.slane %v5765, 4
    %v5767 = vadd.f32 %v5765, %v5766
    %v5768 = vrot.slane %v5767, 2
    %v5769 = vadd.f32 %v5767, %v5768
    %v5770 = vrot.slane %v5769, 1
    %v5771 = vadd.f32 %v5769, %v5770
    %v5772 = vadd.f32 %v5752, %v5756
    %v5773 = vsel %vm4031, %v5760, 0.0
    %v5774 = vadd.f32 %v5772, %v5773
    %v5775 = vrot.slane %v5774, 4
    %v5776 = vadd.f32 %v5774, %v5775
    %v5777 = vrot.slane %v5776, 2
    %v5778 = vadd.f32 %v5776, %v5777
    %v5779 = vrot.slane %v5778, 1
    %v5780 = vadd.f32 %v5778, %v5779
    %v5781 = vadd.f32 %v5753, %v5757
    %v5782 = vsel %vm4031, %v5761, 0.0
    %v5783 = vadd.f32 %v5781, %v5782
    %v5784 = vrot.slane %v5783, 4
    %v5785 = vadd.f32 %v5783, %v5784
    %v5786 = vrot.slane %v5785, 2
    %v5787 = vadd.f32 %v5785, %v5786
    %v5788 = vrot.slane %v5787, 1
    %v5789 = vadd.f32 %v5787, %v5788
    %v5790 = vadd.f32 %v5754, %v5758
    %v5791 = vsel %vm4031, %v5762, 0.0
    %v5792 = vadd.f32 %v5790, %v5791
    %v5793 = vrot.slane %v5792, 4
    %v5794 = vadd.f32 %v5792, %v5793
    %v5795 = vrot.slane %v5794, 2
    %v5796 = vadd.f32 %v5794, %v5795
    %v5797 = vrot.slane %v5796, 1
    %v5798 = vadd.f32 %v5796, %v5797
    %v5799 = vrcp.pop 17.0
    %v5800 = vmul.f32 %v5771, %v5799
    %v5801 = vmul.f32 %v5780, %v5799
    %v5802 = vmul.f32 %v5789, %v5799
    %v5803 = vmul.f32 %v5798, %v5799
    %v5804 = vrsqrt.pop %v5800
    %v5805 = vmul.f32 %v5800, %v5804
    %vm5806 = vcmp.eq.f32.partialorder %v5800, inf
    %v5807 = vsel %vm5806, %v5800, %v5805
    %vm5808 = vcmp.eq.f32.partialorder %v5800, 0.0
    %v5809 = vand.u32 %v5800, 2147483648
    %v5810 = vsel %vm5808, %v5809, %v5807
    %v5811 = vrsqrt.pop %v5801
    %v5812 = vmul.f32 %v5801, %v5811
    %vm5813 = vcmp.eq.f32.partialorder %v5801, inf
    %v5814 = vsel %vm5813, %v5801, %v5812
    %vm5815 = vcmp.eq.f32.partialorder %v5801, 0.0
    %v5816 = vand.u32 %v5801, 2147483648
    %v5817 = vsel %vm5815, %v5816, %v5814
    %v5818 = vrsqrt.pop %v5802
    %v5819 = vmul.f32 %v5802, %v5818
    %vm5820 = vcmp.eq.f32.partialorder %v5802, inf
    %v5821 = vsel %vm5820, %v5802, %v5819
    %vm5822 = vcmp.eq.f32.partialorder %v5802, 0.0
    %v5823 = vand.u32 %v5802, 2147483648
    %v5824 = vsel %vm5822, %v5823, %v5821
    %v5825 = vrsqrt.pop %v5803
    %v5826 = vmul.f32 %v5803, %v5825
    %vm5827 = vcmp.eq.f32.partialorder %v5803, inf
    %v5828 = vsel %vm5827, %v5803, %v5826
    %vm5829 = vcmp.eq.f32.partialorder %v5803, 0.0
    %v5830 = vand.u32 %v5803, 2147483648
    %v5831 = vsel %vm5829, %v5830, %v5828
    %v5832 = vadd.f32 %v5735, %v5810
    %v5833 = vadd.f32 %v5736, %v5817
    %v5834 = vadd.f32 %v5737, %v5824
    %v5835 = vadd.f32 %v5738, %v5831
    %s5836 = scalar_lea.vmem %s0, 32
    %v5837 = vld [vmem:[%s5836] sm:$0xff]
    %v5838 = vld [vmem:[%s5836 + $0x8] sm:$0xff]
    %v5839 = vld [vmem:[%s5836 + $0x10] sm:$0xff]
    %v5840 = vld [vmem:[%s5836 + $0x18] sm:$0xff]
    %v5845 = vrot.slane %v5837, 1
    %v5846 = vrot.slane %v5838, 1
    %v5847 = vsel %vm235, %v5845, %v5846
    %v5848 = vrot.slane %v5839, 1
    %v5849 = vsel %vm235, %v5846, %v5848
    %v5850 = vrot.slane %v5840, 1
    %v5851 = vsel %vm235, %v5848, %v5850
    %5852 = vrot.lane.b32.xlu0 %v5847, 23
    %v5853 = vpop.permute.xlu0 %5852
    %5854 = vrot.lane.b32.xlu0 %v5849, 23
    %v5855 = vpop.permute.xlu0 %5854
    %5856 = vrot.lane.b32.xlu0 %v5851, 23
    %v5857 = vpop.permute.xlu0 %5856
    %5858 = vrot.lane.b32.xlu0 %v5850, 23
    %v5859 = vpop.permute.xlu0 %5858
    %v5864 = vrot.slane %v5837, 2
    %v5865 = vrot.slane %v5838, 2
    %v5866 = vsel %vm255, %v5864, %v5865
    %v5867 = vrot.slane %v5839, 2
    %v5868 = vsel %vm255, %v5865, %v5867
    %v5869 = vrot.slane %v5840, 2
    %v5870 = vsel %vm255, %v5867, %v5869
    %5871 = vrot.lane.b32.xlu0 %v5866, 46
    %v5872 = vpop.permute.xlu0 %5871
    %5873 = vrot.lane.b32.xlu0 %v5868, 46
    %v5874 = vpop.permute.xlu0 %5873
    %5875 = vrot.lane.b32.xlu0 %v5870, 46
    %v5876 = vpop.permute.xlu0 %5875
    %5877 = vrot.lane.b32.xlu0 %v5869, 46
    %v5878 = vpop.permute.xlu0 %5877
    %v5883 = vrot.slane %v5837, 3
    %v5884 = vrot.slane %v5838, 3
    %v5885 = vsel %vm275, %v5883, %v5884
    %v5886 = vrot.slane %v5839, 3
    %v5887 = vsel %vm275, %v5884, %v5886
    %v5888 = vrot.slane %v5840, 3
    %v5889 = vsel %vm275, %v5886, %v5888
    %5890 = vrot.lane.b32.xlu0 %v5885, 69
    %v5891 = vpop.permute.xlu0 %5890
    %5892 = vrot.lane.b32.xlu0 %v5887, 69
    %v5893 = vpop.permute.xlu0 %5892
    %5894 = vrot.lane.b32.xlu0 %v5889, 69
    %v5895 = vpop.permute.xlu0 %5894
    %5896 = vrot.lane.b32.xlu0 %v5888, 69
    %v5897 = vpop.permute.xlu0 %5896
    %v5902 = vrot.slane %v5837, 4
    %v5903 = vrot.slane %v5838, 4
    %v5904 = vsel %vm295, %v5902, %v5903
    %v5905 = vrot.slane %v5839, 4
    %v5906 = vsel %vm295, %v5903, %v5905
    %v5907 = vrot.slane %v5840, 4
    %v5908 = vsel %vm295, %v5905, %v5907
    %5909 = vrot.lane.b32.xlu0 %v5904, 92
    %v5910 = vpop.permute.xlu0 %5909
    %5911 = vrot.lane.b32.xlu0 %v5906, 92
    %v5912 = vpop.permute.xlu0 %5911
    %5913 = vrot.lane.b32.xlu0 %v5908, 92
    %v5914 = vpop.permute.xlu0 %5913
    %5915 = vrot.lane.b32.xlu0 %v5907, 92
    %v5916 = vpop.permute.xlu0 %5915
    %v5921 = vsel %vm315, %v5837, %v5853
    %v5922 = vsel %vm315, %v5838, %v5855
    %v5923 = vsel %vm315, %v5839, %v5857
    %v5924 = vsel %vm315, %v5840, %v5859
    %v5925 = vsel %vm320, %v5921, %v5872
    %v5926 = vsel %vm320, %v5922, %v5874
    %v5927 = vsel %vm320, %v5923, %v5876
    %v5928 = vsel %vm320, %v5924, %v5878
    %v5929 = vsel %vm325, %v5925, %v5891
    %v5930 = vsel %vm325, %v5926, %v5893
    %v5931 = vsel %vm325, %v5927, %v5895
    %v5932 = vsel %vm325, %v5928, %v5897
    %v5933 = vsel %vm330, %v5929, %v5910
    %v5934 = vsel %vm330, %v5930, %v5912
    %v5935 = vsel %vm330, %v5931, %v5914
    %v5936 = vsel %vm330, %v5932, %v5916
    %v5938 = vsel %vm417, %v5933, 0
    %v5941 = vsel %vm417, %v5934, 0
    %v5944 = vsel %vm417, %v5935, 0
    %v5947 = vsel %vm417, %v5936, 0
    %5949 = vmatprep.subr.mxu0 %v336
    %5950 = vmatpush1.msra.mxu0 %v335
    %5951 = vmatprep.subr.mxu0 %v340
    %5952 = vmatpush1.msra.mxu0 %v339
    %5953 = vmatprep.subr.mxu0 %v344
    %5954 = vmatpush1.msra.mxu0 %v343
    %5955 = vmatprep.subr.mxu0 %v348
    %5956 = vmatpush1.msra.mxu0 %v347
    %5957 = vmatprep.subr.mxu0 %v352
    %5958 = vmatpush1.msra.mxu0 %v351
    %5959 = vmatprep.subr.mxu0 %v356
    %5960 = vmatpush1.msra.mxu0 %v355
    %5961 = vmatprep.subr.mxu0 %v360
    %5962 = vmatpush1.msra.mxu0 %v359
    %5963 = vmatprep.subr.mxu0 %v364
    %5964 = vmatpush1.msra.mxu0 %v363
    %5965 = vmatprep.subr.mxu0 %v368
    %5966 = vmatpush1.msra.mxu0 %v367
    %5967 = vmatprep.subr.mxu0 %v372
    %5968 = vmatpush1.msra.mxu0 %v371
    %5969 = vmatprep.subr.mxu0 %v376
    %5970 = vmatpush1.msra.mxu0 %v375
    %5971 = vmatprep.subr.mxu0 %v380
    %5972 = vmatpush1.msra.mxu0 %v379
    %5973 = vmatprep.subr.mxu0 %v384
    %5974 = vmatpush1.msra.mxu0 %v383
    %5975 = vmatprep.subr.mxu0 %v388
    %5976 = vmatpush1.msra.mxu0 %v387
    %5977 = vmatprep.subr.mxu0 %v435
    %5978 = vmatpush1.msra.mxu0 %v432
    %5979 = vmatprep.subr.mxu0 0.0
    %5980 = vmatpush1.msra.mxu0 0.0
    %5981 = vmatprep.subr.mxu0 0.0
    %5982 = vmatpush1.msra.mxu0 0.0
    %5983 = vmatprep.subr.mxu0 0.0
    %5984 = vmatpush1.msra.mxu0 0.0
    %5985 = vmatprep.subr.mxu0 0.0
    %5986 = vmatpush1.msra.mxu0 0.0
    %5987 = vmatprep.subr.mxu0 0.0
    %5988 = vmatpush1.msra.mxu0 0.0
    %5989 = vmatprep.subr.mxu0 0.0
    %5990 = vmatpush1.msra.mxu0 0.0
    %5991 = vmatprep.subr.mxu0 0.0
    %5992 = vmatpush1.msra.mxu0 0.0
    %5993 = vmatprep.subr.mxu0 0.0
    %5994 = vmatpush1.msra.mxu0 0.0
    %5995 = vmatprep.subr.mxu0 0.0
    %5996 = vmatpush1.msra.mxu0 0.0
    %5997 = vmatprep.subr.mxu0 0.0
    %5998 = vmatpush1.msra.mxu0 0.0
    %5999 = vmatprep.subr.mxu0 0.0
    %6000 = vmatpush1.msra.mxu0 0.0
    %6001 = vmatprep.subr.mxu0 0.0
    %6002 = vmatpush1.msra.mxu0 0.0
    %6003 = vmatprep.subr.mxu0 0.0
    %6004 = vmatpush1.msra.mxu0 0.0
    %6005 = vmatprep.subr.mxu0 0.0
    %6006 = vmatpush1.msra.mxu0 0.0
    %6007 = vmatprep.subr.mxu0 0.0
    %6008 = vmatpush1.msra.mxu0 0.0
    %6009 = vmatprep.subr.mxu0 0.0
    %6010 = vmatpush1.msra.mxu0 0.0
    %6011 = vmatprep.subr.mxu0 0.0
    %6012 = vmatpush1.msra.mxu0 0.0
    %6013 = vmatprep.mubr.f32.mxu0 0.0
    %6014 = vmatmul.mubr.f32.gmra.mrb[0].mxu0 %v5938
    %v6015 = vpop.f32.mrb[0].mxu0
    %v6016 = vadd.f32 %v400, %v6015
    %v6017 = vpop.f32.mrb[0].mxu0
    %v6018 = vadd.f32 %v404, %v6017
    %6019 = vmatprep.mubr.f32.mxu0 0.0
    %6020 = vmatmul.mubr.f32.gmra.mrb[0].mxu0 %v5941
    %v6021 = vpop.f32.mrb[0].mxu0
    %v6022 = vadd.f32 %v400, %v6021
    %v6023 = vpop.f32.mrb[0].mxu0
    %v6024 = vadd.f32 %v404, %v6023
    %6025 = vmatprep.mubr.f32.mxu0 0.0
    %6026 = vmatmul.mubr.f32.gmra.mrb[0].mxu0 %v5944
    %v6027 = vpop.f32.mrb[0].mxu0
    %v6028 = vadd.f32 %v400, %v6027
    %v6029 = vpop.f32.mrb[0].mxu0
    %v6030 = vadd.f32 %v404, %v6029
    %6031 = vmatprep.mubr.f32.mxu0 0.0
    %6032 = vmatmul.mubr.f32.gmra.mrb[0].mxu0 %v5947
    %v6033 = vpop.f32.mrb[0].mxu0
    %v6034 = vadd.f32 %v400, %v6033
    %v6035 = vpop.f32.mrb[0].mxu0
    %v6036 = vadd.f32 %v404, %v6035
    %6037 = vdwg.mxu0
    %6038 = vmatprep.subr.mxu0 %v338
    %6039 = vmatpush1.msra.mxu0 %v337
    %6040 = vmatprep.subr.mxu0 %v342
    %6041 = vmatpush1.msra.mxu0 %v341
    %6042 = vmatprep.subr.mxu0 %v346
    %6043 = vmatpush1.msra.mxu0 %v345
    %6044 = vmatprep.subr.mxu0 %v350
    %6045 = vmatpush1.msra.mxu0 %v349
    %6046 = vmatprep.subr.mxu0 %v354
    %6047 = vmatpush1.msra.mxu0 %v353
    %6048 = vmatprep.subr.mxu0 %v358
    %6049 = vmatpush1.msra.mxu0 %v357
    %6050 = vmatprep.subr.mxu0 %v362
    %6051 = vmatpush1.msra.mxu0 %v361
    %6052 = vmatprep.subr.mxu0 %v366
    %6053 = vmatpush1.msra.mxu0 %v365
    %6054 = vmatprep.subr.mxu0 %v370
    %6055 = vmatpush1.msra.mxu0 %v369
    %6056 = vmatprep.subr.mxu0 %v374
    %6057 = vmatpush1.msra.mxu0 %v373
    %6058 = vmatprep.subr.mxu0 %v378
    %6059 = vmatpush1.msra.mxu0 %v377
    %6060 = vmatprep.subr.mxu0 %v382
    %6061 = vmatpush1.msra.mxu0 %v381
    %6062 = vmatprep.subr.mxu0 %v386
    %6063 = vmatpush1.msra.mxu0 %v385
    %6064 = vmatprep.subr.mxu0 %v390
    %6065 = vmatpush1.msra.mxu0 %v389
    %6066 = vmatprep.subr.mxu0 %v441
    %6067 = vmatpush1.msra.mxu0 %v438
    %6068 = vmatprep.subr.mxu0 0.0
    %6069 = vmatpush1.msra.mxu0 0.0
    %6070 = vmatprep.subr.mxu0 0.0
    %6071 = vmatpush1.msra.mxu0 0.0
    %6072 = vmatprep.subr.mxu0 0.0
    %6073 = vmatpush1.msra.mxu0 0.0
    %6074 = vmatprep.subr.mxu0 0.0
    %6075 = vmatpush1.msra.mxu0 0.0
    %6076 = vmatprep.subr.mxu0 0.0
    %6077 = vmatpush1.msra.mxu0 0.0
    %6078 = vmatprep.subr.mxu0 0.0
    %6079 = vmatpush1.msra.mxu0 0.0
    %6080 = vmatprep.subr.mxu0 0.0
    %6081 = vmatpush1.msra.mxu0 0.0
    %6082 = vmatprep.subr.mxu0 0.0
    %6083 = vmatpush1.msra.mxu0 0.0
    %6084 = vmatprep.subr.mxu0 0.0
    %6085 = vmatpush1.msra.mxu0 0.0
    %6086 = vmatprep.subr.mxu0 0.0
    %6087 = vmatpush1.msra.mxu0 0.0
    %6088 = vmatprep.subr.mxu0 0.0
    %6089 = vmatpush1.msra.mxu0 0.0
    %6090 = vmatprep.subr.mxu0 0.0
    %6091 = vmatpush1.msra.mxu0 0.0
    %6092 = vmatprep.subr.mxu0 0.0
    %6093 = vmatpush1.msra.mxu0 0.0
    %6094 = vmatprep.subr.mxu0 0.0
    %6095 = vmatpush1.msra.mxu0 0.0
    %6096 = vmatprep.subr.mxu0 0.0
    %6097 = vmatpush1.msra.mxu0 0.0
    %6098 = vmatprep.subr.mxu0 0.0
    %6099 = vmatpush1.msra.mxu0 0.0
    %6100 = vmatprep.subr.mxu0 0.0
    %6101 = vmatpush1.msra.mxu0 0.0
    %6102 = vmatprep.mubr.f32.mxu0 0.0
    %6103 = vmatmul.mubr.f32.gmra.mrb[0].mxu0 %v5938
    %v6104 = vpop.f32.mrb[0].mxu0
    %v6105 = vadd.f32 %v408, %v6104
    %v6106 = vpop.f32.mrb[0].mxu0
    %v6107 = vadd.f32 %v412, %v6106
    %6108 = vmatprep.mubr.f32.mxu0 0.0
    %6109 = vmatmul.mubr.f32.gmra.mrb[0].mxu0 %v5941
    %v6110 = vpop.f32.mrb[0].mxu0
    %v6111 = vadd.f32 %v408, %v6110
    %v6112 = vpop.f32.mrb[0].mxu0
    %v6113 = vadd.f32 %v412, %v6112
    %6114 = vmatprep.mubr.f32.mxu0 0.0
    %6115 = vmatmul.mubr.f32.gmra.mrb[0].mxu0 %v5944
    %v6116 = vpop.f32.mrb[0].mxu0
    %v6117 = vadd.f32 %v408, %v6116
    %v6118 = vpop.f32.mrb[0].mxu0
    %v6119 = vadd.f32 %v412, %v6118
    %6120 = vmatprep.mubr.f32.mxu0 0.0
    %6121 = vmatmul.mubr.f32.gmra.mrb[0].mxu0 %v5947
    %v6122 = vpop.f32.mrb[0].mxu0
    %v6123 = vadd.f32 %v408, %v6122
    %v6124 = vpop.f32.mrb[0].mxu0
    %v6125 = vadd.f32 %v412, %v6124
    %6126 = vdwg.mxu0
    %v6127 = vmax.f32 %v6016, 0.0
    %v6128 = vmax.f32 %v6018, 0.0
    %v6129 = vmax.f32 %v6105, 0.0
    %v6130 = vmax.f32 %v6107, 0.0
    %v6131 = vmax.f32 %v6022, 0.0
    %v6132 = vmax.f32 %v6024, 0.0
    %v6133 = vmax.f32 %v6111, 0.0
    %v6134 = vmax.f32 %v6113, 0.0
    %v6135 = vmax.f32 %v6028, 0.0
    %v6136 = vmax.f32 %v6030, 0.0
    %v6137 = vmax.f32 %v6117, 0.0
    %v6138 = vmax.f32 %v6119, 0.0
    %v6139 = vmax.f32 %v6034, 0.0
    %v6140 = vmax.f32 %v6036, 0.0
    %v6141 = vmax.f32 %v6123, 0.0
    %v6142 = vmax.f32 %v6125, 0.0
    %v6159 = vrot.slane %v6127, 2
    %v6160 = vrot.slane %v6131, 2
    %v6161 = vsel %vm255, %v6159, %v6160
    %v6162 = vrot.slane %v6128, 2
    %v6163 = vrot.slane %v6132, 2
    %v6164 = vsel %vm255, %v6162, %v6163
    %v6165 = vrot.slane %v6129, 2
    %v6166 = vrot.slane %v6133, 2
    %v6167 = vsel %vm255, %v6165, %v6166
    %v6168 = vrot.slane %v6130, 2
    %v6169 = vrot.slane %v6134, 2
    %v6170 = vsel %vm255, %v6168, %v6169
    %v6171 = vrot.slane %v6135, 2
    %v6172 = vsel %vm255, %v6160, %v6171
    %v6173 = vrot.slane %v6136, 2
    %v6174 = vsel %vm255, %v6163, %v6173
    %v6175 = vrot.slane %v6137, 2
    %v6176 = vsel %vm255, %v6166, %v6175
    %v6177 = vrot.slane %v6138, 2
    %v6178 = vsel %vm255, %v6169, %v6177
    %v6179 = vrot.slane %v6139, 2
    %v6180 = vsel %vm255, %v6171, %v6179
    %v6181 = vrot.slane %v6140, 2
    %v6182 = vsel %vm255, %v6173, %v6181
    %v6183 = vrot.slane %v6141, 2
    %v6184 = vsel %vm255, %v6175, %v6183
    %v6185 = vrot.slane %v6142, 2
    %v6186 = vsel %vm255, %v6177, %v6185
    %6199 = vmatprep.subr.mxu0 %v894
    %6200 = vmatpush1.msra.mxu0 %v893
    %6201 = vmatprep.subr.mxu0 %v898
    %6202 = vmatpush1.msra.mxu0 %v897
    %6203 = vmatprep.subr.mxu0 %v902
    %6204 = vmatpush1.msra.mxu0 %v901
    %6205 = vmatprep.subr.mxu0 %v906
    %6206 = vmatpush1.msra.mxu0 %v905
    %6207 = vmatprep.subr.mxu0 %v910
    %6208 = vmatpush1.msra.mxu0 %v909
    %6209 = vmatprep.subr.mxu0 %v914
    %6210 = vmatpush1.msra.mxu0 %v913
    %6211 = vmatprep.subr.mxu0 %v918
    %6212 = vmatpush1.msra.mxu0 %v917
    %6213 = vmatprep.subr.mxu0 %v922
    %6214 = vmatpush1.msra.mxu0 %v921
    %6215 = vmatprep.subr.mxu0 %v926
    %6216 = vmatpush1.msra.mxu0 %v925
    %6217 = vmatprep.subr.mxu0 %v930
    %6218 = vmatpush1.msra.mxu0 %v929
    %6219 = vmatprep.subr.mxu0 %v934
    %6220 = vmatpush1.msra.mxu0 %v933
    %6221 = vmatprep.subr.mxu0 %v938
    %6222 = vmatpush1.msra.mxu0 %v937
    %6223 = vmatprep.subr.mxu0 %v942
    %6224 = vmatpush1.msra.mxu0 %v941
    %6225 = vmatprep.subr.mxu0 %v946
    %6226 = vmatpush1.msra.mxu0 %v945
    %6227 = vmatprep.subr.mxu0 %v950
    %6228 = vmatpush1.msra.mxu0 %v949
    %6229 = vmatprep.subr.mxu0 %v954
    %6230 = vmatpush1.msra.mxu0 %v953
    %6231 = vmatprep.subr.mxu0 %v958
    %6232 = vmatpush1.msra.mxu0 %v957
    %6233 = vmatprep.subr.mxu0 %v962
    %6234 = vmatpush1.msra.mxu0 %v961
    %6235 = vmatprep.subr.mxu0 %v966
    %6236 = vmatpush1.msra.mxu0 %v965
    %6237 = vmatprep.subr.mxu0 %v970
    %6238 = vmatpush1.msra.mxu0 %v969
    %6239 = vmatprep.subr.mxu0 %v974
    %6240 = vmatpush1.msra.mxu0 %v973
    %6241 = vmatprep.subr.mxu0 %v978
    %6242 = vmatpush1.msra.mxu0 %v977
    %6243 = vmatprep.subr.mxu0 %v982
    %6244 = vmatpush1.msra.mxu0 %v981
    %6245 = vmatprep.subr.mxu0 %v986
    %6246 = vmatpush1.msra.mxu0 %v985
    %6247 = vmatprep.subr.mxu0 %v990
    %6248 = vmatpush1.msra.mxu0 %v989
    %6249 = vmatprep.subr.mxu0 %v994
    %6250 = vmatpush1.msra.mxu0 %v993
    %6251 = vmatprep.subr.mxu0 %v998
    %6252 = vmatpush1.msra.mxu0 %v997
    %6253 = vmatprep.subr.mxu0 %v1002
    %6254 = vmatpush1.msra.mxu0 %v1001
    %6255 = vmatprep.subr.mxu0 %v1006
    %6256 = vmatpush1.msra.mxu0 %v1005
    %6257 = vmatprep.subr.mxu0 %v1010
    %6258 = vmatpush1.msra.mxu0 %v1009
    %6259 = vmatprep.subr.mxu0 %v1014
    %6260 = vmatpush1.msra.mxu0 %v1013
    %6261 = vmatprep.subr.mxu0 %v1018
    %6262 = vmatpush1.msra.mxu0 %v1017
    %6263 = vmatprep.mubr.f32.mxu0 %v6164
    %6264 = vmatmul.mubr.f32.gmra.mrb[0].mxu0 %v6161
    %v6265 = vpop.f32.mrb[0].mxu0
    %v6266 = vadd.f32 0.0, %v6265
    %v6267 = vpop.f32.mrb[0].mxu0
    %v6268 = vadd.f32 0.0, %v6267
    %6269 = vmatprep.mubr.f32.mxu0 %v6174
    %6270 = vmatmul.mubr.f32.gmra.mrb[0].mxu0 %v6172
    %v6271 = vpop.f32.mrb[0].mxu0
    %v6272 = vadd.f32 0.0, %v6271
    %v6273 = vpop.f32.mrb[0].mxu0
    %v6274 = vadd.f32 0.0, %v6273
    %6275 = vmatprep.mubr.f32.mxu0 %v6182
    %6276 = vmatmul.mubr.f32.gmra.mrb[0].mxu0 %v6180
    %v6277 = vpop.f32.mrb[0].mxu0
    %v6278 = vadd.f32 0.0, %v6277
    %v6279 = vpop.f32.mrb[0].mxu0
    %v6280 = vadd.f32 0.0, %v6279
    %6281 = vdwg.mxu0
    %6282 = vmatprep.subr.mxu0 %v1022
    %6283 = vmatpush1.msra.mxu0 %v1021
    %6284 = vmatprep.subr.mxu0 %v1026
    %6285 = vmatpush1.msra.mxu0 %v1025
    %6286 = vmatprep.subr.mxu0 %v1030
    %6287 = vmatpush1.msra.mxu0 %v1029
    %6288 = vmatprep.subr.mxu0 %v1034
    %6289 = vmatpush1.msra.mxu0 %v1033
    %6290 = vmatprep.subr.mxu0 %v1038
    %6291 = vmatpush1.msra.mxu0 %v1037
    %6292 = vmatprep.subr.mxu0 %v1042
    %6293 = vmatpush1.msra.mxu0 %v1041
    %6294 = vmatprep.subr.mxu0 %v1046
    %6295 = vmatpush1.msra.mxu0 %v1045
    %6296 = vmatprep.subr.mxu0 %v1050
    %6297 = vmatpush1.msra.mxu0 %v1049
    %6298 = vmatprep.subr.mxu0 %v1054
    %6299 = vmatpush1.msra.mxu0 %v1053
    %6300 = vmatprep.subr.mxu0 %v1058
    %6301 = vmatpush1.msra.mxu0 %v1057
    %6302 = vmatprep.subr.mxu0 %v1062
    %6303 = vmatpush1.msra.mxu0 %v1061
    %6304 = vmatprep.subr.mxu0 %v1066
    %6305 = vmatpush1.msra.mxu0 %v1065
    %6306 = vmatprep.subr.mxu0 %v1070
    %6307 = vmatpush1.msra.mxu0 %v1069
    %6308 = vmatprep.subr.mxu0 %v1074
    %6309 = vmatpush1.msra.mxu0 %v1073
    %6310 = vmatprep.subr.mxu0 %v1078
    %6311 = vmatpush1.msra.mxu0 %v1077
    %6312 = vmatprep.subr.mxu0 %v1082
    %6313 = vmatpush1.msra.mxu0 %v1081
    %6314 = vmatprep.subr.mxu0 %v1086
    %6315 = vmatpush1.msra.mxu0 %v1085
    %6316 = vmatprep.subr.mxu0 %v1090
    %6317 = vmatpush1.msra.mxu0 %v1089
    %6318 = vmatprep.subr.mxu0 %v1094
    %6319 = vmatpush1.msra.mxu0 %v1093
    %6320 = vmatprep.subr.mxu0 %v1098
    %6321 = vmatpush1.msra.mxu0 %v1097
    %6322 = vmatprep.subr.mxu0 %v1102
    %6323 = vmatpush1.msra.mxu0 %v1101
    %6324 = vmatprep.subr.mxu0 %v1106
    %6325 = vmatpush1.msra.mxu0 %v1105
    %6326 = vmatprep.subr.mxu0 %v1110
    %6327 = vmatpush1.msra.mxu0 %v1109
    %6328 = vmatprep.subr.mxu0 %v1114
    %6329 = vmatpush1.msra.mxu0 %v1113
    %6330 = vmatprep.subr.mxu0 %v1118
    %6331 = vmatpush1.msra.mxu0 %v1117
    %6332 = vmatprep.subr.mxu0 %v1122
    %6333 = vmatpush1.msra.mxu0 %v1121
    %6334 = vmatprep.subr.mxu0 %v1126
    %6335 = vmatpush1.msra.mxu0 %v1125
    %6336 = vmatprep.subr.mxu0 %v1130
    %6337 = vmatpush1.msra.mxu0 %v1129
    %6338 = vmatprep.subr.mxu0 %v1134
    %6339 = vmatpush1.msra.mxu0 %v1133
    %6340 = vmatprep.subr.mxu0 %v1138
    %6341 = vmatpush1.msra.mxu0 %v1137
    %6342 = vmatprep.subr.mxu0 %v1142
    %6343 = vmatpush1.msra.mxu0 %v1141
    %6344 = vmatprep.subr.mxu0 %v1146
    %6345 = vmatpush1.msra.mxu0 %v1145
    %6346 = vmatprep.mubr.f32.mxu0 %v6170
    %6347 = vmatmul.mubr.f32.gmra.mrb[0].mxu0 %v6167
    %v6348 = vpop.f32.mrb[0].mxu0
    %v6349 = vadd.f32 %v6266, %v6348
    %v6350 = vpop.f32.mrb[0].mxu0
    %v6351 = vadd.f32 %v6268, %v6350
    %6352 = vmatprep.mubr.f32.mxu0 %v6178
    %6353 = vmatmul.mubr.f32.gmra.mrb[0].mxu0 %v6176
    %v6354 = vpop.f32.mrb[0].mxu0
    %v6355 = vadd.f32 %v6272, %v6354
    %v6356 = vpop.f32.mrb[0].mxu0
    %v6357 = vadd.f32 %v6274, %v6356
    %6358 = vmatprep.mubr.f32.mxu0 %v6186
    %6359 = vmatmul.mubr.f32.gmra.mrb[0].mxu0 %v6184
    %v6360 = vpop.f32.mrb[0].mxu0
    %v6361 = vadd.f32 %v6278, %v6360
    %v6362 = vpop.f32.mrb[0].mxu0
    %v6363 = vadd.f32 %v6280, %v6362
    %6364 = vdwg.mxu0
    %6365 = vmatprep.subr.mxu0 %v896
    %6366 = vmatpush1.msra.mxu0 %v895
    %6367 = vmatprep.subr.mxu0 %v900
    %6368 = vmatpush1.msra.mxu0 %v899
    %6369 = vmatprep.subr.mxu0 %v904
    %6370 = vmatpush1.msra.mxu0 %v903
    %6371 = vmatprep.subr.mxu0 %v908
    %6372 = vmatpush1.msra.mxu0 %v907
    %6373 = vmatprep.subr.mxu0 %v912
    %6374 = vmatpush1.msra.mxu0 %v911
    %6375 = vmatprep.subr.mxu0 %v916
    %6376 = vmatpush1.msra.mxu0 %v915
    %6377 = vmatprep.subr.mxu0 %v920
    %6378 = vmatpush1.msra.mxu0 %v919
    %6379 = vmatprep.subr.mxu0 %v924
    %6380 = vmatpush1.msra.mxu0 %v923
    %6381 = vmatprep.subr.mxu0 %v928
    %6382 = vmatpush1.msra.mxu0 %v927
    %6383 = vmatprep.subr.mxu0 %v932
    %6384 = vmatpush1.msra.mxu0 %v931
    %6385 = vmatprep.subr.mxu0 %v936
    %6386 = vmatpush1.msra.mxu0 %v935
    %6387 = vmatprep.subr.mxu0 %v940
    %6388 = vmatpush1.msra.mxu0 %v939
    %6389 = vmatprep.subr.mxu0 %v944
    %6390 = vmatpush1.msra.mxu0 %v943
    %6391 = vmatprep.subr.mxu0 %v948
    %6392 = vmatpush1.msra.mxu0 %v947
    %6393 = vmatprep.subr.mxu0 %v952
    %6394 = vmatpush1.msra.mxu0 %v951
    %6395 = vmatprep.subr.mxu0 %v956
    %6396 = vmatpush1.msra.mxu0 %v955
    %6397 = vmatprep.subr.mxu0 %v960
    %6398 = vmatpush1.msra.mxu0 %v959
    %6399 = vmatprep.subr.mxu0 %v964
    %6400 = vmatpush1.msra.mxu0 %v963
    %6401 = vmatprep.subr.mxu0 %v968
    %6402 = vmatpush1.msra.mxu0 %v967
    %6403 = vmatprep.subr.mxu0 %v972
    %6404 = vmatpush1.msra.mxu0 %v971
    %6405 = vmatprep.subr.mxu0 %v976
    %6406 = vmatpush1.msra.mxu0 %v975
    %6407 = vmatprep.subr.mxu0 %v980
    %6408 = vmatpush1.msra.mxu0 %v979
    %6409 = vmatprep.subr.mxu0 %v984
    %6410 = vmatpush1.msra.mxu0 %v983
    %6411 = vmatprep.subr.mxu0 %v988
    %6412 = vmatpush1.msra.mxu0 %v987
    %6413 = vmatprep.subr.mxu0 %v992
    %6414 = vmatpush1.msra.mxu0 %v991
    %6415 = vmatprep.subr.mxu0 %v996
    %6416 = vmatpush1.msra.mxu0 %v995
    %6417 = vmatprep.subr.mxu0 %v1000
    %6418 = vmatpush1.msra.mxu0 %v999
    %6419 = vmatprep.subr.mxu0 %v1004
    %6420 = vmatpush1.msra.mxu0 %v1003
    %6421 = vmatprep.subr.mxu0 %v1008
    %6422 = vmatpush1.msra.mxu0 %v1007
    %6423 = vmatprep.subr.mxu0 %v1012
    %6424 = vmatpush1.msra.mxu0 %v1011
    %6425 = vmatprep.subr.mxu0 %v1016
    %6426 = vmatpush1.msra.mxu0 %v1015
    %6427 = vmatprep.subr.mxu0 %v1020
    %6428 = vmatpush1.msra.mxu0 %v1019
    %6429 = vmatprep.mubr.f32.mxu0 %v6164
    %6430 = vmatmul.mubr.f32.gmra.mrb[0].mxu0 %v6161
    %v6431 = vpop.f32.mrb[0].mxu0
    %v6432 = vadd.f32 0.0, %v6431
    %v6433 = vpop.f32.mrb[0].mxu0
    %v6434 = vadd.f32 0.0, %v6433
    %6435 = vmatprep.mubr.f32.mxu0 %v6174
    %6436 = vmatmul.mubr.f32.gmra.mrb[0].mxu0 %v6172
    %v6437 = vpop.f32.mrb[0].mxu0
    %v6438 = vadd.f32 0.0, %v6437
    %v6439 = vpop.f32.mrb[0].mxu0
    %v6440 = vadd.f32 0.0, %v6439
    %6441 = vmatprep.mubr.f32.mxu0 %v6182
    %6442 = vmatmul.mubr.f32.gmra.mrb[0].mxu0 %v6180
    %v6443 = vpop.f32.mrb[0].mxu0
    %v6444 = vadd.f32 0.0, %v6443
    %v6445 = vpop.f32.mrb[0].mxu0
    %v6446 = vadd.f32 0.0, %v6445
    %6447 = vdwg.mxu0
    %6448 = vmatprep.subr.mxu0 %v1024
    %6449 = vmatpush1.msra.mxu0 %v1023
    %6450 = vmatprep.subr.mxu0 %v1028
    %6451 = vmatpush1.msra.mxu0 %v1027
    %6452 = vmatprep.subr.mxu0 %v1032
    %6453 = vmatpush1.msra.mxu0 %v1031
    %6454 = vmatprep.subr.mxu0 %v1036
    %6455 = vmatpush1.msra.mxu0 %v1035
    %6456 = vmatprep.subr.mxu0 %v1040
    %6457 = vmatpush1.msra.mxu0 %v1039
    %6458 = vmatprep.subr.mxu0 %v1044
    %6459 = vmatpush1.msra.mxu0 %v1043
    %6460 = vmatprep.subr.mxu0 %v1048
    %6461 = vmatpush1.msra.mxu0 %v1047
    %6462 = vmatprep.subr.mxu0 %v1052
    %6463 = vmatpush1.msra.mxu0 %v1051
    %6464 = vmatprep.subr.mxu0 %v1056
    %6465 = vmatpush1.msra.mxu0 %v1055
    %6466 = vmatprep.subr.mxu0 %v1060
    %6467 = vmatpush1.msra.mxu0 %v1059
    %6468 = vmatprep.subr.mxu0 %v1064
    %6469 = vmatpush1.msra.mxu0 %v1063
    %6470 = vmatprep.subr.mxu0 %v1068
    %6471 = vmatpush1.msra.mxu0 %v1067
    %6472 = vmatprep.subr.mxu0 %v1072
    %6473 = vmatpush1.msra.mxu0 %v1071
    %6474 = vmatprep.subr.mxu0 %v1076
    %6475 = vmatpush1.msra.mxu0 %v1075
    %6476 = vmatprep.subr.mxu0 %v1080
    %6477 = vmatpush1.msra.mxu0 %v1079
    %6478 = vmatprep.subr.mxu0 %v1084
    %6479 = vmatpush1.msra.mxu0 %v1083
    %6480 = vmatprep.subr.mxu0 %v1088
    %6481 = vmatpush1.msra.mxu0 %v1087
    %6482 = vmatprep.subr.mxu0 %v1092
    %6483 = vmatpush1.msra.mxu0 %v1091
    %6484 = vmatprep.subr.mxu0 %v1096
    %6485 = vmatpush1.msra.mxu0 %v1095
    %6486 = vmatprep.subr.mxu0 %v1100
    %6487 = vmatpush1.msra.mxu0 %v1099
    %6488 = vmatprep.subr.mxu0 %v1104
    %6489 = vmatpush1.msra.mxu0 %v1103
    %6490 = vmatprep.subr.mxu0 %v1108
    %6491 = vmatpush1.msra.mxu0 %v1107
    %6492 = vmatprep.subr.mxu0 %v1112
    %6493 = vmatpush1.msra.mxu0 %v1111
    %6494 = vmatprep.subr.mxu0 %v1116
    %6495 = vmatpush1.msra.mxu0 %v1115
    %6496 = vmatprep.subr.mxu0 %v1120
    %6497 = vmatpush1.msra.mxu0 %v1119
    %6498 = vmatprep.subr.mxu0 %v1124
    %6499 = vmatpush1.msra.mxu0 %v1123
    %6500 = vmatprep.subr.mxu0 %v1128
    %6501 = vmatpush1.msra.mxu0 %v1127
    %6502 = vmatprep.subr.mxu0 %v1132
    %6503 = vmatpush1.msra.mxu0 %v1131
    %6504 = vmatprep.subr.mxu0 %v1136
    %6505 = vmatpush1.msra.mxu0 %v1135
    %6506 = vmatprep.subr.mxu0 %v1140
    %6507 = vmatpush1.msra.mxu0 %v1139
    %6508 = vmatprep.subr.mxu0 %v1144
    %6509 = vmatpush1.msra.mxu0 %v1143
    %6510 = vmatprep.subr.mxu0 %v1148
    %6511 = vmatpush1.msra.mxu0 %v1147
    %6512 = vmatprep.mubr.f32.mxu0 %v6170
    %6513 = vmatmul.mubr.f32.gmra.mrb[0].mxu0 %v6167
    %v6514 = vpop.f32.mrb[0].mxu0
    %v6515 = vadd.f32 %v6432, %v6514
    %v6516 = vpop.f32.mrb[0].mxu0
    %v6517 = vadd.f32 %v6434, %v6516
    %6518 = vmatprep.mubr.f32.mxu0 %v6178
    %6519 = vmatmul.mubr.f32.gmra.mrb[0].mxu0 %v6176
    %v6520 = vpop.f32.mrb[0].mxu0
    %v6521 = vadd.f32 %v6438, %v6520
    %v6522 = vpop.f32.mrb[0].mxu0
    %v6523 = vadd.f32 %v6440, %v6522
    %6524 = vmatprep.mubr.f32.mxu0 %v6186
    %6525 = vmatmul.mubr.f32.gmra.mrb[0].mxu0 %v6184
    %v6526 = vpop.f32.mrb[0].mxu0
    %v6527 = vadd.f32 %v6444, %v6526
    %v6528 = vpop.f32.mrb[0].mxu0
    %v6529 = vadd.f32 %v6446, %v6528
    %6530 = vdwg.mxu0
    %6531 = vmatprep.subr.mxu0 %v638
    %6532 = vmatpush1.msra.mxu0 %v637
    %6533 = vmatprep.subr.mxu0 %v642
    %6534 = vmatpush1.msra.mxu0 %v641
    %6535 = vmatprep.subr.mxu0 %v646
    %6536 = vmatpush1.msra.mxu0 %v645
    %6537 = vmatprep.subr.mxu0 %v650
    %6538 = vmatpush1.msra.mxu0 %v649
    %6539 = vmatprep.subr.mxu0 %v654
    %6540 = vmatpush1.msra.mxu0 %v653
    %6541 = vmatprep.subr.mxu0 %v658
    %6542 = vmatpush1.msra.mxu0 %v657
    %6543 = vmatprep.subr.mxu0 %v662
    %6544 = vmatpush1.msra.mxu0 %v661
    %6545 = vmatprep.subr.mxu0 %v666
    %6546 = vmatpush1.msra.mxu0 %v665
    %6547 = vmatprep.subr.mxu0 %v670
    %6548 = vmatpush1.msra.mxu0 %v669
    %6549 = vmatprep.subr.mxu0 %v674
    %6550 = vmatpush1.msra.mxu0 %v673
    %6551 = vmatprep.subr.mxu0 %v678
    %6552 = vmatpush1.msra.mxu0 %v677
    %6553 = vmatprep.subr.mxu0 %v682
    %6554 = vmatpush1.msra.mxu0 %v681
    %6555 = vmatprep.subr.mxu0 %v686
    %6556 = vmatpush1.msra.mxu0 %v685
    %6557 = vmatprep.subr.mxu0 %v690
    %6558 = vmatpush1.msra.mxu0 %v689
    %6559 = vmatprep.subr.mxu0 %v694
    %6560 = vmatpush1.msra.mxu0 %v693
    %6561 = vmatprep.subr.mxu0 %v698
    %6562 = vmatpush1.msra.mxu0 %v697
    %6563 = vmatprep.subr.mxu0 %v702
    %6564 = vmatpush1.msra.mxu0 %v701
    %6565 = vmatprep.subr.mxu0 %v706
    %6566 = vmatpush1.msra.mxu0 %v705
    %6567 = vmatprep.subr.mxu0 %v710
    %6568 = vmatpush1.msra.mxu0 %v709
    %6569 = vmatprep.subr.mxu0 %v714
    %6570 = vmatpush1.msra.mxu0 %v713
    %6571 = vmatprep.subr.mxu0 %v718
    %6572 = vmatpush1.msra.mxu0 %v717
    %6573 = vmatprep.subr.mxu0 %v722
    %6574 = vmatpush1.msra.mxu0 %v721
    %6575 = vmatprep.subr.mxu0 %v726
    %6576 = vmatpush1.msra.mxu0 %v725
    %6577 = vmatprep.subr.mxu0 %v730
    %6578 = vmatpush1.msra.mxu0 %v729
    %6579 = vmatprep.subr.mxu0 %v734
    %6580 = vmatpush1.msra.mxu0 %v733
    %6581 = vmatprep.subr.mxu0 %v738
    %6582 = vmatpush1.msra.mxu0 %v737
    %6583 = vmatprep.subr.mxu0 %v742
    %6584 = vmatpush1.msra.mxu0 %v741
    %6585 = vmatprep.subr.mxu0 %v746
    %6586 = vmatpush1.msra.mxu0 %v745
    %6587 = vmatprep.subr.mxu0 %v750
    %6588 = vmatpush1.msra.mxu0 %v749
    %6589 = vmatprep.subr.mxu0 %v754
    %6590 = vmatpush1.msra.mxu0 %v753
    %6591 = vmatprep.subr.mxu0 %v758
    %6592 = vmatpush1.msra.mxu0 %v757
    %6593 = vmatprep.subr.mxu0 %v762
    %6594 = vmatpush1.msra.mxu0 %v761
    %6595 = vmatprep.mubr.f32.mxu0 %v6128
    %6596 = vmatmul.mubr.f32.gmra.mrb[0].mxu0 %v6127
    %v6597 = vpop.f32.mrb[0].mxu0
    %v6598 = vadd.f32 %v6349, %v6597
    %v6599 = vpop.f32.mrb[0].mxu0
    %v6600 = vadd.f32 %v6351, %v6599
    %6601 = vmatprep.mubr.f32.mxu0 %v6132
    %6602 = vmatmul.mubr.f32.gmra.mrb[0].mxu0 %v6131
    %v6603 = vpop.f32.mrb[0].mxu0
    %v6604 = vadd.f32 %v6355, %v6603
    %v6605 = vpop.f32.mrb[0].mxu0
    %v6606 = vadd.f32 %v6357, %v6605
    %6607 = vmatprep.mubr.f32.mxu0 %v6136
    %6608 = vmatmul.mubr.f32.gmra.mrb[0].mxu0 %v6135
    %v6609 = vpop.f32.mrb[0].mxu0
    %v6610 = vadd.f32 %v6361, %v6609
    %v6611 = vpop.f32.mrb[0].mxu0
    %v6612 = vadd.f32 %v6363, %v6611
    %6613 = vdwg.mxu0
    %6614 = vmatprep.subr.mxu0 %v766
    %6615 = vmatpush1.msra.mxu0 %v765
    %6616 = vmatprep.subr.mxu0 %v770
    %6617 = vmatpush1.msra.mxu0 %v769
    %6618 = vmatprep.subr.mxu0 %v774
    %6619 = vmatpush1.msra.mxu0 %v773
    %6620 = vmatprep.subr.mxu0 %v778
    %6621 = vmatpush1.msra.mxu0 %v777
    %6622 = vmatprep.subr.mxu0 %v782
    %6623 = vmatpush1.msra.mxu0 %v781
    %6624 = vmatprep.subr.mxu0 %v786
    %6625 = vmatpush1.msra.mxu0 %v785
    %6626 = vmatprep.subr.mxu0 %v790
    %6627 = vmatpush1.msra.mxu0 %v789
    %6628 = vmatprep.subr.mxu0 %v794
    %6629 = vmatpush1.msra.mxu0 %v793
    %6630 = vmatprep.subr.mxu0 %v798
    %6631 = vmatpush1.msra.mxu0 %v797
    %6632 = vmatprep.subr.mxu0 %v802
    %6633 = vmatpush1.msra.mxu0 %v801
    %6634 = vmatprep.subr.mxu0 %v806
    %6635 = vmatpush1.msra.mxu0 %v805
    %6636 = vmatprep.subr.mxu0 %v810
    %6637 = vmatpush1.msra.mxu0 %v809
    %6638 = vmatprep.subr.mxu0 %v814
    %6639 = vmatpush1.msra.mxu0 %v813
    %6640 = vmatprep.subr.mxu0 %v818
    %6641 = vmatpush1.msra.mxu0 %v817
    %6642 = vmatprep.subr.mxu0 %v822
    %6643 = vmatpush1.msra.mxu0 %v821
    %6644 = vmatprep.subr.mxu0 %v826
    %6645 = vmatpush1.msra.mxu0 %v825
    %6646 = vmatprep.subr.mxu0 %v830
    %6647 = vmatpush1.msra.mxu0 %v829
    %6648 = vmatprep.subr.mxu0 %v834
    %6649 = vmatpush1.msra.mxu0 %v833
    %6650 = vmatprep.subr.mxu0 %v838
    %6651 = vmatpush1.msra.mxu0 %v837
    %6652 = vmatprep.subr.mxu0 %v842
    %6653 = vmatpush1.msra.mxu0 %v841
    %6654 = vmatprep.subr.mxu0 %v846
    %6655 = vmatpush1.msra.mxu0 %v845
    %6656 = vmatprep.subr.mxu0 %v850
    %6657 = vmatpush1.msra.mxu0 %v849
    %6658 = vmatprep.subr.mxu0 %v854
    %6659 = vmatpush1.msra.mxu0 %v853
    %6660 = vmatprep.subr.mxu0 %v858
    %6661 = vmatpush1.msra.mxu0 %v857
    %6662 = vmatprep.subr.mxu0 %v862
    %6663 = vmatpush1.msra.mxu0 %v861
    %6664 = vmatprep.subr.mxu0 %v866
    %6665 = vmatpush1.msra.mxu0 %v865
    %6666 = vmatprep.subr.mxu0 %v870
    %6667 = vmatpush1.msra.mxu0 %v869
    %6668 = vmatprep.subr.mxu0 %v874
    %6669 = vmatpush1.msra.mxu0 %v873
    %6670 = vmatprep.subr.mxu0 %v878
    %6671 = vmatpush1.msra.mxu0 %v877
    %6672 = vmatprep.subr.mxu0 %v882
    %6673 = vmatpush1.msra.mxu0 %v881
    %6674 = vmatprep.subr.mxu0 %v886
    %6675 = vmatpush1.msra.mxu0 %v885
    %6676 = vmatprep.subr.mxu0 %v890
    %6677 = vmatpush1.msra.mxu0 %v889
    %6678 = vmatprep.mubr.f32.mxu0 %v6130
    %6679 = vmatmul.mubr.f32.gmra.mrb[0].mxu0 %v6129
    %v6680 = vpop.f32.mrb[0].mxu0
    %v6681 = vadd.f32 %v6598, %v6680
    %v6682 = vpop.f32.mrb[0].mxu0
    %v6683 = vadd.f32 %v6600, %v6682
    %6684 = vmatprep.mubr.f32.mxu0 %v6134
    %6685 = vmatmul.mubr.f32.gmra.mrb[0].mxu0 %v6133
    %v6686 = vpop.f32.mrb[0].mxu0
    %v6687 = vadd.f32 %v6604, %v6686
    %v6688 = vpop.f32.mrb[0].mxu0
    %v6689 = vadd.f32 %v6606, %v6688
    %6690 = vmatprep.mubr.f32.mxu0 %v6138
    %6691 = vmatmul.mubr.f32.gmra.mrb[0].mxu0 %v6137
    %v6692 = vpop.f32.mrb[0].mxu0
    %v6693 = vadd.f32 %v6610, %v6692
    %v6694 = vpop.f32.mrb[0].mxu0
    %v6695 = vadd.f32 %v6612, %v6694
    %6696 = vdwg.mxu0
    %6697 = vmatprep.subr.mxu0 %v640
    %6698 = vmatpush1.msra.mxu0 %v639
    %6699 = vmatprep.subr.mxu0 %v644
    %6700 = vmatpush1.msra.mxu0 %v643
    %6701 = vmatprep.subr.mxu0 %v648
    %6702 = vmatpush1.msra.mxu0 %v647
    %6703 = vmatprep.subr.mxu0 %v652
    %6704 = vmatpush1.msra.mxu0 %v651
    %6705 = vmatprep.subr.mxu0 %v656
    %6706 = vmatpush1.msra.mxu0 %v655
    %6707 = vmatprep.subr.mxu0 %v660
    %6708 = vmatpush1.msra.mxu0 %v659
    %6709 = vmatprep.subr.mxu0 %v664
    %6710 = vmatpush1.msra.mxu0 %v663
    %6711 = vmatprep.subr.mxu0 %v668
    %6712 = vmatpush1.msra.mxu0 %v667
    %6713 = vmatprep.subr.mxu0 %v672
    %6714 = vmatpush1.msra.mxu0 %v671
    %6715 = vmatprep.subr.mxu0 %v676
    %6716 = vmatpush1.msra.mxu0 %v675
    %6717 = vmatprep.subr.mxu0 %v680
    %6718 = vmatpush1.msra.mxu0 %v679
    %6719 = vmatprep.subr.mxu0 %v684
    %6720 = vmatpush1.msra.mxu0 %v683
    %6721 = vmatprep.subr.mxu0 %v688
    %6722 = vmatpush1.msra.mxu0 %v687
    %6723 = vmatprep.subr.mxu0 %v692
    %6724 = vmatpush1.msra.mxu0 %v691
    %6725 = vmatprep.subr.mxu0 %v696
    %6726 = vmatpush1.msra.mxu0 %v695
    %6727 = vmatprep.subr.mxu0 %v700
    %6728 = vmatpush1.msra.mxu0 %v699
    %6729 = vmatprep.subr.mxu0 %v704
    %6730 = vmatpush1.msra.mxu0 %v703
    %6731 = vmatprep.subr.mxu0 %v708
    %6732 = vmatpush1.msra.mxu0 %v707
    %6733 = vmatprep.subr.mxu0 %v712
    %6734 = vmatpush1.msra.mxu0 %v711
    %6735 = vmatprep.subr.mxu0 %v716
    %6736 = vmatpush1.msra.mxu0 %v715
    %6737 = vmatprep.subr.mxu0 %v720
    %6738 = vmatpush1.msra.mxu0 %v719
    %6739 = vmatprep.subr.mxu0 %v724
    %6740 = vmatpush1.msra.mxu0 %v723
    %6741 = vmatprep.subr.mxu0 %v728
    %6742 = vmatpush1.msra.mxu0 %v727
    %6743 = vmatprep.subr.mxu0 %v732
    %6744 = vmatpush1.msra.mxu0 %v731
    %6745 = vmatprep.subr.mxu0 %v736
    %6746 = vmatpush1.msra.mxu0 %v735
    %6747 = vmatprep.subr.mxu0 %v740
    %6748 = vmatpush1.msra.mxu0 %v739
    %6749 = vmatprep.subr.mxu0 %v744
    %6750 = vmatpush1.msra.mxu0 %v743
    %6751 = vmatprep.subr.mxu0 %v748
    %6752 = vmatpush1.msra.mxu0 %v747
    %6753 = vmatprep.subr.mxu0 %v752
    %6754 = vmatpush1.msra.mxu0 %v751
    %6755 = vmatprep.subr.mxu0 %v756
    %6756 = vmatpush1.msra.mxu0 %v755
    %6757 = vmatprep.subr.mxu0 %v760
    %6758 = vmatpush1.msra.mxu0 %v759
    %6759 = vmatprep.subr.mxu0 %v764
    %6760 = vmatpush1.msra.mxu0 %v763
    %6761 = vmatprep.mubr.f32.mxu0 %v6128
    %6762 = vmatmul.mubr.f32.gmra.mrb[0].mxu0 %v6127
    %v6763 = vpop.f32.mrb[0].mxu0
    %v6764 = vadd.f32 %v6515, %v6763
    %v6765 = vpop.f32.mrb[0].mxu0
    %v6766 = vadd.f32 %v6517, %v6765
    %6767 = vmatprep.mubr.f32.mxu0 %v6132
    %6768 = vmatmul.mubr.f32.gmra.mrb[0].mxu0 %v6131
    %v6769 = vpop.f32.mrb[0].mxu0
    %v6770 = vadd.f32 %v6521, %v6769
    %v6771 = vpop.f32.mrb[0].mxu0
    %v6772 = vadd.f32 %v6523, %v6771
    %6773 = vmatprep.mubr.f32.mxu0 %v6136
    %6774 = vmatmul.mubr.f32.gmra.mrb[0].mxu0 %v6135
    %v6775 = vpop.f32.mrb[0].mxu0
    %v6776 = vadd.f32 %v6527, %v6775
    %v6777 = vpop.f32.mrb[0].mxu0
    %v6778 = vadd.f32 %v6529, %v6777
    %6779 = vdwg.mxu0
    %6780 = vmatprep.subr.mxu0 %v768
    %6781 = vmatpush1.msra.mxu0 %v767
    %6782 = vmatprep.subr.mxu0 %v772
    %6783 = vmatpush1.msra.mxu0 %v771
    %6784 = vmatprep.subr.mxu0 %v776
    %6785 = vmatpush1.msra.mxu0 %v775
    %6786 = vmatprep.subr.mxu0 %v780
    %6787 = vmatpush1.msra.mxu0 %v779
    %6788 = vmatprep.subr.mxu0 %v784
    %6789 = vmatpush1.msra.mxu0 %v783
    %6790 = vmatprep.subr.mxu0 %v788
    %6791 = vmatpush1.msra.mxu0 %v787
    %6792 = vmatprep.subr.mxu0 %v792
    %6793 = vmatpush1.msra.mxu0 %v791
    %6794 = vmatprep.subr.mxu0 %v796
    %6795 = vmatpush1.msra.mxu0 %v795
    %6796 = vmatprep.subr.mxu0 %v800
    %6797 = vmatpush1.msra.mxu0 %v799
    %6798 = vmatprep.subr.mxu0 %v804
    %6799 = vmatpush1.msra.mxu0 %v803
    %6800 = vmatprep.subr.mxu0 %v808
    %6801 = vmatpush1.msra.mxu0 %v807
    %6802 = vmatprep.subr.mxu0 %v812
    %6803 = vmatpush1.msra.mxu0 %v811
    %6804 = vmatprep.subr.mxu0 %v816
    %6805 = vmatpush1.msra.mxu0 %v815
    %6806 = vmatprep.subr.mxu0 %v820
    %6807 = vmatpush1.msra.mxu0 %v819
    %6808 = vmatprep.subr.mxu0 %v824
    %6809 = vmatpush1.msra.mxu0 %v823
    %6810 = vmatprep.subr.mxu0 %v828
    %6811 = vmatpush1.msra.mxu0 %v827
    %6812 = vmatprep.subr.mxu0 %v832
    %6813 = vmatpush1.msra.mxu0 %v831
    %6814 = vmatprep.subr.mxu0 %v836
    %6815 = vmatpush1.msra.mxu0 %v835
    %6816 = vmatprep.subr.mxu0 %v840
    %6817 = vmatpush1.msra.mxu0 %v839
    %6818 = vmatprep.subr.mxu0 %v844
    %6819 = vmatpush1.msra.mxu0 %v843
    %6820 = vmatprep.subr.mxu0 %v848
    %6821 = vmatpush1.msra.mxu0 %v847
    %6822 = vmatprep.subr.mxu0 %v852
    %6823 = vmatpush1.msra.mxu0 %v851
    %6824 = vmatprep.subr.mxu0 %v856
    %6825 = vmatpush1.msra.mxu0 %v855
    %6826 = vmatprep.subr.mxu0 %v860
    %6827 = vmatpush1.msra.mxu0 %v859
    %6828 = vmatprep.subr.mxu0 %v864
    %6829 = vmatpush1.msra.mxu0 %v863
    %6830 = vmatprep.subr.mxu0 %v868
    %6831 = vmatpush1.msra.mxu0 %v867
    %6832 = vmatprep.subr.mxu0 %v872
    %6833 = vmatpush1.msra.mxu0 %v871
    %6834 = vmatprep.subr.mxu0 %v876
    %6835 = vmatpush1.msra.mxu0 %v875
    %6836 = vmatprep.subr.mxu0 %v880
    %6837 = vmatpush1.msra.mxu0 %v879
    %6838 = vmatprep.subr.mxu0 %v884
    %6839 = vmatpush1.msra.mxu0 %v883
    %6840 = vmatprep.subr.mxu0 %v888
    %6841 = vmatpush1.msra.mxu0 %v887
    %6842 = vmatprep.subr.mxu0 %v892
    %6843 = vmatpush1.msra.mxu0 %v891
    %6844 = vmatprep.mubr.f32.mxu0 %v6130
    %6845 = vmatmul.mubr.f32.gmra.mrb[0].mxu0 %v6129
    %v6846 = vpop.f32.mrb[0].mxu0
    %v6847 = vadd.f32 %v6764, %v6846
    %v6848 = vpop.f32.mrb[0].mxu0
    %v6849 = vadd.f32 %v6766, %v6848
    %6850 = vmatprep.mubr.f32.mxu0 %v6134
    %6851 = vmatmul.mubr.f32.gmra.mrb[0].mxu0 %v6133
    %v6852 = vpop.f32.mrb[0].mxu0
    %v6853 = vadd.f32 %v6770, %v6852
    %v6854 = vpop.f32.mrb[0].mxu0
    %v6855 = vadd.f32 %v6772, %v6854
    %6856 = vmatprep.mubr.f32.mxu0 %v6138
    %6857 = vmatmul.mubr.f32.gmra.mrb[0].mxu0 %v6137
    %v6858 = vpop.f32.mrb[0].mxu0
    %v6859 = vadd.f32 %v6776, %v6858
    %v6860 = vpop.f32.mrb[0].mxu0
    %v6861 = vadd.f32 %v6778, %v6860
    %6862 = vdwg.mxu0
    %v6863 = vrot.slane %v6127, 4
    %v6864 = vrot.slane %v6131, 4
    %v6865 = vsel %vm295, %v6863, %v6864
    %v6866 = vrot.slane %v6128, 4
    %v6867 = vrot.slane %v6132, 4
    %v6868 = vsel %vm295, %v6866, %v6867
    %v6869 = vrot.slane %v6129, 4
    %v6870 = vrot.slane %v6133, 4
    %v6871 = vsel %vm295, %v6869, %v6870
    %v6872 = vrot.slane %v6130, 4
    %v6873 = vrot.slane %v6134, 4
    %v6874 = vsel %vm295, %v6872, %v6873
    %v6875 = vrot.slane %v6135, 4
    %v6876 = vsel %vm295, %v6864, %v6875
    %v6877 = vrot.slane %v6136, 4
    %v6878 = vsel %vm295, %v6867, %v6877
    %v6879 = vrot.slane %v6137, 4
    %v6880 = vsel %vm295, %v6870, %v6879
    %v6881 = vrot.slane %v6138, 4
    %v6882 = vsel %vm295, %v6873, %v6881
    %v6883 = vrot.slane %v6139, 4
    %v6884 = vsel %vm295, %v6875, %v6883
    %v6885 = vrot.slane %v6140, 4
    %v6886 = vsel %vm295, %v6877, %v6885
    %v6887 = vrot.slane %v6141, 4
    %v6888 = vsel %vm295, %v6879, %v6887
    %v6889 = vrot.slane %v6142, 4
    %v6890 = vsel %vm295, %v6881, %v6889
    %6903 = vmatprep.subr.mxu0 %v1870
    %6904 = vmatpush1.msra.mxu0 %v1869
    %6905 = vmatprep.subr.mxu0 %v1874
    %6906 = vmatpush1.msra.mxu0 %v1873
    %6907 = vmatprep.subr.mxu0 %v1878
    %6908 = vmatpush1.msra.mxu0 %v1877
    %6909 = vmatprep.subr.mxu0 %v1882
    %6910 = vmatpush1.msra.mxu0 %v1881
    %6911 = vmatprep.subr.mxu0 %v1886
    %6912 = vmatpush1.msra.mxu0 %v1885
    %6913 = vmatprep.subr.mxu0 %v1890
    %6914 = vmatpush1.msra.mxu0 %v1889
    %6915 = vmatprep.subr.mxu0 %v1894
    %6916 = vmatpush1.msra.mxu0 %v1893
    %6917 = vmatprep.subr.mxu0 %v1898
    %6918 = vmatpush1.msra.mxu0 %v1897
    %6919 = vmatprep.subr.mxu0 %v1902
    %6920 = vmatpush1.msra.mxu0 %v1901
    %6921 = vmatprep.subr.mxu0 %v1906
    %6922 = vmatpush1.msra.mxu0 %v1905
    %6923 = vmatprep.subr.mxu0 %v1910
    %6924 = vmatpush1.msra.mxu0 %v1909
    %6925 = vmatprep.subr.mxu0 %v1914
    %6926 = vmatpush1.msra.mxu0 %v1913
    %6927 = vmatprep.subr.mxu0 %v1918
    %6928 = vmatpush1.msra.mxu0 %v1917
    %6929 = vmatprep.subr.mxu0 %v1922
    %6930 = vmatpush1.msra.mxu0 %v1921
    %6931 = vmatprep.subr.mxu0 %v1926
    %6932 = vmatpush1.msra.mxu0 %v1925
    %6933 = vmatprep.subr.mxu0 %v1930
    %6934 = vmatpush1.msra.mxu0 %v1929
    %6935 = vmatprep.subr.mxu0 %v1934
    %6936 = vmatpush1.msra.mxu0 %v1933
    %6937 = vmatprep.subr.mxu0 %v1938
    %6938 = vmatpush1.msra.mxu0 %v1937
    %6939 = vmatprep.subr.mxu0 %v1942
    %6940 = vmatpush1.msra.mxu0 %v1941
    %6941 = vmatprep.subr.mxu0 %v1946
    %6942 = vmatpush1.msra.mxu0 %v1945
    %6943 = vmatprep.subr.mxu0 %v1950
    %6944 = vmatpush1.msra.mxu0 %v1949
    %6945 = vmatprep.subr.mxu0 %v1954
    %6946 = vmatpush1.msra.mxu0 %v1953
    %6947 = vmatprep.subr.mxu0 %v1958
    %6948 = vmatpush1.msra.mxu0 %v1957
    %6949 = vmatprep.subr.mxu0 %v1962
    %6950 = vmatpush1.msra.mxu0 %v1961
    %6951 = vmatprep.subr.mxu0 %v1966
    %6952 = vmatpush1.msra.mxu0 %v1965
    %6953 = vmatprep.subr.mxu0 %v1970
    %6954 = vmatpush1.msra.mxu0 %v1969
    %6955 = vmatprep.subr.mxu0 %v1974
    %6956 = vmatpush1.msra.mxu0 %v1973
    %6957 = vmatprep.subr.mxu0 %v1978
    %6958 = vmatpush1.msra.mxu0 %v1977
    %6959 = vmatprep.subr.mxu0 %v1982
    %6960 = vmatpush1.msra.mxu0 %v1981
    %6961 = vmatprep.subr.mxu0 %v1986
    %6962 = vmatpush1.msra.mxu0 %v1985
    %6963 = vmatprep.subr.mxu0 %v1990
    %6964 = vmatpush1.msra.mxu0 %v1989
    %6965 = vmatprep.subr.mxu0 %v1994
    %6966 = vmatpush1.msra.mxu0 %v1993
    %6967 = vmatprep.mubr.f32.mxu0 %v6868
    %6968 = vmatmul.mubr.f32.gmra.mrb[0].mxu0 %v6865
    %v6969 = vpop.f32.mrb[0].mxu0
    %v6970 = vadd.f32 0.0, %v6969
    %v6971 = vpop.f32.mrb[0].mxu0
    %v6972 = vadd.f32 0.0, %v6971
    %6973 = vmatprep.mubr.f32.mxu0 %v6878
    %6974 = vmatmul.mubr.f32.gmra.mrb[0].mxu0 %v6876
    %v6975 = vpop.f32.mrb[0].mxu0
    %v6976 = vadd.f32 0.0, %v6975
    %v6977 = vpop.f32.mrb[0].mxu0
    %v6978 = vadd.f32 0.0, %v6977
    %6979 = vmatprep.mubr.f32.mxu0 %v6886
    %6980 = vmatmul.mubr.f32.gmra.mrb[0].mxu0 %v6884
    %v6981 = vpop.f32.mrb[0].mxu0
    %v6982 = vadd.f32 0.0, %v6981
    %v6983 = vpop.f32.mrb[0].mxu0
    %v6984 = vadd.f32 0.0, %v6983
    %6985 = vdwg.mxu0
    %6986 = vmatprep.subr.mxu0 %v1998
    %6987 = vmatpush1.msra.mxu0 %v1997
    %6988 = vmatprep.subr.mxu0 %v2002
    %6989 = vmatpush1.msra.mxu0 %v2001
    %6990 = vmatprep.subr.mxu0 %v2006
    %6991 = vmatpush1.msra.mxu0 %v2005
    %6992 = vmatprep.subr.mxu0 %v2010
    %6993 = vmatpush1.msra.mxu0 %v2009
    %6994 = vmatprep.subr.mxu0 %v2014
    %6995 = vmatpush1.msra.mxu0 %v2013
    %6996 = vmatprep.subr.mxu0 %v2018
    %6997 = vmatpush1.msra.mxu0 %v2017
    %6998 = vmatprep.subr.mxu0 %v2022
    %6999 = vmatpush1.msra.mxu0 %v2021
    %7000 = vmatprep.subr.mxu0 %v2026
    %7001 = vmatpush1.msra.mxu0 %v2025
    %7002 = vmatprep.subr.mxu0 %v2030
    %7003 = vmatpush1.msra.mxu0 %v2029
    %7004 = vmatprep.subr.mxu0 %v2034
    %7005 = vmatpush1.msra.mxu0 %v2033
    %7006 = vmatprep.subr.mxu0 %v2038
    %7007 = vmatpush1.msra.mxu0 %v2037
    %7008 = vmatprep.subr.mxu0 %v2042
    %7009 = vmatpush1.msra.mxu0 %v2041
    %7010 = vmatprep.subr.mxu0 %v2046
    %7011 = vmatpush1.msra.mxu0 %v2045
    %7012 = vmatprep.subr.mxu0 %v2050
    %7013 = vmatpush1.msra.mxu0 %v2049
    %7014 = vmatprep.subr.mxu0 %v2054
    %7015 = vmatpush1.msra.mxu0 %v2053
    %7016 = vmatprep.subr.mxu0 %v2058
    %7017 = vmatpush1.msra.mxu0 %v2057
    %7018 = vmatprep.subr.mxu0 %v2062
    %7019 = vmatpush1.msra.mxu0 %v2061
    %7020 = vmatprep.subr.mxu0 %v2066
    %7021 = vmatpush1.msra.mxu0 %v2065
    %7022 = vmatprep.subr.mxu0 %v2070
    %7023 = vmatpush1.msra.mxu0 %v2069
    %7024 = vmatprep.subr.mxu0 %v2074
    %7025 = vmatpush1.msra.mxu0 %v2073
    %7026 = vmatprep.subr.mxu0 %v2078
    %7027 = vmatpush1.msra.mxu0 %v2077
    %7028 = vmatprep.subr.mxu0 %v2082
    %7029 = vmatpush1.msra.mxu0 %v2081
    %7030 = vmatprep.subr.mxu0 %v2086
    %7031 = vmatpush1.msra.mxu0 %v2085
    %7032 = vmatprep.subr.mxu0 %v2090
    %7033 = vmatpush1.msra.mxu0 %v2089
    %7034 = vmatprep.subr.mxu0 %v2094
    %7035 = vmatpush1.msra.mxu0 %v2093
    %7036 = vmatprep.subr.mxu0 %v2098
    %7037 = vmatpush1.msra.mxu0 %v2097
    %7038 = vmatprep.subr.mxu0 %v2102
    %7039 = vmatpush1.msra.mxu0 %v2101
    %7040 = vmatprep.subr.mxu0 %v2106
    %7041 = vmatpush1.msra.mxu0 %v2105
    %7042 = vmatprep.subr.mxu0 %v2110
    %7043 = vmatpush1.msra.mxu0 %v2109
    %7044 = vmatprep.subr.mxu0 %v2114
    %7045 = vmatpush1.msra.mxu0 %v2113
    %7046 = vmatprep.subr.mxu0 %v2118
    %7047 = vmatpush1.msra.mxu0 %v2117
    %7048 = vmatprep.subr.mxu0 %v2122
    %7049 = vmatpush1.msra.mxu0 %v2121
    %7050 = vmatprep.mubr.f32.mxu0 %v6874
    %7051 = vmatmul.mubr.f32.gmra.mrb[0].mxu0 %v6871
    %v7052 = vpop.f32.mrb[0].mxu0
    %v7053 = vadd.f32 %v6970, %v7052
    %v7054 = vpop.f32.mrb[0].mxu0
    %v7055 = vadd.f32 %v6972, %v7054
    %7056 = vmatprep.mubr.f32.mxu0 %v6882
    %7057 = vmatmul.mubr.f32.gmra.mrb[0].mxu0 %v6880
    %v7058 = vpop.f32.mrb[0].mxu0
    %v7059 = vadd.f32 %v6976, %v7058
    %v7060 = vpop.f32.mrb[0].mxu0
    %v7061 = vadd.f32 %v6978, %v7060
    %7062 = vmatprep.mubr.f32.mxu0 %v6890
    %7063 = vmatmul.mubr.f32.gmra.mrb[0].mxu0 %v6888
    %v7064 = vpop.f32.mrb[0].mxu0
    %v7065 = vadd.f32 %v6982, %v7064
    %v7066 = vpop.f32.mrb[0].mxu0
    %v7067 = vadd.f32 %v6984, %v7066
    %7068 = vdwg.mxu0
    %7069 = vmatprep.subr.mxu0 %v1872
    %7070 = vmatpush1.msra.mxu0 %v1871
    %7071 = vmatprep.subr.mxu0 %v1876
    %7072 = vmatpush1.msra.mxu0 %v1875
    %7073 = vmatprep.subr.mxu0 %v1880
    %7074 = vmatpush1.msra.mxu0 %v1879
    %7075 = vmatprep.subr.mxu0 %v1884
    %7076 = vmatpush1.msra.mxu0 %v1883
    %7077 = vmatprep.subr.mxu0 %v1888
    %7078 = vmatpush1.msra.mxu0 %v1887
    %7079 = vmatprep.subr.mxu0 %v1892
    %7080 = vmatpush1.msra.mxu0 %v1891
    %7081 = vmatprep.subr.mxu0 %v1896
    %7082 = vmatpush1.msra.mxu0 %v1895
    %7083 = vmatprep.subr.mxu0 %v1900
    %7084 = vmatpush1.msra.mxu0 %v1899
    %7085 = vmatprep.subr.mxu0 %v1904
    %7086 = vmatpush1.msra.mxu0 %v1903
    %7087 = vmatprep.subr.mxu0 %v1908
    %7088 = vmatpush1.msra.mxu0 %v1907
    %7089 = vmatprep.subr.mxu0 %v1912
    %7090 = vmatpush1.msra.mxu0 %v1911
    %7091 = vmatprep.subr.mxu0 %v1916
    %7092 = vmatpush1.msra.mxu0 %v1915
    %7093 = vmatprep.subr.mxu0 %v1920
    %7094 = vmatpush1.msra.mxu0 %v1919
    %7095 = vmatprep.subr.mxu0 %v1924
    %7096 = vmatpush1.msra.mxu0 %v1923
    %7097 = vmatprep.subr.mxu0 %v1928
    %7098 = vmatpush1.msra.mxu0 %v1927
    %7099 = vmatprep.subr.mxu0 %v1932
    %7100 = vmatpush1.msra.mxu0 %v1931
    %7101 = vmatprep.subr.mxu0 %v1936
    %7102 = vmatpush1.msra.mxu0 %v1935
    %7103 = vmatprep.subr.mxu0 %v1940
    %7104 = vmatpush1.msra.mxu0 %v1939
    %7105 = vmatprep.subr.mxu0 %v1944
    %7106 = vmatpush1.msra.mxu0 %v1943
    %7107 = vmatprep.subr.mxu0 %v1948
    %7108 = vmatpush1.msra.mxu0 %v1947
    %7109 = vmatprep.subr.mxu0 %v1952
    %7110 = vmatpush1.msra.mxu0 %v1951
    %7111 = vmatprep.subr.mxu0 %v1956
    %7112 = vmatpush1.msra.mxu0 %v1955
    %7113 = vmatprep.subr.mxu0 %v1960
    %7114 = vmatpush1.msra.mxu0 %v1959
    %7115 = vmatprep.subr.mxu0 %v1964
    %7116 = vmatpush1.msra.mxu0 %v1963
    %7117 = vmatprep.subr.mxu0 %v1968
    %7118 = vmatpush1.msra.mxu0 %v1967
    %7119 = vmatprep.subr.mxu0 %v1972
    %7120 = vmatpush1.msra.mxu0 %v1971
    %7121 = vmatprep.subr.mxu0 %v1976
    %7122 = vmatpush1.msra.mxu0 %v1975
    %7123 = vmatprep.subr.mxu0 %v1980
    %7124 = vmatpush1.msra.mxu0 %v1979
    %7125 = vmatprep.subr.mxu0 %v1984
    %7126 = vmatpush1.msra.mxu0 %v1983
    %7127 = vmatprep.subr.mxu0 %v1988
    %7128 = vmatpush1.msra.mxu0 %v1987
    %7129 = vmatprep.subr.mxu0 %v1992
    %7130 = vmatpush1.msra.mxu0 %v1991
    %7131 = vmatprep.subr.mxu0 %v1996
    %7132 = vmatpush1.msra.mxu0 %v1995
    %7133 = vmatprep.mubr.f32.mxu0 %v6868
    %7134 = vmatmul.mubr.f32.gmra.mrb[0].mxu0 %v6865
    %v7135 = vpop.f32.mrb[0].mxu0
    %v7136 = vadd.f32 0.0, %v7135
    %v7137 = vpop.f32.mrb[0].mxu0
    %v7138 = vadd.f32 0.0, %v7137
    %7139 = vmatprep.mubr.f32.mxu0 %v6878
    %7140 = vmatmul.mubr.f32.gmra.mrb[0].mxu0 %v6876
    %v7141 = vpop.f32.mrb[0].mxu0
    %v7142 = vadd.f32 0.0, %v7141
    %v7143 = vpop.f32.mrb[0].mxu0
    %v7144 = vadd.f32 0.0, %v7143
    %7145 = vmatprep.mubr.f32.mxu0 %v6886
    %7146 = vmatmul.mubr.f32.gmra.mrb[0].mxu0 %v6884
    %v7147 = vpop.f32.mrb[0].mxu0
    %v7148 = vadd.f32 0.0, %v7147
    %v7149 = vpop.f32.mrb[0].mxu0
    %v7150 = vadd.f32 0.0, %v7149
    %7151 = vdwg.mxu0
    %7152 = vmatprep.subr.mxu0 %v2000
    %7153 = vmatpush1.msra.mxu0 %v1999
    %7154 = vmatprep.subr.mxu0 %v2004
    %7155 = vmatpush1.msra.mxu0 %v2003
    %7156 = vmatprep.subr.mxu0 %v2008
    %7157 = vmatpush1.msra.mxu0 %v2007
    %7158 = vmatprep.subr.mxu0 %v2012
    %7159 = vmatpush1.msra.mxu0 %v2011
    %7160 = vmatprep.subr.mxu0 %v2016
    %7161 = vmatpush1.msra.mxu0 %v2015
    %7162 = vmatprep.subr.mxu0 %v2020
    %7163 = vmatpush1.msra.mxu0 %v2019
    %7164 = vmatprep.subr.mxu0 %v2024
    %7165 = vmatpush1.msra.mxu0 %v2023
    %7166 = vmatprep.subr.mxu0 %v2028
    %7167 = vmatpush1.msra.mxu0 %v2027
    %7168 = vmatprep.subr.mxu0 %v2032
    %7169 = vmatpush1.msra.mxu0 %v2031
    %7170 = vmatprep.subr.mxu0 %v2036
    %7171 = vmatpush1.msra.mxu0 %v2035
    %7172 = vmatprep.subr.mxu0 %v2040
    %7173 = vmatpush1.msra.mxu0 %v2039
    %7174 = vmatprep.subr.mxu0 %v2044
    %7175 = vmatpush1.msra.mxu0 %v2043
    %7176 = vmatprep.subr.mxu0 %v2048
    %7177 = vmatpush1.msra.mxu0 %v2047
    %7178 = vmatprep.subr.mxu0 %v2052
    %7179 = vmatpush1.msra.mxu0 %v2051
    %7180 = vmatprep.subr.mxu0 %v2056
    %7181 = vmatpush1.msra.mxu0 %v2055
    %7182 = vmatprep.subr.mxu0 %v2060
    %7183 = vmatpush1.msra.mxu0 %v2059
    %7184 = vmatprep.subr.mxu0 %v2064
    %7185 = vmatpush1.msra.mxu0 %v2063
    %7186 = vmatprep.subr.mxu0 %v2068
    %7187 = vmatpush1.msra.mxu0 %v2067
    %7188 = vmatprep.subr.mxu0 %v2072
    %7189 = vmatpush1.msra.mxu0 %v2071
    %7190 = vmatprep.subr.mxu0 %v2076
    %7191 = vmatpush1.msra.mxu0 %v2075
    %7192 = vmatprep.subr.mxu0 %v2080
    %7193 = vmatpush1.msra.mxu0 %v2079
    %7194 = vmatprep.subr.mxu0 %v2084
    %7195 = vmatpush1.msra.mxu0 %v2083
    %7196 = vmatprep.subr.mxu0 %v2088
    %7197 = vmatpush1.msra.mxu0 %v2087
    %7198 = vmatprep.subr.mxu0 %v2092
    %7199 = vmatpush1.msra.mxu0 %v2091
    %7200 = vmatprep.subr.mxu0 %v2096
    %7201 = vmatpush1.msra.mxu0 %v2095
    %7202 = vmatprep.subr.mxu0 %v2100
    %7203 = vmatpush1.msra.mxu0 %v2099
    %7204 = vmatprep.subr.mxu0 %v2104
    %7205 = vmatpush1.msra.mxu0 %v2103
    %7206 = vmatprep.subr.mxu0 %v2108
    %7207 = vmatpush1.msra.mxu0 %v2107
    %7208 = vmatprep.subr.mxu0 %v2112
    %7209 = vmatpush1.msra.mxu0 %v2111
    %7210 = vmatprep.subr.mxu0 %v2116
    %7211 = vmatpush1.msra.mxu0 %v2115
    %7212 = vmatprep.subr.mxu0 %v2120
    %7213 = vmatpush1.msra.mxu0 %v2119
    %7214 = vmatprep.subr.mxu0 %v2124
    %7215 = vmatpush1.msra.mxu0 %v2123
    %7216 = vmatprep.mubr.f32.mxu0 %v6874
    %7217 = vmatmul.mubr.f32.gmra.mrb[0].mxu0 %v6871
    %v7218 = vpop.f32.mrb[0].mxu0
    %v7219 = vadd.f32 %v7136, %v7218
    %v7220 = vpop.f32.mrb[0].mxu0
    %v7221 = vadd.f32 %v7138, %v7220
    %7222 = vmatprep.mubr.f32.mxu0 %v6882
    %7223 = vmatmul.mubr.f32.gmra.mrb[0].mxu0 %v6880
    %v7224 = vpop.f32.mrb[0].mxu0
    %v7225 = vadd.f32 %v7142, %v7224
    %v7226 = vpop.f32.mrb[0].mxu0
    %v7227 = vadd.f32 %v7144, %v7226
    %7228 = vmatprep.mubr.f32.mxu0 %v6890
    %7229 = vmatmul.mubr.f32.gmra.mrb[0].mxu0 %v6888
    %v7230 = vpop.f32.mrb[0].mxu0
    %v7231 = vadd.f32 %v7148, %v7230
    %v7232 = vpop.f32.mrb[0].mxu0
    %v7233 = vadd.f32 %v7150, %v7232
    %7234 = vdwg.mxu0
    %v7235 = vadd.f32 %v6681, %v7053
    %v7236 = vadd.f32 %v6683, %v7055
    %v7237 = vadd.f32 %v6847, %v7219
    %v7238 = vadd.f32 %v6849, %v7221
    %v7239 = vadd.f32 %v6687, %v7059
    %v7240 = vadd.f32 %v6689, %v7061
    %v7241 = vadd.f32 %v6853, %v7225
    %v7242 = vadd.f32 %v6855, %v7227
    %v7243 = vadd.f32 %v6693, %v7065
    %v7244 = vadd.f32 %v6695, %v7067
    %v7245 = vadd.f32 %v6859, %v7231
    %v7246 = vadd.f32 %v6861, %v7233
    %v7247 = vadd.f32 %v7235, %v2514
    %v7248 = vadd.f32 %v7236, %v2518
    %v7249 = vadd.f32 %v7237, %v2522
    %v7250 = vadd.f32 %v7238, %v2526
    %v7251 = vadd.f32 %v7239, %v2514
    %v7252 = vadd.f32 %v7240, %v2518
    %v7253 = vadd.f32 %v7241, %v2522
    %v7254 = vadd.f32 %v7242, %v2526
    %v7255 = vadd.f32 %v7243, %v2514
    %v7256 = vadd.f32 %v7244, %v2518
    %v7257 = vadd.f32 %v7245, %v2522
    %v7258 = vadd.f32 %v7246, %v2526
    %v7259 = vmax.f32 %v7247, 0.0
    %v7260 = vmax.f32 %v7248, 0.0
    %v7261 = vmax.f32 %v7249, 0.0
    %v7262 = vmax.f32 %v7250, 0.0
    %v7263 = vmax.f32 %v7251, 0.0
    %v7264 = vmax.f32 %v7252, 0.0
    %v7265 = vmax.f32 %v7253, 0.0
    %v7266 = vmax.f32 %v7254, 0.0
    %v7267 = vmax.f32 %v7255, 0.0
    %v7268 = vmax.f32 %v7256, 0.0
    %v7269 = vmax.f32 %v7257, 0.0
    %v7270 = vmax.f32 %v7258, 0.0
    %v7283 = vrot.slane %v7259, 3
    %v7284 = vrot.slane %v7263, 3
    %v7285 = vsel %vm275, %v7283, %v7284
    %v7286 = vrot.slane %v7260, 3
    %v7287 = vrot.slane %v7264, 3
    %v7288 = vsel %vm275, %v7286, %v7287
    %v7289 = vrot.slane %v7261, 3
    %v7290 = vrot.slane %v7265, 3
    %v7291 = vsel %vm275, %v7289, %v7290
    %v7292 = vrot.slane %v7262, 3
    %v7293 = vrot.slane %v7266, 3
    %v7294 = vsel %vm275, %v7292, %v7293
    %v7295 = vrot.slane %v7267, 3
    %v7296 = vsel %vm275, %v7284, %v7295
    %v7297 = vrot.slane %v7268, 3
    %v7298 = vsel %vm275, %v7287, %v7297
    %v7299 = vrot.slane %v7269, 3
    %v7300 = vsel %vm275, %v7290, %v7299
    %v7301 = vrot.slane %v7270, 3
    %v7302 = vsel %vm275, %v7293, %v7301
    %7315 = vmatprep.subr.mxu0 %v2812
    %7316 = vmatpush1.msra.mxu0 %v2811
    %7317 = vmatprep.subr.mxu0 %v2816
    %7318 = vmatpush1.msra.mxu0 %v2815
    %7319 = vmatprep.subr.mxu0 %v2820
    %7320 = vmatpush1.msra.mxu0 %v2819
    %7321 = vmatprep.subr.mxu0 %v2824
    %7322 = vmatpush1.msra.mxu0 %v2823
    %7323 = vmatprep.subr.mxu0 %v2828
    %7324 = vmatpush1.msra.mxu0 %v2827
    %7325 = vmatprep.subr.mxu0 %v2832
    %7326 = vmatpush1.msra.mxu0 %v2831
    %7327 = vmatprep.subr.mxu0 %v2836
    %7328 = vmatpush1.msra.mxu0 %v2835
    %7329 = vmatprep.subr.mxu0 %v2840
    %7330 = vmatpush1.msra.mxu0 %v2839
    %7331 = vmatprep.subr.mxu0 %v2844
    %7332 = vmatpush1.msra.mxu0 %v2843
    %7333 = vmatprep.subr.mxu0 %v2848
    %7334 = vmatpush1.msra.mxu0 %v2847
    %7335 = vmatprep.subr.mxu0 %v2852
    %7336 = vmatpush1.msra.mxu0 %v2851
    %7337 = vmatprep.subr.mxu0 %v2856
    %7338 = vmatpush1.msra.mxu0 %v2855
    %7339 = vmatprep.subr.mxu0 %v2860
    %7340 = vmatpush1.msra.mxu0 %v2859
    %7341 = vmatprep.subr.mxu0 %v2864
    %7342 = vmatpush1.msra.mxu0 %v2863
    %7343 = vmatprep.subr.mxu0 %v2868
    %7344 = vmatpush1.msra.mxu0 %v2867
    %7345 = vmatprep.subr.mxu0 %v2872
    %7346 = vmatpush1.msra.mxu0 %v2871
    %7347 = vmatprep.subr.mxu0 %v2876
    %7348 = vmatpush1.msra.mxu0 %v2875
    %7349 = vmatprep.subr.mxu0 %v2880
    %7350 = vmatpush1.msra.mxu0 %v2879
    %7351 = vmatprep.subr.mxu0 %v2884
    %7352 = vmatpush1.msra.mxu0 %v2883
    %7353 = vmatprep.subr.mxu0 %v2888
    %7354 = vmatpush1.msra.mxu0 %v2887
    %7355 = vmatprep.subr.mxu0 %v2892
    %7356 = vmatpush1.msra.mxu0 %v2891
    %7357 = vmatprep.subr.mxu0 %v2896
    %7358 = vmatpush1.msra.mxu0 %v2895
    %7359 = vmatprep.subr.mxu0 %v2900
    %7360 = vmatpush1.msra.mxu0 %v2899
    %7361 = vmatprep.subr.mxu0 %v2904
    %7362 = vmatpush1.msra.mxu0 %v2903
    %7363 = vmatprep.subr.mxu0 %v2908
    %7364 = vmatpush1.msra.mxu0 %v2907
    %7365 = vmatprep.subr.mxu0 %v2912
    %7366 = vmatpush1.msra.mxu0 %v2911
    %7367 = vmatprep.subr.mxu0 %v2916
    %7368 = vmatpush1.msra.mxu0 %v2915
    %7369 = vmatprep.subr.mxu0 %v2920
    %7370 = vmatpush1.msra.mxu0 %v2919
    %7371 = vmatprep.subr.mxu0 %v2924
    %7372 = vmatpush1.msra.mxu0 %v2923
    %7373 = vmatprep.subr.mxu0 %v2928
    %7374 = vmatpush1.msra.mxu0 %v2927
    %7375 = vmatprep.subr.mxu0 %v2932
    %7376 = vmatpush1.msra.mxu0 %v2931
    %7377 = vmatprep.subr.mxu0 %v2936
    %7378 = vmatpush1.msra.mxu0 %v2935
    %7379 = vmatprep.mubr.f32.mxu0 %v7288
    %7380 = vmatmul.mubr.f32.gmra.mrb[0].mxu0 %v7285
    %v7381 = vpop.f32.mrb[0].mxu0
    %v7382 = vadd.f32 0.0, %v7381
    %v7383 = vpop.f32.mrb[0].mxu0
    %v7384 = vadd.f32 0.0, %v7383
    %7385 = vmatprep.mubr.f32.mxu0 %v7298
    %7386 = vmatmul.mubr.f32.gmra.mrb[0].mxu0 %v7296
    %v7387 = vpop.f32.mrb[0].mxu0
    %v7388 = vadd.f32 0.0, %v7387
    %v7389 = vpop.f32.mrb[0].mxu0
    %v7390 = vadd.f32 0.0, %v7389
    %7391 = vmatprep.mubr.f32.mxu0 %v7297
    %7392 = vmatmul.mubr.f32.gmra.mrb[0].mxu0 %v7295
    %v7393 = vpop.f32.mrb[0].mxu0
    %v7394 = vadd.f32 0.0, %v7393
    %v7395 = vpop.f32.mrb[0].mxu0
    %v7396 = vadd.f32 0.0, %v7395
    %7397 = vdwg.mxu0
    %7398 = vmatprep.subr.mxu0 %v2940
    %7399 = vmatpush1.msra.mxu0 %v2939
    %7400 = vmatprep.subr.mxu0 %v2944
    %7401 = vmatpush1.msra.mxu0 %v2943
    %7402 = vmatprep.subr.mxu0 %v2948
    %7403 = vmatpush1.msra.mxu0 %v2947
    %7404 = vmatprep.subr.mxu0 %v2952
    %7405 = vmatpush1.msra.mxu0 %v2951
    %7406 = vmatprep.subr.mxu0 %v2956
    %7407 = vmatpush1.msra.mxu0 %v2955
    %7408 = vmatprep.subr.mxu0 %v2960
    %7409 = vmatpush1.msra.mxu0 %v2959
    %7410 = vmatprep.subr.mxu0 %v2964
    %7411 = vmatpush1.msra.mxu0 %v2963
    %7412 = vmatprep.subr.mxu0 %v2968
    %7413 = vmatpush1.msra.mxu0 %v2967
    %7414 = vmatprep.subr.mxu0 %v2972
    %7415 = vmatpush1.msra.mxu0 %v2971
    %7416 = vmatprep.subr.mxu0 %v2976
    %7417 = vmatpush1.msra.mxu0 %v2975
    %7418 = vmatprep.subr.mxu0 %v2980
    %7419 = vmatpush1.msra.mxu0 %v2979
    %7420 = vmatprep.subr.mxu0 %v2984
    %7421 = vmatpush1.msra.mxu0 %v2983
    %7422 = vmatprep.subr.mxu0 %v2988
    %7423 = vmatpush1.msra.mxu0 %v2987
    %7424 = vmatprep.subr.mxu0 %v2992
    %7425 = vmatpush1.msra.mxu0 %v2991
    %7426 = vmatprep.subr.mxu0 %v2996
    %7427 = vmatpush1.msra.mxu0 %v2995
    %7428 = vmatprep.subr.mxu0 %v3000
    %7429 = vmatpush1.msra.mxu0 %v2999
    %7430 = vmatprep.subr.mxu0 %v3004
    %7431 = vmatpush1.msra.mxu0 %v3003
    %7432 = vmatprep.subr.mxu0 %v3008
    %7433 = vmatpush1.msra.mxu0 %v3007
    %7434 = vmatprep.subr.mxu0 %v3012
    %7435 = vmatpush1.msra.mxu0 %v3011
    %7436 = vmatprep.subr.mxu0 %v3016
    %7437 = vmatpush1.msra.mxu0 %v3015
    %7438 = vmatprep.subr.mxu0 %v3020
    %7439 = vmatpush1.msra.mxu0 %v3019
    %7440 = vmatprep.subr.mxu0 %v3024
    %7441 = vmatpush1.msra.mxu0 %v3023
    %7442 = vmatprep.subr.mxu0 %v3028
    %7443 = vmatpush1.msra.mxu0 %v3027
    %7444 = vmatprep.subr.mxu0 %v3032
    %7445 = vmatpush1.msra.mxu0 %v3031
    %7446 = vmatprep.subr.mxu0 %v3036
    %7447 = vmatpush1.msra.mxu0 %v3035
    %7448 = vmatprep.subr.mxu0 %v3040
    %7449 = vmatpush1.msra.mxu0 %v3039
    %7450 = vmatprep.subr.mxu0 %v3044
    %7451 = vmatpush1.msra.mxu0 %v3043
    %7452 = vmatprep.subr.mxu0 %v3048
    %7453 = vmatpush1.msra.mxu0 %v3047
    %7454 = vmatprep.subr.mxu0 %v3052
    %7455 = vmatpush1.msra.mxu0 %v3051
    %7456 = vmatprep.subr.mxu0 %v3056
    %7457 = vmatpush1.msra.mxu0 %v3055
    %7458 = vmatprep.subr.mxu0 %v3060
    %7459 = vmatpush1.msra.mxu0 %v3059
    %7460 = vmatprep.subr.mxu0 %v3064
    %7461 = vmatpush1.msra.mxu0 %v3063
    %7462 = vmatprep.mubr.f32.mxu0 %v7294
    %7463 = vmatmul.mubr.f32.gmra.mrb[0].mxu0 %v7291
    %v7464 = vpop.f32.mrb[0].mxu0
    %v7465 = vadd.f32 %v7382, %v7464
    %v7466 = vpop.f32.mrb[0].mxu0
    %v7467 = vadd.f32 %v7384, %v7466
    %7468 = vmatprep.mubr.f32.mxu0 %v7302
    %7469 = vmatmul.mubr.f32.gmra.mrb[0].mxu0 %v7300
    %v7470 = vpop.f32.mrb[0].mxu0
    %v7471 = vadd.f32 %v7388, %v7470
    %v7472 = vpop.f32.mrb[0].mxu0
    %v7473 = vadd.f32 %v7390, %v7472
    %7474 = vmatprep.mubr.f32.mxu0 %v7301
    %7475 = vmatmul.mubr.f32.gmra.mrb[0].mxu0 %v7299
    %v7476 = vpop.f32.mrb[0].mxu0
    %v7477 = vadd.f32 %v7394, %v7476
    %v7478 = vpop.f32.mrb[0].mxu0
    %v7479 = vadd.f32 %v7396, %v7478
    %7480 = vdwg.mxu0
    %7481 = vmatprep.subr.mxu0 %v2814
    %7482 = vmatpush1.msra.mxu0 %v2813
    %7483 = vmatprep.subr.mxu0 %v2818
    %7484 = vmatpush1.msra.mxu0 %v2817
    %7485 = vmatprep.subr.mxu0 %v2822
    %7486 = vmatpush1.msra.mxu0 %v2821
    %7487 = vmatprep.subr.mxu0 %v2826
    %7488 = vmatpush1.msra.mxu0 %v2825
    %7489 = vmatprep.subr.mxu0 %v2830
    %7490 = vmatpush1.msra.mxu0 %v2829
    %7491 = vmatprep.subr.mxu0 %v2834
    %7492 = vmatpush1.msra.mxu0 %v2833
    %7493 = vmatprep.subr.mxu0 %v2838
    %7494 = vmatpush1.msra.mxu0 %v2837
    %7495 = vmatprep.subr.mxu0 %v2842
    %7496 = vmatpush1.msra.mxu0 %v2841
    %7497 = vmatprep.subr.mxu0 %v2846
    %7498 = vmatpush1.msra.mxu0 %v2845
    %7499 = vmatprep.subr.mxu0 %v2850
    %7500 = vmatpush1.msra.mxu0 %v2849
    %7501 = vmatprep.subr.mxu0 %v2854
    %7502 = vmatpush1.msra.mxu0 %v2853
    %7503 = vmatprep.subr.mxu0 %v2858
    %7504 = vmatpush1.msra.mxu0 %v2857
    %7505 = vmatprep.subr.mxu0 %v2862
    %7506 = vmatpush1.msra.mxu0 %v2861
    %7507 = vmatprep.subr.mxu0 %v2866
    %7508 = vmatpush1.msra.mxu0 %v2865
    %7509 = vmatprep.subr.mxu0 %v2870
    %7510 = vmatpush1.msra.mxu0 %v2869
    %7511 = vmatprep.subr.mxu0 %v2874
    %7512 = vmatpush1.msra.mxu0 %v2873
    %7513 = vmatprep.subr.mxu0 %v2878
    %7514 = vmatpush1.msra.mxu0 %v2877
    %7515 = vmatprep.subr.mxu0 %v2882
    %7516 = vmatpush1.msra.mxu0 %v2881
    %7517 = vmatprep.subr.mxu0 %v2886
    %7518 = vmatpush1.msra.mxu0 %v2885
    %7519 = vmatprep.subr.mxu0 %v2890
    %7520 = vmatpush1.msra.mxu0 %v2889
    %7521 = vmatprep.subr.mxu0 %v2894
    %7522 = vmatpush1.msra.mxu0 %v2893
    %7523 = vmatprep.subr.mxu0 %v2898
    %7524 = vmatpush1.msra.mxu0 %v2897
    %7525 = vmatprep.subr.mxu0 %v2902
    %7526 = vmatpush1.msra.mxu0 %v2901
    %7527 = vmatprep.subr.mxu0 %v2906
    %7528 = vmatpush1.msra.mxu0 %v2905
    %7529 = vmatprep.subr.mxu0 %v2910
    %7530 = vmatpush1.msra.mxu0 %v2909
    %7531 = vmatprep.subr.mxu0 %v2914
    %7532 = vmatpush1.msra.mxu0 %v2913
    %7533 = vmatprep.subr.mxu0 %v2918
    %7534 = vmatpush1.msra.mxu0 %v2917
    %7535 = vmatprep.subr.mxu0 %v2922
    %7536 = vmatpush1.msra.mxu0 %v2921
    %7537 = vmatprep.subr.mxu0 %v2926
    %7538 = vmatpush1.msra.mxu0 %v2925
    %7539 = vmatprep.subr.mxu0 %v2930
    %7540 = vmatpush1.msra.mxu0 %v2929
    %7541 = vmatprep.subr.mxu0 %v2934
    %7542 = vmatpush1.msra.mxu0 %v2933
    %7543 = vmatprep.subr.mxu0 %v2938
    %7544 = vmatpush1.msra.mxu0 %v2937
    %7545 = vmatprep.mubr.f32.mxu0 %v7288
    %7546 = vmatmul.mubr.f32.gmra.mrb[0].mxu0 %v7285
    %v7547 = vpop.f32.mrb[0].mxu0
    %v7548 = vadd.f32 0.0, %v7547
    %v7549 = vpop.f32.mrb[0].mxu0
    %v7550 = vadd.f32 0.0, %v7549
    %7551 = vmatprep.mubr.f32.mxu0 %v7298
    %7552 = vmatmul.mubr.f32.gmra.mrb[0].mxu0 %v7296
    %v7553 = vpop.f32.mrb[0].mxu0
    %v7554 = vadd.f32 0.0, %v7553
    %v7555 = vpop.f32.mrb[0].mxu0
    %v7556 = vadd.f32 0.0, %v7555
    %7557 = vmatprep.mubr.f32.mxu0 %v7297
    %7558 = vmatmul.mubr.f32.gmra.mrb[0].mxu0 %v7295
    %v7559 = vpop.f32.mrb[0].mxu0
    %v7560 = vadd.f32 0.0, %v7559
    %v7561 = vpop.f32.mrb[0].mxu0
    %v7562 = vadd.f32 0.0, %v7561
    %7563 = vdwg.mxu0
    %7564 = vmatprep.subr.mxu0 %v2942
    %7565 = vmatpush1.msra.mxu0 %v2941
    %7566 = vmatprep.subr.mxu0 %v2946
    %7567 = vmatpush1.msra.mxu0 %v2945
    %7568 = vmatprep.subr.mxu0 %v2950
    %7569 = vmatpush1.msra.mxu0 %v2949
    %7570 = vmatprep.subr.mxu0 %v2954
    %7571 = vmatpush1.msra.mxu0 %v2953
    %7572 = vmatprep.subr.mxu0 %v2958
    %7573 = vmatpush1.msra.mxu0 %v2957
    %7574 = vmatprep.subr.mxu0 %v2962
    %7575 = vmatpush1.msra.mxu0 %v2961
    %7576 = vmatprep.subr.mxu0 %v2966
    %7577 = vmatpush1.msra.mxu0 %v2965
    %7578 = vmatprep.subr.mxu0 %v2970
    %7579 = vmatpush1.msra.mxu0 %v2969
    %7580 = vmatprep.subr.mxu0 %v2974
    %7581 = vmatpush1.msra.mxu0 %v2973
    %7582 = vmatprep.subr.mxu0 %v2978
    %7583 = vmatpush1.msra.mxu0 %v2977
    %7584 = vmatprep.subr.mxu0 %v2982
    %7585 = vmatpush1.msra.mxu0 %v2981
    %7586 = vmatprep.subr.mxu0 %v2986
    %7587 = vmatpush1.msra.mxu0 %v2985
    %7588 = vmatprep.subr.mxu0 %v2990
    %7589 = vmatpush1.msra.mxu0 %v2989
    %7590 = vmatprep.subr.mxu0 %v2994
    %7591 = vmatpush1.msra.mxu0 %v2993
    %7592 = vmatprep.subr.mxu0 %v2998
    %7593 = vmatpush1.msra.mxu0 %v2997
    %7594 = vmatprep.subr.mxu0 %v3002
    %7595 = vmatpush1.msra.mxu0 %v3001
    %7596 = vmatprep.subr.mxu0 %v3006
    %7597 = vmatpush1.msra.mxu0 %v3005
    %7598 = vmatprep.subr.mxu0 %v3010
    %7599 = vmatpush1.msra.mxu0 %v3009
    %7600 = vmatprep.subr.mxu0 %v3014
    %7601 = vmatpush1.msra.mxu0 %v3013
    %7602 = vmatprep.subr.mxu0 %v3018
    %7603 = vmatpush1.msra.mxu0 %v3017
    %7604 = vmatprep.subr.mxu0 %v3022
    %7605 = vmatpush1.msra.mxu0 %v3021
    %7606 = vmatprep.subr.mxu0 %v3026
    %7607 = vmatpush1.msra.mxu0 %v3025
    %7608 = vmatprep.subr.mxu0 %v3030
    %7609 = vmatpush1.msra.mxu0 %v3029
    %7610 = vmatprep.subr.mxu0 %v3034
    %7611 = vmatpush1.msra.mxu0 %v3033
    %7612 = vmatprep.subr.mxu0 %v3038
    %7613 = vmatpush1.msra.mxu0 %v3037
    %7614 = vmatprep.subr.mxu0 %v3042
    %7615 = vmatpush1.msra.mxu0 %v3041
    %7616 = vmatprep.subr.mxu0 %v3046
    %7617 = vmatpush1.msra.mxu0 %v3045
    %7618 = vmatprep.subr.mxu0 %v3050
    %7619 = vmatpush1.msra.mxu0 %v3049
    %7620 = vmatprep.subr.mxu0 %v3054
    %7621 = vmatpush1.msra.mxu0 %v3053
    %7622 = vmatprep.subr.mxu0 %v3058
    %7623 = vmatpush1.msra.mxu0 %v3057
    %7624 = vmatprep.subr.mxu0 %v3062
    %7625 = vmatpush1.msra.mxu0 %v3061
    %7626 = vmatprep.subr.mxu0 %v3066
    %7627 = vmatpush1.msra.mxu0 %v3065
    %7628 = vmatprep.mubr.f32.mxu0 %v7294
    %7629 = vmatmul.mubr.f32.gmra.mrb[0].mxu0 %v7291
    %v7630 = vpop.f32.mrb[0].mxu0
    %v7631 = vadd.f32 %v7548, %v7630
    %v7632 = vpop.f32.mrb[0].mxu0
    %v7633 = vadd.f32 %v7550, %v7632
    %7634 = vmatprep.mubr.f32.mxu0 %v7302
    %7635 = vmatmul.mubr.f32.gmra.mrb[0].mxu0 %v7300
    %v7636 = vpop.f32.mrb[0].mxu0
    %v7637 = vadd.f32 %v7554, %v7636
    %v7638 = vpop.f32.mrb[0].mxu0
    %v7639 = vadd.f32 %v7556, %v7638
    %7640 = vmatprep.mubr.f32.mxu0 %v7301
    %7641 = vmatmul.mubr.f32.gmra.mrb[0].mxu0 %v7299
    %v7642 = vpop.f32.mrb[0].mxu0
    %v7643 = vadd.f32 %v7560, %v7642
    %v7644 = vpop.f32.mrb[0].mxu0
    %v7645 = vadd.f32 %v7562, %v7644
    %7646 = vdwg.mxu0
    %7647 = vmatprep.subr.mxu0 %v2556
    %7648 = vmatpush1.msra.mxu0 %v2555
    %7649 = vmatprep.subr.mxu0 %v2560
    %7650 = vmatpush1.msra.mxu0 %v2559
    %7651 = vmatprep.subr.mxu0 %v2564
    %7652 = vmatpush1.msra.mxu0 %v2563
    %7653 = vmatprep.subr.mxu0 %v2568
    %7654 = vmatpush1.msra.mxu0 %v2567
    %7655 = vmatprep.subr.mxu0 %v2572
    %7656 = vmatpush1.msra.mxu0 %v2571
    %7657 = vmatprep.subr.mxu0 %v2576
    %7658 = vmatpush1.msra.mxu0 %v2575
    %7659 = vmatprep.subr.mxu0 %v2580
    %7660 = vmatpush1.msra.mxu0 %v2579
    %7661 = vmatprep.subr.mxu0 %v2584
    %7662 = vmatpush1.msra.mxu0 %v2583
    %7663 = vmatprep.subr.mxu0 %v2588
    %7664 = vmatpush1.msra.mxu0 %v2587
    %7665 = vmatprep.subr.mxu0 %v2592
    %7666 = vmatpush1.msra.mxu0 %v2591
    %7667 = vmatprep.subr.mxu0 %v2596
    %7668 = vmatpush1.msra.mxu0 %v2595
    %7669 = vmatprep.subr.mxu0 %v2600
    %7670 = vmatpush1.msra.mxu0 %v2599
    %7671 = vmatprep.subr.mxu0 %v2604
    %7672 = vmatpush1.msra.mxu0 %v2603
    %7673 = vmatprep.subr.mxu0 %v2608
    %7674 = vmatpush1.msra.mxu0 %v2607
    %7675 = vmatprep.subr.mxu0 %v2612
    %7676 = vmatpush1.msra.mxu0 %v2611
    %7677 = vmatprep.subr.mxu0 %v2616
    %7678 = vmatpush1.msra.mxu0 %v2615
    %7679 = vmatprep.subr.mxu0 %v2620
    %7680 = vmatpush1.msra.mxu0 %v2619
    %7681 = vmatprep.subr.mxu0 %v2624
    %7682 = vmatpush1.msra.mxu0 %v2623
    %7683 = vmatprep.subr.mxu0 %v2628
    %7684 = vmatpush1.msra.mxu0 %v2627
    %7685 = vmatprep.subr.mxu0 %v2632
    %7686 = vmatpush1.msra.mxu0 %v2631
    %7687 = vmatprep.subr.mxu0 %v2636
    %7688 = vmatpush1.msra.mxu0 %v2635
    %7689 = vmatprep.subr.mxu0 %v2640
    %7690 = vmatpush1.msra.mxu0 %v2639
    %7691 = vmatprep.subr.mxu0 %v2644
    %7692 = vmatpush1.msra.mxu0 %v2643
    %7693 = vmatprep.subr.mxu0 %v2648
    %7694 = vmatpush1.msra.mxu0 %v2647
    %7695 = vmatprep.subr.mxu0 %v2652
    %7696 = vmatpush1.msra.mxu0 %v2651
    %7697 = vmatprep.subr.mxu0 %v2656
    %7698 = vmatpush1.msra.mxu0 %v2655
    %7699 = vmatprep.subr.mxu0 %v2660
    %7700 = vmatpush1.msra.mxu0 %v2659
    %7701 = vmatprep.subr.mxu0 %v2664
    %7702 = vmatpush1.msra.mxu0 %v2663
    %7703 = vmatprep.subr.mxu0 %v2668
    %7704 = vmatpush1.msra.mxu0 %v2667
    %7705 = vmatprep.subr.mxu0 %v2672
    %7706 = vmatpush1.msra.mxu0 %v2671
    %7707 = vmatprep.subr.mxu0 %v2676
    %7708 = vmatpush1.msra.mxu0 %v2675
    %7709 = vmatprep.subr.mxu0 %v2680
    %7710 = vmatpush1.msra.mxu0 %v2679
    %7711 = vmatprep.mubr.f32.mxu0 %v7260
    %7712 = vmatmul.mubr.f32.gmra.mrb[0].mxu0 %v7259
    %v7713 = vpop.f32.mrb[0].mxu0
    %v7714 = vadd.f32 %v7465, %v7713
    %v7715 = vpop.f32.mrb[0].mxu0
    %v7716 = vadd.f32 %v7467, %v7715
    %7717 = vmatprep.mubr.f32.mxu0 %v7264
    %7718 = vmatmul.mubr.f32.gmra.mrb[0].mxu0 %v7263
    %v7719 = vpop.f32.mrb[0].mxu0
    %v7720 = vadd.f32 %v7471, %v7719
    %v7721 = vpop.f32.mrb[0].mxu0
    %v7722 = vadd.f32 %v7473, %v7721
    %7723 = vmatprep.mubr.f32.mxu0 %v7268
    %7724 = vmatmul.mubr.f32.gmra.mrb[0].mxu0 %v7267
    %v7725 = vpop.f32.mrb[0].mxu0
    %v7726 = vadd.f32 %v7477, %v7725
    %v7727 = vpop.f32.mrb[0].mxu0
    %v7728 = vadd.f32 %v7479, %v7727
    %7729 = vdwg.mxu0
    %7730 = vmatprep.subr.mxu0 %v2684
    %7731 = vmatpush1.msra.mxu0 %v2683
    %7732 = vmatprep.subr.mxu0 %v2688
    %7733 = vmatpush1.msra.mxu0 %v2687
    %7734 = vmatprep.subr.mxu0 %v2692
    %7735 = vmatpush1.msra.mxu0 %v2691
    %7736 = vmatprep.subr.mxu0 %v2696
    %7737 = vmatpush1.msra.mxu0 %v2695
    %7738 = vmatprep.subr.mxu0 %v2700
    %7739 = vmatpush1.msra.mxu0 %v2699
    %7740 = vmatprep.subr.mxu0 %v2704
    %7741 = vmatpush1.msra.mxu0 %v2703
    %7742 = vmatprep.subr.mxu0 %v2708
    %7743 = vmatpush1.msra.mxu0 %v2707
    %7744 = vmatprep.subr.mxu0 %v2712
    %7745 = vmatpush1.msra.mxu0 %v2711
    %7746 = vmatprep.subr.mxu0 %v2716
    %7747 = vmatpush1.msra.mxu0 %v2715
    %7748 = vmatprep.subr.mxu0 %v2720
    %7749 = vmatpush1.msra.mxu0 %v2719
    %7750 = vmatprep.subr.mxu0 %v2724
    %7751 = vmatpush1.msra.mxu0 %v2723
    %7752 = vmatprep.subr.mxu0 %v2728
    %7753 = vmatpush1.msra.mxu0 %v2727
    %7754 = vmatprep.subr.mxu0 %v2732
    %7755 = vmatpush1.msra.mxu0 %v2731
    %7756 = vmatprep.subr.mxu0 %v2736
    %7757 = vmatpush1.msra.mxu0 %v2735
    %7758 = vmatprep.subr.mxu0 %v2740
    %7759 = vmatpush1.msra.mxu0 %v2739
    %7760 = vmatprep.subr.mxu0 %v2744
    %7761 = vmatpush1.msra.mxu0 %v2743
    %7762 = vmatprep.subr.mxu0 %v2748
    %7763 = vmatpush1.msra.mxu0 %v2747
    %7764 = vmatprep.subr.mxu0 %v2752
    %7765 = vmatpush1.msra.mxu0 %v2751
    %7766 = vmatprep.subr.mxu0 %v2756
    %7767 = vmatpush1.msra.mxu0 %v2755
    %7768 = vmatprep.subr.mxu0 %v2760
    %7769 = vmatpush1.msra.mxu0 %v2759
    %7770 = vmatprep.subr.mxu0 %v2764
    %7771 = vmatpush1.msra.mxu0 %v2763
    %7772 = vmatprep.subr.mxu0 %v2768
    %7773 = vmatpush1.msra.mxu0 %v2767
    %7774 = vmatprep.subr.mxu0 %v2772
    %7775 = vmatpush1.msra.mxu0 %v2771
    %7776 = vmatprep.subr.mxu0 %v2776
    %7777 = vmatpush1.msra.mxu0 %v2775
    %7778 = vmatprep.subr.mxu0 %v2780
    %7779 = vmatpush1.msra.mxu0 %v2779
    %7780 = vmatprep.subr.mxu0 %v2784
    %7781 = vmatpush1.msra.mxu0 %v2783
    %7782 = vmatprep.subr.mxu0 %v2788
    %7783 = vmatpush1.msra.mxu0 %v2787
    %7784 = vmatprep.subr.mxu0 %v2792
    %7785 = vmatpush1.msra.mxu0 %v2791
    %7786 = vmatprep.subr.mxu0 %v2796
    %7787 = vmatpush1.msra.mxu0 %v2795
    %7788 = vmatprep.subr.mxu0 %v2800
    %7789 = vmatpush1.msra.mxu0 %v2799
    %7790 = vmatprep.subr.mxu0 %v2804
    %7791 = vmatpush1.msra.mxu0 %v2803
    %7792 = vmatprep.subr.mxu0 %v2808
    %7793 = vmatpush1.msra.mxu0 %v2807
    %7794 = vmatprep.mubr.f32.mxu0 %v7262
    %7795 = vmatmul.mubr.f32.gmra.mrb[0].mxu0 %v7261
    %v7796 = vpop.f32.mrb[0].mxu0
    %v7797 = vadd.f32 %v7714, %v7796
    %v7798 = vpop.f32.mrb[0].mxu0
    %v7799 = vadd.f32 %v7716, %v7798
    %7800 = vmatprep.mubr.f32.mxu0 %v7266
    %7801 = vmatmul.mubr.f32.gmra.mrb[0].mxu0 %v7265
    %v7802 = vpop.f32.mrb[0].mxu0
    %v7803 = vadd.f32 %v7720, %v7802
    %v7804 = vpop.f32.mrb[0].mxu0
    %v7805 = vadd.f32 %v7722, %v7804
    %7806 = vmatprep.mubr.f32.mxu0 %v7270
    %7807 = vmatmul.mubr.f32.gmra.mrb[0].mxu0 %v7269
    %v7808 = vpop.f32.mrb[0].mxu0
    %v7809 = vadd.f32 %v7726, %v7808
    %v7810 = vpop.f32.mrb[0].mxu0
    %v7811 = vadd.f32 %v7728, %v7810
    %7812 = vdwg.mxu0
    %7813 = vmatprep.subr.mxu0 %v2558
    %7814 = vmatpush1.msra.mxu0 %v2557
    %7815 = vmatprep.subr.mxu0 %v2562
    %7816 = vmatpush1.msra.mxu0 %v2561
    %7817 = vmatprep.subr.mxu0 %v2566
    %7818 = vmatpush1.msra.mxu0 %v2565
    %7819 = vmatprep.subr.mxu0 %v2570
    %7820 = vmatpush1.msra.mxu0 %v2569
    %7821 = vmatprep.subr.mxu0 %v2574
    %7822 = vmatpush1.msra.mxu0 %v2573
    %7823 = vmatprep.subr.mxu0 %v2578
    %7824 = vmatpush1.msra.mxu0 %v2577
    %7825 = vmatprep.subr.mxu0 %v2582
    %7826 = vmatpush1.msra.mxu0 %v2581
    %7827 = vmatprep.subr.mxu0 %v2586
    %7828 = vmatpush1.msra.mxu0 %v2585
    %7829 = vmatprep.subr.mxu0 %v2590
    %7830 = vmatpush1.msra.mxu0 %v2589
    %7831 = vmatprep.subr.mxu0 %v2594
    %7832 = vmatpush1.msra.mxu0 %v2593
    %7833 = vmatprep.subr.mxu0 %v2598
    %7834 = vmatpush1.msra.mxu0 %v2597
    %7835 = vmatprep.subr.mxu0 %v2602
    %7836 = vmatpush1.msra.mxu0 %v2601
    %7837 = vmatprep.subr.mxu0 %v2606
    %7838 = vmatpush1.msra.mxu0 %v2605
    %7839 = vmatprep.subr.mxu0 %v2610
    %7840 = vmatpush1.msra.mxu0 %v2609
    %7841 = vmatprep.subr.mxu0 %v2614
    %7842 = vmatpush1.msra.mxu0 %v2613
    %7843 = vmatprep.subr.mxu0 %v2618
    %7844 = vmatpush1.msra.mxu0 %v2617
    %7845 = vmatprep.subr.mxu0 %v2622
    %7846 = vmatpush1.msra.mxu0 %v2621
    %7847 = vmatprep.subr.mxu0 %v2626
    %7848 = vmatpush1.msra.mxu0 %v2625
    %7849 = vmatprep.subr.mxu0 %v2630
    %7850 = vmatpush1.msra.mxu0 %v2629
    %7851 = vmatprep.subr.mxu0 %v2634
    %7852 = vmatpush1.msra.mxu0 %v2633
    %7853 = vmatprep.subr.mxu0 %v2638
    %7854 = vmatpush1.msra.mxu0 %v2637
    %7855 = vmatprep.subr.mxu0 %v2642
    %7856 = vmatpush1.msra.mxu0 %v2641
    %7857 = vmatprep.subr.mxu0 %v2646
    %7858 = vmatpush1.msra.mxu0 %v2645
    %7859 = vmatprep.subr.mxu0 %v2650
    %7860 = vmatpush1.msra.mxu0 %v2649
    %7861 = vmatprep.subr.mxu0 %v2654
    %7862 = vmatpush1.msra.mxu0 %v2653
    %7863 = vmatprep.subr.mxu0 %v2658
    %7864 = vmatpush1.msra.mxu0 %v2657
    %7865 = vmatprep.subr.mxu0 %v2662
    %7866 = vmatpush1.msra.mxu0 %v2661
    %7867 = vmatprep.subr.mxu0 %v2666
    %7868 = vmatpush1.msra.mxu0 %v2665
    %7869 = vmatprep.subr.mxu0 %v2670
    %7870 = vmatpush1.msra.mxu0 %v2669
    %7871 = vmatprep.subr.mxu0 %v2674
    %7872 = vmatpush1.msra.mxu0 %v2673
    %7873 = vmatprep.subr.mxu0 %v2678
    %7874 = vmatpush1.msra.mxu0 %v2677
    %7875 = vmatprep.subr.mxu0 %v2682
    %7876 = vmatpush1.msra.mxu0 %v2681
    %7877 = vmatprep.mubr.f32.mxu0 %v7260
    %7878 = vmatmul.mubr.f32.gmra.mrb[0].mxu0 %v7259
    %v7879 = vpop.f32.mrb[0].mxu0
    %v7880 = vadd.f32 %v7631, %v7879
    %v7881 = vpop.f32.mrb[0].mxu0
    %v7882 = vadd.f32 %v7633, %v7881
    %7883 = vmatprep.mubr.f32.mxu0 %v7264
    %7884 = vmatmul.mubr.f32.gmra.mrb[0].mxu0 %v7263
    %v7885 = vpop.f32.mrb[0].mxu0
    %v7886 = vadd.f32 %v7637, %v7885
    %v7887 = vpop.f32.mrb[0].mxu0
    %v7888 = vadd.f32 %v7639, %v7887
    %7889 = vmatprep.mubr.f32.mxu0 %v7268
    %7890 = vmatmul.mubr.f32.gmra.mrb[0].mxu0 %v7267
    %v7891 = vpop.f32.mrb[0].mxu0
    %v7892 = vadd.f32 %v7643, %v7891
    %v7893 = vpop.f32.mrb[0].mxu0
    %v7894 = vadd.f32 %v7645, %v7893
    %7895 = vdwg.mxu0
    %7896 = vmatprep.subr.mxu0 %v2686
    %7897 = vmatpush1.msra.mxu0 %v2685
    %7898 = vmatprep.subr.mxu0 %v2690
    %7899 = vmatpush1.msra.mxu0 %v2689
    %7900 = vmatprep.subr.mxu0 %v2694
    %7901 = vmatpush1.msra.mxu0 %v2693
    %7902 = vmatprep.subr.mxu0 %v2698
    %7903 = vmatpush1.msra.mxu0 %v2697
    %7904 = vmatprep.subr.mxu0 %v2702
    %7905 = vmatpush1.msra.mxu0 %v2701
    %7906 = vmatprep.subr.mxu0 %v2706
    %7907 = vmatpush1.msra.mxu0 %v2705
    %7908 = vmatprep.subr.mxu0 %v2710
    %7909 = vmatpush1.msra.mxu0 %v2709
    %7910 = vmatprep.subr.mxu0 %v2714
    %7911 = vmatpush1.msra.mxu0 %v2713
    %7912 = vmatprep.subr.mxu0 %v2718
    %7913 = vmatpush1.msra.mxu0 %v2717
    %7914 = vmatprep.subr.mxu0 %v2722
    %7915 = vmatpush1.msra.mxu0 %v2721
    %7916 = vmatprep.subr.mxu0 %v2726
    %7917 = vmatpush1.msra.mxu0 %v2725
    %7918 = vmatprep.subr.mxu0 %v2730
    %7919 = vmatpush1.msra.mxu0 %v2729
    %7920 = vmatprep.subr.mxu0 %v2734
    %7921 = vmatpush1.msra.mxu0 %v2733
    %7922 = vmatprep.subr.mxu0 %v2738
    %7923 = vmatpush1.msra.mxu0 %v2737
    %7924 = vmatprep.subr.mxu0 %v2742
    %7925 = vmatpush1.msra.mxu0 %v2741
    %7926 = vmatprep.subr.mxu0 %v2746
    %7927 = vmatpush1.msra.mxu0 %v2745
    %7928 = vmatprep.subr.mxu0 %v2750
    %7929 = vmatpush1.msra.mxu0 %v2749
    %7930 = vmatprep.subr.mxu0 %v2754
    %7931 = vmatpush1.msra.mxu0 %v2753
    %7932 = vmatprep.subr.mxu0 %v2758
    %7933 = vmatpush1.msra.mxu0 %v2757
    %7934 = vmatprep.subr.mxu0 %v2762
    %7935 = vmatpush1.msra.mxu0 %v2761
    %7936 = vmatprep.subr.mxu0 %v2766
    %7937 = vmatpush1.msra.mxu0 %v2765
    %7938 = vmatprep.subr.mxu0 %v2770
    %7939 = vmatpush1.msra.mxu0 %v2769
    %7940 = vmatprep.subr.mxu0 %v2774
    %7941 = vmatpush1.msra.mxu0 %v2773
    %7942 = vmatprep.subr.mxu0 %v2778
    %7943 = vmatpush1.msra.mxu0 %v2777
    %7944 = vmatprep.subr.mxu0 %v2782
    %7945 = vmatpush1.msra.mxu0 %v2781
    %7946 = vmatprep.subr.mxu0 %v2786
    %7947 = vmatpush1.msra.mxu0 %v2785
    %7948 = vmatprep.subr.mxu0 %v2790
    %7949 = vmatpush1.msra.mxu0 %v2789
    %7950 = vmatprep.subr.mxu0 %v2794
    %7951 = vmatpush1.msra.mxu0 %v2793
    %7952 = vmatprep.subr.mxu0 %v2798
    %7953 = vmatpush1.msra.mxu0 %v2797
    %7954 = vmatprep.subr.mxu0 %v2802
    %7955 = vmatpush1.msra.mxu0 %v2801
    %7956 = vmatprep.subr.mxu0 %v2806
    %7957 = vmatpush1.msra.mxu0 %v2805
    %7958 = vmatprep.subr.mxu0 %v2810
    %7959 = vmatpush1.msra.mxu0 %v2809
    %7960 = vmatprep.mubr.f32.mxu0 %v7262
    %7961 = vmatmul.mubr.f32.gmra.mrb[0].mxu0 %v7261
    %v7962 = vpop.f32.mrb[0].mxu0
    %v7963 = vadd.f32 %v7880, %v7962
    %v7964 = vpop.f32.mrb[0].mxu0
    %v7965 = vadd.f32 %v7882, %v7964
    %7966 = vmatprep.mubr.f32.mxu0 %v7266
    %7967 = vmatmul.mubr.f32.gmra.mrb[0].mxu0 %v7265
    %v7968 = vpop.f32.mrb[0].mxu0
    %v7969 = vadd.f32 %v7886, %v7968
    %v7970 = vpop.f32.mrb[0].mxu0
    %v7971 = vadd.f32 %v7888, %v7970
    %7972 = vmatprep.mubr.f32.mxu0 %v7270
    %7973 = vmatmul.mubr.f32.gmra.mrb[0].mxu0 %v7269
    %v7974 = vpop.f32.mrb[0].mxu0
    %v7975 = vadd.f32 %v7892, %v7974
    %v7976 = vpop.f32.mrb[0].mxu0
    %v7977 = vadd.f32 %v7894, %v7976
    %7978 = vdwg.mxu0
    %v7979 = vrot.slane %v7259, 6
    %v7980 = vrot.slane %v7263, 6
    %v7981 = vsel %vm4031, %v7979, %v7980
    %v7982 = vrot.slane %v7260, 6
    %v7983 = vrot.slane %v7264, 6
    %v7984 = vsel %vm4031, %v7982, %v7983
    %v7985 = vrot.slane %v7261, 6
    %v7986 = vrot.slane %v7265, 6
    %v7987 = vsel %vm4031, %v7985, %v7986
    %v7988 = vrot.slane %v7262, 6
    %v7989 = vrot.slane %v7266, 6
    %v7990 = vsel %vm4031, %v7988, %v7989
    %v7991 = vrot.slane %v7267, 6
    %v7992 = vsel %vm4031, %v7980, %v7991
    %v7993 = vrot.slane %v7268, 6
    %v7994 = vsel %vm4031, %v7983, %v7993
    %v7995 = vrot.slane %v7269, 6
    %v7996 = vsel %vm4031, %v7986, %v7995
    %v7997 = vrot.slane %v7270, 6
    %v7998 = vsel %vm4031, %v7989, %v7997
    %8011 = vmatprep.subr.mxu0 %v3776
    %8012 = vmatpush1.msra.mxu0 %v3775
    %8013 = vmatprep.subr.mxu0 %v3780
    %8014 = vmatpush1.msra.mxu0 %v3779
    %8015 = vmatprep.subr.mxu0 %v3784
    %8016 = vmatpush1.msra.mxu0 %v3783
    %8017 = vmatprep.subr.mxu0 %v3788
    %8018 = vmatpush1.msra.mxu0 %v3787
    %8019 = vmatprep.subr.mxu0 %v3792
    %8020 = vmatpush1.msra.mxu0 %v3791
    %8021 = vmatprep.subr.mxu0 %v3796
    %8022 = vmatpush1.msra.mxu0 %v3795
    %8023 = vmatprep.subr.mxu0 %v3800
    %8024 = vmatpush1.msra.mxu0 %v3799
    %8025 = vmatprep.subr.mxu0 %v3804
    %8026 = vmatpush1.msra.mxu0 %v3803
    %8027 = vmatprep.subr.mxu0 %v3808
    %8028 = vmatpush1.msra.mxu0 %v3807
    %8029 = vmatprep.subr.mxu0 %v3812
    %8030 = vmatpush1.msra.mxu0 %v3811
    %8031 = vmatprep.subr.mxu0 %v3816
    %8032 = vmatpush1.msra.mxu0 %v3815
    %8033 = vmatprep.subr.mxu0 %v3820
    %8034 = vmatpush1.msra.mxu0 %v3819
    %8035 = vmatprep.subr.mxu0 %v3824
    %8036 = vmatpush1.msra.mxu0 %v3823
    %8037 = vmatprep.subr.mxu0 %v3828
    %8038 = vmatpush1.msra.mxu0 %v3827
    %8039 = vmatprep.subr.mxu0 %v3832
    %8040 = vmatpush1.msra.mxu0 %v3831
    %8041 = vmatprep.subr.mxu0 %v3836
    %8042 = vmatpush1.msra.mxu0 %v3835
    %8043 = vmatprep.subr.mxu0 %v3840
    %8044 = vmatpush1.msra.mxu0 %v3839
    %8045 = vmatprep.subr.mxu0 %v3844
    %8046 = vmatpush1.msra.mxu0 %v3843
    %8047 = vmatprep.subr.mxu0 %v3848
    %8048 = vmatpush1.msra.mxu0 %v3847
    %8049 = vmatprep.subr.mxu0 %v3852
    %8050 = vmatpush1.msra.mxu0 %v3851
    %8051 = vmatprep.subr.mxu0 %v3856
    %8052 = vmatpush1.msra.mxu0 %v3855
    %8053 = vmatprep.subr.mxu0 %v3860
    %8054 = vmatpush1.msra.mxu0 %v3859
    %8055 = vmatprep.subr.mxu0 %v3864
    %8056 = vmatpush1.msra.mxu0 %v3863
    %8057 = vmatprep.subr.mxu0 %v3868
    %8058 = vmatpush1.msra.mxu0 %v3867
    %8059 = vmatprep.subr.mxu0 %v3872
    %8060 = vmatpush1.msra.mxu0 %v3871
    %8061 = vmatprep.subr.mxu0 %v3876
    %8062 = vmatpush1.msra.mxu0 %v3875
    %8063 = vmatprep.subr.mxu0 %v3880
    %8064 = vmatpush1.msra.mxu0 %v3879
    %8065 = vmatprep.subr.mxu0 %v3884
    %8066 = vmatpush1.msra.mxu0 %v3883
    %8067 = vmatprep.subr.mxu0 %v3888
    %8068 = vmatpush1.msra.mxu0 %v3887
    %8069 = vmatprep.subr.mxu0 %v3892
    %8070 = vmatpush1.msra.mxu0 %v3891
    %8071 = vmatprep.subr.mxu0 %v3896
    %8072 = vmatpush1.msra.mxu0 %v3895
    %8073 = vmatprep.subr.mxu0 %v3900
    %8074 = vmatpush1.msra.mxu0 %v3899
    %8075 = vmatprep.mubr.f32.mxu0 %v7984
    %8076 = vmatmul.mubr.f32.gmra.mrb[0].mxu0 %v7981
    %v8077 = vpop.f32.mrb[0].mxu0
    %v8078 = vadd.f32 0.0, %v8077
    %v8079 = vpop.f32.mrb[0].mxu0
    %v8080 = vadd.f32 0.0, %v8079
    %8081 = vmatprep.mubr.f32.mxu0 %v7994
    %8082 = vmatmul.mubr.f32.gmra.mrb[0].mxu0 %v7992
    %v8083 = vpop.f32.mrb[0].mxu0
    %v8084 = vadd.f32 0.0, %v8083
    %v8085 = vpop.f32.mrb[0].mxu0
    %v8086 = vadd.f32 0.0, %v8085
    %8087 = vmatprep.mubr.f32.mxu0 %v7993
    %8088 = vmatmul.mubr.f32.gmra.mrb[0].mxu0 %v7991
    %v8089 = vpop.f32.mrb[0].mxu0
    %v8090 = vadd.f32 0.0, %v8089
    %v8091 = vpop.f32.mrb[0].mxu0
    %v8092 = vadd.f32 0.0, %v8091
    %8093 = vdwg.mxu0
    %8094 = vmatprep.subr.mxu0 %v3904
    %8095 = vmatpush1.msra.mxu0 %v3903
    %8096 = vmatprep.subr.mxu0 %v3908
    %8097 = vmatpush1.msra.mxu0 %v3907
    %8098 = vmatprep.subr.mxu0 %v3912
    %8099 = vmatpush1.msra.mxu0 %v3911
    %8100 = vmatprep.subr.mxu0 %v3916
    %8101 = vmatpush1.msra.mxu0 %v3915
    %8102 = vmatprep.subr.mxu0 %v3920
    %8103 = vmatpush1.msra.mxu0 %v3919
    %8104 = vmatprep.subr.mxu0 %v3924
    %8105 = vmatpush1.msra.mxu0 %v3923
    %8106 = vmatprep.subr.mxu0 %v3928
    %8107 = vmatpush1.msra.mxu0 %v3927
    %8108 = vmatprep.subr.mxu0 %v3932
    %8109 = vmatpush1.msra.mxu0 %v3931
    %8110 = vmatprep.subr.mxu0 %v3936
    %8111 = vmatpush1.msra.mxu0 %v3935
    %8112 = vmatprep.subr.mxu0 %v3940
    %8113 = vmatpush1.msra.mxu0 %v3939
    %8114 = vmatprep.subr.mxu0 %v3944
    %8115 = vmatpush1.msra.mxu0 %v3943
    %8116 = vmatprep.subr.mxu0 %v3948
    %8117 = vmatpush1.msra.mxu0 %v3947
    %8118 = vmatprep.subr.mxu0 %v3952
    %8119 = vmatpush1.msra.mxu0 %v3951
    %8120 = vmatprep.subr.mxu0 %v3956
    %8121 = vmatpush1.msra.mxu0 %v3955
    %8122 = vmatprep.subr.mxu0 %v3960
    %8123 = vmatpush1.msra.mxu0 %v3959
    %8124 = vmatprep.subr.mxu0 %v3964
    %8125 = vmatpush1.msra.mxu0 %v3963
    %8126 = vmatprep.subr.mxu0 %v3968
    %8127 = vmatpush1.msra.mxu0 %v3967
    %8128 = vmatprep.subr.mxu0 %v3972
    %8129 = vmatpush1.msra.mxu0 %v3971
    %8130 = vmatprep.subr.mxu0 %v3976
    %8131 = vmatpush1.msra.mxu0 %v3975
    %8132 = vmatprep.subr.mxu0 %v3980
    %8133 = vmatpush1.msra.mxu0 %v3979
    %8134 = vmatprep.subr.mxu0 %v3984
    %8135 = vmatpush1.msra.mxu0 %v3983
    %8136 = vmatprep.subr.mxu0 %v3988
    %8137 = vmatpush1.msra.mxu0 %v3987
    %8138 = vmatprep.subr.mxu0 %v3992
    %8139 = vmatpush1.msra.mxu0 %v3991
    %8140 = vmatprep.subr.mxu0 %v3996
    %8141 = vmatpush1.msra.mxu0 %v3995
    %8142 = vmatprep.subr.mxu0 %v4000
    %8143 = vmatpush1.msra.mxu0 %v3999
    %8144 = vmatprep.subr.mxu0 %v4004
    %8145 = vmatpush1.msra.mxu0 %v4003
    %8146 = vmatprep.subr.mxu0 %v4008
    %8147 = vmatpush1.msra.mxu0 %v4007
    %8148 = vmatprep.subr.mxu0 %v4012
    %8149 = vmatpush1.msra.mxu0 %v4011
    %8150 = vmatprep.subr.mxu0 %v4016
    %8151 = vmatpush1.msra.mxu0 %v4015
    %8152 = vmatprep.subr.mxu0 %v4020
    %8153 = vmatpush1.msra.mxu0 %v4019
    %8154 = vmatprep.subr.mxu0 %v4024
    %8155 = vmatpush1.msra.mxu0 %v4023
    %8156 = vmatprep.subr.mxu0 %v4028
    %8157 = vmatpush1.msra.mxu0 %v4027
    %8158 = vmatprep.mubr.f32.mxu0 %v7990
    %8159 = vmatmul.mubr.f32.gmra.mrb[0].mxu0 %v7987
    %v8160 = vpop.f32.mrb[0].mxu0
    %v8161 = vadd.f32 %v8078, %v8160
    %v8162 = vpop.f32.mrb[0].mxu0
    %v8163 = vadd.f32 %v8080, %v8162
    %8164 = vmatprep.mubr.f32.mxu0 %v7998
    %8165 = vmatmul.mubr.f32.gmra.mrb[0].mxu0 %v7996
    %v8166 = vpop.f32.mrb[0].mxu0
    %v8167 = vadd.f32 %v8084, %v8166
    %v8168 = vpop.f32.mrb[0].mxu0
    %v8169 = vadd.f32 %v8086, %v8168
    %8170 = vmatprep.mubr.f32.mxu0 %v7997
    %8171 = vmatmul.mubr.f32.gmra.mrb[0].mxu0 %v7995
    %v8172 = vpop.f32.mrb[0].mxu0
    %v8173 = vadd.f32 %v8090, %v8172
    %v8174 = vpop.f32.mrb[0].mxu0
    %v8175 = vadd.f32 %v8092, %v8174
    %8176 = vdwg.mxu0
    %8177 = vmatprep.subr.mxu0 %v3778
    %8178 = vmatpush1.msra.mxu0 %v3777
    %8179 = vmatprep.subr.mxu0 %v3782
    %8180 = vmatpush1.msra.mxu0 %v3781
    %8181 = vmatprep.subr.mxu0 %v3786
    %8182 = vmatpush1.msra.mxu0 %v3785
    %8183 = vmatprep.subr.mxu0 %v3790
    %8184 = vmatpush1.msra.mxu0 %v3789
    %8185 = vmatprep.subr.mxu0 %v3794
    %8186 = vmatpush1.msra.mxu0 %v3793
    %8187 = vmatprep.subr.mxu0 %v3798
    %8188 = vmatpush1.msra.mxu0 %v3797
    %8189 = vmatprep.subr.mxu0 %v3802
    %8190 = vmatpush1.msra.mxu0 %v3801
    %8191 = vmatprep.subr.mxu0 %v3806
    %8192 = vmatpush1.msra.mxu0 %v3805
    %8193 = vmatprep.subr.mxu0 %v3810
    %8194 = vmatpush1.msra.mxu0 %v3809
    %8195 = vmatprep.subr.mxu0 %v3814
    %8196 = vmatpush1.msra.mxu0 %v3813
    %8197 = vmatprep.subr.mxu0 %v3818
    %8198 = vmatpush1.msra.mxu0 %v3817
    %8199 = vmatprep.subr.mxu0 %v3822
    %8200 = vmatpush1.msra.mxu0 %v3821
    %8201 = vmatprep.subr.mxu0 %v3826
    %8202 = vmatpush1.msra.mxu0 %v3825
    %8203 = vmatprep.subr.mxu0 %v3830
    %8204 = vmatpush1.msra.mxu0 %v3829
    %8205 = vmatprep.subr.mxu0 %v3834
    %8206 = vmatpush1.msra.mxu0 %v3833
    %8207 = vmatprep.subr.mxu0 %v3838
    %8208 = vmatpush1.msra.mxu0 %v3837
    %8209 = vmatprep.subr.mxu0 %v3842
    %8210 = vmatpush1.msra.mxu0 %v3841
    %8211 = vmatprep.subr.mxu0 %v3846
    %8212 = vmatpush1.msra.mxu0 %v3845
    %8213 = vmatprep.subr.mxu0 %v3850
    %8214 = vmatpush1.msra.mxu0 %v3849
    %8215 = vmatprep.subr.mxu0 %v3854
    %8216 = vmatpush1.msra.mxu0 %v3853
    %8217 = vmatprep.subr.mxu0 %v3858
    %8218 = vmatpush1.msra.mxu0 %v3857
    %8219 = vmatprep.subr.mxu0 %v3862
    %8220 = vmatpush1.msra.mxu0 %v3861
    %8221 = vmatprep.subr.mxu0 %v3866
    %8222 = vmatpush1.msra.mxu0 %v3865
    %8223 = vmatprep.subr.mxu0 %v3870
    %8224 = vmatpush1.msra.mxu0 %v3869
    %8225 = vmatprep.subr.mxu0 %v3874
    %8226 = vmatpush1.msra.mxu0 %v3873
    %8227 = vmatprep.subr.mxu0 %v3878
    %8228 = vmatpush1.msra.mxu0 %v3877
    %8229 = vmatprep.subr.mxu0 %v3882
    %8230 = vmatpush1.msra.mxu0 %v3881
    %8231 = vmatprep.subr.mxu0 %v3886
    %8232 = vmatpush1.msra.mxu0 %v3885
    %8233 = vmatprep.subr.mxu0 %v3890
    %8234 = vmatpush1.msra.mxu0 %v3889
    %8235 = vmatprep.subr.mxu0 %v3894
    %8236 = vmatpush1.msra.mxu0 %v3893
    %8237 = vmatprep.subr.mxu0 %v3898
    %8238 = vmatpush1.msra.mxu0 %v3897
    %8239 = vmatprep.subr.mxu0 %v3902
    %8240 = vmatpush1.msra.mxu0 %v3901
    %8241 = vmatprep.mubr.f32.mxu0 %v7984
    %8242 = vmatmul.mubr.f32.gmra.mrb[0].mxu0 %v7981
    %v8243 = vpop.f32.mrb[0].mxu0
    %v8244 = vadd.f32 0.0, %v8243
    %v8245 = vpop.f32.mrb[0].mxu0
    %v8246 = vadd.f32 0.0, %v8245
    %8247 = vmatprep.mubr.f32.mxu0 %v7994
    %8248 = vmatmul.mubr.f32.gmra.mrb[0].mxu0 %v7992
    %v8249 = vpop.f32.mrb[0].mxu0
    %v8250 = vadd.f32 0.0, %v8249
    %v8251 = vpop.f32.mrb[0].mxu0
    %v8252 = vadd.f32 0.0, %v8251
    %8253 = vmatprep.mubr.f32.mxu0 %v7993
    %8254 = vmatmul.mubr.f32.gmra.mrb[0].mxu0 %v7991
    %v8255 = vpop.f32.mrb[0].mxu0
    %v8256 = vadd.f32 0.0, %v8255
    %v8257 = vpop.f32.mrb[0].mxu0
    %v8258 = vadd.f32 0.0, %v8257
    %8259 = vdwg.mxu0
    %8260 = vmatprep.subr.mxu0 %v3906
    %8261 = vmatpush1.msra.mxu0 %v3905
    %8262 = vmatprep.subr.mxu0 %v3910
    %8263 = vmatpush1.msra.mxu0 %v3909
    %8264 = vmatprep.subr.mxu0 %v3914
    %8265 = vmatpush1.msra.mxu0 %v3913
    %8266 = vmatprep.subr.mxu0 %v3918
    %8267 = vmatpush1.msra.mxu0 %v3917
    %8268 = vmatprep.subr.mxu0 %v3922
    %8269 = vmatpush1.msra.mxu0 %v3921
    %8270 = vmatprep.subr.mxu0 %v3926
    %8271 = vmatpush1.msra.mxu0 %v3925
    %8272 = vmatprep.subr.mxu0 %v3930
    %8273 = vmatpush1.msra.mxu0 %v3929
    %8274 = vmatprep.subr.mxu0 %v3934
    %8275 = vmatpush1.msra.mxu0 %v3933
    %8276 = vmatprep.subr.mxu0 %v3938
    %8277 = vmatpush1.msra.mxu0 %v3937
    %8278 = vmatprep.subr.mxu0 %v3942
    %8279 = vmatpush1.msra.mxu0 %v3941
    %8280 = vmatprep.subr.mxu0 %v3946
    %8281 = vmatpush1.msra.mxu0 %v3945
    %8282 = vmatprep.subr.mxu0 %v3950
    %8283 = vmatpush1.msra.mxu0 %v3949
    %8284 = vmatprep.subr.mxu0 %v3954
    %8285 = vmatpush1.msra.mxu0 %v3953
    %8286 = vmatprep.subr.mxu0 %v3958
    %8287 = vmatpush1.msra.mxu0 %v3957
    %8288 = vmatprep.subr.mxu0 %v3962
    %8289 = vmatpush1.msra.mxu0 %v3961
    %8290 = vmatprep.subr.mxu0 %v3966
    %8291 = vmatpush1.msra.mxu0 %v3965
    %8292 = vmatprep.subr.mxu0 %v3970
    %8293 = vmatpush1.msra.mxu0 %v3969
    %8294 = vmatprep.subr.mxu0 %v3974
    %8295 = vmatpush1.msra.mxu0 %v3973
    %8296 = vmatprep.subr.mxu0 %v3978
    %8297 = vmatpush1.msra.mxu0 %v3977
    %8298 = vmatprep.subr.mxu0 %v3982
    %8299 = vmatpush1.msra.mxu0 %v3981
    %8300 = vmatprep.subr.mxu0 %v3986
    %8301 = vmatpush1.msra.mxu0 %v3985
    %8302 = vmatprep.subr.mxu0 %v3990
    %8303 = vmatpush1.msra.mxu0 %v3989
    %8304 = vmatprep.subr.mxu0 %v3994
    %8305 = vmatpush1.msra.mxu0 %v3993
    %8306 = vmatprep.subr.mxu0 %v3998
    %8307 = vmatpush1.msra.mxu0 %v3997
    %8308 = vmatprep.subr.mxu0 %v4002
    %8309 = vmatpush1.msra.mxu0 %v4001
    %8310 = vmatprep.subr.mxu0 %v4006
    %8311 = vmatpush1.msra.mxu0 %v4005
    %8312 = vmatprep.subr.mxu0 %v4010
    %8313 = vmatpush1.msra.mxu0 %v4009
    %8314 = vmatprep.subr.mxu0 %v4014
    %8315 = vmatpush1.msra.mxu0 %v4013
    %8316 = vmatprep.subr.mxu0 %v4018
    %8317 = vmatpush1.msra.mxu0 %v4017
    %8318 = vmatprep.subr.mxu0 %v4022
    %8319 = vmatpush1.msra.mxu0 %v4021
    %8320 = vmatprep.subr.mxu0 %v4026
    %8321 = vmatpush1.msra.mxu0 %v4025
    %8322 = vmatprep.subr.mxu0 %v4030
    %8323 = vmatpush1.msra.mxu0 %v4029
    %8324 = vmatprep.mubr.f32.mxu0 %v7990
    %8325 = vmatmul.mubr.f32.gmra.mrb[0].mxu0 %v7987
    %v8326 = vpop.f32.mrb[0].mxu0
    %v8327 = vadd.f32 %v8244, %v8326
    %v8328 = vpop.f32.mrb[0].mxu0
    %v8329 = vadd.f32 %v8246, %v8328
    %8330 = vmatprep.mubr.f32.mxu0 %v7998
    %8331 = vmatmul.mubr.f32.gmra.mrb[0].mxu0 %v7996
    %v8332 = vpop.f32.mrb[0].mxu0
    %v8333 = vadd.f32 %v8250, %v8332
    %v8334 = vpop.f32.mrb[0].mxu0
    %v8335 = vadd.f32 %v8252, %v8334
    %8336 = vmatprep.mubr.f32.mxu0 %v7997
    %8337 = vmatmul.mubr.f32.gmra.mrb[0].mxu0 %v7995
    %v8338 = vpop.f32.mrb[0].mxu0
    %v8339 = vadd.f32 %v8256, %v8338
    %v8340 = vpop.f32.mrb[0].mxu0
    %v8341 = vadd.f32 %v8258, %v8340
    %8342 = vdwg.mxu0
    %v8343 = vadd.f32 %v7797, %v8161
    %v8344 = vadd.f32 %v7799, %v8163
    %v8345 = vadd.f32 %v7963, %v8327
    %v8346 = vadd.f32 %v7965, %v8329
    %v8347 = vadd.f32 %v7803, %v8167
    %v8348 = vadd.f32 %v7805, %v8169
    %v8349 = vadd.f32 %v7969, %v8333
    %v8350 = vadd.f32 %v7971, %v8335
    %v8351 = vadd.f32 %v7809, %v8173
    %v8352 = vadd.f32 %v7811, %v8175
    %v8353 = vadd.f32 %v7975, %v8339
    %v8354 = vadd.f32 %v7977, %v8341
    %v8355 = vadd.f32 %v8343, %v4413
    %v8356 = vadd.f32 %v8344, %v4417
    %v8357 = vadd.f32 %v8345, %v4421
    %v8358 = vadd.f32 %v8346, %v4425
    %v8359 = vadd.f32 %v8347, %v4413
    %v8360 = vadd.f32 %v8348, %v4417
    %v8361 = vadd.f32 %v8349, %v4421
    %v8362 = vadd.f32 %v8350, %v4425
    %v8363 = vadd.f32 %v8351, %v4413
    %v8364 = vadd.f32 %v8352, %v4417
    %v8365 = vadd.f32 %v8353, %v4421
    %v8366 = vadd.f32 %v8354, %v4425
    %v8367 = vmax.f32 %v8355, 0.0
    %v8368 = vmax.f32 %v8356, 0.0
    %v8369 = vmax.f32 %v8357, 0.0
    %v8370 = vmax.f32 %v8358, 0.0
    %v8371 = vmax.f32 %v8359, 0.0
    %v8372 = vmax.f32 %v8360, 0.0
    %v8373 = vmax.f32 %v8361, 0.0
    %v8374 = vmax.f32 %v8362, 0.0
    %v8375 = vmax.f32 %v8363, 0.0
    %v8376 = vmax.f32 %v8364, 0.0
    %v8377 = vmax.f32 %v8365, 0.0
    %v8378 = vmax.f32 %v8366, 0.0
    %8379 = vmatprep.subr.mxu0 %v4455
    %8380 = vmatpush1.msra.mxu0 %v4454
    %8381 = vmatprep.subr.mxu0 %v4459
    %8382 = vmatpush1.msra.mxu0 %v4458
    %8383 = vmatprep.subr.mxu0 %v4463
    %8384 = vmatpush1.msra.mxu0 %v4462
    %8385 = vmatprep.subr.mxu0 %v4467
    %8386 = vmatpush1.msra.mxu0 %v4466
    %8387 = vmatprep.subr.mxu0 %v4471
    %8388 = vmatpush1.msra.mxu0 %v4470
    %8389 = vmatprep.subr.mxu0 %v4475
    %8390 = vmatpush1.msra.mxu0 %v4474
    %8391 = vmatprep.subr.mxu0 %v4479
    %8392 = vmatpush1.msra.mxu0 %v4478
    %8393 = vmatprep.subr.mxu0 %v4483
    %8394 = vmatpush1.msra.mxu0 %v4482
    %8395 = vmatprep.subr.mxu0 %v4487
    %8396 = vmatpush1.msra.mxu0 %v4486
    %8397 = vmatprep.subr.mxu0 %v4491
    %8398 = vmatpush1.msra.mxu0 %v4490
    %8399 = vmatprep.subr.mxu0 %v4495
    %8400 = vmatpush1.msra.mxu0 %v4494
    %8401 = vmatprep.subr.mxu0 %v4499
    %8402 = vmatpush1.msra.mxu0 %v4498
    %8403 = vmatprep.subr.mxu0 %v4503
    %8404 = vmatpush1.msra.mxu0 %v4502
    %8405 = vmatprep.subr.mxu0 %v4507
    %8406 = vmatpush1.msra.mxu0 %v4506
    %8407 = vmatprep.subr.mxu0 %v4511
    %8408 = vmatpush1.msra.mxu0 %v4510
    %8409 = vmatprep.subr.mxu0 %v4515
    %8410 = vmatpush1.msra.mxu0 %v4514
    %8411 = vmatprep.subr.mxu0 %v4519
    %8412 = vmatpush1.msra.mxu0 %v4518
    %8413 = vmatprep.subr.mxu0 %v4523
    %8414 = vmatpush1.msra.mxu0 %v4522
    %8415 = vmatprep.subr.mxu0 %v4527
    %8416 = vmatpush1.msra.mxu0 %v4526
    %8417 = vmatprep.subr.mxu0 %v4531
    %8418 = vmatpush1.msra.mxu0 %v4530
    %8419 = vmatprep.subr.mxu0 %v4535
    %8420 = vmatpush1.msra.mxu0 %v4534
    %8421 = vmatprep.subr.mxu0 %v4539
    %8422 = vmatpush1.msra.mxu0 %v4538
    %8423 = vmatprep.subr.mxu0 %v4543
    %8424 = vmatpush1.msra.mxu0 %v4542
    %8425 = vmatprep.subr.mxu0 %v4547
    %8426 = vmatpush1.msra.mxu0 %v4546
    %8427 = vmatprep.subr.mxu0 %v4551
    %8428 = vmatpush1.msra.mxu0 %v4550
    %8429 = vmatprep.subr.mxu0 %v4555
    %8430 = vmatpush1.msra.mxu0 %v4554
    %8431 = vmatprep.subr.mxu0 %v4559
    %8432 = vmatpush1.msra.mxu0 %v4558
    %8433 = vmatprep.subr.mxu0 %v4563
    %8434 = vmatpush1.msra.mxu0 %v4562
    %8435 = vmatprep.subr.mxu0 %v4567
    %8436 = vmatpush1.msra.mxu0 %v4566
    %8437 = vmatprep.subr.mxu0 %v4571
    %8438 = vmatpush1.msra.mxu0 %v4570
    %8439 = vmatprep.subr.mxu0 %v4575
    %8440 = vmatpush1.msra.mxu0 %v4574
    %8441 = vmatprep.subr.mxu0 %v4579
    %8442 = vmatpush1.msra.mxu0 %v4578
    %8443 = vmatprep.mubr.f32.mxu0 %v8368
    %8444 = vmatmul.mubr.f32.gmra.mrb[0].mxu0 %v8367
    %v8445 = vpop.f32.mrb[0].mxu0
    %v8446 = vadd.f32 %v4715, %v8445
    %v8447 = vpop.f32.mrb[0].mxu0
    %v8448 = vadd.f32 %v4719, %v8447
    %8449 = vmatprep.mubr.f32.mxu0 %v8372
    %8450 = vmatmul.mubr.f32.gmra.mrb[0].mxu0 %v8371
    %v8451 = vpop.f32.mrb[0].mxu0
    %v8452 = vadd.f32 %v4715, %v8451
    %v8453 = vpop.f32.mrb[0].mxu0
    %v8454 = vadd.f32 %v4719, %v8453
    %8455 = vmatprep.mubr.f32.mxu0 %v8376
    %8456 = vmatmul.mubr.f32.gmra.mrb[0].mxu0 %v8375
    %v8457 = vpop.f32.mrb[0].mxu0
    %v8458 = vadd.f32 %v4715, %v8457
    %v8459 = vpop.f32.mrb[0].mxu0
    %v8460 = vadd.f32 %v4719, %v8459
    %8461 = vdwg.mxu0
    %8462 = vmatprep.subr.mxu0 %v4583
    %8463 = vmatpush1.msra.mxu0 %v4582
    %8464 = vmatprep.subr.mxu0 %v4587
    %8465 = vmatpush1.msra.mxu0 %v4586
    %8466 = vmatprep.subr.mxu0 %v4591
    %8467 = vmatpush1.msra.mxu0 %v4590
    %8468 = vmatprep.subr.mxu0 %v4595
    %8469 = vmatpush1.msra.mxu0 %v4594
    %8470 = vmatprep.subr.mxu0 %v4599
    %8471 = vmatpush1.msra.mxu0 %v4598
    %8472 = vmatprep.subr.mxu0 %v4603
    %8473 = vmatpush1.msra.mxu0 %v4602
    %8474 = vmatprep.subr.mxu0 %v4607
    %8475 = vmatpush1.msra.mxu0 %v4606
    %8476 = vmatprep.subr.mxu0 %v4611
    %8477 = vmatpush1.msra.mxu0 %v4610
    %8478 = vmatprep.subr.mxu0 %v4615
    %8479 = vmatpush1.msra.mxu0 %v4614
    %8480 = vmatprep.subr.mxu0 %v4619
    %8481 = vmatpush1.msra.mxu0 %v4618
    %8482 = vmatprep.subr.mxu0 %v4623
    %8483 = vmatpush1.msra.mxu0 %v4622
    %8484 = vmatprep.subr.mxu0 %v4627
    %8485 = vmatpush1.msra.mxu0 %v4626
    %8486 = vmatprep.subr.mxu0 %v4631
    %8487 = vmatpush1.msra.mxu0 %v4630
    %8488 = vmatprep.subr.mxu0 %v4635
    %8489 = vmatpush1.msra.mxu0 %v4634
    %8490 = vmatprep.subr.mxu0 %v4639
    %8491 = vmatpush1.msra.mxu0 %v4638
    %8492 = vmatprep.subr.mxu0 %v4643
    %8493 = vmatpush1.msra.mxu0 %v4642
    %8494 = vmatprep.subr.mxu0 %v4647
    %8495 = vmatpush1.msra.mxu0 %v4646
    %8496 = vmatprep.subr.mxu0 %v4651
    %8497 = vmatpush1.msra.mxu0 %v4650
    %8498 = vmatprep.subr.mxu0 %v4655
    %8499 = vmatpush1.msra.mxu0 %v4654
    %8500 = vmatprep.subr.mxu0 %v4659
    %8501 = vmatpush1.msra.mxu0 %v4658
    %8502 = vmatprep.subr.mxu0 %v4663
    %8503 = vmatpush1.msra.mxu0 %v4662
    %8504 = vmatprep.subr.mxu0 %v4667
    %8505 = vmatpush1.msra.mxu0 %v4666
    %8506 = vmatprep.subr.mxu0 %v4671
    %8507 = vmatpush1.msra.mxu0 %v4670
    %8508 = vmatprep.subr.mxu0 %v4675
    %8509 = vmatpush1.msra.mxu0 %v4674
    %8510 = vmatprep.subr.mxu0 %v4679
    %8511 = vmatpush1.msra.mxu0 %v4678
    %8512 = vmatprep.subr.mxu0 %v4683
    %8513 = vmatpush1.msra.mxu0 %v4682
    %8514 = vmatprep.subr.mxu0 %v4687
    %8515 = vmatpush1.msra.mxu0 %v4686
    %8516 = vmatprep.subr.mxu0 %v4691
    %8517 = vmatpush1.msra.mxu0 %v4690
    %8518 = vmatprep.subr.mxu0 %v4695
    %8519 = vmatpush1.msra.mxu0 %v4694
    %8520 = vmatprep.subr.mxu0 %v4699
    %8521 = vmatpush1.msra.mxu0 %v4698
    %8522 = vmatprep.subr.mxu0 %v4703
    %8523 = vmatpush1.msra.mxu0 %v4702
    %8524 = vmatprep.subr.mxu0 %v4707
    %8525 = vmatpush1.msra.mxu0 %v4706
    %8526 = vmatprep.mubr.f32.mxu0 %v8370
    %8527 = vmatmul.mubr.f32.gmra.mrb[0].mxu0 %v8369
    %v8528 = vpop.f32.mrb[0].mxu0
    %v8529 = vadd.f32 %v8446, %v8528
    %v8530 = vpop.f32.mrb[0].mxu0
    %v8531 = vadd.f32 %v8448, %v8530
    %8532 = vmatprep.mubr.f32.mxu0 %v8374
    %8533 = vmatmul.mubr.f32.gmra.mrb[0].mxu0 %v8373
    %v8534 = vpop.f32.mrb[0].mxu0
    %v8535 = vadd.f32 %v8452, %v8534
    %v8536 = vpop.f32.mrb[0].mxu0
    %v8537 = vadd.f32 %v8454, %v8536
    %8538 = vmatprep.mubr.f32.mxu0 %v8378
    %8539 = vmatmul.mubr.f32.gmra.mrb[0].mxu0 %v8377
    %v8540 = vpop.f32.mrb[0].mxu0
    %v8541 = vadd.f32 %v8458, %v8540
    %v8542 = vpop.f32.mrb[0].mxu0
    %v8543 = vadd.f32 %v8460, %v8542
    %8544 = vdwg.mxu0
    %8545 = vmatprep.subr.mxu0 %v4457
    %8546 = vmatpush1.msra.mxu0 %v4456
    %8547 = vmatprep.subr.mxu0 %v4461
    %8548 = vmatpush1.msra.mxu0 %v4460
    %8549 = vmatprep.subr.mxu0 %v4465
    %8550 = vmatpush1.msra.mxu0 %v4464
    %8551 = vmatprep.subr.mxu0 %v4469
    %8552 = vmatpush1.msra.mxu0 %v4468
    %8553 = vmatprep.subr.mxu0 %v4473
    %8554 = vmatpush1.msra.mxu0 %v4472
    %8555 = vmatprep.subr.mxu0 %v4477
    %8556 = vmatpush1.msra.mxu0 %v4476
    %8557 = vmatprep.subr.mxu0 %v4481
    %8558 = vmatpush1.msra.mxu0 %v4480
    %8559 = vmatprep.subr.mxu0 %v4485
    %8560 = vmatpush1.msra.mxu0 %v4484
    %8561 = vmatprep.subr.mxu0 %v4489
    %8562 = vmatpush1.msra.mxu0 %v4488
    %8563 = vmatprep.subr.mxu0 %v4493
    %8564 = vmatpush1.msra.mxu0 %v4492
    %8565 = vmatprep.subr.mxu0 %v4497
    %8566 = vmatpush1.msra.mxu0 %v4496
    %8567 = vmatprep.subr.mxu0 %v4501
    %8568 = vmatpush1.msra.mxu0 %v4500
    %8569 = vmatprep.subr.mxu0 %v4505
    %8570 = vmatpush1.msra.mxu0 %v4504
    %8571 = vmatprep.subr.mxu0 %v4509
    %8572 = vmatpush1.msra.mxu0 %v4508
    %8573 = vmatprep.subr.mxu0 %v4513
    %8574 = vmatpush1.msra.mxu0 %v4512
    %8575 = vmatprep.subr.mxu0 %v4517
    %8576 = vmatpush1.msra.mxu0 %v4516
    %8577 = vmatprep.subr.mxu0 %v4521
    %8578 = vmatpush1.msra.mxu0 %v4520
    %8579 = vmatprep.subr.mxu0 %v4525
    %8580 = vmatpush1.msra.mxu0 %v4524
    %8581 = vmatprep.subr.mxu0 %v4529
    %8582 = vmatpush1.msra.mxu0 %v4528
    %8583 = vmatprep.subr.mxu0 %v4533
    %8584 = vmatpush1.msra.mxu0 %v4532
    %8585 = vmatprep.subr.mxu0 %v4537
    %8586 = vmatpush1.msra.mxu0 %v4536
    %8587 = vmatprep.subr.mxu0 %v4541
    %8588 = vmatpush1.msra.mxu0 %v4540
    %8589 = vmatprep.subr.mxu0 %v4545
    %8590 = vmatpush1.msra.mxu0 %v4544
    %8591 = vmatprep.subr.mxu0 %v4549
    %8592 = vmatpush1.msra.mxu0 %v4548
    %8593 = vmatprep.subr.mxu0 %v4553
    %8594 = vmatpush1.msra.mxu0 %v4552
    %8595 = vmatprep.subr.mxu0 %v4557
    %8596 = vmatpush1.msra.mxu0 %v4556
    %8597 = vmatprep.subr.mxu0 %v4561
    %8598 = vmatpush1.msra.mxu0 %v4560
    %8599 = vmatprep.subr.mxu0 %v4565
    %8600 = vmatpush1.msra.mxu0 %v4564
    %8601 = vmatprep.subr.mxu0 %v4569
    %8602 = vmatpush1.msra.mxu0 %v4568
    %8603 = vmatprep.subr.mxu0 %v4573
    %8604 = vmatpush1.msra.mxu0 %v4572
    %8605 = vmatprep.subr.mxu0 %v4577
    %8606 = vmatpush1.msra.mxu0 %v4576
    %8607 = vmatprep.subr.mxu0 %v4581
    %8608 = vmatpush1.msra.mxu0 %v4580
    %8609 = vmatprep.mubr.f32.mxu0 %v8368
    %8610 = vmatmul.mubr.f32.gmra.mrb[0].mxu0 %v8367
    %v8611 = vpop.f32.mrb[0].mxu0
    %v8612 = vadd.f32 %v4723, %v8611
    %v8613 = vpop.f32.mrb[0].mxu0
    %v8614 = vadd.f32 %v4727, %v8613
    %8615 = vmatprep.mubr.f32.mxu0 %v8372
    %8616 = vmatmul.mubr.f32.gmra.mrb[0].mxu0 %v8371
    %v8617 = vpop.f32.mrb[0].mxu0
    %v8618 = vadd.f32 %v4723, %v8617
    %v8619 = vpop.f32.mrb[0].mxu0
    %v8620 = vadd.f32 %v4727, %v8619
    %8621 = vmatprep.mubr.f32.mxu0 %v8376
    %8622 = vmatmul.mubr.f32.gmra.mrb[0].mxu0 %v8375
    %v8623 = vpop.f32.mrb[0].mxu0
    %v8624 = vadd.f32 %v4723, %v8623
    %v8625 = vpop.f32.mrb[0].mxu0
    %v8626 = vadd.f32 %v4727, %v8625
    %8627 = vdwg.mxu0
    %8628 = vmatprep.subr.mxu0 %v4585
    %8629 = vmatpush1.msra.mxu0 %v4584
    %8630 = vmatprep.subr.mxu0 %v4589
    %8631 = vmatpush1.msra.mxu0 %v4588
    %8632 = vmatprep.subr.mxu0 %v4593
    %8633 = vmatpush1.msra.mxu0 %v4592
    %8634 = vmatprep.subr.mxu0 %v4597
    %8635 = vmatpush1.msra.mxu0 %v4596
    %8636 = vmatprep.subr.mxu0 %v4601
    %8637 = vmatpush1.msra.mxu0 %v4600
    %8638 = vmatprep.subr.mxu0 %v4605
    %8639 = vmatpush1.msra.mxu0 %v4604
    %8640 = vmatprep.subr.mxu0 %v4609
    %8641 = vmatpush1.msra.mxu0 %v4608
    %8642 = vmatprep.subr.mxu0 %v4613
    %8643 = vmatpush1.msra.mxu0 %v4612
    %8644 = vmatprep.subr.mxu0 %v4617
    %8645 = vmatpush1.msra.mxu0 %v4616
    %8646 = vmatprep.subr.mxu0 %v4621
    %8647 = vmatpush1.msra.mxu0 %v4620
    %8648 = vmatprep.subr.mxu0 %v4625
    %8649 = vmatpush1.msra.mxu0 %v4624
    %8650 = vmatprep.subr.mxu0 %v4629
    %8651 = vmatpush1.msra.mxu0 %v4628
    %8652 = vmatprep.subr.mxu0 %v4633
    %8653 = vmatpush1.msra.mxu0 %v4632
    %8654 = vmatprep.subr.mxu0 %v4637
    %8655 = vmatpush1.msra.mxu0 %v4636
    %8656 = vmatprep.subr.mxu0 %v4641
    %8657 = vmatpush1.msra.mxu0 %v4640
    %8658 = vmatprep.subr.mxu0 %v4645
    %8659 = vmatpush1.msra.mxu0 %v4644
    %8660 = vmatprep.subr.mxu0 %v4649
    %8661 = vmatpush1.msra.mxu0 %v4648
    %8662 = vmatprep.subr.mxu0 %v4653
    %8663 = vmatpush1.msra.mxu0 %v4652
    %8664 = vmatprep.subr.mxu0 %v4657
    %8665 = vmatpush1.msra.mxu0 %v4656
    %8666 = vmatprep.subr.mxu0 %v4661
    %8667 = vmatpush1.msra.mxu0 %v4660
    %8668 = vmatprep.subr.mxu0 %v4665
    %8669 = vmatpush1.msra.mxu0 %v4664
    %8670 = vmatprep.subr.mxu0 %v4669
    %8671 = vmatpush1.msra.mxu0 %v4668
    %8672 = vmatprep.subr.mxu0 %v4673
    %8673 = vmatpush1.msra.mxu0 %v4672
    %8674 = vmatprep.subr.mxu0 %v4677
    %8675 = vmatpush1.msra.mxu0 %v4676
    %8676 = vmatprep.subr.mxu0 %v4681
    %8677 = vmatpush1.msra.mxu0 %v4680
    %8678 = vmatprep.subr.mxu0 %v4685
    %8679 = vmatpush1.msra.mxu0 %v4684
    %8680 = vmatprep.subr.mxu0 %v4689
    %8681 = vmatpush1.msra.mxu0 %v4688
    %8682 = vmatprep.subr.mxu0 %v4693
    %8683 = vmatpush1.msra.mxu0 %v4692
    %8684 = vmatprep.subr.mxu0 %v4697
    %8685 = vmatpush1.msra.mxu0 %v4696
    %8686 = vmatprep.subr.mxu0 %v4701
    %8687 = vmatpush1.msra.mxu0 %v4700
    %8688 = vmatprep.subr.mxu0 %v4705
    %8689 = vmatpush1.msra.mxu0 %v4704
    %8690 = vmatprep.subr.mxu0 %v4709
    %8691 = vmatpush1.msra.mxu0 %v4708
    %8692 = vmatprep.mubr.f32.mxu0 %v8370
    %8693 = vmatmul.mubr.f32.gmra.mrb[0].mxu0 %v8369
    %v8694 = vpop.f32.mrb[0].mxu0
    %v8695 = vadd.f32 %v8612, %v8694
    %v8696 = vpop.f32.mrb[0].mxu0
    %v8697 = vadd.f32 %v8614, %v8696
    %8698 = vmatprep.mubr.f32.mxu0 %v8374
    %8699 = vmatmul.mubr.f32.gmra.mrb[0].mxu0 %v8373
    %v8700 = vpop.f32.mrb[0].mxu0
    %v8701 = vadd.f32 %v8618, %v8700
    %v8702 = vpop.f32.mrb[0].mxu0
    %v8703 = vadd.f32 %v8620, %v8702
    %8704 = vmatprep.mubr.f32.mxu0 %v8378
    %8705 = vmatmul.mubr.f32.gmra.mrb[0].mxu0 %v8377
    %v8706 = vpop.f32.mrb[0].mxu0
    %v8707 = vadd.f32 %v8624, %v8706
    %v8708 = vpop.f32.mrb[0].mxu0
    %v8709 = vadd.f32 %v8626, %v8708
    %8710 = vdwg.mxu0
    %v8711 = vmax.f32 %v8529, 0.0
    %v8712 = vmax.f32 %v8531, 0.0
    %v8713 = vmax.f32 %v8695, 0.0
    %v8714 = vmax.f32 %v8697, 0.0
    %v8715 = vmax.f32 %v8535, 0.0
    %v8716 = vmax.f32 %v8537, 0.0
    %v8717 = vmax.f32 %v8701, 0.0
    %v8718 = vmax.f32 %v8703, 0.0
    %v8719 = vmax.f32 %v8541, 0.0
    %v8720 = vmax.f32 %v8543, 0.0
    %v8721 = vmax.f32 %v8707, 0.0
    %v8722 = vmax.f32 %v8709, 0.0
    %8723 = vmatprep.subr.mxu0 %v5077
    %8724 = vmatpush1.msra.mxu0 %v5076
    %8725 = vmatprep.subr.mxu0 %v5081
    %8726 = vmatpush1.msra.mxu0 %v5080
    %8727 = vmatprep.subr.mxu0 %v5085
    %8728 = vmatpush1.msra.mxu0 %v5084
    %8729 = vmatprep.subr.mxu0 %v5089
    %8730 = vmatpush1.msra.mxu0 %v5088
    %8731 = vmatprep.subr.mxu0 %v5093
    %8732 = vmatpush1.msra.mxu0 %v5092
    %8733 = vmatprep.subr.mxu0 %v5097
    %8734 = vmatpush1.msra.mxu0 %v5096
    %8735 = vmatprep.subr.mxu0 %v5101
    %8736 = vmatpush1.msra.mxu0 %v5100
    %8737 = vmatprep.subr.mxu0 %v5105
    %8738 = vmatpush1.msra.mxu0 %v5104
    %8739 = vmatprep.subr.mxu0 %v5109
    %8740 = vmatpush1.msra.mxu0 %v5108
    %8741 = vmatprep.subr.mxu0 %v5113
    %8742 = vmatpush1.msra.mxu0 %v5112
    %8743 = vmatprep.subr.mxu0 %v5117
    %8744 = vmatpush1.msra.mxu0 %v5116
    %8745 = vmatprep.subr.mxu0 %v5121
    %8746 = vmatpush1.msra.mxu0 %v5120
    %8747 = vmatprep.subr.mxu0 %v5125
    %8748 = vmatpush1.msra.mxu0 %v5124
    %8749 = vmatprep.subr.mxu0 %v5129
    %8750 = vmatpush1.msra.mxu0 %v5128
    %8751 = vmatprep.subr.mxu0 %v5133
    %8752 = vmatpush1.msra.mxu0 %v5132
    %8753 = vmatprep.subr.mxu0 %v5137
    %8754 = vmatpush1.msra.mxu0 %v5136
    %8755 = vmatprep.subr.mxu0 %v5141
    %8756 = vmatpush1.msra.mxu0 %v5140
    %8757 = vmatprep.subr.mxu0 %v5145
    %8758 = vmatpush1.msra.mxu0 %v5144
    %8759 = vmatprep.subr.mxu0 %v5149
    %8760 = vmatpush1.msra.mxu0 %v5148
    %8761 = vmatprep.subr.mxu0 %v5153
    %8762 = vmatpush1.msra.mxu0 %v5152
    %8763 = vmatprep.subr.mxu0 %v5157
    %8764 = vmatpush1.msra.mxu0 %v5156
    %8765 = vmatprep.subr.mxu0 %v5161
    %8766 = vmatpush1.msra.mxu0 %v5160
    %8767 = vmatprep.subr.mxu0 %v5165
    %8768 = vmatpush1.msra.mxu0 %v5164
    %8769 = vmatprep.subr.mxu0 %v5169
    %8770 = vmatpush1.msra.mxu0 %v5168
    %8771 = vmatprep.subr.mxu0 %v5173
    %8772 = vmatpush1.msra.mxu0 %v5172
    %8773 = vmatprep.subr.mxu0 %v5177
    %8774 = vmatpush1.msra.mxu0 %v5176
    %8775 = vmatprep.subr.mxu0 %v5181
    %8776 = vmatpush1.msra.mxu0 %v5180
    %8777 = vmatprep.subr.mxu0 %v5185
    %8778 = vmatpush1.msra.mxu0 %v5184
    %8779 = vmatprep.subr.mxu0 %v5189
    %8780 = vmatpush1.msra.mxu0 %v5188
    %8781 = vmatprep.subr.mxu0 %v5193
    %8782 = vmatpush1.msra.mxu0 %v5192
    %8783 = vmatprep.subr.mxu0 %v5197
    %8784 = vmatpush1.msra.mxu0 %v5196
    %8785 = vmatprep.subr.mxu0 %v5201
    %8786 = vmatpush1.msra.mxu0 %v5200
    %8787 = vmatprep.mubr.f32.mxu0 %v8712
    %8788 = vmatmul.mubr.f32.gmra.mrb[0].mxu0 %v8711
    %v8789 = vpop.f32.mrb[0].mxu0
    %v8790 = vadd.f32 %v5337, %v8789
    %v8791 = vpop.f32.mrb[0].mxu0
    %v8792 = vadd.f32 %v5341, %v8791
    %8793 = vmatprep.mubr.f32.mxu0 %v8716
    %8794 = vmatmul.mubr.f32.gmra.mrb[0].mxu0 %v8715
    %v8795 = vpop.f32.mrb[0].mxu0
    %v8796 = vadd.f32 %v5337, %v8795
    %v8797 = vpop.f32.mrb[0].mxu0
    %v8798 = vadd.f32 %v5341, %v8797
    %8799 = vmatprep.mubr.f32.mxu0 %v8720
    %8800 = vmatmul.mubr.f32.gmra.mrb[0].mxu0 %v8719
    %v8801 = vpop.f32.mrb[0].mxu0
    %v8802 = vadd.f32 %v5337, %v8801
    %v8803 = vpop.f32.mrb[0].mxu0
    %v8804 = vadd.f32 %v5341, %v8803
    %8805 = vdwg.mxu0
    %8806 = vmatprep.subr.mxu0 %v5205
    %8807 = vmatpush1.msra.mxu0 %v5204
    %8808 = vmatprep.subr.mxu0 %v5209
    %8809 = vmatpush1.msra.mxu0 %v5208
    %8810 = vmatprep.subr.mxu0 %v5213
    %8811 = vmatpush1.msra.mxu0 %v5212
    %8812 = vmatprep.subr.mxu0 %v5217
    %8813 = vmatpush1.msra.mxu0 %v5216
    %8814 = vmatprep.subr.mxu0 %v5221
    %8815 = vmatpush1.msra.mxu0 %v5220
    %8816 = vmatprep.subr.mxu0 %v5225
    %8817 = vmatpush1.msra.mxu0 %v5224
    %8818 = vmatprep.subr.mxu0 %v5229
    %8819 = vmatpush1.msra.mxu0 %v5228
    %8820 = vmatprep.subr.mxu0 %v5233
    %8821 = vmatpush1.msra.mxu0 %v5232
    %8822 = vmatprep.subr.mxu0 %v5237
    %8823 = vmatpush1.msra.mxu0 %v5236
    %8824 = vmatprep.subr.mxu0 %v5241
    %8825 = vmatpush1.msra.mxu0 %v5240
    %8826 = vmatprep.subr.mxu0 %v5245
    %8827 = vmatpush1.msra.mxu0 %v5244
    %8828 = vmatprep.subr.mxu0 %v5249
    %8829 = vmatpush1.msra.mxu0 %v5248
    %8830 = vmatprep.subr.mxu0 %v5253
    %8831 = vmatpush1.msra.mxu0 %v5252
    %8832 = vmatprep.subr.mxu0 %v5257
    %8833 = vmatpush1.msra.mxu0 %v5256
    %8834 = vmatprep.subr.mxu0 %v5261
    %8835 = vmatpush1.msra.mxu0 %v5260
    %8836 = vmatprep.subr.mxu0 %v5265
    %8837 = vmatpush1.msra.mxu0 %v5264
    %8838 = vmatprep.subr.mxu0 %v5269
    %8839 = vmatpush1.msra.mxu0 %v5268
    %8840 = vmatprep.subr.mxu0 %v5273
    %8841 = vmatpush1.msra.mxu0 %v5272
    %8842 = vmatprep.subr.mxu0 %v5277
    %8843 = vmatpush1.msra.mxu0 %v5276
    %8844 = vmatprep.subr.mxu0 %v5281
    %8845 = vmatpush1.msra.mxu0 %v5280
    %8846 = vmatprep.subr.mxu0 %v5285
    %8847 = vmatpush1.msra.mxu0 %v5284
    %8848 = vmatprep.subr.mxu0 %v5289
    %8849 = vmatpush1.msra.mxu0 %v5288
    %8850 = vmatprep.subr.mxu0 %v5293
    %8851 = vmatpush1.msra.mxu0 %v5292
    %8852 = vmatprep.subr.mxu0 %v5297
    %8853 = vmatpush1.msra.mxu0 %v5296
    %8854 = vmatprep.subr.mxu0 %v5301
    %8855 = vmatpush1.msra.mxu0 %v5300
    %8856 = vmatprep.subr.mxu0 %v5305
    %8857 = vmatpush1.msra.mxu0 %v5304
    %8858 = vmatprep.subr.mxu0 %v5309
    %8859 = vmatpush1.msra.mxu0 %v5308
    %8860 = vmatprep.subr.mxu0 %v5313
    %8861 = vmatpush1.msra.mxu0 %v5312
    %8862 = vmatprep.subr.mxu0 %v5317
    %8863 = vmatpush1.msra.mxu0 %v5316
    %8864 = vmatprep.subr.mxu0 %v5321
    %8865 = vmatpush1.msra.mxu0 %v5320
    %8866 = vmatprep.subr.mxu0 %v5325
    %8867 = vmatpush1.msra.mxu0 %v5324
    %8868 = vmatprep.subr.mxu0 %v5329
    %8869 = vmatpush1.msra.mxu0 %v5328
    %8870 = vmatprep.mubr.f32.mxu0 %v8714
    %8871 = vmatmul.mubr.f32.gmra.mrb[0].mxu0 %v8713
    %v8872 = vpop.f32.mrb[0].mxu0
    %v8873 = vadd.f32 %v8790, %v8872
    %v8874 = vpop.f32.mrb[0].mxu0
    %v8875 = vadd.f32 %v8792, %v8874
    %8876 = vmatprep.mubr.f32.mxu0 %v8718
    %8877 = vmatmul.mubr.f32.gmra.mrb[0].mxu0 %v8717
    %v8878 = vpop.f32.mrb[0].mxu0
    %v8879 = vadd.f32 %v8796, %v8878
    %v8880 = vpop.f32.mrb[0].mxu0
    %v8881 = vadd.f32 %v8798, %v8880
    %8882 = vmatprep.mubr.f32.mxu0 %v8722
    %8883 = vmatmul.mubr.f32.gmra.mrb[0].mxu0 %v8721
    %v8884 = vpop.f32.mrb[0].mxu0
    %v8885 = vadd.f32 %v8802, %v8884
    %v8886 = vpop.f32.mrb[0].mxu0
    %v8887 = vadd.f32 %v8804, %v8886
    %8888 = vdwg.mxu0
    %8889 = vmatprep.subr.mxu0 %v5079
    %8890 = vmatpush1.msra.mxu0 %v5078
    %8891 = vmatprep.subr.mxu0 %v5083
    %8892 = vmatpush1.msra.mxu0 %v5082
    %8893 = vmatprep.subr.mxu0 %v5087
    %8894 = vmatpush1.msra.mxu0 %v5086
    %8895 = vmatprep.subr.mxu0 %v5091
    %8896 = vmatpush1.msra.mxu0 %v5090
    %8897 = vmatprep.subr.mxu0 %v5095
    %8898 = vmatpush1.msra.mxu0 %v5094
    %8899 = vmatprep.subr.mxu0 %v5099
    %8900 = vmatpush1.msra.mxu0 %v5098
    %8901 = vmatprep.subr.mxu0 %v5103
    %8902 = vmatpush1.msra.mxu0 %v5102
    %8903 = vmatprep.subr.mxu0 %v5107
    %8904 = vmatpush1.msra.mxu0 %v5106
    %8905 = vmatprep.subr.mxu0 %v5111
    %8906 = vmatpush1.msra.mxu0 %v5110
    %8907 = vmatprep.subr.mxu0 %v5115
    %8908 = vmatpush1.msra.mxu0 %v5114
    %8909 = vmatprep.subr.mxu0 %v5119
    %8910 = vmatpush1.msra.mxu0 %v5118
    %8911 = vmatprep.subr.mxu0 %v5123
    %8912 = vmatpush1.msra.mxu0 %v5122
    %8913 = vmatprep.subr.mxu0 %v5127
    %8914 = vmatpush1.msra.mxu0 %v5126
    %8915 = vmatprep.subr.mxu0 %v5131
    %8916 = vmatpush1.msra.mxu0 %v5130
    %8917 = vmatprep.subr.mxu0 %v5135
    %8918 = vmatpush1.msra.mxu0 %v5134
    %8919 = vmatprep.subr.mxu0 %v5139
    %8920 = vmatpush1.msra.mxu0 %v5138
    %8921 = vmatprep.subr.mxu0 %v5143
    %8922 = vmatpush1.msra.mxu0 %v5142
    %8923 = vmatprep.subr.mxu0 %v5147
    %8924 = vmatpush1.msra.mxu0 %v5146
    %8925 = vmatprep.subr.mxu0 %v5151
    %8926 = vmatpush1.msra.mxu0 %v5150
    %8927 = vmatprep.subr.mxu0 %v5155
    %8928 = vmatpush1.msra.mxu0 %v5154
    %8929 = vmatprep.subr.mxu0 %v5159
    %8930 = vmatpush1.msra.mxu0 %v5158
    %8931 = vmatprep.subr.mxu0 %v5163
    %8932 = vmatpush1.msra.mxu0 %v5162
    %8933 = vmatprep.subr.mxu0 %v5167
    %8934 = vmatpush1.msra.mxu0 %v5166
    %8935 = vmatprep.subr.mxu0 %v5171
    %8936 = vmatpush1.msra.mxu0 %v5170
    %8937 = vmatprep.subr.mxu0 %v5175
    %8938 = vmatpush1.msra.mxu0 %v5174
    %8939 = vmatprep.subr.mxu0 %v5179
    %8940 = vmatpush1.msra.mxu0 %v5178
    %8941 = vmatprep.subr.mxu0 %v5183
    %8942 = vmatpush1.msra.mxu0 %v5182
    %8943 = vmatprep.subr.mxu0 %v5187
    %8944 = vmatpush1.msra.mxu0 %v5186
    %8945 = vmatprep.subr.mxu0 %v5191
    %8946 = vmatpush1.msra.mxu0 %v5190
    %8947 = vmatprep.subr.mxu0 %v5195
    %8948 = vmatpush1.msra.mxu0 %v5194
    %8949 = vmatprep.subr.mxu0 %v5199
    %8950 = vmatpush1.msra.mxu0 %v5198
    %8951 = vmatprep.subr.mxu0 %v5203
    %8952 = vmatpush1.msra.mxu0 %v5202
    %8953 = vmatprep.mubr.f32.mxu0 %v8712
    %8954 = vmatmul.mubr.f32.gmra.mrb[0].mxu0 %v8711
    %v8955 = vpop.f32.mrb[0].mxu0
    %v8956 = vadd.f32 %v5345, %v8955
    %v8957 = vpop.f32.mrb[0].mxu0
    %v8958 = vadd.f32 %v5349, %v8957
    %8959 = vmatprep.mubr.f32.mxu0 %v8716
    %8960 = vmatmul.mubr.f32.gmra.mrb[0].mxu0 %v8715
    %v8961 = vpop.f32.mrb[0].mxu0
    %v8962 = vadd.f32 %v5345, %v8961
    %v8963 = vpop.f32.mrb[0].mxu0
    %v8964 = vadd.f32 %v5349, %v8963
    %8965 = vmatprep.mubr.f32.mxu0 %v8720
    %8966 = vmatmul.mubr.f32.gmra.mrb[0].mxu0 %v8719
    %v8967 = vpop.f32.mrb[0].mxu0
    %v8968 = vadd.f32 %v5345, %v8967
    %v8969 = vpop.f32.mrb[0].mxu0
    %v8970 = vadd.f32 %v5349, %v8969
    %8971 = vdwg.mxu0
    %8972 = vmatprep.subr.mxu0 %v5207
    %8973 = vmatpush1.msra.mxu0 %v5206
    %8974 = vmatprep.subr.mxu0 %v5211
    %8975 = vmatpush1.msra.mxu0 %v5210
    %8976 = vmatprep.subr.mxu0 %v5215
    %8977 = vmatpush1.msra.mxu0 %v5214
    %8978 = vmatprep.subr.mxu0 %v5219
    %8979 = vmatpush1.msra.mxu0 %v5218
    %8980 = vmatprep.subr.mxu0 %v5223
    %8981 = vmatpush1.msra.mxu0 %v5222
    %8982 = vmatprep.subr.mxu0 %v5227
    %8983 = vmatpush1.msra.mxu0 %v5226
    %8984 = vmatprep.subr.mxu0 %v5231
    %8985 = vmatpush1.msra.mxu0 %v5230
    %8986 = vmatprep.subr.mxu0 %v5235
    %8987 = vmatpush1.msra.mxu0 %v5234
    %8988 = vmatprep.subr.mxu0 %v5239
    %8989 = vmatpush1.msra.mxu0 %v5238
    %8990 = vmatprep.subr.mxu0 %v5243
    %8991 = vmatpush1.msra.mxu0 %v5242
    %8992 = vmatprep.subr.mxu0 %v5247
    %8993 = vmatpush1.msra.mxu0 %v5246
    %8994 = vmatprep.subr.mxu0 %v5251
    %8995 = vmatpush1.msra.mxu0 %v5250
    %8996 = vmatprep.subr.mxu0 %v5255
    %8997 = vmatpush1.msra.mxu0 %v5254
    %8998 = vmatprep.subr.mxu0 %v5259
    %8999 = vmatpush1.msra.mxu0 %v5258
    %9000 = vmatprep.subr.mxu0 %v5263
    %9001 = vmatpush1.msra.mxu0 %v5262
    %9002 = vmatprep.subr.mxu0 %v5267
    %9003 = vmatpush1.msra.mxu0 %v5266
    %9004 = vmatprep.subr.mxu0 %v5271
    %9005 = vmatpush1.msra.mxu0 %v5270
    %9006 = vmatprep.subr.mxu0 %v5275
    %9007 = vmatpush1.msra.mxu0 %v5274
    %9008 = vmatprep.subr.mxu0 %v5279
    %9009 = vmatpush1.msra.mxu0 %v5278
    %9010 = vmatprep.subr.mxu0 %v5283
    %9011 = vmatpush1.msra.mxu0 %v5282
    %9012 = vmatprep.subr.mxu0 %v5287
    %9013 = vmatpush1.msra.mxu0 %v5286
    %9014 = vmatprep.subr.mxu0 %v5291
    %9015 = vmatpush1.msra.mxu0 %v5290
    %9016 = vmatprep.subr.mxu0 %v5295
    %9017 = vmatpush1.msra.mxu0 %v5294
    %9018 = vmatprep.subr.mxu0 %v5299
    %9019 = vmatpush1.msra.mxu0 %v5298
    %9020 = vmatprep.subr.mxu0 %v5303
    %9021 = vmatpush1.msra.mxu0 %v5302
    %9022 = vmatprep.subr.mxu0 %v5307
    %9023 = vmatpush1.msra.mxu0 %v5306
    %9024 = vmatprep.subr.mxu0 %v5311
    %9025 = vmatpush1.msra.mxu0 %v5310
    %9026 = vmatprep.subr.mxu0 %v5315
    %9027 = vmatpush1.msra.mxu0 %v5314
    %9028 = vmatprep.subr.mxu0 %v5319
    %9029 = vmatpush1.msra.mxu0 %v5318
    %9030 = vmatprep.subr.mxu0 %v5323
    %9031 = vmatpush1.msra.mxu0 %v5322
    %9032 = vmatprep.subr.mxu0 %v5327
    %9033 = vmatpush1.msra.mxu0 %v5326
    %9034 = vmatprep.subr.mxu0 %v5331
    %9035 = vmatpush1.msra.mxu0 %v5330
    %9036 = vmatprep.mubr.f32.mxu0 %v8714
    %9037 = vmatmul.mubr.f32.gmra.mrb[0].mxu0 %v8713
    %v9038 = vpop.f32.mrb[0].mxu0
    %v9039 = vadd.f32 %v8956, %v9038
    %v9040 = vpop.f32.mrb[0].mxu0
    %v9041 = vadd.f32 %v8958, %v9040
    %9042 = vmatprep.mubr.f32.mxu0 %v8718
    %9043 = vmatmul.mubr.f32.gmra.mrb[0].mxu0 %v8717
    %v9044 = vpop.f32.mrb[0].mxu0
    %v9045 = vadd.f32 %v8962, %v9044
    %v9046 = vpop.f32.mrb[0].mxu0
    %v9047 = vadd.f32 %v8964, %v9046
    %9048 = vmatprep.mubr.f32.mxu0 %v8722
    %9049 = vmatmul.mubr.f32.gmra.mrb[0].mxu0 %v8721
    %v9050 = vpop.f32.mrb[0].mxu0
    %v9051 = vadd.f32 %v8968, %v9050
    %v9052 = vpop.f32.mrb[0].mxu0
    %v9053 = vadd.f32 %v8970, %v9052
    %9054 = vdwg.mxu0
    %v9055 = vmax.f32 %v8873, 0.0
    %v9056 = vmax.f32 %v8875, 0.0
    %v9057 = vmax.f32 %v9039, 0.0
    %v9058 = vmax.f32 %v9041, 0.0
    %v9059 = vmax.f32 %v8879, 0.0
    %v9060 = vmax.f32 %v8881, 0.0
    %v9061 = vmax.f32 %v9045, 0.0
    %v9062 = vmax.f32 %v9047, 0.0
    %v9063 = vmax.f32 %v8885, 0.0
    %v9064 = vmax.f32 %v8887, 0.0
    %v9065 = vmax.f32 %v9051, 0.0
    %v9066 = vmax.f32 %v9053, 0.0
    %v9067 = vadd.f32 %v9055, %v9059
    %v9068 = vsel %vm4031, %v9063, 0.0
    %v9069 = vadd.f32 %v9067, %v9068
    %v9070 = vrot.slane %v9069, 4
    %v9071 = vadd.f32 %v9069, %v9070
    %v9072 = vrot.slane %v9071, 2
    %v9073 = vadd.f32 %v9071, %v9072
    %v9074 = vrot.slane %v9073, 1
    %v9075 = vadd.f32 %v9073, %v9074
    %v9076 = vadd.f32 %v9056, %v9060
    %v9077 = vsel %vm4031, %v9064, 0.0
    %v9078 = vadd.f32 %v9076, %v9077
    %v9079 = vrot.slane %v9078, 4
    %v9080 = vadd.f32 %v9078, %v9079
    %v9081 = vrot.slane %v9080, 2
    %v9082 = vadd.f32 %v9080, %v9081
    %v9083 = vrot.slane %v9082, 1
    %v9084 = vadd.f32 %v9082, %v9083
    %v9085 = vadd.f32 %v9057, %v9061
    %v9086 = vsel %vm4031, %v9065, 0.0
    %v9087 = vadd.f32 %v9085, %v9086
    %v9088 = vrot.slane %v9087, 4
    %v9089 = vadd.f32 %v9087, %v9088
    %v9090 = vrot.slane %v9089, 2
    %v9091 = vadd.f32 %v9089, %v9090
    %v9092 = vrot.slane %v9091, 1
    %v9093 = vadd.f32 %v9091, %v9092
    %v9094 = vadd.f32 %v9058, %v9062
    %v9095 = vsel %vm4031, %v9066, 0.0
    %v9096 = vadd.f32 %v9094, %v9095
    %v9097 = vrot.slane %v9096, 4
    %v9098 = vadd.f32 %v9096, %v9097
    %v9099 = vrot.slane %v9098, 2
    %v9100 = vadd.f32 %v9098, %v9099
    %v9101 = vrot.slane %v9100, 1
    %v9102 = vadd.f32 %v9100, %v9101
    %v9103 = vmul.f32 %v9075, %v5734
    %v9104 = vmul.f32 %v9084, %v5734
    %v9105 = vmul.f32 %v9093, %v5734
    %v9106 = vmul.f32 %v9102, %v5734
    %v9107 = vsub.f32 %v9055, %v9103
    %v9108 = vsub.f32 %v9056, %v9104
    %v9109 = vsub.f32 %v9057, %v9105
    %v9110 = vsub.f32 %v9058, %v9106
    %v9111 = vsub.f32 %v9059, %v9103
    %v9112 = vsub.f32 %v9060, %v9104
    %v9113 = vsub.f32 %v9061, %v9105
    %v9114 = vsub.f32 %v9062, %v9106
    %v9115 = vsub.f32 %v9063, %v9103
    %v9116 = vsub.f32 %v9064, %v9104
    %v9117 = vsub.f32 %v9065, %v9105
    %v9118 = vsub.f32 %v9066, %v9106
    %v9119 = vmul.f32 %v9107, %v9107
    %v9120 = vmul.f32 %v9108, %v9108
    %v9121 = vmul.f32 %v9109, %v9109
    %v9122 = vmul.f32 %v9110, %v9110
    %v9123 = vmul.f32 %v9111, %v9111
    %v9124 = vmul.f32 %v9112, %v9112
    %v9125 = vmul.f32 %v9113, %v9113
    %v9126 = vmul.f32 %v9114, %v9114
    %v9127 = vmul.f32 %v9115, %v9115
    %v9128 = vmul.f32 %v9116, %v9116
    %v9129 = vmul.f32 %v9117, %v9117
    %v9130 = vmul.f32 %v9118, %v9118
    %v9131 = vadd.f32 %v9119, %v9123
    %v9132 = vsel %vm4031, %v9127, 0.0
    %v9133 = vadd.f32 %v9131, %v9132
    %v9134 = vrot.slane %v9133, 4
    %v9135 = vadd.f32 %v9133, %v9134
    %v9136 = vrot.slane %v9135, 2
    %v9137 = vadd.f32 %v9135, %v9136
    %v9138 = vrot.slane %v9137, 1
    %v9139 = vadd.f32 %v9137, %v9138
    %v9140 = vadd.f32 %v9120, %v9124
    %v9141 = vsel %vm4031, %v9128, 0.0
    %v9142 = vadd.f32 %v9140, %v9141
    %v9143 = vrot.slane %v9142, 4
    %v9144 = vadd.f32 %v9142, %v9143
    %v9145 = vrot.slane %v9144, 2
    %v9146 = vadd.f32 %v9144, %v9145
    %v9147 = vrot.slane %v9146, 1
    %v9148 = vadd.f32 %v9146, %v9147
    %v9149 = vadd.f32 %v9121, %v9125
    %v9150 = vsel %vm4031, %v9129, 0.0
    %v9151 = vadd.f32 %v9149, %v9150
    %v9152 = vrot.slane %v9151, 4
    %v9153 = vadd.f32 %v9151, %v9152
    %v9154 = vrot.slane %v9153, 2
    %v9155 = vadd.f32 %v9153, %v9154
    %v9156 = vrot.slane %v9155, 1
    %v9157 = vadd.f32 %v9155, %v9156
    %v9158 = vadd.f32 %v9122, %v9126
    %v9159 = vsel %vm4031, %v9130, 0.0
    %v9160 = vadd.f32 %v9158, %v9159
    %v9161 = vrot.slane %v9160, 4
    %v9162 = vadd.f32 %v9160, %v9161
    %v9163 = vrot.slane %v9162, 2
    %v9164 = vadd.f32 %v9162, %v9163
    %v9165 = vrot.slane %v9164, 1
    %v9166 = vadd.f32 %v9164, %v9165
    %v9167 = vmul.f32 %v9139, %v5799
    %v9168 = vmul.f32 %v9148, %v5799
    %v9169 = vmul.f32 %v9157, %v5799
    %v9170 = vmul.f32 %v9166, %v5799
    %v9171 = vrsqrt.pop %v9167
    %v9172 = vmul.f32 %v9167, %v9171
    %vm9173 = vcmp.eq.f32.partialorder %v9167, inf
    %v9174 = vsel %vm9173, %v9167, %v9172
    %vm9175 = vcmp.eq.f32.partialorder %v9167, 0.0
    %v9176 = vand.u32 %v9167, 2147483648
    %v9177 = vsel %vm9175, %v9176, %v9174
    %v9178 = vrsqrt.pop %v9168
    %v9179 = vmul.f32 %v9168, %v9178
    %vm9180 = vcmp.eq.f32.partialorder %v9168, inf
    %v9181 = vsel %vm9180, %v9168, %v9179
    %vm9182 = vcmp.eq.f32.partialorder %v9168, 0.0
    %v9183 = vand.u32 %v9168, 2147483648
    %v9184 = vsel %vm9182, %v9183, %v9181
    %v9185 = vrsqrt.pop %v9169
    %v9186 = vmul.f32 %v9169, %v9185
    %vm9187 = vcmp.eq.f32.partialorder %v9169, inf
    %v9188 = vsel %vm9187, %v9169, %v9186
    %vm9189 = vcmp.eq.f32.partialorder %v9169, 0.0
    %v9190 = vand.u32 %v9169, 2147483648
    %v9191 = vsel %vm9189, %v9190, %v9188
    %v9192 = vrsqrt.pop %v9170
    %v9193 = vmul.f32 %v9170, %v9192
    %vm9194 = vcmp.eq.f32.partialorder %v9170, inf
    %v9195 = vsel %vm9194, %v9170, %v9193
    %vm9196 = vcmp.eq.f32.partialorder %v9170, 0.0
    %v9197 = vand.u32 %v9170, 2147483648
    %v9198 = vsel %vm9196, %v9197, %v9195
    %v9199 = vadd.f32 %v9103, %v9177
    %v9200 = vadd.f32 %v9104, %v9184
    %v9201 = vadd.f32 %v9105, %v9191
    %v9202 = vadd.f32 %v9106, %v9198
    %vm9203 = vcmask 1040384
    %v9204 = vsel %vm9203, %v5832, %v9199
    %v9205 = vsel %vm9203, %v5833, %v9200
    %v9206 = vsel %vm9203, %v5834, %v9201
    %v9207 = vsel %vm9203, %v5835, %v9202
    %v9208 = vld [vmem:[#allocation19] sm:$0xff]
    %v9209 = vld [vmem:[#allocation19 + $0x8] sm:$0xff]
    %v9210 = vld [vmem:[#allocation19 + $0x10] sm:$0xff]
    %v9211 = vld [vmem:[#allocation19 + $0x18] sm:$0xff]
    %v9212 = vld [vmem:[#allocation19 + $0x20] sm:$0xff]
    %v9213 = vld [vmem:[#allocation19 + $0x28] sm:$0xff]
    %v9214 = vld [vmem:[#allocation19 + $0x30] sm:$0xff]
    %v9215 = vld [vmem:[#allocation19 + $0x38] sm:$0xff]
    %v9216 = vld [vmem:[#allocation19 + $0x40] sm:$0xff]
    %v9217 = vld [vmem:[#allocation19 + $0x48] sm:$0xff]
    %v9218 = vld [vmem:[#allocation19 + $0x50] sm:$0xff]
    %v9219 = vld [vmem:[#allocation19 + $0x58] sm:$0xff]
    %v9220 = vld [vmem:[#allocation19 + $0x60] sm:$0xff]
    %v9221 = vld [vmem:[#allocation19 + $0x68] sm:$0xff]
    %v9222 = vld [vmem:[#allocation19 + $0x70] sm:$0xff]
    %v9223 = vld [vmem:[#allocation19 + $0x78] sm:$0xff]
    %v9224 = vld [vmem:[#allocation19 + $0x80] sm:$0xff]
    %v9225 = vld [vmem:[#allocation19 + $0x88] sm:$0xff]
    %v9226 = vld [vmem:[#allocation19 + $0x90] sm:$0xff]
    %v9227 = vld [vmem:[#allocation19 + $0x98] sm:$0xff]
    %v9228 = vld [vmem:[#allocation19 + $0xa0] sm:$0xff]
    %v9229 = vld [vmem:[#allocation19 + $0xa8] sm:$0xff]
    %v9230 = vld [vmem:[#allocation19 + $0xb0] sm:$0xff]
    %v9231 = vld [vmem:[#allocation19 + $0xb8] sm:$0xff]
    %v9232 = vld [vmem:[#allocation19 + $0xc0] sm:$0xff]
    %v9233 = vld [vmem:[#allocation19 + $0xc8] sm:$0xff]
    %v9234 = vld [vmem:[#allocation19 + $0xd0] sm:$0xff]
    %v9235 = vld [vmem:[#allocation19 + $0xd8] sm:$0xff]
    %v9236 = vld [vmem:[#allocation19 + $0xe0] sm:$0xff]
    %v9237 = vld [vmem:[#allocation19 + $0xe8] sm:$0xff]
    %v9238 = vld [vmem:[#allocation19 + $0xf0] sm:$0xff]
    %v9239 = vld [vmem:[#allocation19 + $0xf8] sm:$0xff]
    %v9240 = vld [vmem:[#allocation19 + $0x100] sm:$0xff]
    %v9241 = vld [vmem:[#allocation19 + $0x108] sm:$0xff]
    %v9242 = vld [vmem:[#allocation19 + $0x110] sm:$0xff]
    %v9243 = vld [vmem:[#allocation19 + $0x118] sm:$0xff]
    %v9244 = vld [vmem:[#allocation19 + $0x120] sm:$0xff]
    %v9245 = vld [vmem:[#allocation19 + $0x128] sm:$0xff]
    %v9246 = vld [vmem:[#allocation19 + $0x130] sm:$0xff]
    %v9247 = vld [vmem:[#allocation19 + $0x138] sm:$0xff]
    %v9248 = vld [vmem:[#allocation19 + $0x140] sm:$0xff]
    %v9249 = vld [vmem:[#allocation19 + $0x148] sm:$0xff]
    %v9250 = vld [vmem:[#allocation19 + $0x150] sm:$0xff]
    %v9251 = vld [vmem:[#allocation19 + $0x158] sm:$0xff]
    %v9252 = vld [vmem:[#allocation19 + $0x160] sm:$0xff]
    %v9253 = vld [vmem:[#allocation19 + $0x168] sm:$0xff]
    %v9254 = vld [vmem:[#allocation19 + $0x170] sm:$0xff]
    %v9255 = vld [vmem:[#allocation19 + $0x178] sm:$0xff]
    %v9256 = vld [vmem:[#allocation19 + $0x180] sm:$0xff]
    %v9257 = vld [vmem:[#allocation19 + $0x188] sm:$0xff]
    %v9258 = vld [vmem:[#allocation19 + $0x190] sm:$0xff]
    %v9259 = vld [vmem:[#allocation19 + $0x198] sm:$0xff]
    %v9260 = vld [vmem:[#allocation19 + $0x1a0] sm:$0xff]
    %v9261 = vld [vmem:[#allocation19 + $0x1a8] sm:$0xff]
    %v9262 = vld [vmem:[#allocation19 + $0x1b0] sm:$0xff]
    %v9263 = vld [vmem:[#allocation19 + $0x1b8] sm:$0xff]
    %v9264 = vld [vmem:[#allocation19 + $0x1c0] sm:$0xff]
    %v9265 = vld [vmem:[#allocation19 + $0x1c8] sm:$0xff]
    %v9266 = vld [vmem:[#allocation19 + $0x1d0] sm:$0xff]
    %v9267 = vld [vmem:[#allocation19 + $0x1d8] sm:$0xff]
    %v9268 = vld [vmem:[#allocation19 + $0x1e0] sm:$0xff]
    %v9269 = vld [vmem:[#allocation19 + $0x1e8] sm:$0xff]
    %v9270 = vld [vmem:[#allocation19 + $0x1f0] sm:$0xff]
    %v9271 = vld [vmem:[#allocation19 + $0x1f8] sm:$0xff]
    %v9272 = vld [vmem:[#allocation19 + $0x200] sm:$0xff]
    %v9273 = vld [vmem:[#allocation19 + $0x208] sm:$0xff]
    %v9274 = vld [vmem:[#allocation19 + $0x210] sm:$0xff]
    %v9275 = vld [vmem:[#allocation19 + $0x218] sm:$0xff]
    %v9276 = vld [vmem:[#allocation19 + $0x220] sm:$0xff]
    %v9277 = vld [vmem:[#allocation19 + $0x228] sm:$0xff]
    %v9278 = vld [vmem:[#allocation19 + $0x230] sm:$0xff]
    %v9279 = vld [vmem:[#allocation19 + $0x238] sm:$0xff]
    %v9280 = vld [vmem:[#allocation19 + $0x240] sm:$0xff]
    %v9281 = vld [vmem:[#allocation19 + $0x248] sm:$0xff]
    %v9282 = vld [vmem:[#allocation19 + $0x250] sm:$0xff]
    %v9283 = vld [vmem:[#allocation19 + $0x258] sm:$0xff]
    %v9284 = vld [vmem:[#allocation19 + $0x260] sm:$0xff]
    %v9285 = vld [vmem:[#allocation19 + $0x268] sm:$0xff]
    %v9286 = vld [vmem:[#allocation19 + $0x270] sm:$0xff]
    %v9287 = vld [vmem:[#allocation19 + $0x278] sm:$0xff]
    %v9288 = vld [vmem:[#allocation19 + $0x280] sm:$0xff]
    %v9289 = vld [vmem:[#allocation19 + $0x288] sm:$0xff]
    %v9290 = vld [vmem:[#allocation19 + $0x290] sm:$0xff]
    %v9291 = vld [vmem:[#allocation19 + $0x298] sm:$0xff]
    %v9292 = vld [vmem:[#allocation19 + $0x2a0] sm:$0xff]
    %v9293 = vld [vmem:[#allocation19 + $0x2a8] sm:$0xff]
    %v9294 = vld [vmem:[#allocation19 + $0x2b0] sm:$0xff]
    %v9295 = vld [vmem:[#allocation19 + $0x2b8] sm:$0xff]
    %v9296 = vld [vmem:[#allocation19 + $0x2c0] sm:$0xff]
    %v9297 = vld [vmem:[#allocation19 + $0x2c8] sm:$0xff]
    %v9298 = vld [vmem:[#allocation19 + $0x2d0] sm:$0xff]
    %v9299 = vld [vmem:[#allocation19 + $0x2d8] sm:$0xff]
    %v9300 = vld [vmem:[#allocation19 + $0x2e0] sm:$0xff]
    %v9301 = vld [vmem:[#allocation19 + $0x2e8] sm:$0xff]
    %v9302 = vld [vmem:[#allocation19 + $0x2f0] sm:$0xff]
    %v9303 = vld [vmem:[#allocation19 + $0x2f8] sm:$0xff]
    %v9304 = vld [vmem:[#allocation19 + $0x300] sm:$0xff]
    %v9305 = vld [vmem:[#allocation19 + $0x308] sm:$0xff]
    %v9306 = vld [vmem:[#allocation19 + $0x310] sm:$0xff]
    %v9307 = vld [vmem:[#allocation19 + $0x318] sm:$0xff]
    %v9308 = vld [vmem:[#allocation19 + $0x320] sm:$0xff]
    %v9309 = vld [vmem:[#allocation19 + $0x328] sm:$0xff]
    %v9310 = vld [vmem:[#allocation19 + $0x330] sm:$0xff]
    %v9311 = vld [vmem:[#allocation19 + $0x338] sm:$0xff]
    %v9312 = vld [vmem:[#allocation19 + $0x340] sm:$0xff]
    %v9313 = vld [vmem:[#allocation19 + $0x348] sm:$0xff]
    %v9314 = vld [vmem:[#allocation19 + $0x350] sm:$0xff]
    %v9315 = vld [vmem:[#allocation19 + $0x358] sm:$0xff]
    %v9316 = vld [vmem:[#allocation19 + $0x360] sm:$0xff]
    %v9317 = vld [vmem:[#allocation19 + $0x368] sm:$0xff]
    %v9318 = vld [vmem:[#allocation19 + $0x370] sm:$0xff]
    %v9319 = vld [vmem:[#allocation19 + $0x378] sm:$0xff]
    %v9320 = vld [vmem:[#allocation19 + $0x380] sm:$0xff]
    %v9321 = vld [vmem:[#allocation19 + $0x388] sm:$0xff]
    %v9322 = vld [vmem:[#allocation19 + $0x390] sm:$0xff]
    %v9323 = vld [vmem:[#allocation19 + $0x398] sm:$0xff]
    %v9324 = vld [vmem:[#allocation19 + $0x3a0] sm:$0xff]
    %v9325 = vld [vmem:[#allocation19 + $0x3a8] sm:$0xff]
    %v9326 = vld [vmem:[#allocation19 + $0x3b0] sm:$0xff]
    %v9327 = vld [vmem:[#allocation19 + $0x3b8] sm:$0xff]
    %v9328 = vld [vmem:[#allocation19 + $0x3c0] sm:$0xff]
    %v9329 = vld [vmem:[#allocation19 + $0x3c8] sm:$0xff]
    %v9330 = vld [vmem:[#allocation19 + $0x3d0] sm:$0xff]
    %v9331 = vld [vmem:[#allocation19 + $0x3d8] sm:$0xff]
    %v9332 = vld [vmem:[#allocation19 + $0x3e0] sm:$0xff]
    %v9333 = vld [vmem:[#allocation19 + $0x3e8] sm:$0xff]
    %v9334 = vld [vmem:[#allocation19 + $0x3f0] sm:$0xff]
    %v9335 = vld [vmem:[#allocation19 + $0x3f8] sm:$0xff]
    %v9336 = vld [vmem:[#allocation19 + $0x400] sm:$0xff]
    %v9337 = vld [vmem:[#allocation19 + $0x408] sm:$0xff]
    %v9338 = vld [vmem:[#allocation19 + $0x410] sm:$0xff]
    %v9339 = vld [vmem:[#allocation19 + $0x418] sm:$0xff]
    %v9340 = vld [vmem:[#allocation19 + $0x420] sm:$0xff]
    %v9341 = vld [vmem:[#allocation19 + $0x428] sm:$0xff]
    %v9342 = vld [vmem:[#allocation19 + $0x430] sm:$0xff]
    %v9343 = vld [vmem:[#allocation19 + $0x438] sm:$0xff]
    %v9344 = vld [vmem:[#allocation19 + $0x440] sm:$0xff]
    %v9345 = vld [vmem:[#allocation19 + $0x448] sm:$0xff]
    %v9346 = vld [vmem:[#allocation19 + $0x450] sm:$0xff]
    %v9347 = vld [vmem:[#allocation19 + $0x458] sm:$0xff]
    %v9348 = vld [vmem:[#allocation19 + $0x460] sm:$0xff]
    %v9349 = vld [vmem:[#allocation19 + $0x468] sm:$0xff]
    %v9350 = vld [vmem:[#allocation19 + $0x470] sm:$0xff]
    %v9351 = vld [vmem:[#allocation19 + $0x478] sm:$0xff]
    %v9352 = vld [vmem:[#allocation19 + $0x480] sm:$0xff]
    %v9353 = vld [vmem:[#allocation19 + $0x488] sm:$0xff]
    %v9354 = vld [vmem:[#allocation19 + $0x490] sm:$0xff]
    %v9355 = vld [vmem:[#allocation19 + $0x498] sm:$0xff]
    %v9356 = vld [vmem:[#allocation19 + $0x4a0] sm:$0xff]
    %v9357 = vld [vmem:[#allocation19 + $0x4a8] sm:$0xff]
    %v9358 = vld [vmem:[#allocation19 + $0x4b0] sm:$0xff]
    %v9359 = vld [vmem:[#allocation19 + $0x4b8] sm:$0xff]
    %v9360 = vld [vmem:[#allocation19 + $0x4c0] sm:$0xff]
    %v9361 = vld [vmem:[#allocation19 + $0x4c8] sm:$0xff]
    %v9362 = vld [vmem:[#allocation19 + $0x4d0] sm:$0xff]
    %v9363 = vld [vmem:[#allocation19 + $0x4d8] sm:$0xff]
    %v9364 = vld [vmem:[#allocation19 + $0x4e0] sm:$0xff]
    %v9365 = vld [vmem:[#allocation19 + $0x4e8] sm:$0xff]
    %v9366 = vld [vmem:[#allocation19 + $0x4f0] sm:$0xff]
    %v9367 = vld [vmem:[#allocation19 + $0x4f8] sm:$0xff]
    %v9368 = vld [vmem:[#allocation19 + $0x500] sm:$0xff]
    %v9369 = vld [vmem:[#allocation19 + $0x508] sm:$0xff]
    %v9370 = vld [vmem:[#allocation19 + $0x510] sm:$0xff]
    %v9371 = vld [vmem:[#allocation19 + $0x518] sm:$0xff]
    %v9372 = vld [vmem:[#allocation19 + $0x520] sm:$0xff]
    %v9373 = vld [vmem:[#allocation19 + $0x528] sm:$0xff]
    %v9374 = vld [vmem:[#allocation19 + $0x530] sm:$0xff]
    %v9375 = vld [vmem:[#allocation19 + $0x538] sm:$0xff]
    %v9376 = vld [vmem:[#allocation19 + $0x540] sm:$0xff]
    %v9377 = vld [vmem:[#allocation19 + $0x548] sm:$0xff]
    %v9378 = vld [vmem:[#allocation19 + $0x550] sm:$0xff]
    %v9379 = vld [vmem:[#allocation19 + $0x558] sm:$0xff]
    %v9380 = vld [vmem:[#allocation19 + $0x560] sm:$0xff]
    %v9381 = vld [vmem:[#allocation19 + $0x568] sm:$0xff]
    %v9382 = vld [vmem:[#allocation19 + $0x570] sm:$0xff]
    %v9383 = vld [vmem:[#allocation19 + $0x578] sm:$0xff]
    %v9384 = vld [vmem:[#allocation19 + $0x580] sm:$0xff]
    %v9385 = vld [vmem:[#allocation19 + $0x588] sm:$0xff]
    %v9386 = vld [vmem:[#allocation19 + $0x590] sm:$0xff]
    %v9387 = vld [vmem:[#allocation19 + $0x598] sm:$0xff]
    %v9388 = vld [vmem:[#allocation19 + $0x5a0] sm:$0xff]
    %v9389 = vld [vmem:[#allocation19 + $0x5a8] sm:$0xff]
    %v9390 = vld [vmem:[#allocation19 + $0x5b0] sm:$0xff]
    %v9391 = vld [vmem:[#allocation19 + $0x5b8] sm:$0xff]
    %v9392 = vld [vmem:[#allocation19 + $0x5c0] sm:$0xff]
    %v9393 = vld [vmem:[#allocation19 + $0x5c8] sm:$0xff]
    %v9394 = vld [vmem:[#allocation19 + $0x5d0] sm:$0xff]
    %v9395 = vld [vmem:[#allocation19 + $0x5d8] sm:$0xff]
    %v9396 = vld [vmem:[#allocation19 + $0x5e0] sm:$0xff]
    %v9397 = vld [vmem:[#allocation19 + $0x5e8] sm:$0xff]
    %v9398 = vld [vmem:[#allocation19 + $0x5f0] sm:$0xff]
    %v9399 = vld [vmem:[#allocation19 + $0x5f8] sm:$0xff]
    %v9400 = vld [vmem:[#allocation19 + $0x600] sm:$0xff]
    %v9401 = vld [vmem:[#allocation19 + $0x608] sm:$0xff]
    %v9402 = vld [vmem:[#allocation19 + $0x610] sm:$0xff]
    %v9403 = vld [vmem:[#allocation19 + $0x618] sm:$0xff]
    %v9404 = vld [vmem:[#allocation19 + $0x620] sm:$0xff]
    %v9405 = vld [vmem:[#allocation19 + $0x628] sm:$0xff]
    %v9406 = vld [vmem:[#allocation19 + $0x630] sm:$0xff]
    %v9407 = vld [vmem:[#allocation19 + $0x638] sm:$0xff]
    %v9408 = vld [vmem:[#allocation19 + $0x640] sm:$0xff]
    %v9409 = vld [vmem:[#allocation19 + $0x648] sm:$0xff]
    %v9410 = vld [vmem:[#allocation19 + $0x650] sm:$0xff]
    %v9411 = vld [vmem:[#allocation19 + $0x658] sm:$0xff]
    %v9412 = vld [vmem:[#allocation19 + $0x660] sm:$0xff]
    %v9413 = vld [vmem:[#allocation19 + $0x668] sm:$0xff]
    %v9414 = vld [vmem:[#allocation19 + $0x670] sm:$0xff]
    %v9415 = vld [vmem:[#allocation19 + $0x678] sm:$0xff]
    %v9416 = vld [vmem:[#allocation19 + $0x680] sm:$0xff]
    %v9417 = vld [vmem:[#allocation19 + $0x688] sm:$0xff]
    %v9418 = vld [vmem:[#allocation19 + $0x690] sm:$0xff]
    %v9419 = vld [vmem:[#allocation19 + $0x698] sm:$0xff]
    %v9420 = vld [vmem:[#allocation19 + $0x6a0] sm:$0xff]
    %v9421 = vld [vmem:[#allocation19 + $0x6a8] sm:$0xff]
    %v9422 = vld [vmem:[#allocation19 + $0x6b0] sm:$0xff]
    %v9423 = vld [vmem:[#allocation19 + $0x6b8] sm:$0xff]
    %v9424 = vld [vmem:[#allocation19 + $0x6c0] sm:$0xff]
    %v9425 = vld [vmem:[#allocation19 + $0x6c8] sm:$0xff]
    %v9426 = vld [vmem:[#allocation19 + $0x6d0] sm:$0xff]
    %v9427 = vld [vmem:[#allocation19 + $0x6d8] sm:$0xff]
    %v9428 = vld [vmem:[#allocation19 + $0x6e0] sm:$0xff]
    %v9429 = vld [vmem:[#allocation19 + $0x6e8] sm:$0xff]
    %v9430 = vld [vmem:[#allocation19 + $0x6f0] sm:$0xff]
    %v9431 = vld [vmem:[#allocation19 + $0x6f8] sm:$0xff]
    %v9432 = vld [vmem:[#allocation19 + $0x700] sm:$0xff]
    %v9433 = vld [vmem:[#allocation19 + $0x708] sm:$0xff]
    %v9434 = vld [vmem:[#allocation19 + $0x710] sm:$0xff]
    %v9435 = vld [vmem:[#allocation19 + $0x718] sm:$0xff]
    %v9436 = vld [vmem:[#allocation19 + $0x720] sm:$0xff]
    %v9437 = vld [vmem:[#allocation19 + $0x728] sm:$0xff]
    %v9438 = vld [vmem:[#allocation19 + $0x730] sm:$0xff]
    %v9439 = vld [vmem:[#allocation19 + $0x738] sm:$0xff]
    %v9440 = vld [vmem:[#allocation19 + $0x740] sm:$0xff]
    %v9441 = vld [vmem:[#allocation19 + $0x748] sm:$0xff]
    %v9442 = vld [vmem:[#allocation19 + $0x750] sm:$0xff]
    %v9443 = vld [vmem:[#allocation19 + $0x758] sm:$0xff]
    %v9444 = vld [vmem:[#allocation19 + $0x760] sm:$0xff]
    %v9445 = vld [vmem:[#allocation19 + $0x768] sm:$0xff]
    %v9446 = vld [vmem:[#allocation19 + $0x770] sm:$0xff]
    %v9447 = vld [vmem:[#allocation19 + $0x778] sm:$0xff]
    %v9448 = vld [vmem:[#allocation19 + $0x780] sm:$0xff]
    %v9449 = vld [vmem:[#allocation19 + $0x788] sm:$0xff]
    %v9450 = vld [vmem:[#allocation19 + $0x790] sm:$0xff]
    %v9451 = vld [vmem:[#allocation19 + $0x798] sm:$0xff]
    %v9452 = vld [vmem:[#allocation19 + $0x7a0] sm:$0xff]
    %v9453 = vld [vmem:[#allocation19 + $0x7a8] sm:$0xff]
    %v9454 = vld [vmem:[#allocation19 + $0x7b0] sm:$0xff]
    %v9455 = vld [vmem:[#allocation19 + $0x7b8] sm:$0xff]
    %v9456 = vld [vmem:[#allocation19 + $0x7c0] sm:$0xff]
    %v9457 = vld [vmem:[#allocation19 + $0x7c8] sm:$0xff]
    %v9458 = vld [vmem:[#allocation19 + $0x7d0] sm:$0xff]
    %v9459 = vld [vmem:[#allocation19 + $0x7d8] sm:$0xff]
    %v9460 = vld [vmem:[#allocation19 + $0x7e0] sm:$0xff]
    %v9461 = vld [vmem:[#allocation19 + $0x7e8] sm:$0xff]
    %v9462 = vld [vmem:[#allocation19 + $0x7f0] sm:$0xff]
    %v9463 = vld [vmem:[#allocation19 + $0x7f8] sm:$0xff]
    %v9464 = vld [vmem:[#allocation20] sm:$0xf]
    %v9466 = vlaneseq
    %v9467 = vshrl.u32 %v9466, 7
    %v9468 = vsub.s32 0, %v9467
    %v9469 = vrot.slane %v9464, %v9468
    %v9470 = vlaneseq
    %v9471 = vshrl.u32 %v9470, 7
    %v9472 = vsub.s32 1, %v9471
    %v9473 = vrot.slane %v9464, %v9472
    %v9474 = vlaneseq
    %v9475 = vshrl.u32 %v9474, 7
    %v9476 = vsub.s32 2, %v9475
    %v9477 = vrot.slane %v9464, %v9476
    %v9478 = vlaneseq
    %v9479 = vshrl.u32 %v9478, 7
    %v9480 = vsub.s32 3, %v9479
    %v9481 = vrot.slane %v9464, %v9480
    %9486 = vmatprep.subr.mxu0 %v9209
    %9487 = vmatpush1.msra.mxu0 %v9208
    %9488 = vmatprep.subr.mxu0 %v9213
    %9489 = vmatpush1.msra.mxu0 %v9212
    %9490 = vmatprep.subr.mxu0 %v9217
    %9491 = vmatpush1.msra.mxu0 %v9216
    %9492 = vmatprep.subr.mxu0 %v9221
    %9493 = vmatpush1.msra.mxu0 %v9220
    %9494 = vmatprep.subr.mxu0 %v9225
    %9495 = vmatpush1.msra.mxu0 %v9224
    %9496 = vmatprep.subr.mxu0 %v9229
    %9497 = vmatpush1.msra.mxu0 %v9228
    %9498 = vmatprep.subr.mxu0 %v9233
    %9499 = vmatpush1.msra.mxu0 %v9232
    %9500 = vmatprep.subr.mxu0 %v9237
    %9501 = vmatpush1.msra.mxu0 %v9236
    %9502 = vmatprep.subr.mxu0 %v9241
    %9503 = vmatpush1.msra.mxu0 %v9240
    %9504 = vmatprep.subr.mxu0 %v9245
    %9505 = vmatpush1.msra.mxu0 %v9244
    %9506 = vmatprep.subr.mxu0 %v9249
    %9507 = vmatpush1.msra.mxu0 %v9248
    %9508 = vmatprep.subr.mxu0 %v9253
    %9509 = vmatpush1.msra.mxu0 %v9252
    %9510 = vmatprep.subr.mxu0 %v9257
    %9511 = vmatpush1.msra.mxu0 %v9256
    %9512 = vmatprep.subr.mxu0 %v9261
    %9513 = vmatpush1.msra.mxu0 %v9260
    %9514 = vmatprep.subr.mxu0 %v9265
    %9515 = vmatpush1.msra.mxu0 %v9264
    %9516 = vmatprep.subr.mxu0 %v9269
    %9517 = vmatpush1.msra.mxu0 %v9268
    %9518 = vmatprep.subr.mxu0 %v9273
    %9519 = vmatpush1.msra.mxu0 %v9272
    %9520 = vmatprep.subr.mxu0 %v9277
    %9521 = vmatpush1.msra.mxu0 %v9276
    %9522 = vmatprep.subr.mxu0 %v9281
    %9523 = vmatpush1.msra.mxu0 %v9280
    %9524 = vmatprep.subr.mxu0 %v9285
    %9525 = vmatpush1.msra.mxu0 %v9284
    %9526 = vmatprep.subr.mxu0 %v9289
    %9527 = vmatpush1.msra.mxu0 %v9288
    %9528 = vmatprep.subr.mxu0 %v9293
    %9529 = vmatpush1.msra.mxu0 %v9292
    %9530 = vmatprep.subr.mxu0 %v9297
    %9531 = vmatpush1.msra.mxu0 %v9296
    %9532 = vmatprep.subr.mxu0 %v9301
    %9533 = vmatpush1.msra.mxu0 %v9300
    %9534 = vmatprep.subr.mxu0 %v9305
    %9535 = vmatpush1.msra.mxu0 %v9304
    %9536 = vmatprep.subr.mxu0 %v9309
    %9537 = vmatpush1.msra.mxu0 %v9308
    %9538 = vmatprep.subr.mxu0 %v9313
    %9539 = vmatpush1.msra.mxu0 %v9312
    %9540 = vmatprep.subr.mxu0 %v9317
    %9541 = vmatpush1.msra.mxu0 %v9316
    %9542 = vmatprep.subr.mxu0 %v9321
    %9543 = vmatpush1.msra.mxu0 %v9320
    %9544 = vmatprep.subr.mxu0 %v9325
    %9545 = vmatpush1.msra.mxu0 %v9324
    %9546 = vmatprep.subr.mxu0 %v9329
    %9547 = vmatpush1.msra.mxu0 %v9328
    %9548 = vmatprep.subr.mxu0 %v9333
    %9549 = vmatpush1.msra.mxu0 %v9332
    %9550 = vmatprep.mubr.f32.mxu0 %v9205
    %9551 = vmatmul.mubr.f32.gmra.mrb[0].mxu0 %v9204
    %v9552 = vpop.f32.mrb[0].mxu0
    %v9553 = vadd.f32 %v9469, %v9552
    %v9554 = vpop.f32.mrb[0].mxu0
    %v9555 = vadd.f32 %v9473, %v9554
    %9556 = vdwg.mxu0
    %9557 = vmatprep.subr.mxu0 %v9337
    %9558 = vmatpush1.msra.mxu0 %v9336
    %9559 = vmatprep.subr.mxu0 %v9341
    %9560 = vmatpush1.msra.mxu0 %v9340
    %9561 = vmatprep.subr.mxu0 %v9345
    %9562 = vmatpush1.msra.mxu0 %v9344
    %9563 = vmatprep.subr.mxu0 %v9349
    %9564 = vmatpush1.msra.mxu0 %v9348
    %9565 = vmatprep.subr.mxu0 %v9353
    %9566 = vmatpush1.msra.mxu0 %v9352
    %9567 = vmatprep.subr.mxu0 %v9357
    %9568 = vmatpush1.msra.mxu0 %v9356
    %9569 = vmatprep.subr.mxu0 %v9361
    %9570 = vmatpush1.msra.mxu0 %v9360
    %9571 = vmatprep.subr.mxu0 %v9365
    %9572 = vmatpush1.msra.mxu0 %v9364
    %9573 = vmatprep.subr.mxu0 %v9369
    %9574 = vmatpush1.msra.mxu0 %v9368
    %9575 = vmatprep.subr.mxu0 %v9373
    %9576 = vmatpush1.msra.mxu0 %v9372
    %9577 = vmatprep.subr.mxu0 %v9377
    %9578 = vmatpush1.msra.mxu0 %v9376
    %9579 = vmatprep.subr.mxu0 %v9381
    %9580 = vmatpush1.msra.mxu0 %v9380
    %9581 = vmatprep.subr.mxu0 %v9385
    %9582 = vmatpush1.msra.mxu0 %v9384
    %9583 = vmatprep.subr.mxu0 %v9389
    %9584 = vmatpush1.msra.mxu0 %v9388
    %9585 = vmatprep.subr.mxu0 %v9393
    %9586 = vmatpush1.msra.mxu0 %v9392
    %9587 = vmatprep.subr.mxu0 %v9397
    %9588 = vmatpush1.msra.mxu0 %v9396
    %9589 = vmatprep.subr.mxu0 %v9401
    %9590 = vmatpush1.msra.mxu0 %v9400
    %9591 = vmatprep.subr.mxu0 %v9405
    %9592 = vmatpush1.msra.mxu0 %v9404
    %9593 = vmatprep.subr.mxu0 %v9409
    %9594 = vmatpush1.msra.mxu0 %v9408
    %9595 = vmatprep.subr.mxu0 %v9413
    %9596 = vmatpush1.msra.mxu0 %v9412
    %9597 = vmatprep.subr.mxu0 %v9417
    %9598 = vmatpush1.msra.mxu0 %v9416
    %9599 = vmatprep.subr.mxu0 %v9421
    %9600 = vmatpush1.msra.mxu0 %v9420
    %9601 = vmatprep.subr.mxu0 %v9425
    %9602 = vmatpush1.msra.mxu0 %v9424
    %9603 = vmatprep.subr.mxu0 %v9429
    %9604 = vmatpush1.msra.mxu0 %v9428
    %9605 = vmatprep.subr.mxu0 %v9433
    %9606 = vmatpush1.msra.mxu0 %v9432
    %9607 = vmatprep.subr.mxu0 %v9437
    %9608 = vmatpush1.msra.mxu0 %v9436
    %9609 = vmatprep.subr.mxu0 %v9441
    %9610 = vmatpush1.msra.mxu0 %v9440
    %9611 = vmatprep.subr.mxu0 %v9445
    %9612 = vmatpush1.msra.mxu0 %v9444
    %9613 = vmatprep.subr.mxu0 %v9449
    %9614 = vmatpush1.msra.mxu0 %v9448
    %9615 = vmatprep.subr.mxu0 %v9453
    %9616 = vmatpush1.msra.mxu0 %v9452
    %9617 = vmatprep.subr.mxu0 %v9457
    %9618 = vmatpush1.msra.mxu0 %v9456
    %9619 = vmatprep.subr.mxu0 %v9461
    %9620 = vmatpush1.msra.mxu0 %v9460
    %9621 = vmatprep.mubr.f32.mxu0 %v9207
    %9622 = vmatmul.mubr.f32.gmra.mrb[0].mxu0 %v9206
    %v9623 = vpop.f32.mrb[0].mxu0
    %v9624 = vadd.f32 %v9553, %v9623
    %v9625 = vpop.f32.mrb[0].mxu0
    %v9626 = vadd.f32 %v9555, %v9625
    %9627 = vdwg.mxu0
    %9628 = vmatprep.subr.mxu0 %v9211
    %9629 = vmatpush1.msra.mxu0 %v9210
    %9630 = vmatprep.subr.mxu0 %v9215
    %9631 = vmatpush1.msra.mxu0 %v9214
    %9632 = vmatprep.subr.mxu0 %v9219
    %9633 = vmatpush1.msra.mxu0 %v9218
    %9634 = vmatprep.subr.mxu0 %v9223
    %9635 = vmatpush1.msra.mxu0 %v9222
    %9636 = vmatprep.subr.mxu0 %v9227
    %9637 = vmatpush1.msra.mxu0 %v9226
    %9638 = vmatprep.subr.mxu0 %v9231
    %9639 = vmatpush1.msra.mxu0 %v9230
    %9640 = vmatprep.subr.mxu0 %v9235
    %9641 = vmatpush1.msra.mxu0 %v9234
    %9642 = vmatprep.subr.mxu0 %v9239
    %9643 = vmatpush1.msra.mxu0 %v9238
    %9644 = vmatprep.subr.mxu0 %v9243
    %9645 = vmatpush1.msra.mxu0 %v9242
    %9646 = vmatprep.subr.mxu0 %v9247
    %9647 = vmatpush1.msra.mxu0 %v9246
    %9648 = vmatprep.subr.mxu0 %v9251
    %9649 = vmatpush1.msra.mxu0 %v9250
    %9650 = vmatprep.subr.mxu0 %v9255
    %9651 = vmatpush1.msra.mxu0 %v9254
    %9652 = vmatprep.subr.mxu0 %v9259
    %9653 = vmatpush1.msra.mxu0 %v9258
    %9654 = vmatprep.subr.mxu0 %v9263
    %9655 = vmatpush1.msra.mxu0 %v9262
    %9656 = vmatprep.subr.mxu0 %v9267
    %9657 = vmatpush1.msra.mxu0 %v9266
    %9658 = vmatprep.subr.mxu0 %v9271
    %9659 = vmatpush1.msra.mxu0 %v9270
    %9660 = vmatprep.subr.mxu0 %v9275
    %9661 = vmatpush1.msra.mxu0 %v9274
    %9662 = vmatprep.subr.mxu0 %v9279
    %9663 = vmatpush1.msra.mxu0 %v9278
    %9664 = vmatprep.subr.mxu0 %v9283
    %9665 = vmatpush1.msra.mxu0 %v9282
    %9666 = vmatprep.subr.mxu0 %v9287
    %9667 = vmatpush1.msra.mxu0 %v9286
    %9668 = vmatprep.subr.mxu0 %v9291
    %9669 = vmatpush1.msra.mxu0 %v9290
    %9670 = vmatprep.subr.mxu0 %v9295
    %9671 = vmatpush1.msra.mxu0 %v9294
    %9672 = vmatprep.subr.mxu0 %v9299
    %9673 = vmatpush1.msra.mxu0 %v9298
    %9674 = vmatprep.subr.mxu0 %v9303
    %9675 = vmatpush1.msra.mxu0 %v9302
    %9676 = vmatprep.subr.mxu0 %v9307
    %9677 = vmatpush1.msra.mxu0 %v9306
    %9678 = vmatprep.subr.mxu0 %v9311
    %9679 = vmatpush1.msra.mxu0 %v9310
    %9680 = vmatprep.subr.mxu0 %v9315
    %9681 = vmatpush1.msra.mxu0 %v9314
    %9682 = vmatprep.subr.mxu0 %v9319
    %9683 = vmatpush1.msra.mxu0 %v9318
    %9684 = vmatprep.subr.mxu0 %v9323
    %9685 = vmatpush1.msra.mxu0 %v9322
    %9686 = vmatprep.subr.mxu0 %v9327
    %9687 = vmatpush1.msra.mxu0 %v9326
    %9688 = vmatprep.subr.mxu0 %v9331
    %9689 = vmatpush1.msra.mxu0 %v9330
    %9690 = vmatprep.subr.mxu0 %v9335
    %9691 = vmatpush1.msra.mxu0 %v9334
    %9692 = vmatprep.mubr.f32.mxu0 %v9205
    %9693 = vmatmul.mubr.f32.gmra.mrb[0].mxu0 %v9204
    %v9694 = vpop.f32.mrb[0].mxu0
    %v9695 = vadd.f32 %v9477, %v9694
    %v9696 = vpop.f32.mrb[0].mxu0
    %v9697 = vadd.f32 %v9481, %v9696
    %9698 = vdwg.mxu0
    %9699 = vmatprep.subr.mxu0 %v9339
    %9700 = vmatpush1.msra.mxu0 %v9338
    %9701 = vmatprep.subr.mxu0 %v9343
    %9702 = vmatpush1.msra.mxu0 %v9342
    %9703 = vmatprep.subr.mxu0 %v9347
    %9704 = vmatpush1.msra.mxu0 %v9346
    %9705 = vmatprep.subr.mxu0 %v9351
    %9706 = vmatpush1.msra.mxu0 %v9350
    %9707 = vmatprep.subr.mxu0 %v9355
    %9708 = vmatpush1.msra.mxu0 %v9354
    %9709 = vmatprep.subr.mxu0 %v9359
    %9710 = vmatpush1.msra.mxu0 %v9358
    %9711 = vmatprep.subr.mxu0 %v9363
    %9712 = vmatpush1.msra.mxu0 %v9362
    %9713 = vmatprep.subr.mxu0 %v9367
    %9714 = vmatpush1.msra.mxu0 %v9366
    %9715 = vmatprep.subr.mxu0 %v9371
    %9716 = vmatpush1.msra.mxu0 %v9370
    %9717 = vmatprep.subr.mxu0 %v9375
    %9718 = vmatpush1.msra.mxu0 %v9374
    %9719 = vmatprep.subr.mxu0 %v9379
    %9720 = vmatpush1.msra.mxu0 %v9378
    %9721 = vmatprep.subr.mxu0 %v9383
    %9722 = vmatpush1.msra.mxu0 %v9382
    %9723 = vmatprep.subr.mxu0 %v9387
    %9724 = vmatpush1.msra.mxu0 %v9386
    %9725 = vmatprep.subr.mxu0 %v9391
    %9726 = vmatpush1.msra.mxu0 %v9390
    %9727 = vmatprep.subr.mxu0 %v9395
    %9728 = vmatpush1.msra.mxu0 %v9394
    %9729 = vmatprep.subr.mxu0 %v9399
    %9730 = vmatpush1.msra.mxu0 %v9398
    %9731 = vmatprep.subr.mxu0 %v9403
    %9732 = vmatpush1.msra.mxu0 %v9402
    %9733 = vmatprep.subr.mxu0 %v9407
    %9734 = vmatpush1.msra.mxu0 %v9406
    %9735 = vmatprep.subr.mxu0 %v9411
    %9736 = vmatpush1.msra.mxu0 %v9410
    %9737 = vmatprep.subr.mxu0 %v9415
    %9738 = vmatpush1.msra.mxu0 %v9414
    %9739 = vmatprep.subr.mxu0 %v9419
    %9740 = vmatpush1.msra.mxu0 %v9418
    %9741 = vmatprep.subr.mxu0 %v9423
    %9742 = vmatpush1.msra.mxu0 %v9422
    %9743 = vmatprep.subr.mxu0 %v9427
    %9744 = vmatpush1.msra.mxu0 %v9426
    %9745 = vmatprep.subr.mxu0 %v9431
    %9746 = vmatpush1.msra.mxu0 %v9430
    %9747 = vmatprep.subr.mxu0 %v9435
    %9748 = vmatpush1.msra.mxu0 %v9434
    %9749 = vmatprep.subr.mxu0 %v9439
    %9750 = vmatpush1.msra.mxu0 %v9438
    %9751 = vmatprep.subr.mxu0 %v9443
    %9752 = vmatpush1.msra.mxu0 %v9442
    %9753 = vmatprep.subr.mxu0 %v9447
    %9754 = vmatpush1.msra.mxu0 %v9446
    %9755 = vmatprep.subr.mxu0 %v9451
    %9756 = vmatpush1.msra.mxu0 %v9450
    %9757 = vmatprep.subr.mxu0 %v9455
    %9758 = vmatpush1.msra.mxu0 %v9454
    %9759 = vmatprep.subr.mxu0 %v9459
    %9760 = vmatpush1.msra.mxu0 %v9458
    %9761 = vmatprep.subr.mxu0 %v9463
    %9762 = vmatpush1.msra.mxu0 %v9462
    %9763 = vmatprep.mubr.f32.mxu0 %v9207
    %9764 = vmatmul.mubr.f32.gmra.mrb[0].mxu0 %v9206
    %v9765 = vpop.f32.mrb[0].mxu0
    %v9766 = vadd.f32 %v9695, %v9765
    %v9767 = vpop.f32.mrb[0].mxu0
    %v9768 = vadd.f32 %v9697, %v9767
    %9769 = vdwg.mxu0
    %v9770 = vld [vmem:[#allocation22] sm:$0xff]
    %v9771 = vld [vmem:[#allocation22 + $0x8] sm:$0xff]
    %v9772 = vld [vmem:[#allocation22 + $0x10] sm:$0xff]
    %v9773 = vld [vmem:[#allocation22 + $0x18] sm:$0xff]
    %v9774 = vld [vmem:[#allocation22 + $0x20] sm:$0xff]
    %v9775 = vld [vmem:[#allocation22 + $0x28] sm:$0xff]
    %v9776 = vld [vmem:[#allocation22 + $0x30] sm:$0xff]
    %v9777 = vld [vmem:[#allocation22 + $0x38] sm:$0xff]
    %v9778 = vld [vmem:[#allocation22 + $0x40] sm:$0xff]
    %v9779 = vld [vmem:[#allocation22 + $0x48] sm:$0xff]
    %v9780 = vld [vmem:[#allocation22 + $0x50] sm:$0xff]
    %v9781 = vld [vmem:[#allocation22 + $0x58] sm:$0xff]
    %v9782 = vld [vmem:[#allocation22 + $0x60] sm:$0xff]
    %v9783 = vld [vmem:[#allocation22 + $0x68] sm:$0xff]
    %v9784 = vld [vmem:[#allocation22 + $0x70] sm:$0xff]
    %v9785 = vld [vmem:[#allocation22 + $0x78] sm:$0xff]
    %v9786 = vld [vmem:[#allocation22 + $0x80] sm:$0xff]
    %v9787 = vld [vmem:[#allocation22 + $0x88] sm:$0xff]
    %v9788 = vld [vmem:[#allocation22 + $0x90] sm:$0xff]
    %v9789 = vld [vmem:[#allocation22 + $0x98] sm:$0xff]
    %v9790 = vld [vmem:[#allocation22 + $0xa0] sm:$0xff]
    %v9791 = vld [vmem:[#allocation22 + $0xa8] sm:$0xff]
    %v9792 = vld [vmem:[#allocation22 + $0xb0] sm:$0xff]
    %v9793 = vld [vmem:[#allocation22 + $0xb8] sm:$0xff]
    %v9794 = vld [vmem:[#allocation22 + $0xc0] sm:$0xff]
    %v9795 = vld [vmem:[#allocation22 + $0xc8] sm:$0xff]
    %v9796 = vld [vmem:[#allocation22 + $0xd0] sm:$0xff]
    %v9797 = vld [vmem:[#allocation22 + $0xd8] sm:$0xff]
    %v9798 = vld [vmem:[#allocation22 + $0xe0] sm:$0xff]
    %v9799 = vld [vmem:[#allocation22 + $0xe8] sm:$0xff]
    %v9800 = vld [vmem:[#allocation22 + $0xf0] sm:$0xff]
    %v9801 = vld [vmem:[#allocation22 + $0xf8] sm:$0xff]
    %v9802 = vld [vmem:[#allocation22 + $0x100] sm:$0xff]
    %v9803 = vld [vmem:[#allocation22 + $0x108] sm:$0xff]
    %v9804 = vld [vmem:[#allocation22 + $0x110] sm:$0xff]
    %v9805 = vld [vmem:[#allocation22 + $0x118] sm:$0xff]
    %v9806 = vld [vmem:[#allocation22 + $0x120] sm:$0xff]
    %v9807 = vld [vmem:[#allocation22 + $0x128] sm:$0xff]
    %v9808 = vld [vmem:[#allocation22 + $0x130] sm:$0xff]
    %v9809 = vld [vmem:[#allocation22 + $0x138] sm:$0xff]
    %v9810 = vld [vmem:[#allocation22 + $0x140] sm:$0xff]
    %v9811 = vld [vmem:[#allocation22 + $0x148] sm:$0xff]
    %v9812 = vld [vmem:[#allocation22 + $0x150] sm:$0xff]
    %v9813 = vld [vmem:[#allocation22 + $0x158] sm:$0xff]
    %v9814 = vld [vmem:[#allocation22 + $0x160] sm:$0xff]
    %v9815 = vld [vmem:[#allocation22 + $0x168] sm:$0xff]
    %v9816 = vld [vmem:[#allocation22 + $0x170] sm:$0xff]
    %v9817 = vld [vmem:[#allocation22 + $0x178] sm:$0xff]
    %v9818 = vld [vmem:[#allocation22 + $0x180] sm:$0xff]
    %v9819 = vld [vmem:[#allocation22 + $0x188] sm:$0xff]
    %v9820 = vld [vmem:[#allocation22 + $0x190] sm:$0xff]
    %v9821 = vld [vmem:[#allocation22 + $0x198] sm:$0xff]
    %v9822 = vld [vmem:[#allocation22 + $0x1a0] sm:$0xff]
    %v9823 = vld [vmem:[#allocation22 + $0x1a8] sm:$0xff]
    %v9824 = vld [vmem:[#allocation22 + $0x1b0] sm:$0xff]
    %v9825 = vld [vmem:[#allocation22 + $0x1b8] sm:$0xff]
    %v9826 = vld [vmem:[#allocation22 + $0x1c0] sm:$0xff]
    %v9827 = vld [vmem:[#allocation22 + $0x1c8] sm:$0xff]
    %v9828 = vld [vmem:[#allocation22 + $0x1d0] sm:$0xff]
    %v9829 = vld [vmem:[#allocation22 + $0x1d8] sm:$0xff]
    %v9830 = vld [vmem:[#allocation22 + $0x1e0] sm:$0xff]
    %v9831 = vld [vmem:[#allocation22 + $0x1e8] sm:$0xff]
    %v9832 = vld [vmem:[#allocation22 + $0x1f0] sm:$0xff]
    %v9833 = vld [vmem:[#allocation22 + $0x1f8] sm:$0xff]
    %v9834 = vld [vmem:[#allocation22 + $0x200] sm:$0xff]
    %v9835 = vld [vmem:[#allocation22 + $0x208] sm:$0xff]
    %v9836 = vld [vmem:[#allocation22 + $0x210] sm:$0xff]
    %v9837 = vld [vmem:[#allocation22 + $0x218] sm:$0xff]
    %v9838 = vld [vmem:[#allocation22 + $0x220] sm:$0xff]
    %v9839 = vld [vmem:[#allocation22 + $0x228] sm:$0xff]
    %v9840 = vld [vmem:[#allocation22 + $0x230] sm:$0xff]
    %v9841 = vld [vmem:[#allocation22 + $0x238] sm:$0xff]
    %v9842 = vld [vmem:[#allocation22 + $0x240] sm:$0xff]
    %v9843 = vld [vmem:[#allocation22 + $0x248] sm:$0xff]
    %v9844 = vld [vmem:[#allocation22 + $0x250] sm:$0xff]
    %v9845 = vld [vmem:[#allocation22 + $0x258] sm:$0xff]
    %v9846 = vld [vmem:[#allocation22 + $0x260] sm:$0xff]
    %v9847 = vld [vmem:[#allocation22 + $0x268] sm:$0xff]
    %v9848 = vld [vmem:[#allocation22 + $0x270] sm:$0xff]
    %v9849 = vld [vmem:[#allocation22 + $0x278] sm:$0xff]
    %v9850 = vld [vmem:[#allocation22 + $0x280] sm:$0xff]
    %v9851 = vld [vmem:[#allocation22 + $0x288] sm:$0xff]
    %v9852 = vld [vmem:[#allocation22 + $0x290] sm:$0xff]
    %v9853 = vld [vmem:[#allocation22 + $0x298] sm:$0xff]
    %v9854 = vld [vmem:[#allocation22 + $0x2a0] sm:$0xff]
    %v9855 = vld [vmem:[#allocation22 + $0x2a8] sm:$0xff]
    %v9856 = vld [vmem:[#allocation22 + $0x2b0] sm:$0xff]
    %v9857 = vld [vmem:[#allocation22 + $0x2b8] sm:$0xff]
    %v9858 = vld [vmem:[#allocation22 + $0x2c0] sm:$0xff]
    %v9859 = vld [vmem:[#allocation22 + $0x2c8] sm:$0xff]
    %v9860 = vld [vmem:[#allocation22 + $0x2d0] sm:$0xff]
    %v9861 = vld [vmem:[#allocation22 + $0x2d8] sm:$0xff]
    %v9862 = vld [vmem:[#allocation22 + $0x2e0] sm:$0xff]
    %v9863 = vld [vmem:[#allocation22 + $0x2e8] sm:$0xff]
    %v9864 = vld [vmem:[#allocation22 + $0x2f0] sm:$0xff]
    %v9865 = vld [vmem:[#allocation22 + $0x2f8] sm:$0xff]
    %v9866 = vld [vmem:[#allocation22 + $0x300] sm:$0xff]
    %v9867 = vld [vmem:[#allocation22 + $0x308] sm:$0xff]
    %v9868 = vld [vmem:[#allocation22 + $0x310] sm:$0xff]
    %v9869 = vld [vmem:[#allocation22 + $0x318] sm:$0xff]
    %v9870 = vld [vmem:[#allocation22 + $0x320] sm:$0xff]
    %v9871 = vld [vmem:[#allocation22 + $0x328] sm:$0xff]
    %v9872 = vld [vmem:[#allocation22 + $0x330] sm:$0xff]
    %v9873 = vld [vmem:[#allocation22 + $0x338] sm:$0xff]
    %v9874 = vld [vmem:[#allocation22 + $0x340] sm:$0xff]
    %v9875 = vld [vmem:[#allocation22 + $0x348] sm:$0xff]
    %v9876 = vld [vmem:[#allocation22 + $0x350] sm:$0xff]
    %v9877 = vld [vmem:[#allocation22 + $0x358] sm:$0xff]
    %v9878 = vld [vmem:[#allocation22 + $0x360] sm:$0xff]
    %v9879 = vld [vmem:[#allocation22 + $0x368] sm:$0xff]
    %v9880 = vld [vmem:[#allocation22 + $0x370] sm:$0xff]
    %v9881 = vld [vmem:[#allocation22 + $0x378] sm:$0xff]
    %v9882 = vld [vmem:[#allocation22 + $0x380] sm:$0xff]
    %v9883 = vld [vmem:[#allocation22 + $0x388] sm:$0xff]
    %v9884 = vld [vmem:[#allocation22 + $0x390] sm:$0xff]
    %v9885 = vld [vmem:[#allocation22 + $0x398] sm:$0xff]
    %v9886 = vld [vmem:[#allocation22 + $0x3a0] sm:$0xff]
    %v9887 = vld [vmem:[#allocation22 + $0x3a8] sm:$0xff]
    %v9888 = vld [vmem:[#allocation22 + $0x3b0] sm:$0xff]
    %v9889 = vld [vmem:[#allocation22 + $0x3b8] sm:$0xff]
    %v9890 = vld [vmem:[#allocation22 + $0x3c0] sm:$0xff]
    %v9891 = vld [vmem:[#allocation22 + $0x3c8] sm:$0xff]
    %v9892 = vld [vmem:[#allocation22 + $0x3d0] sm:$0xff]
    %v9893 = vld [vmem:[#allocation22 + $0x3d8] sm:$0xff]
    %v9894 = vld [vmem:[#allocation22 + $0x3e0] sm:$0xff]
    %v9895 = vld [vmem:[#allocation22 + $0x3e8] sm:$0xff]
    %v9896 = vld [vmem:[#allocation22 + $0x3f0] sm:$0xff]
    %v9897 = vld [vmem:[#allocation22 + $0x3f8] sm:$0xff]
    %v9898 = vld [vmem:[#allocation22 + $0x400] sm:$0xff]
    %v9899 = vld [vmem:[#allocation22 + $0x408] sm:$0xff]
    %v9900 = vld [vmem:[#allocation22 + $0x410] sm:$0xff]
    %v9901 = vld [vmem:[#allocation22 + $0x418] sm:$0xff]
    %v9902 = vld [vmem:[#allocation22 + $0x420] sm:$0xff]
    %v9903 = vld [vmem:[#allocation22 + $0x428] sm:$0xff]
    %v9904 = vld [vmem:[#allocation22 + $0x430] sm:$0xff]
    %v9905 = vld [vmem:[#allocation22 + $0x438] sm:$0xff]
    %v9906 = vld [vmem:[#allocation22 + $0x440] sm:$0xff]
    %v9907 = vld [vmem:[#allocation22 + $0x448] sm:$0xff]
    %v9908 = vld [vmem:[#allocation22 + $0x450] sm:$0xff]
    %v9909 = vld [vmem:[#allocation22 + $0x458] sm:$0xff]
    %v9910 = vld [vmem:[#allocation22 + $0x460] sm:$0xff]
    %v9911 = vld [vmem:[#allocation22 + $0x468] sm:$0xff]
    %v9912 = vld [vmem:[#allocation22 + $0x470] sm:$0xff]
    %v9913 = vld [vmem:[#allocation22 + $0x478] sm:$0xff]
    %v9914 = vld [vmem:[#allocation22 + $0x480] sm:$0xff]
    %v9915 = vld [vmem:[#allocation22 + $0x488] sm:$0xff]
    %v9916 = vld [vmem:[#allocation22 + $0x490] sm:$0xff]
    %v9917 = vld [vmem:[#allocation22 + $0x498] sm:$0xff]
    %v9918 = vld [vmem:[#allocation22 + $0x4a0] sm:$0xff]
    %v9919 = vld [vmem:[#allocation22 + $0x4a8] sm:$0xff]
    %v9920 = vld [vmem:[#allocation22 + $0x4b0] sm:$0xff]
    %v9921 = vld [vmem:[#allocation22 + $0x4b8] sm:$0xff]
    %v9922 = vld [vmem:[#allocation22 + $0x4c0] sm:$0xff]
    %v9923 = vld [vmem:[#allocation22 + $0x4c8] sm:$0xff]
    %v9924 = vld [vmem:[#allocation22 + $0x4d0] sm:$0xff]
    %v9925 = vld [vmem:[#allocation22 + $0x4d8] sm:$0xff]
    %v9926 = vld [vmem:[#allocation22 + $0x4e0] sm:$0xff]
    %v9927 = vld [vmem:[#allocation22 + $0x4e8] sm:$0xff]
    %v9928 = vld [vmem:[#allocation22 + $0x4f0] sm:$0xff]
    %v9929 = vld [vmem:[#allocation22 + $0x4f8] sm:$0xff]
    %v9930 = vld [vmem:[#allocation22 + $0x500] sm:$0xff]
    %v9931 = vld [vmem:[#allocation22 + $0x508] sm:$0xff]
    %v9932 = vld [vmem:[#allocation22 + $0x510] sm:$0xff]
    %v9933 = vld [vmem:[#allocation22 + $0x518] sm:$0xff]
    %v9934 = vld [vmem:[#allocation22 + $0x520] sm:$0xff]
    %v9935 = vld [vmem:[#allocation22 + $0x528] sm:$0xff]
    %v9936 = vld [vmem:[#allocation22 + $0x530] sm:$0xff]
    %v9937 = vld [vmem:[#allocation22 + $0x538] sm:$0xff]
    %v9938 = vld [vmem:[#allocation22 + $0x540] sm:$0xff]
    %v9939 = vld [vmem:[#allocation22 + $0x548] sm:$0xff]
    %v9940 = vld [vmem:[#allocation22 + $0x550] sm:$0xff]
    %v9941 = vld [vmem:[#allocation22 + $0x558] sm:$0xff]
    %v9942 = vld [vmem:[#allocation22 + $0x560] sm:$0xff]
    %v9943 = vld [vmem:[#allocation22 + $0x568] sm:$0xff]
    %v9944 = vld [vmem:[#allocation22 + $0x570] sm:$0xff]
    %v9945 = vld [vmem:[#allocation22 + $0x578] sm:$0xff]
    %v9946 = vld [vmem:[#allocation22 + $0x580] sm:$0xff]
    %v9947 = vld [vmem:[#allocation22 + $0x588] sm:$0xff]
    %v9948 = vld [vmem:[#allocation22 + $0x590] sm:$0xff]
    %v9949 = vld [vmem:[#allocation22 + $0x598] sm:$0xff]
    %v9950 = vld [vmem:[#allocation22 + $0x5a0] sm:$0xff]
    %v9951 = vld [vmem:[#allocation22 + $0x5a8] sm:$0xff]
    %v9952 = vld [vmem:[#allocation22 + $0x5b0] sm:$0xff]
    %v9953 = vld [vmem:[#allocation22 + $0x5b8] sm:$0xff]
    %v9954 = vld [vmem:[#allocation22 + $0x5c0] sm:$0xff]
    %v9955 = vld [vmem:[#allocation22 + $0x5c8] sm:$0xff]
    %v9956 = vld [vmem:[#allocation22 + $0x5d0] sm:$0xff]
    %v9957 = vld [vmem:[#allocation22 + $0x5d8] sm:$0xff]
    %v9958 = vld [vmem:[#allocation22 + $0x5e0] sm:$0xff]
    %v9959 = vld [vmem:[#allocation22 + $0x5e8] sm:$0xff]
    %v9960 = vld [vmem:[#allocation22 + $0x5f0] sm:$0xff]
    %v9961 = vld [vmem:[#allocation22 + $0x5f8] sm:$0xff]
    %v9962 = vld [vmem:[#allocation22 + $0x600] sm:$0xff]
    %v9963 = vld [vmem:[#allocation22 + $0x608] sm:$0xff]
    %v9964 = vld [vmem:[#allocation22 + $0x610] sm:$0xff]
    %v9965 = vld [vmem:[#allocation22 + $0x618] sm:$0xff]
    %v9966 = vld [vmem:[#allocation22 + $0x620] sm:$0xff]
    %v9967 = vld [vmem:[#allocation22 + $0x628] sm:$0xff]
    %v9968 = vld [vmem:[#allocation22 + $0x630] sm:$0xff]
    %v9969 = vld [vmem:[#allocation22 + $0x638] sm:$0xff]
    %v9970 = vld [vmem:[#allocation22 + $0x640] sm:$0xff]
    %v9971 = vld [vmem:[#allocation22 + $0x648] sm:$0xff]
    %v9972 = vld [vmem:[#allocation22 + $0x650] sm:$0xff]
    %v9973 = vld [vmem:[#allocation22 + $0x658] sm:$0xff]
    %v9974 = vld [vmem:[#allocation22 + $0x660] sm:$0xff]
    %v9975 = vld [vmem:[#allocation22 + $0x668] sm:$0xff]
    %v9976 = vld [vmem:[#allocation22 + $0x670] sm:$0xff]
    %v9977 = vld [vmem:[#allocation22 + $0x678] sm:$0xff]
    %v9978 = vld [vmem:[#allocation22 + $0x680] sm:$0xff]
    %v9979 = vld [vmem:[#allocation22 + $0x688] sm:$0xff]
    %v9980 = vld [vmem:[#allocation22 + $0x690] sm:$0xff]
    %v9981 = vld [vmem:[#allocation22 + $0x698] sm:$0xff]
    %v9982 = vld [vmem:[#allocation22 + $0x6a0] sm:$0xff]
    %v9983 = vld [vmem:[#allocation22 + $0x6a8] sm:$0xff]
    %v9984 = vld [vmem:[#allocation22 + $0x6b0] sm:$0xff]
    %v9985 = vld [vmem:[#allocation22 + $0x6b8] sm:$0xff]
    %v9986 = vld [vmem:[#allocation22 + $0x6c0] sm:$0xff]
    %v9987 = vld [vmem:[#allocation22 + $0x6c8] sm:$0xff]
    %v9988 = vld [vmem:[#allocation22 + $0x6d0] sm:$0xff]
    %v9989 = vld [vmem:[#allocation22 + $0x6d8] sm:$0xff]
    %v9990 = vld [vmem:[#allocation22 + $0x6e0] sm:$0xff]
    %v9991 = vld [vmem:[#allocation22 + $0x6e8] sm:$0xff]
    %v9992 = vld [vmem:[#allocation22 + $0x6f0] sm:$0xff]
    %v9993 = vld [vmem:[#allocation22 + $0x6f8] sm:$0xff]
    %v9994 = vld [vmem:[#allocation22 + $0x700] sm:$0xff]
    %v9995 = vld [vmem:[#allocation22 + $0x708] sm:$0xff]
    %v9996 = vld [vmem:[#allocation22 + $0x710] sm:$0xff]
    %v9997 = vld [vmem:[#allocation22 + $0x718] sm:$0xff]
    %v9998 = vld [vmem:[#allocation22 + $0x720] sm:$0xff]
    %v9999 = vld [vmem:[#allocation22 + $0x728] sm:$0xff]
    %v10000 = vld [vmem:[#allocation22 + $0x730] sm:$0xff]
    %v10001 = vld [vmem:[#allocation22 + $0x738] sm:$0xff]
    %v10002 = vld [vmem:[#allocation22 + $0x740] sm:$0xff]
    %v10003 = vld [vmem:[#allocation22 + $0x748] sm:$0xff]
    %v10004 = vld [vmem:[#allocation22 + $0x750] sm:$0xff]
    %v10005 = vld [vmem:[#allocation22 + $0x758] sm:$0xff]
    %v10006 = vld [vmem:[#allocation22 + $0x760] sm:$0xff]
    %v10007 = vld [vmem:[#allocation22 + $0x768] sm:$0xff]
    %v10008 = vld [vmem:[#allocation22 + $0x770] sm:$0xff]
    %v10009 = vld [vmem:[#allocation22 + $0x778] sm:$0xff]
    %v10010 = vld [vmem:[#allocation22 + $0x780] sm:$0xff]
    %v10011 = vld [vmem:[#allocation22 + $0x788] sm:$0xff]
    %v10012 = vld [vmem:[#allocation22 + $0x790] sm:$0xff]
    %v10013 = vld [vmem:[#allocation22 + $0x798] sm:$0xff]
    %v10014 = vld [vmem:[#allocation22 + $0x7a0] sm:$0xff]
    %v10015 = vld [vmem:[#allocation22 + $0x7a8] sm:$0xff]
    %v10016 = vld [vmem:[#allocation22 + $0x7b0] sm:$0xff]
    %v10017 = vld [vmem:[#allocation22 + $0x7b8] sm:$0xff]
    %v10018 = vld [vmem:[#allocation22 + $0x7c0] sm:$0xff]
    %v10019 = vld [vmem:[#allocation22 + $0x7c8] sm:$0xff]
    %v10020 = vld [vmem:[#allocation22 + $0x7d0] sm:$0xff]
    %v10021 = vld [vmem:[#allocation22 + $0x7d8] sm:$0xff]
    %v10022 = vld [vmem:[#allocation22 + $0x7e0] sm:$0xff]
    %v10023 = vld [vmem:[#allocation22 + $0x7e8] sm:$0xff]
    %v10024 = vld [vmem:[#allocation22 + $0x7f0] sm:$0xff]
    %v10025 = vld [vmem:[#allocation22 + $0x7f8] sm:$0xff]
    %v10026 = vld [vmem:[#allocation23] sm:$0xf]
    %v10028 = vlaneseq
    %v10029 = vshrl.u32 %v10028, 7
    %v10030 = vsub.s32 0, %v10029
    %v10031 = vrot.slane %v10026, %v10030
    %v10032 = vlaneseq
    %v10033 = vshrl.u32 %v10032, 7
    %v10034 = vsub.s32 1, %v10033
    %v10035 = vrot.slane %v10026, %v10034
    %v10036 = vlaneseq
    %v10037 = vshrl.u32 %v10036, 7
    %v10038 = vsub.s32 2, %v10037
    %v10039 = vrot.slane %v10026, %v10038
    %v10040 = vlaneseq
    %v10041 = vshrl.u32 %v10040, 7
    %v10042 = vsub.s32 3, %v10041
    %v10043 = vrot.slane %v10026, %v10042
    %10048 = vmatprep.subr.mxu0 %v9771
    %10049 = vmatpush1.msra.mxu0 %v9770
    %10050 = vmatprep.subr.mxu0 %v9775
    %10051 = vmatpush1.msra.mxu0 %v9774
    %10052 = vmatprep.subr.mxu0 %v9779
    %10053 = vmatpush1.msra.mxu0 %v9778
    %10054 = vmatprep.subr.mxu0 %v9783
    %10055 = vmatpush1.msra.mxu0 %v9782
    %10056 = vmatprep.subr.mxu0 %v9787
    %10057 = vmatpush1.msra.mxu0 %v9786
    %10058 = vmatprep.subr.mxu0 %v9791
    %10059 = vmatpush1.msra.mxu0 %v9790
    %10060 = vmatprep.subr.mxu0 %v9795
    %10061 = vmatpush1.msra.mxu0 %v9794
    %10062 = vmatprep.subr.mxu0 %v9799
    %10063 = vmatpush1.msra.mxu0 %v9798
    %10064 = vmatprep.subr.mxu0 %v9803
    %10065 = vmatpush1.msra.mxu0 %v9802
    %10066 = vmatprep.subr.mxu0 %v9807
    %10067 = vmatpush1.msra.mxu0 %v9806
    %10068 = vmatprep.subr.mxu0 %v9811
    %10069 = vmatpush1.msra.mxu0 %v9810
    %10070 = vmatprep.subr.mxu0 %v9815
    %10071 = vmatpush1.msra.mxu0 %v9814
    %10072 = vmatprep.subr.mxu0 %v9819
    %10073 = vmatpush1.msra.mxu0 %v9818
    %10074 = vmatprep.subr.mxu0 %v9823
    %10075 = vmatpush1.msra.mxu0 %v9822
    %10076 = vmatprep.subr.mxu0 %v9827
    %10077 = vmatpush1.msra.mxu0 %v9826
    %10078 = vmatprep.subr.mxu0 %v9831
    %10079 = vmatpush1.msra.mxu0 %v9830
    %10080 = vmatprep.subr.mxu0 %v9835
    %10081 = vmatpush1.msra.mxu0 %v9834
    %10082 = vmatprep.subr.mxu0 %v9839
    %10083 = vmatpush1.msra.mxu0 %v9838
    %10084 = vmatprep.subr.mxu0 %v9843
    %10085 = vmatpush1.msra.mxu0 %v9842
    %10086 = vmatprep.subr.mxu0 %v9847
    %10087 = vmatpush1.msra.mxu0 %v9846
    %10088 = vmatprep.subr.mxu0 %v9851
    %10089 = vmatpush1.msra.mxu0 %v9850
    %10090 = vmatprep.subr.mxu0 %v9855
    %10091 = vmatpush1.msra.mxu0 %v9854
    %10092 = vmatprep.subr.mxu0 %v9859
    %10093 = vmatpush1.msra.mxu0 %v9858
    %10094 = vmatprep.subr.mxu0 %v9863
    %10095 = vmatpush1.msra.mxu0 %v9862
    %10096 = vmatprep.subr.mxu0 %v9867
    %10097 = vmatpush1.msra.mxu0 %v9866
    %10098 = vmatprep.subr.mxu0 %v9871
    %10099 = vmatpush1.msra.mxu0 %v9870
    %10100 = vmatprep.subr.mxu0 %v9875
    %10101 = vmatpush1.msra.mxu0 %v9874
    %10102 = vmatprep.subr.mxu0 %v9879
    %10103 = vmatpush1.msra.mxu0 %v9878
    %10104 = vmatprep.subr.mxu0 %v9883
    %10105 = vmatpush1.msra.mxu0 %v9882
    %10106 = vmatprep.subr.mxu0 %v9887
    %10107 = vmatpush1.msra.mxu0 %v9886
    %10108 = vmatprep.subr.mxu0 %v9891
    %10109 = vmatpush1.msra.mxu0 %v9890
    %10110 = vmatprep.subr.mxu0 %v9895
    %10111 = vmatpush1.msra.mxu0 %v9894
    %10112 = vmatprep.mubr.f32.mxu0 %v9626
    %10113 = vmatmul.mubr.f32.gmra.mrb[0].mxu0 %v9624
    %v10114 = vpop.f32.mrb[0].mxu0
    %v10115 = vadd.f32 %v10031, %v10114
    %v10116 = vpop.f32.mrb[0].mxu0
    %v10117 = vadd.f32 %v10035, %v10116
    %10118 = vdwg.mxu0
    %10119 = vmatprep.subr.mxu0 %v9899
    %10120 = vmatpush1.msra.mxu0 %v9898
    %10121 = vmatprep.subr.mxu0 %v9903
    %10122 = vmatpush1.msra.mxu0 %v9902
    %10123 = vmatprep.subr.mxu0 %v9907
    %10124 = vmatpush1.msra.mxu0 %v9906
    %10125 = vmatprep.subr.mxu0 %v9911
    %10126 = vmatpush1.msra.mxu0 %v9910
    %10127 = vmatprep.subr.mxu0 %v9915
    %10128 = vmatpush1.msra.mxu0 %v9914
    %10129 = vmatprep.subr.mxu0 %v9919
    %10130 = vmatpush1.msra.mxu0 %v9918
    %10131 = vmatprep.subr.mxu0 %v9923
    %10132 = vmatpush1.msra.mxu0 %v9922
    %10133 = vmatprep.subr.mxu0 %v9927
    %10134 = vmatpush1.msra.mxu0 %v9926
    %10135 = vmatprep.subr.mxu0 %v9931
    %10136 = vmatpush1.msra.mxu0 %v9930
    %10137 = vmatprep.subr.mxu0 %v9935
    %10138 = vmatpush1.msra.mxu0 %v9934
    %10139 = vmatprep.subr.mxu0 %v9939
    %10140 = vmatpush1.msra.mxu0 %v9938
    %10141 = vmatprep.subr.mxu0 %v9943
    %10142 = vmatpush1.msra.mxu0 %v9942
    %10143 = vmatprep.subr.mxu0 %v9947
    %10144 = vmatpush1.msra.mxu0 %v9946
    %10145 = vmatprep.subr.mxu0 %v9951
    %10146 = vmatpush1.msra.mxu0 %v9950
    %10147 = vmatprep.subr.mxu0 %v9955
    %10148 = vmatpush1.msra.mxu0 %v9954
    %10149 = vmatprep.subr.mxu0 %v9959
    %10150 = vmatpush1.msra.mxu0 %v9958
    %10151 = vmatprep.subr.mxu0 %v9963
    %10152 = vmatpush1.msra.mxu0 %v9962
    %10153 = vmatprep.subr.mxu0 %v9967
    %10154 = vmatpush1.msra.mxu0 %v9966
    %10155 = vmatprep.subr.mxu0 %v9971
    %10156 = vmatpush1.msra.mxu0 %v9970
    %10157 = vmatprep.subr.mxu0 %v9975
    %10158 = vmatpush1.msra.mxu0 %v9974
    %10159 = vmatprep.subr.mxu0 %v9979
    %10160 = vmatpush1.msra.mxu0 %v9978
    %10161 = vmatprep.subr.mxu0 %v9983
    %10162 = vmatpush1.msra.mxu0 %v9982
    %10163 = vmatprep.subr.mxu0 %v9987
    %10164 = vmatpush1.msra.mxu0 %v9986
    %10165 = vmatprep.subr.mxu0 %v9991
    %10166 = vmatpush1.msra.mxu0 %v9990
    %10167 = vmatprep.subr.mxu0 %v9995
    %10168 = vmatpush1.msra.mxu0 %v9994
    %10169 = vmatprep.subr.mxu0 %v9999
    %10170 = vmatpush1.msra.mxu0 %v9998
    %10171 = vmatprep.subr.mxu0 %v10003
    %10172 = vmatpush1.msra.mxu0 %v10002
    %10173 = vmatprep.subr.mxu0 %v10007
    %10174 = vmatpush1.msra.mxu0 %v10006
    %10175 = vmatprep.subr.mxu0 %v10011
    %10176 = vmatpush1.msra.mxu0 %v10010
    %10177 = vmatprep.subr.mxu0 %v10015
    %10178 = vmatpush1.msra.mxu0 %v10014
    %10179 = vmatprep.subr.mxu0 %v10019
    %10180 = vmatpush1.msra.mxu0 %v10018
    %10181 = vmatprep.subr.mxu0 %v10023
    %10182 = vmatpush1.msra.mxu0 %v10022
    %10183 = vmatprep.mubr.f32.mxu0 %v9768
    %10184 = vmatmul.mubr.f32.gmra.mrb[0].mxu0 %v9766
    %v10185 = vpop.f32.mrb[0].mxu0
    %v10186 = vadd.f32 %v10115, %v10185
    %v10187 = vpop.f32.mrb[0].mxu0
    %v10188 = vadd.f32 %v10117, %v10187
    %10189 = vdwg.mxu0
    %10190 = vmatprep.subr.mxu0 %v9773
    %10191 = vmatpush1.msra.mxu0 %v9772
    %10192 = vmatprep.subr.mxu0 %v9777
    %10193 = vmatpush1.msra.mxu0 %v9776
    %10194 = vmatprep.subr.mxu0 %v9781
    %10195 = vmatpush1.msra.mxu0 %v9780
    %10196 = vmatprep.subr.mxu0 %v9785
    %10197 = vmatpush1.msra.mxu0 %v9784
    %10198 = vmatprep.subr.mxu0 %v9789
    %10199 = vmatpush1.msra.mxu0 %v9788
    %10200 = vmatprep.subr.mxu0 %v9793
    %10201 = vmatpush1.msra.mxu0 %v9792
    %10202 = vmatprep.subr.mxu0 %v9797
    %10203 = vmatpush1.msra.mxu0 %v9796
    %10204 = vmatprep.subr.mxu0 %v9801
    %10205 = vmatpush1.msra.mxu0 %v9800
    %10206 = vmatprep.subr.mxu0 %v9805
    %10207 = vmatpush1.msra.mxu0 %v9804
    %10208 = vmatprep.subr.mxu0 %v9809
    %10209 = vmatpush1.msra.mxu0 %v9808
    %10210 = vmatprep.subr.mxu0 %v9813
    %10211 = vmatpush1.msra.mxu0 %v9812
    %10212 = vmatprep.subr.mxu0 %v9817
    %10213 = vmatpush1.msra.mxu0 %v9816
    %10214 = vmatprep.subr.mxu0 %v9821
    %10215 = vmatpush1.msra.mxu0 %v9820
    %10216 = vmatprep.subr.mxu0 %v9825
    %10217 = vmatpush1.msra.mxu0 %v9824
    %10218 = vmatprep.subr.mxu0 %v9829
    %10219 = vmatpush1.msra.mxu0 %v9828
    %10220 = vmatprep.subr.mxu0 %v9833
    %10221 = vmatpush1.msra.mxu0 %v9832
    %10222 = vmatprep.subr.mxu0 %v9837
    %10223 = vmatpush1.msra.mxu0 %v9836
    %10224 = vmatprep.subr.mxu0 %v9841
    %10225 = vmatpush1.msra.mxu0 %v9840
    %10226 = vmatprep.subr.mxu0 %v9845
    %10227 = vmatpush1.msra.mxu0 %v9844
    %10228 = vmatprep.subr.mxu0 %v9849
    %10229 = vmatpush1.msra.mxu0 %v9848
    %10230 = vmatprep.subr.mxu0 %v9853
    %10231 = vmatpush1.msra.mxu0 %v9852
    %10232 = vmatprep.subr.mxu0 %v9857
    %10233 = vmatpush1.msra.mxu0 %v9856
    %10234 = vmatprep.subr.mxu0 %v9861
    %10235 = vmatpush1.msra.mxu0 %v9860
    %10236 = vmatprep.subr.mxu0 %v9865
    %10237 = vmatpush1.msra.mxu0 %v9864
    %10238 = vmatprep.subr.mxu0 %v9869
    %10239 = vmatpush1.msra.mxu0 %v9868
    %10240 = vmatprep.subr.mxu0 %v9873
    %10241 = vmatpush1.msra.mxu0 %v9872
    %10242 = vmatprep.subr.mxu0 %v9877
    %10243 = vmatpush1.msra.mxu0 %v9876
    %10244 = vmatprep.subr.mxu0 %v9881
    %10245 = vmatpush1.msra.mxu0 %v9880
    %10246 = vmatprep.subr.mxu0 %v9885
    %10247 = vmatpush1.msra.mxu0 %v9884
    %10248 = vmatprep.subr.mxu0 %v9889
    %10249 = vmatpush1.msra.mxu0 %v9888
    %10250 = vmatprep.subr.mxu0 %v9893
    %10251 = vmatpush1.msra.mxu0 %v9892
    %10252 = vmatprep.subr.mxu0 %v9897
    %10253 = vmatpush1.msra.mxu0 %v9896
    %10254 = vmatprep.mubr.f32.mxu0 %v9626
    %10255 = vmatmul.mubr.f32.gmra.mrb[0].mxu0 %v9624
    %v10256 = vpop.f32.mrb[0].mxu0
    %v10257 = vadd.f32 %v10039, %v10256
    %v10258 = vpop.f32.mrb[0].mxu0
    %v10259 = vadd.f32 %v10043, %v10258
    %10260 = vdwg.mxu0
    %10261 = vmatprep.subr.mxu0 %v9901
    %10262 = vmatpush1.msra.mxu0 %v9900
    %10263 = vmatprep.subr.mxu0 %v9905
    %10264 = vmatpush1.msra.mxu0 %v9904
    %10265 = vmatprep.subr.mxu0 %v9909
    %10266 = vmatpush1.msra.mxu0 %v9908
    %10267 = vmatprep.subr.mxu0 %v9913
    %10268 = vmatpush1.msra.mxu0 %v9912
    %10269 = vmatprep.subr.mxu0 %v9917
    %10270 = vmatpush1.msra.mxu0 %v9916
    %10271 = vmatprep.subr.mxu0 %v9921
    %10272 = vmatpush1.msra.mxu0 %v9920
    %10273 = vmatprep.subr.mxu0 %v9925
    %10274 = vmatpush1.msra.mxu0 %v9924
    %10275 = vmatprep.subr.mxu0 %v9929
    %10276 = vmatpush1.msra.mxu0 %v9928
    %10277 = vmatprep.subr.mxu0 %v9933
    %10278 = vmatpush1.msra.mxu0 %v9932
    %10279 = vmatprep.subr.mxu0 %v9937
    %10280 = vmatpush1.msra.mxu0 %v9936
    %10281 = vmatprep.subr.mxu0 %v9941
    %10282 = vmatpush1.msra.mxu0 %v9940
    %10283 = vmatprep.subr.mxu0 %v9945
    %10284 = vmatpush1.msra.mxu0 %v9944
    %10285 = vmatprep.subr.mxu0 %v9949
    %10286 = vmatpush1.msra.mxu0 %v9948
    %10287 = vmatprep.subr.mxu0 %v9953
    %10288 = vmatpush1.msra.mxu0 %v9952
    %10289 = vmatprep.subr.mxu0 %v9957
    %10290 = vmatpush1.msra.mxu0 %v9956
    %10291 = vmatprep.subr.mxu0 %v9961
    %10292 = vmatpush1.msra.mxu0 %v9960
    %10293 = vmatprep.subr.mxu0 %v9965
    %10294 = vmatpush1.msra.mxu0 %v9964
    %10295 = vmatprep.subr.mxu0 %v9969
    %10296 = vmatpush1.msra.mxu0 %v9968
    %10297 = vmatprep.subr.mxu0 %v9973
    %10298 = vmatpush1.msra.mxu0 %v9972
    %10299 = vmatprep.subr.mxu0 %v9977
    %10300 = vmatpush1.msra.mxu0 %v9976
    %10301 = vmatprep.subr.mxu0 %v9981
    %10302 = vmatpush1.msra.mxu0 %v9980
    %10303 = vmatprep.subr.mxu0 %v9985
    %10304 = vmatpush1.msra.mxu0 %v9984
    %10305 = vmatprep.subr.mxu0 %v9989
    %10306 = vmatpush1.msra.mxu0 %v9988
    %10307 = vmatprep.subr.mxu0 %v9993
    %10308 = vmatpush1.msra.mxu0 %v9992
    %10309 = vmatprep.subr.mxu0 %v9997
    %10310 = vmatpush1.msra.mxu0 %v9996
    %10311 = vmatprep.subr.mxu0 %v10001
    %10312 = vmatpush1.msra.mxu0 %v10000
    %10313 = vmatprep.subr.mxu0 %v10005
    %10314 = vmatpush1.msra.mxu0 %v10004
    %10315 = vmatprep.subr.mxu0 %v10009
    %10316 = vmatpush1.msra.mxu0 %v10008
    %10317 = vmatprep.subr.mxu0 %v10013
    %10318 = vmatpush1.msra.mxu0 %v10012
    %10319 = vmatprep.subr.mxu0 %v10017
    %10320 = vmatpush1.msra.mxu0 %v10016
    %10321 = vmatprep.subr.mxu0 %v10021
    %10322 = vmatpush1.msra.mxu0 %v10020
    %10323 = vmatprep.subr.mxu0 %v10025
    %10324 = vmatpush1.msra.mxu0 %v10024
    %10325 = vmatprep.mubr.f32.mxu0 %v9768
    %10326 = vmatmul.mubr.f32.gmra.mrb[0].mxu0 %v9766
    %v10327 = vpop.f32.mrb[0].mxu0
    %v10328 = vadd.f32 %v10257, %v10327
    %v10329 = vpop.f32.mrb[0].mxu0
    %v10330 = vadd.f32 %v10259, %v10329
    %10331 = vdwg.mxu0
    %v10332 = vsel %vm4031, %v10186, -inf
    %v10333 = vsel %vm4031, %v10188, -inf
    %v10334 = vsel %vm4031, %v10328, -inf
    %v10335 = vsel %vm4031, %v10330, -inf
    %v10336 = vmax.f32 %v10332, %v10333
    %v10337 = vmax.f32 %v10334, %v10335
    %v10338 = vmax.f32 %v10336, %v10337
    %10339 = vmax.xlane.f32.xlu0 %v10338
    %v10340 = vpop.xlane.xlu0 %10339
    %v10341 = vsub.f32 %v10186, %v10340
    %v10342 = vsub.f32 %v10188, %v10340
    %v10343 = vsub.f32 %v10328, %v10340
    %v10344 = vsub.f32 %v10330, %v10340
    %v10345 = vmul.f32 %v10341, 1.442695
    %v10346 = vpow.pop %v10345
    %v10347 = vmul.f32 %v10342, 1.442695
    %v10348 = vpow.pop %v10347
    %v10349 = vmul.f32 %v10343, 1.442695
    %v10350 = vpow.pop %v10349
    %v10351 = vmul.f32 %v10344, 1.442695
    %v10352 = vpow.pop %v10351
    %v10353 = vsel %vm4031, %v10346, 0.0
    %v10354 = vsel %vm4031, %v10348, 0.0
    %v10355 = vadd.f32 %v10353, %v10354
    %v10356 = vsel %vm4031, %v10350, 0.0
    %v10357 = vadd.f32 %v10355, %v10356
    %v10358 = vsel %vm4031, %v10352, 0.0
    %v10359 = vadd.f32 %v10357, %v10358
    %10360 = vadd.xlane.f32.xlu0 %v10359
    %v10361 = vpop.xlane.xlu0 %10360
    %v10362 = vrcp.pop %v10361
    %v10363 = vmul.f32 %v10346, %v10362
    %v10364 = vmul.f32 %v10348, %v10362
    %v10365 = vmul.f32 %v10350, %v10362
    %v10366 = vmul.f32 %v10352, %v10362
    %v10371 = vcombine.low %v10363, %v10364
    %v10372 = vcombine.low %v10365, %v10366
    %v10374 = vunpack.c.l.s4 1983009808
    %v10375 = vunpack.c.0.s8 %v10374
    %v10376 = vlaneseq
    %v10377 = vshrl.u32 %v10376, 7
    %v10378 = vsub.s32 %v10375, %v10377
    %v10379 = vrot.slane %v10371, %v10378
    %v10381 = vunpack.c.l.s4 1983009808
    %v10382 = vunpack.c.0.s8 %v10381
    %v10383 = vlaneseq
    %v10384 = vshrl.u32 %v10383, 7
    %v10385 = vsub.s32 %v10382, %v10384
    %v10386 = vrot.slane %v10372, %v10385
    %v10387 = vcombine.low %v10379, %v10386
    %10389 = vst [vmem:[#allocation25] sm:$0xff] %v10387
    // Predicated region
    $region118: #{my_model.1} parent=1 // pred_check
      _
    $region119: #{my_model.1} parent=1 // pred_check_branch
      %10391 = sbr.rel (0) target = $region121
    $region120: #{my_model.1} parent=1 // pred_region
      %s10393 = ssub.s32 128, 128
      %10394 = vsyncadd [#allocation4], %s10393
      %s10396 = sshll.u32 [#allocation25], 4
      %s10397 = int_to_ptr.vmem [resolvable:$true] %s10396
      %10399 = dma.vmem_to_hbm [thread:$0]  %s10397, 128, %s15, [#allocation4]
    $region121: #{my_model.1} parent=1 // pred_fallthru
      _
    // Predicated region
    $region122: #{my_model.1} parent=1 // pred_check
      _
    $region123: #{my_model.1} parent=1 // pred_check_branch
      %10401 = sbr.rel (0) target = $region125
    $region124: #{my_model.1} parent=1 // pred_region
      %10402 = dma.done [#allocation4], 128
    $region125: #{my_model.1} parent=1 // pred_fallthru
      _
    %10403 = vsyncpa [#allocation3], 1
    %10404 = vsyncpa [#allocation6], 1
    %10405 = vsyncpa [#allocation9], 1
    %10406 = vsyncpa [#allocation12], 1
    %10407 = vsyncpa [#allocation15], 1
    %10408 = vsyncpa [#allocation18], 1
    %10409 = vsyncpa [#allocation21], 1
    %10410 = vsyncpa [#allocation24], 1
    %10411 = vsyncpa [#allocation4], 1

</llo_original>
